<compile_context>
chip_gen: v7x
topology: tpu7x:2x2x1
jax: 0.10.0
libtpu: 0.0.40
codegen_flags: <defaults>
</compile_context>

<pallas_src>
import functools

import jax
import jax.numpy as jnp
from jax.experimental import pallas as pl
from jax.experimental.pallas import tpu as pltpu

BN_EPS = 0.8          # nn.BatchNorm2d(out_channels, 0.8) -> eps = 0.8
LEAKY_SLOPE = 0.2     # nn.LeakyReLU(0.2)
DROP_P = 0.5          # nn.Dropout2d(0.5)


def _round_up(x, m):
    return (x + m - 1) // m * m


def _vmem_limit_bytes():
    """~3/4 of physical VMEM: ~96 MiB on v5e/v6e (128 MiB), ~48 MiB on v7x (64 MiB/TC)."""
    try:
        cap = int(pltpu.get_tpu_info().vmem_capacity_bytes)
    except Exception:
        cap = 64 * 1024 * 1024
    return int(min(cap * 3 // 4, 96 * 1024 * 1024))


# --------------------------------------------------------------------------- #
# Shared conv body: 9 accumulate-matmuls over static row-slices of the
# flattened, padded per-sample activation block.
#
# Flat input row j = y*(W+2) + x of the (H+4, W+2)-padded sample.
# Extended output row m = r*(W+2) + x' (r in [0,H), x' in [0,W+2)); valid
# outputs are x' in [1, W].  Tap (dy, dx) reads j = m + (dy+1)*(W+2) + dx - 1,
# i.e. a contiguous slice of length MP starting at a static per-tap offset.
# --------------------------------------------------------------------------- #
def _conv_taps(x_ref, w_ref, *, cin, w2, mp):
    acc = None
    for dy in range(3):
        for dx in range(3):
            start = (dy + 1) * w2 + dx - 1               # static per-tap offset
            tap = 3 * dy + dx
            lhs = x_ref[pl.ds(start, mp), :]             # (MP, Cin) bf16
            rhs = w_ref[pl.ds(tap * cin, cin), :]        # (Cin, Cp) bf16
            part = jnp.dot(lhs, rhs, preferred_element_type=jnp.float32)
            acc = part if acc is None else acc + part
    return acc                                           # (MP, Cp) f32


# --------------------------------------------------------------------------- #
# Phase 1: conv + per-sample channel sum / sumsq partials (no conv intermediate).
# --------------------------------------------------------------------------- #
def _conv_stats_kernel(x_ref, w_ref, mask_ref, sum_ref, sumsq_ref, *, cin, w2, mp):
    acc = _conv_taps(x_ref, w_ref, cin=cin, w2=w2, mp=mp)
    accm = acc * mask_ref[...]                           # zero junk rows for stats
    sum_ref[...] = jnp.broadcast_to(
        jnp.sum(accm, axis=0, keepdims=True), sum_ref.shape)
    sumsq_ref[...] = jnp.broadcast_to(
        jnp.sum(accm * accm, axis=0, keepdims=True), sumsq_ref.shape)


# --------------------------------------------------------------------------- #
# Phase 2: recompute conv, fused per-sample affine (BN * dropout) + LeakyReLU.
# --------------------------------------------------------------------------- #
def _conv_bn_act_kernel(x_ref, w_ref, scale_ref, shift_ref, o_ref, *, cin, w2, mp):
    acc = _conv_taps(x_ref, w_ref, cin=cin, w2=w2, mp=mp)
    y = acc * scale_ref[0:1, :] + shift_ref[0:1, :]
    o_ref[...] = jnp.where(y > 0, y, LEAKY_SLOPE * y)


def midlayer_forward(x_nchw, w_oihw, bias, gamma, beta, drop_key,
                     *, training_dropout=True):
    """Forward pass of MidLayer(in_c, out_c, normalize=True, dropout=True), training.
    x_nchw: (N, Cin, H, W) f32.  Returns (out_nchw (N,Cout,H,W), dropout_mask (N,Cout))."""
    del bias  # exactly cancelled by the BatchNorm mean subtraction (normalize=True)

    n, cin, h, w = x_nchw.shape
    cout = w_oihw.shape[0]
    w2 = w + 2
    cp = _round_up(cout, 128)                       # lane-dense padded channel dim
    mp = _round_up(h * w2, 8)                       # extended-output rows / sample
    sin = _round_up(max((h + 4) * w2, 3 * w2 + 1 + mp), 16)   # input rows / sample

    # --- glue: NCHW -> NHWC bf16, pad H by 2 (halo + OOB guard), W by 1, flatten ---
    x_nhwc = jnp.transpose(x_nchw, (0, 2, 3, 1)).astype(jnp.bfloat16)
    xp = jnp.pad(x_nhwc, ((0, 0), (2, 2), (1, 1), (0, 0)))    # (N, H+4, W+2, Cin)
    x_flat = xp.reshape(n, (h + 4) * w2, cin)
    x_flat = jnp.pad(x_flat, ((0, 0), (0, sin - (h + 4) * w2), (0, 0)))
    x_flat = x_flat.reshape(n * sin, cin)                     # (N*SIN, Cin) bf16

    # conv weight (Cout, Cin, 3, 3) -> (9*Cin, Cp), tap-major / channel-minor
    w_fold = jnp.transpose(w_oihw, (2, 3, 1, 0)).reshape(9 * cin, cout)
    w_fold = jnp.pad(w_fold, ((0, 0), (0, cp - cout))).astype(jnp.bfloat16)

    # Validity mask over extended-output rows (built once in XLA, passed in):
    # column x' in [1, W] and row index < H*(W+2).
    ridx = jnp.arange(mp)
    colx = ridx % w2
    row_mask = (((colx >= 1) & (colx <= w) & (ridx < h * w2))
                .astype(jnp.float32).reshape(mp, 1))

    vmem_limit = _vmem_limit_bytes()

    # ---------------- phase 1: conv + per-sample channel statistics ---------------- #
    psum, psumsq = pl.pallas_call(
        functools.partial(_conv_stats_kernel, cin=cin, w2=w2, mp=mp),
        grid=(n,),
        in_specs=[
            pl.BlockSpec((sin, cin), lambda i: (i, 0)),
            pl.BlockSpec((9 * cin, cp), lambda i: (0, 0)),
            pl.BlockSpec((mp, 1), lambda i: (0, 0)),
        ],
        out_specs=[
            pl.BlockSpec((8, cp), lambda i: (i, 0)),
            pl.BlockSpec((8, cp), lambda i: (i, 0)),
        ],
        out_shape=[
            jax.ShapeDtypeStruct((8 * n, cp), jnp.float32),
            jax.ShapeDtypeStruct((8 * n, cp), jnp.float32),
        ],
        compiler_params=pltpu.CompilerParams(
            dimension_semantics=("parallel",), vmem_limit_bytes=vmem_limit),
    )(x_flat, w_fold, row_mask)

    # ---------------- tiny per-channel finalize (plain JAX) ---------------- #
    m_valid = n * h * w
    ch_sum = psum.reshape(n, 8, cp)[:, 0, :].sum(axis=0)            # (Cp,)
    ch_sumsq = psumsq.reshape(n, 8, cp)[:, 0, :].sum(axis=0)
    mean = ch_sum / m_valid
    var = jnp.maximum(ch_sumsq / m_valid - mean * mean, 0.0)        # biased variance
    gamma_p = jnp.pad(gamma.astype(jnp.float32), (0, cp - cout))
    beta_p = jnp.pad(beta.astype(jnp.float32), (0, cp - cout))
    scale0 = gamma_p * jax.lax.rsqrt(var + BN_EPS)                  # (Cp,)
    shift0 = beta_p - mean * scale0

    # Dropout2d: one Bernoulli draw per (sample, channel), scaled by 1/(1-p),
    # folded into per-sample scale/shift (exact for LeakyReLU, mask in {0, 2}).
    if training_dropout:
        keep = jax.random.bernoulli(drop_key, 1.0 - DROP_P, (n, cout))
        mask = keep.astype(jnp.float32) / (1.0 - DROP_P)            # (N, Cout)
    else:
        mask = jnp.ones((n, cout), jnp.float32)
    mask_p = jnp.pad(mask, ((0, 0), (0, cp - cout)))                # (N, Cp)
    scale_rows = jnp.repeat(scale0[None, :] * mask_p, 8, axis=0)    # (8N, Cp)
    shift_rows = jnp.repeat(shift0[None, :] * mask_p, 8, axis=0)    # (8N, Cp)

    # ---------------- phase 2: conv recompute + affine + LeakyReLU ---------------- #
    out_flat = pl.pallas_call(
        functools.partial(_conv_bn_act_kernel, cin=cin, w2=w2, mp=mp),
        grid=(n,),
        in_specs=[
            pl.BlockSpec((sin, cin), lambda i: (i, 0)),
            pl.BlockSpec((9 * cin, cp), lambda i: (0, 0)),
            pl.BlockSpec((8, cp), lambda i: (i, 0)),
            pl.BlockSpec((8, cp), lambda i: (i, 0)),
        ],
        out_specs=pl.BlockSpec((mp, cp), lambda i: (i, 0)),
        out_shape=jax.ShapeDtypeStruct((n * mp, cp), jnp.float32),
        compiler_params=pltpu.CompilerParams(
            dimension_semantics=("parallel",), vmem_limit_bytes=vmem_limit),
    )(x_flat, w_fold, scale_rows, shift_rows)

    # drop junk rows / columns / channel padding, back to NCHW
    out = out_flat.reshape(n, mp, cp)[:, :h * w2, :cout]
    out = out.reshape(n, h, w2, cout)[:, :, 1:w + 1, :]
    return jnp.transpose(out, (0, 3, 1, 2)), mask


def _reference_forward(x_nchw, w_oihw, bias, gamma, beta, mask_nc):
    """Pure-JAX reference with identical semantics (same dropout mask, bf16 conv inputs)."""
    n, cin, h, w = x_nchw.shape
    cout = w_oihw.shape[0]
    x_nhwc = jnp.transpose(x_nchw, (0, 2, 3, 1)).astype(jnp.bfloat16)
    w_hwio = jnp.transpose(w_oihw, (2, 3, 1, 0)).astype(jnp.bfloat16)
    y = jax.lax.conv_general_dilated(
        x_nhwc, w_hwio, window_strides=(1, 1), padding="SAME",
        dimension_numbers=("NHWC", "HWIO", "NHWC"),
        preferred_element_type=jnp.float32)
    y = y + bias.reshape(1, 1, 1, cout)
    mean = jnp.mean(y, axis=(0, 1, 2), keepdims=True)
    var = jnp.mean(jnp.square(y - mean), axis=(0, 1, 2), keepdims=True)
    y = (y - mean) * jax.lax.rsqrt(var + BN_EPS)
    y = y * gamma.reshape(1, 1, 1, cout) + beta.reshape(1, 1, 1, cout)
    y = jnp.where(y > 0, y, LEAKY_SLOPE * y)
    y = y * mask_nc.reshape(n, 1, 1, cout)
    return jnp.transpose(y, (0, 3, 1, 2))


if __name__ == "__main__":
    key = jax.random.PRNGKey(0)
    k_x, k_w, k_b, k_drop = jax.random.split(key, 4)

    N, Cin, Cout, H, W = 2, 4, 8, 16, 16
    x = jax.random.normal(k_x, (N, Cin, H, W), jnp.float32)

    # Deterministic parameter init (shapes from nn.Conv2d / nn.BatchNorm2d).
    w_conv = 0.1 * jax.random.normal(k_w, (Cout, Cin, 3, 3), jnp.float32)
    b_conv = 0.1 * jax.random.normal(k_b, (Cout,), jnp.float32)
    bn_gamma = jnp.ones((Cout,), jnp.float32)   # BatchNorm2d default init
    bn_beta = jnp.zeros((Cout,), jnp.float32)

    fwd = jax.jit(functools.partial(midlayer_forward, training_dropout=True))
    out, mask = fwd(x, w_conv, b_conv, bn_gamma, bn_beta, k_drop)
    out = jax.block_until_ready(out)

    ref = _reference_forward(x, w_conv, b_conv, bn_gamma, bn_beta, mask)
    assert out.shape == (N, Cout, H, W)
    assert jnp.allclose(out, ref, atol=2e-3, rtol=2e-3), (
        float(jnp.max(jnp.abs(out - ref))))

    print("KERNEL_OK")
</pallas_src>

<mosaic_0001>
module attributes {stable_mosaic.version = 11 : i64} {
  func.func @_conv_stats_kernel(%arg0: i32, %arg1: memref<368x4xbf16, #tpu.memory_space<vmem>>, %arg2: memref<36x128xbf16, #tpu.memory_space<vmem>>, %arg3: memref<288x1xf32, #tpu.memory_space<vmem>>, %arg4: memref<8x128xf32, #tpu.memory_space<vmem>>, %arg5: memref<8x128xf32, #tpu.memory_space<vmem>>) attributes {dimension_semantics = [#tpu.dimension_semantics<parallel>], iteration_bounds = array<i64: 2>, scalar_prefetch = 0 : i64, scratch_operands = 0 : i64, tpu.core_type = #tpu.core_type<tc>, window_params = [{transform_indices = @transform_0, window_bounds = array<i64: 368, 4>}, {pipeline_mode = #tpu.pipeline_mode<synchronous>, transform_indices = @transform_1, window_bounds = array<i64: 36, 128>}, {pipeline_mode = #tpu.pipeline_mode<synchronous>, transform_indices = @transform_2, window_bounds = array<i64: 288, 1>}, {transform_indices = @transform_3, window_bounds = array<i64: 8, 128>}, {transform_indices = @transform_4, window_bounds = array<i64: 8, 128>}]} {
    %c17 = arith.constant 17 : index
    %c0 = arith.constant 0 : index
    %0 = vector.load %arg1[%c17, %c0] : memref<368x4xbf16, #tpu.memory_space<vmem>>, vector<288x4xbf16>
    %c0_0 = arith.constant 0 : index
    %c0_1 = arith.constant 0 : index
    %1 = vector.load %arg2[%c0_0, %c0_1] : memref<36x128xbf16, #tpu.memory_space<vmem>>, vector<4x128xbf16>
    %cst = arith.constant dense<0.000000e+00> : vector<288x128xf32>
    %2 = tpu.matmul %0, %1, %cst {dimension_numbers = #tpu.dot_dimension_numbers<[1], [0], [0], [1], [0, 0, 1, 1], [], []>} : vector<288x4xbf16>, vector<4x128xbf16>, vector<288x128xf32> -> vector<288x128xf32>
    %c18 = arith.constant 18 : index
    %c0_2 = arith.constant 0 : index
    %3 = vector.load %arg1[%c18, %c0_2] : memref<368x4xbf16, #tpu.memory_space<vmem>>, vector<288x4xbf16>
    %c4 = arith.constant 4 : index
    %c0_3 = arith.constant 0 : index
    %4 = vector.load %arg2[%c4, %c0_3] : memref<36x128xbf16, #tpu.memory_space<vmem>>, vector<4x128xbf16>
    %cst_4 = arith.constant dense<0.000000e+00> : vector<288x128xf32>
    %5 = tpu.matmul %3, %4, %cst_4 {dimension_numbers = #tpu.dot_dimension_numbers<[1], [0], [0], [1], [0, 0, 1, 1], [], []>} : vector<288x4xbf16>, vector<4x128xbf16>, vector<288x128xf32> -> vector<288x128xf32>
    %6 = arith.addf %2, %5 : vector<288x128xf32>
    %c19 = arith.constant 19 : index
    %c0_5 = arith.constant 0 : index
    %7 = vector.load %arg1[%c19, %c0_5] : memref<368x4xbf16, #tpu.memory_space<vmem>>, vector<288x4xbf16>
    %c8 = arith.constant 8 : index
    %c0_6 = arith.constant 0 : index
    %8 = vector.load %arg2[%c8, %c0_6] : memref<36x128xbf16, #tpu.memory_space<vmem>>, vector<4x128xbf16>
    %cst_7 = arith.constant dense<0.000000e+00> : vector<288x128xf32>
    %9 = tpu.matmul %7, %8, %cst_7 {dimension_numbers = #tpu.dot_dimension_numbers<[1], [0], [0], [1], [0, 0, 1, 1], [], []>} : vector<288x4xbf16>, vector<4x128xbf16>, vector<288x128xf32> -> vector<288x128xf32>
    %10 = arith.addf %6, %9 : vector<288x128xf32>
    %c35 = arith.constant 35 : index
    %c0_8 = arith.constant 0 : index
    %11 = vector.load %arg1[%c35, %c0_8] : memref<368x4xbf16, #tpu.memory_space<vmem>>, vector<288x4xbf16>
    %c12 = arith.constant 12 : index
    %c0_9 = arith.constant 0 : index
    %12 = vector.load %arg2[%c12, %c0_9] : memref<36x128xbf16, #tpu.memory_space<vmem>>, vector<4x128xbf16>
    %cst_10 = arith.constant dense<0.000000e+00> : vector<288x128xf32>
    %13 = tpu.matmul %11, %12, %cst_10 {dimension_numbers = #tpu.dot_dimension_numbers<[1], [0], [0], [1], [0, 0, 1, 1], [], []>} : vector<288x4xbf16>, vector<4x128xbf16>, vector<288x128xf32> -> vector<288x128xf32>
    %14 = arith.addf %10, %13 : vector<288x128xf32>
    %c36 = arith.constant 36 : index
    %c0_11 = arith.constant 0 : index
    %15 = vector.load %arg1[%c36, %c0_11] : memref<368x4xbf16, #tpu.memory_space<vmem>>, vector<288x4xbf16>
    %c16 = arith.constant 16 : index
    %c0_12 = arith.constant 0 : index
    %16 = vector.load %arg2[%c16, %c0_12] : memref<36x128xbf16, #tpu.memory_space<vmem>>, vector<4x128xbf16>
    %cst_13 = arith.constant dense<0.000000e+00> : vector<288x128xf32>
    %17 = tpu.matmul %15, %16, %cst_13 {dimension_numbers = #tpu.dot_dimension_numbers<[1], [0], [0], [1], [0, 0, 1, 1], [], []>} : vector<288x4xbf16>, vector<4x128xbf16>, vector<288x128xf32> -> vector<288x128xf32>
    %18 = arith.addf %14, %17 : vector<288x128xf32>
    %c37 = arith.constant 37 : index
    %c0_14 = arith.constant 0 : index
    %19 = vector.load %arg1[%c37, %c0_14] : memref<368x4xbf16, #tpu.memory_space<vmem>>, vector<288x4xbf16>
    %c20 = arith.constant 20 : index
    %c0_15 = arith.constant 0 : index
    %20 = vector.load %arg2[%c20, %c0_15] : memref<36x128xbf16, #tpu.memory_space<vmem>>, vector<4x128xbf16>
    %cst_16 = arith.constant dense<0.000000e+00> : vector<288x128xf32>
    %21 = tpu.matmul %19, %20, %cst_16 {dimension_numbers = #tpu.dot_dimension_numbers<[1], [0], [0], [1], [0, 0, 1, 1], [], []>} : vector<288x4xbf16>, vector<4x128xbf16>, vector<288x128xf32> -> vector<288x128xf32>
    %22 = arith.addf %18, %21 : vector<288x128xf32>
    %c53 = arith.constant 53 : index
    %c0_17 = arith.constant 0 : index
    %23 = vector.load %arg1[%c53, %c0_17] : memref<368x4xbf16, #tpu.memory_space<vmem>>, vector<288x4xbf16>
    %c24 = arith.constant 24 : index
    %c0_18 = arith.constant 0 : index
    %24 = vector.load %arg2[%c24, %c0_18] : memref<36x128xbf16, #tpu.memory_space<vmem>>, vector<4x128xbf16>
    %cst_19 = arith.constant dense<0.000000e+00> : vector<288x128xf32>
    %25 = tpu.matmul %23, %24, %cst_19 {dimension_numbers = #tpu.dot_dimension_numbers<[1], [0], [0], [1], [0, 0, 1, 1], [], []>} : vector<288x4xbf16>, vector<4x128xbf16>, vector<288x128xf32> -> vector<288x128xf32>
    %26 = arith.addf %22, %25 : vector<288x128xf32>
    %c54 = arith.constant 54 : index
    %c0_20 = arith.constant 0 : index
    %27 = vector.load %arg1[%c54, %c0_20] : memref<368x4xbf16, #tpu.memory_space<vmem>>, vector<288x4xbf16>
    %c28 = arith.constant 28 : index
    %c0_21 = arith.constant 0 : index
    %28 = vector.load %arg2[%c28, %c0_21] : memref<36x128xbf16, #tpu.memory_space<vmem>>, vector<4x128xbf16>
    %cst_22 = arith.constant dense<0.000000e+00> : vector<288x128xf32>
    %29 = tpu.matmul %27, %28, %cst_22 {dimension_numbers = #tpu.dot_dimension_numbers<[1], [0], [0], [1], [0, 0, 1, 1], [], []>} : vector<288x4xbf16>, vector<4x128xbf16>, vector<288x128xf32> -> vector<288x128xf32>
    %30 = arith.addf %26, %29 : vector<288x128xf32>
    %c55 = arith.constant 55 : index
    %c0_23 = arith.constant 0 : index
    %31 = vector.load %arg1[%c55, %c0_23] : memref<368x4xbf16, #tpu.memory_space<vmem>>, vector<288x4xbf16>
    %c32 = arith.constant 32 : index
    %c0_24 = arith.constant 0 : index
    %32 = vector.load %arg2[%c32, %c0_24] : memref<36x128xbf16, #tpu.memory_space<vmem>>, vector<4x128xbf16>
    %cst_25 = arith.constant dense<0.000000e+00> : vector<288x128xf32>
    %33 = tpu.matmul %31, %32, %cst_25 {dimension_numbers = #tpu.dot_dimension_numbers<[1], [0], [0], [1], [0, 0, 1, 1], [], []>} : vector<288x4xbf16>, vector<4x128xbf16>, vector<288x128xf32> -> vector<288x128xf32>
    %34 = arith.addf %30, %33 : vector<288x128xf32>
    %c0_26 = arith.constant 0 : index
    %c0_27 = arith.constant 0 : index
    %35 = vector.load %arg3[%c0_26, %c0_27] : memref<288x1xf32, #tpu.memory_space<vmem>>, vector<288x1xf32>
    %36 = vector.broadcast %35 : vector<288x1xf32> to vector<288x128xf32>
    %37 = arith.mulf %34, %36 : vector<288x128xf32>
    %cst_28 = arith.constant dense<0.000000e+00> : vector<128xf32>
    %38 = vector.multi_reduction <add>, %37, %cst_28 [0] : vector<288x128xf32> to vector<128xf32>
    %39 = vector.shape_cast %38 : vector<128xf32> to vector<1x128xf32>
    %40 = vector.shape_cast %39 : vector<1x128xf32> to vector<1x128xf32>
    %41 = vector.broadcast %40 : vector<1x128xf32> to vector<8x128xf32>
    %c0_29 = arith.constant 0 : index
    %c0_30 = arith.constant 0 : index
    %42 = vector.load %arg4[%c0_29, %c0_30] : memref<8x128xf32, #tpu.memory_space<vmem>>, vector<8x128xf32>
    tpu.vector_store %arg4[%c0_29, %c0_30], %41 {strides = array<i32>} : memref<8x128xf32, #tpu.memory_space<vmem>>, vector<8x128xf32>,
    %43 = arith.mulf %37, %37 : vector<288x128xf32>
    %cst_31 = arith.constant dense<0.000000e+00> : vector<128xf32>
    %44 = vector.multi_reduction <add>, %43, %cst_31 [0] : vector<288x128xf32> to vector<128xf32>
    %45 = vector.shape_cast %44 : vector<128xf32> to vector<1x128xf32>
    %46 = vector.shape_cast %45 : vector<1x128xf32> to vector<1x128xf32>
    %47 = vector.broadcast %46 : vector<1x128xf32> to vector<8x128xf32>
    %c0_32 = arith.constant 0 : index
    %c0_33 = arith.constant 0 : index
    %48 = vector.load %arg5[%c0_32, %c0_33] : memref<8x128xf32, #tpu.memory_space<vmem>>, vector<8x128xf32>
    tpu.vector_store %arg5[%c0_32, %c0_33], %47 {strides = array<i32>} : memref<8x128xf32, #tpu.memory_space<vmem>>, vector<8x128xf32>,
    return
  }
  func.func @transform_0(%arg0: i32) -> (i32, i32) {
    %c0_i32 = arith.constant 0 : i32
    %c0_i32_0 = arith.constant 0 : i32
    return %arg0, %c0_i32 : i32, i32
  }
  func.func @transform_1(%arg0: i32) -> (i32, i32) {
    %c0_i32 = arith.constant 0 : i32
    %c0_i32_0 = arith.constant 0 : i32
    %c0_i32_1 = arith.constant 0 : i32
    return %c0_i32, %c0_i32_0 : i32, i32
  }
  func.func @transform_2(%arg0: i32) -> (i32, i32) {
    %c0_i32 = arith.constant 0 : i32
    %c0_i32_0 = arith.constant 0 : i32
    %c0_i32_1 = arith.constant 0 : i32
    return %c0_i32, %c0_i32_0 : i32, i32
  }
  func.func @transform_3(%arg0: i32) -> (i32, i32) {
    %c0_i32 = arith.constant 0 : i32
    %c0_i32_0 = arith.constant 0 : i32
    return %arg0, %c0_i32 : i32, i32
  }
  func.func @transform_4(%arg0: i32) -> (i32, i32) {
    %c0_i32 = arith.constant 0 : i32
    %c0_i32_0 = arith.constant 0 : i32
    return %arg0, %c0_i32 : i32, i32
  }
}

module attributes {stable_mosaic.version = 11 : i64} {
  func.func @_conv_bn_act_kernel(%arg0: i32, %arg1: memref<368x4xbf16, #tpu.memory_space<vmem>>, %arg2: memref<36x128xbf16, #tpu.memory_space<vmem>>, %arg3: memref<8x128xf32, #tpu.memory_space<vmem>>, %arg4: memref<8x128xf32, #tpu.memory_space<vmem>>, %arg5: memref<288x128xf32, #tpu.memory_space<vmem>>) attributes {dimension_semantics = [#tpu.dimension_semantics<parallel>], iteration_bounds = array<i64: 2>, scalar_prefetch = 0 : i64, scratch_operands = 0 : i64, tpu.core_type = #tpu.core_type<tc>, window_params = [{transform_indices = @transform_0, window_bounds = array<i64: 368, 4>}, {pipeline_mode = #tpu.pipeline_mode<synchronous>, transform_indices = @transform_1, window_bounds = array<i64: 36, 128>}, {transform_indices = @transform_2, window_bounds = array<i64: 8, 128>}, {transform_indices = @transform_3, window_bounds = array<i64: 8, 128>}, {transform_indices = @transform_4, window_bounds = array<i64: 288, 128>}]} {
    %c17 = arith.constant 17 : index
    %c0 = arith.constant 0 : index
    %0 = vector.load %arg1[%c17, %c0] : memref<368x4xbf16, #tpu.memory_space<vmem>>, vector<288x4xbf16>
    %c0_0 = arith.constant 0 : index
    %c0_1 = arith.constant 0 : index
    %1 = vector.load %arg2[%c0_0, %c0_1] : memref<36x128xbf16, #tpu.memory_space<vmem>>, vector<4x128xbf16>
    %cst = arith.constant dense<0.000000e+00> : vector<288x128xf32>
    %2 = tpu.matmul %0, %1, %cst {dimension_numbers = #tpu.dot_dimension_numbers<[1], [0], [0], [1], [0, 0, 1, 1], [], []>} : vector<288x4xbf16>, vector<4x128xbf16>, vector<288x128xf32> -> vector<288x128xf32>
    %c18 = arith.constant 18 : index
    %c0_2 = arith.constant 0 : index
    %3 = vector.load %arg1[%c18, %c0_2] : memref<368x4xbf16, #tpu.memory_space<vmem>>, vector<288x4xbf16>
    %c4 = arith.constant 4 : index
    %c0_3 = arith.constant 0 : index
    %4 = vector.load %arg2[%c4, %c0_3] : memref<36x128xbf16, #tpu.memory_space<vmem>>, vector<4x128xbf16>
    %cst_4 = arith.constant dense<0.000000e+00> : vector<288x128xf32>
    %5 = tpu.matmul %3, %4, %cst_4 {dimension_numbers = #tpu.dot_dimension_numbers<[1], [0], [0], [1], [0, 0, 1, 1], [], []>} : vector<288x4xbf16>, vector<4x128xbf16>, vector<288x128xf32> -> vector<288x128xf32>
    %6 = arith.addf %2, %5 : vector<288x128xf32>
    %c19 = arith.constant 19 : index
    %c0_5 = arith.constant 0 : index
    %7 = vector.load %arg1[%c19, %c0_5] : memref<368x4xbf16, #tpu.memory_space<vmem>>, vector<288x4xbf16>
    %c8 = arith.constant 8 : index
    %c0_6 = arith.constant 0 : index
    %8 = vector.load %arg2[%c8, %c0_6] : memref<36x128xbf16, #tpu.memory_space<vmem>>, vector<4x128xbf16>
    %cst_7 = arith.constant dense<0.000000e+00> : vector<288x128xf32>
    %9 = tpu.matmul %7, %8, %cst_7 {dimension_numbers = #tpu.dot_dimension_numbers<[1], [0], [0], [1], [0, 0, 1, 1], [], []>} : vector<288x4xbf16>, vector<4x128xbf16>, vector<288x128xf32> -> vector<288x128xf32>
    %10 = arith.addf %6, %9 : vector<288x128xf32>
    %c35 = arith.constant 35 : index
    %c0_8 = arith.constant 0 : index
    %11 = vector.load %arg1[%c35, %c0_8] : memref<368x4xbf16, #tpu.memory_space<vmem>>, vector<288x4xbf16>
    %c12 = arith.constant 12 : index
    %c0_9 = arith.constant 0 : index
    %12 = vector.load %arg2[%c12, %c0_9] : memref<36x128xbf16, #tpu.memory_space<vmem>>, vector<4x128xbf16>
    %cst_10 = arith.constant dense<0.000000e+00> : vector<288x128xf32>
    %13 = tpu.matmul %11, %12, %cst_10 {dimension_numbers = #tpu.dot_dimension_numbers<[1], [0], [0], [1], [0, 0, 1, 1], [], []>} : vector<288x4xbf16>, vector<4x128xbf16>, vector<288x128xf32> -> vector<288x128xf32>
    %14 = arith.addf %10, %13 : vector<288x128xf32>
    %c36 = arith.constant 36 : index
    %c0_11 = arith.constant 0 : index
    %15 = vector.load %arg1[%c36, %c0_11] : memref<368x4xbf16, #tpu.memory_space<vmem>>, vector<288x4xbf16>
    %c16 = arith.constant 16 : index
    %c0_12 = arith.constant 0 : index
    %16 = vector.load %arg2[%c16, %c0_12] : memref<36x128xbf16, #tpu.memory_space<vmem>>, vector<4x128xbf16>
    %cst_13 = arith.constant dense<0.000000e+00> : vector<288x128xf32>
    %17 = tpu.matmul %15, %16, %cst_13 {dimension_numbers = #tpu.dot_dimension_numbers<[1], [0], [0], [1], [0, 0, 1, 1], [], []>} : vector<288x4xbf16>, vector<4x128xbf16>, vector<288x128xf32> -> vector<288x128xf32>
    %18 = arith.addf %14, %17 : vector<288x128xf32>
    %c37 = arith.constant 37 : index
    %c0_14 = arith.constant 0 : index
    %19 = vector.load %arg1[%c37, %c0_14] : memref<368x4xbf16, #tpu.memory_space<vmem>>, vector<288x4xbf16>
    %c20 = arith.constant 20 : index
    %c0_15 = arith.constant 0 : index
    %20 = vector.load %arg2[%c20, %c0_15] : memref<36x128xbf16, #tpu.memory_space<vmem>>, vector<4x128xbf16>
    %cst_16 = arith.constant dense<0.000000e+00> : vector<288x128xf32>
    %21 = tpu.matmul %19, %20, %cst_16 {dimension_numbers = #tpu.dot_dimension_numbers<[1], [0], [0], [1], [0, 0, 1, 1], [], []>} : vector<288x4xbf16>, vector<4x128xbf16>, vector<288x128xf32> -> vector<288x128xf32>
    %22 = arith.addf %18, %21 : vector<288x128xf32>
    %c53 = arith.constant 53 : index
    %c0_17 = arith.constant 0 : index
    %23 = vector.load %arg1[%c53, %c0_17] : memref<368x4xbf16, #tpu.memory_space<vmem>>, vector<288x4xbf16>
    %c24 = arith.constant 24 : index
    %c0_18 = arith.constant 0 : index
    %24 = vector.load %arg2[%c24, %c0_18] : memref<36x128xbf16, #tpu.memory_space<vmem>>, vector<4x128xbf16>
    %cst_19 = arith.constant dense<0.000000e+00> : vector<288x128xf32>
    %25 = tpu.matmul %23, %24, %cst_19 {dimension_numbers = #tpu.dot_dimension_numbers<[1], [0], [0], [1], [0, 0, 1, 1], [], []>} : vector<288x4xbf16>, vector<4x128xbf16>, vector<288x128xf32> -> vector<288x128xf32>
    %26 = arith.addf %22, %25 : vector<288x128xf32>
    %c54 = arith.constant 54 : index
    %c0_20 = arith.constant 0 : index
    %27 = vector.load %arg1[%c54, %c0_20] : memref<368x4xbf16, #tpu.memory_space<vmem>>, vector<288x4xbf16>
    %c28 = arith.constant 28 : index
    %c0_21 = arith.constant 0 : index
    %28 = vector.load %arg2[%c28, %c0_21] : memref<36x128xbf16, #tpu.memory_space<vmem>>, vector<4x128xbf16>
    %cst_22 = arith.constant dense<0.000000e+00> : vector<288x128xf32>
    %29 = tpu.matmul %27, %28, %cst_22 {dimension_numbers = #tpu.dot_dimension_numbers<[1], [0], [0], [1], [0, 0, 1, 1], [], []>} : vector<288x4xbf16>, vector<4x128xbf16>, vector<288x128xf32> -> vector<288x128xf32>
    %30 = arith.addf %26, %29 : vector<288x128xf32>
    %c55 = arith.constant 55 : index
    %c0_23 = arith.constant 0 : index
    %31 = vector.load %arg1[%c55, %c0_23] : memref<368x4xbf16, #tpu.memory_space<vmem>>, vector<288x4xbf16>
    %c32 = arith.constant 32 : index
    %c0_24 = arith.constant 0 : index
    %32 = vector.load %arg2[%c32, %c0_24] : memref<36x128xbf16, #tpu.memory_space<vmem>>, vector<4x128xbf16>
    %cst_25 = arith.constant dense<0.000000e+00> : vector<288x128xf32>
    %33 = tpu.matmul %31, %32, %cst_25 {dimension_numbers = #tpu.dot_dimension_numbers<[1], [0], [0], [1], [0, 0, 1, 1], [], []>} : vector<288x4xbf16>, vector<4x128xbf16>, vector<288x128xf32> -> vector<288x128xf32>
    %34 = arith.addf %30, %33 : vector<288x128xf32>
    %c0_26 = arith.constant 0 : index
    %c0_27 = arith.constant 0 : index
    %35 = vector.load %arg3[%c0_26, %c0_27] : memref<8x128xf32, #tpu.memory_space<vmem>>, vector<1x128xf32>
    %36 = vector.broadcast %35 : vector<1x128xf32> to vector<288x128xf32>
    %37 = arith.mulf %34, %36 : vector<288x128xf32>
    %c0_28 = arith.constant 0 : index
    %c0_29 = arith.constant 0 : index
    %38 = vector.load %arg4[%c0_28, %c0_29] : memref<8x128xf32, #tpu.memory_space<vmem>>, vector<1x128xf32>
    %39 = vector.broadcast %38 : vector<1x128xf32> to vector<288x128xf32>
    %40 = arith.addf %37, %39 : vector<288x128xf32>
    %cst_30 = arith.constant 0.000000e+00 : f32
    %41 = vector.broadcast %cst_30 : f32 to vector<288x128xf32>
    %42 = arith.cmpf ogt, %40, %41 : vector<288x128xf32>
    %cst_31 = arith.constant 2.000000e-01 : f32
    %43 = vector.broadcast %cst_31 : f32 to vector<288x128xf32>
    %44 = arith.mulf %43, %40 : vector<288x128xf32>
    %45 = arith.select %42, %40, %44 : vector<288x128xi1>, vector<288x128xf32>
    %c0_32 = arith.constant 0 : index
    %c0_33 = arith.constant 0 : index
    %46 = vector.load %arg5[%c0_32, %c0_33] : memref<288x128xf32, #tpu.memory_space<vmem>>, vector<288x128xf32>
    tpu.vector_store %arg5[%c0_32, %c0_33], %45 {strides = array<i32>} : memref<288x128xf32, #tpu.memory_space<vmem>>, vector<288x128xf32>,
    return
  }
  func.func @transform_0(%arg0: i32) -> (i32, i32) {
    %c0_i32 = arith.constant 0 : i32
    %c0_i32_0 = arith.constant 0 : i32
    return %arg0, %c0_i32 : i32, i32
  }
  func.func @transform_1(%arg0: i32) -> (i32, i32) {
    %c0_i32 = arith.constant 0 : i32
    %c0_i32_0 = arith.constant 0 : i32
    %c0_i32_1 = arith.constant 0 : i32
    return %c0_i32, %c0_i32_0 : i32, i32
  }
  func.func @transform_2(%arg0: i32) -> (i32, i32) {
    %c0_i32 = arith.constant 0 : i32
    %c0_i32_0 = arith.constant 0 : i32
    return %arg0, %c0_i32 : i32, i32
  }
  func.func @transform_3(%arg0: i32) -> (i32, i32) {
    %c0_i32 = arith.constant 0 : i32
    %c0_i32_0 = arith.constant 0 : i32
    return %arg0, %c0_i32 : i32, i32
  }
  func.func @transform_4(%arg0: i32) -> (i32, i32) {
    %c0_i32 = arith.constant 0 : i32
    %c0_i32_0 = arith.constant 0 : i32
    return %arg0, %c0_i32 : i32, i32
  }
}

</mosaic_0001>

<llo_original>
// kernel: midlayer_forward.2
$region0: #{midlayer_forward.2}
  #allocation0 [shape = 'u32[]', space=smem, size = 0x4, offset = 0x4, fixed_abs, tag = 'smem constant byte address 0x4 - core index']
  #allocation1 [shape = 'u32[144,128]{1,0:T(1,128)}', space=vmem, size = 0x12000, scoped, tag = 'internal scratch']
  %s0 = inlined_call_operand.vmem [shape: bf16[736,4], index: 0, kind: input, shape index: {}]
  %s1 = inlined_call_operand.vmem [shape: bf16[36,128], index: 1, kind: input, shape index: {}]
  %s2 = inlined_call_operand.vmem [shape: f32[288,1], index: 2, kind: input, shape index: {}]
  %s3 = inlined_call_operand.vmem [shape: f32[16,128], index: 3, kind: output, shape index: {0}]
  %s4 = inlined_call_operand.vmem [shape: f32[16,128], index: 4, kind: output, shape index: {1}]
  %5 = xla_tuple %s3, %s4
  %s6 = sld [smem:[#allocation0]]
  $region53: #{midlayer_forward.2} parent=0
    _
  %s8 = ssub.s32 1, %s6
  %s9 = scalar_select 0, %s8, %s6
  loop: start=0, step=1, limit=4
  $region2: #{midlayer_forward.2} parent=0 // loop_pre_header
    _
  $region3: #{midlayer_forward.2} parent=0 // loop_header
    %s11 = sphi 0, %s15
    %p12 = scmp.ge.s32.totalorder %s11, 4
    %s21 = sphi 0, %s23
    %s24 = sphi 0, %s21
    %s25 = sphi 0, %s24
    %s41 = sphi 0, %s25
    %s45 = sphi 0, %s45
    %s47 = sphi 0, %s45
    %s48 = sphi 0, %s47
    %s62 = sphi 0, %s48
    %s66 = sphi 0, %s66
    %s68 = sphi 0, %s66
    %s69 = sphi 0, %s68
    %s83 = sphi 0, %s69
    %s89 = sphi 0, %s91
    %s92 = sphi 0, %s89
    %s93 = sphi 0, %s92
    %s109 = sphi 0, %s93
    %s115 = sphi 0, %s117
    %s118 = sphi 0, %s115
    %s119 = sphi 0, %s118
    %s135 = sphi 0, %s119
  $region4: #{midlayer_forward.2} parent=0 // loop_header_branch
    %14 = sbr.rel (%p12) target = $region8
  $region5: #{midlayer_forward.2} parent=0 // loop_body
    %s16 = ssub.s32 %s11, 1
    %s17 = ssub.s32 %s11, 2
    %s18 = sadd.s32 %s11, 1
    %s19 = ssub.s32 %s11, %s18
    %p20 = scmp.eq.s32.totalorder %s19, 0
    %s22 = sadd.s32 %s21, 1
    %s23 = scalar_select %p20, %s21, %s22
    %p26 = pneg %p20
    %p27 = scmp.eq.s32.totalorder %s11, 1
    %p28 = por %p26, %p27
    %p29 = scmp.ne.s32.totalorder %s21, %s24
    %p30 = scmp.eq.s32.totalorder %s11, 0
    %p31 = por %p29, %p30
    %p32 = scmp.ne.s32.totalorder %s21, %s24
    %p33 = scmp.eq.s32.totalorder %s16, 1
    %p34 = por %p32, %p33
    %p35 = scmp.ne.s32.totalorder %s24, %s25
    %p36 = scmp.eq.s32.totalorder %s16, 0
    %p37 = por %p35, %p36
    %p38 = scmp.ne.s32.totalorder %s24, %s25
    %p39 = scmp.eq.s32.totalorder %s17, 1
    %p40 = por %p38, %p39
    %p42 = scmp.ne.s32.totalorder %s25, %s41
    %p43 = scmp.eq.s32.totalorder %s17, 0
    %p44 = por %p42, %p43
    %s46 = sadd.s32 %s45, 1
    %p49 = scmp.eq.s32.totalorder %s11, 1
    %p50 = scmp.ne.s32.totalorder %s45, %s47
    %p51 = scmp.eq.s32.totalorder %s11, 0
    %p52 = por %p50, %p51
    %p53 = scmp.ne.s32.totalorder %s45, %s47
    %p54 = scmp.eq.s32.totalorder %s16, 1
    %p55 = por %p53, %p54
    %p56 = scmp.ne.s32.totalorder %s47, %s48
    %p57 = scmp.eq.s32.totalorder %s16, 0
    %p58 = por %p56, %p57
    %p59 = scmp.ne.s32.totalorder %s47, %s48
    %p60 = scmp.eq.s32.totalorder %s17, 1
    %p61 = por %p59, %p60
    %p63 = scmp.ne.s32.totalorder %s48, %s62
    %p64 = scmp.eq.s32.totalorder %s17, 0
    %p65 = por %p63, %p64
    %s67 = sadd.s32 %s66, 1
    %p70 = scmp.eq.s32.totalorder %s11, 1
    %p71 = scmp.ne.s32.totalorder %s66, %s68
    %p72 = scmp.eq.s32.totalorder %s11, 0
    %p73 = por %p71, %p72
    %p74 = scmp.ne.s32.totalorder %s66, %s68
    %p75 = scmp.eq.s32.totalorder %s16, 1
    %p76 = por %p74, %p75
    %p77 = scmp.ne.s32.totalorder %s68, %s69
    %p78 = scmp.eq.s32.totalorder %s16, 0
    %p79 = por %p77, %p78
    %p80 = scmp.ne.s32.totalorder %s68, %s69
    %p81 = scmp.eq.s32.totalorder %s17, 1
    %p82 = por %p80, %p81
    %p84 = scmp.ne.s32.totalorder %s69, %s83
    %p85 = scmp.eq.s32.totalorder %s17, 0
    %p86 = por %p84, %p85
    %s87 = ssub.s32 %s11, %s18
    %p88 = scmp.eq.s32.totalorder %s87, 0
    %s90 = sadd.s32 %s89, 1
    %s91 = scalar_select %p88, %s89, %s90
    %p94 = pneg %p88
    %p95 = scmp.eq.s32.totalorder %s11, 1
    %p96 = por %p94, %p95
    %p97 = scmp.ne.s32.totalorder %s89, %s92
    %p98 = scmp.eq.s32.totalorder %s11, 0
    %p99 = por %p97, %p98
    %p100 = scmp.ne.s32.totalorder %s89, %s92
    %p101 = scmp.eq.s32.totalorder %s16, 1
    %p102 = por %p100, %p101
    %p103 = scmp.ne.s32.totalorder %s92, %s93
    %p104 = scmp.eq.s32.totalorder %s16, 0
    %p105 = por %p103, %p104
    %p106 = scmp.ne.s32.totalorder %s92, %s93
    %p107 = scmp.eq.s32.totalorder %s17, 1
    %p108 = por %p106, %p107
    %p110 = scmp.ne.s32.totalorder %s93, %s109
    %p111 = scmp.eq.s32.totalorder %s17, 0
    %p112 = por %p110, %p111
    %s113 = ssub.s32 %s11, %s18
    %p114 = scmp.eq.s32.totalorder %s113, 0
    %s116 = sadd.s32 %s115, 1
    %s117 = scalar_select %p114, %s115, %s116
    %p120 = pneg %p114
    %p121 = scmp.eq.s32.totalorder %s11, 1
    %p122 = por %p120, %p121
    %p123 = scmp.ne.s32.totalorder %s115, %s118
    %p124 = scmp.eq.s32.totalorder %s11, 0
    %p125 = por %p123, %p124
    %p126 = scmp.ne.s32.totalorder %s115, %s118
    %p127 = scmp.eq.s32.totalorder %s16, 1
    %p128 = por %p126, %p127
    %p129 = scmp.ne.s32.totalorder %s118, %s119
    %p130 = scmp.eq.s32.totalorder %s16, 0
    %p131 = por %p129, %p130
    %p132 = scmp.ne.s32.totalorder %s118, %s119
    %p133 = scmp.eq.s32.totalorder %s17, 1
    %p134 = por %p132, %p133
    %p136 = scmp.ne.s32.totalorder %s119, %s135
    %p137 = scmp.eq.s32.totalorder %s17, 0
    %p138 = por %p136, %p137
    %p139 = scmp.le.s32.totalorder 1, %s11
    %p140 = scmp.lt.s32.totalorder %s11, 3
    %p141 = pnand %p139, %p140
    %p142 = pneg %p141
    // Predicated region
    $region9: #{midlayer_forward.2} parent=5 // pred_check
      _
    $region10: #{midlayer_forward.2} parent=5 // pred_check_branch
      %144 = sbr.rel (%p141) target = $region12
    $region11: #{midlayer_forward.2} parent=5 // pred_region
      %s145 = ssub.s32 %s11, 1
      // Predicated region
      $region13: #{midlayer_forward.2} parent=11 // pred_check
        %p146 = pneg %p58
      $region14: #{midlayer_forward.2} parent=11 // pred_check_branch
        %148 = sbr.rel (%p146) target = $region16
      $region15: #{midlayer_forward.2} parent=11 // pred_region
        _
      $region16: #{midlayer_forward.2} parent=11 // pred_fallthru
        _
      // Predicated region
      $region17: #{midlayer_forward.2} parent=11 // pred_check
        %p149 = pneg %p79
      $region18: #{midlayer_forward.2} parent=11 // pred_check_branch
        %151 = sbr.rel (%p149) target = $region20
      $region19: #{midlayer_forward.2} parent=11 // pred_region
        _
      $region20: #{midlayer_forward.2} parent=11 // pred_fallthru
        _
    $region12: #{midlayer_forward.2} parent=5 // pred_fallthru
      _
    %p152 = scmp.lt.s32.totalorder %s11, 2
    // Predicated region
    $region21: #{midlayer_forward.2} parent=5 // pred_check
      %p153 = pneg %p152
    $region22: #{midlayer_forward.2} parent=5 // pred_check_branch
      %155 = sbr.rel (%p153) target = $region24
    $region23: #{midlayer_forward.2} parent=5 // pred_region
      // Predicated region
      $region25: #{midlayer_forward.2} parent=23 // pred_check
        %p156 = pneg %p31
      $region26: #{midlayer_forward.2} parent=23 // pred_check_branch
        %158 = sbr.rel (%p156) target = $region28
      $region27: #{midlayer_forward.2} parent=23 // pred_region
        %s159 = smul.u32 46, %s11
        %p160 = scmp.lt.s32.totalorder %s159, 91
        %s161 = scalar_select %p160, %s159, 91
        %s162 = smul.addr %s161, 4
        %s163 = scalar_lea.vmem %s0, %s162
        %s164 = smul.u32 46, %s11
      $region28: #{midlayer_forward.2} parent=23 // pred_fallthru
        _
    $region24: #{midlayer_forward.2} parent=5 // pred_fallthru
      _
    %p165 = scmp.le.s32.totalorder 1, %s11
    %p166 = scmp.lt.s32.totalorder %s11, 3
    %p167 = pnand %p165, %p166
    %p168 = pneg %p167
    // Predicated region
    $region29: #{midlayer_forward.2} parent=5 // pred_check
      _
    $region30: #{midlayer_forward.2} parent=5 // pred_check_branch
      %170 = sbr.rel (%p167) target = $region32
    $region31: #{midlayer_forward.2} parent=5 // pred_region
      %s171 = ssub.s32 %s11, 1
      %s172 = smul.u32 46, %s16
      %p173 = scmp.lt.s32.totalorder %s172, 91
      %s174 = scalar_select %p173, %s172, 91
      %s175 = smul.addr %s174, 4
      %s176 = scalar_lea.vmem %s0, %s175
      %p177 = pneg %p37
      %p178 = pneg %p34
      %p179 = pneg %p58
      %p180 = pneg %p55
      %p181 = pneg %p79
      %p182 = pneg %p76
      %p183 = pneg %p105
      %p184 = pneg %p102
      %p185 = scmp.lt.s32.totalorder %s16, 1
      %s186 = scalar_select %p185, %s16, 1
      %s187 = smul.addr %s186, 8
      %s188 = scalar_lea.vmem %s3, %s187
      %p189 = pneg %p131
      %p190 = pneg %p128
      %p191 = scmp.lt.s32.totalorder %s16, 1
      %s192 = scalar_select %p191, %s16, 1
      %s193 = smul.addr %s192, 8
      %s194 = scalar_lea.vmem %s4, %s193
      %s195 = smul.u32 46, %s16
      %p196 = scmp.lt.s32.totalorder %s195, 91
      %s197 = scalar_select %p196, %s195, 91
      %s198 = smul.addr %s197, 4
      %s199 = scalar_lea.vmem %s0, %s198
      %s200 = smul.u32 46, %s16
      %p201 = scmp.lt.s32.totalorder %s16, 1
      %s202 = scalar_select %p201, %s16, 1
      %s203 = smul.addr %s202, 8
      %s204 = scalar_lea.vmem %s3, %s203
      %p205 = scmp.lt.s32.totalorder %s16, 1
      %s206 = scalar_select %p205, %s16, 1
      %s207 = smul.addr %s206, 8
      %s208 = scalar_lea.vmem %s4, %s207
      %v210 = vld [vmem:[%s199 + $0x8] sm:$0xf]
      %v211 = vld [vmem:[%s199 + $0xc] sm:$0xf]
      %v212 = vld [vmem:[%s199 + $0x10] sm:$0xf]
      %v213 = vld [vmem:[%s199 + $0x14] sm:$0xf]
      %v214 = vld [vmem:[%s199 + $0x18] sm:$0xf]
      %v215 = vld [vmem:[%s199 + $0x1c] sm:$0xf]
      %v216 = vld [vmem:[%s199 + $0x20] sm:$0xf]
      %v217 = vld [vmem:[%s199 + $0x24] sm:$0xf]
      %v218 = vld [vmem:[%s199 + $0x28] sm:$0xf]
      %v219 = vld [vmem:[%s199 + $0x2c] sm:$0xf]
      %v220 = vld [vmem:[%s199 + $0x30] sm:$0xf]
      %v221 = vld [vmem:[%s199 + $0x34] sm:$0xf]
      %v222 = vld [vmem:[%s199 + $0x38] sm:$0xf]
      %v223 = vld [vmem:[%s199 + $0x3c] sm:$0xf]
      %v224 = vld [vmem:[%s199 + $0x40] sm:$0xf]
      %v225 = vld [vmem:[%s199 + $0x44] sm:$0xf]
      %v226 = vld [vmem:[%s199 + $0x48] sm:$0xf]
      %v227 = vld [vmem:[%s199 + $0x4c] sm:$0xf]
      %v228 = vld [vmem:[%s199 + $0x50] sm:$0xf]
      %v229 = vld [vmem:[%s199 + $0x54] sm:$0xf]
      %v230 = vld [vmem:[%s199 + $0x58] sm:$0xf]
      %v231 = vld [vmem:[%s199 + $0x5c] sm:$0xf]
      %v232 = vld [vmem:[%s199 + $0x60] sm:$0xf]
      %v233 = vld [vmem:[%s199 + $0x64] sm:$0xf]
      %v234 = vld [vmem:[%s199 + $0x68] sm:$0xf]
      %v235 = vld [vmem:[%s199 + $0x6c] sm:$0xf]
      %v236 = vld [vmem:[%s199 + $0x70] sm:$0xf]
      %v237 = vld [vmem:[%s199 + $0x74] sm:$0xf]
      %v238 = vld [vmem:[%s199 + $0x78] sm:$0xf]
      %v239 = vld [vmem:[%s199 + $0x7c] sm:$0xf]
      %v240 = vld [vmem:[%s199 + $0x80] sm:$0xf]
      %v241 = vld [vmem:[%s199 + $0x84] sm:$0xf]
      %v242 = vld [vmem:[%s199 + $0x88] sm:$0xf]
      %v243 = vld [vmem:[%s199 + $0x8c] sm:$0xf]
      %v244 = vld [vmem:[%s199 + $0x90] sm:$0xf]
      %v245 = vld [vmem:[%s199 + $0x94] sm:$0xf]
      %v246 = vld [vmem:[%s199 + $0x98] sm:$0x1]
      %v247 = vld [vmem:[%s1] sm:$0x3]
      %v248 = vld [vmem:[%s199 + $0x8] sm:$0xe]
      %v249 = vld [vmem:[%s1] sm:$0xc]
      %v287 = vunpack.c.l.b16 %v248
      %v288 = vunpack.c.l.b16 %v211
      %v289 = vunpack.c.l.b16 %v212
      %v290 = vunpack.c.l.b16 %v213
      %v291 = vunpack.c.l.b16 %v214
      %v292 = vunpack.c.l.b16 %v215
      %v293 = vunpack.c.l.b16 %v216
      %v294 = vunpack.c.l.b16 %v217
      %v295 = vunpack.c.l.b16 %v218
      %v296 = vunpack.c.l.b16 %v219
      %v297 = vunpack.c.l.b16 %v220
      %v298 = vunpack.c.l.b16 %v221
      %v299 = vunpack.c.l.b16 %v222
      %v300 = vunpack.c.l.b16 %v223
      %v301 = vunpack.c.l.b16 %v224
      %v302 = vunpack.c.l.b16 %v225
      %v303 = vunpack.c.l.b16 %v226
      %v304 = vunpack.c.l.b16 %v227
      %v305 = vunpack.c.l.b16 %v228
      %v306 = vunpack.c.l.b16 %v229
      %v307 = vunpack.c.l.b16 %v230
      %v308 = vunpack.c.l.b16 %v231
      %v309 = vunpack.c.l.b16 %v232
      %v310 = vunpack.c.l.b16 %v233
      %v311 = vunpack.c.l.b16 %v234
      %v312 = vunpack.c.l.b16 %v235
      %v313 = vunpack.c.l.b16 %v236
      %v314 = vunpack.c.l.b16 %v237
      %v315 = vunpack.c.l.b16 %v238
      %v316 = vunpack.c.l.b16 %v239
      %v317 = vunpack.c.l.b16 %v240
      %v318 = vunpack.c.l.b16 %v241
      %v319 = vunpack.c.l.b16 %v242
      %v320 = vunpack.c.l.b16 %v243
      %v321 = vunpack.c.l.b16 %v244
      %v322 = vunpack.c.l.b16 %v245
      %v323 = vunpack.c.l.b16 %v246
      %v324 = vpack.c.b16 %v288, %v287
      %v325 = vpack.c.b16 %v290, %v289
      %v326 = vpack.c.b16 %v292, %v291
      %v327 = vpack.c.b16 %v294, %v293
      %v328 = vpack.c.b16 %v296, %v295
      %v329 = vpack.c.b16 %v298, %v297
      %v330 = vpack.c.b16 %v300, %v299
      %v331 = vpack.c.b16 %v302, %v301
      %v332 = vpack.c.b16 %v304, %v303
      %v333 = vpack.c.b16 %v306, %v305
      %v334 = vpack.c.b16 %v308, %v307
      %v335 = vpack.c.b16 %v310, %v309
      %v336 = vpack.c.b16 %v312, %v311
      %v337 = vpack.c.b16 %v314, %v313
      %v338 = vpack.c.b16 %v316, %v315
      %v339 = vpack.c.b16 %v318, %v317
      %v340 = vpack.c.b16 %v320, %v319
      %v341 = vpack.c.b16 %v322, %v321
      %v342 = vpack.c.b16 %v323, %v323
      %vm343 = vcmask 1046528
      %v344 = vrot.slane %v324, 1
      %v345 = vrot.slane %v325, 1
      %v346 = vsel %vm343, %v344, %v345
      %v347 = vrot.slane %v326, 1
      %v348 = vsel %vm343, %v345, %v347
      %v349 = vrot.slane %v327, 1
      %v350 = vsel %vm343, %v347, %v349
      %v351 = vrot.slane %v328, 1
      %v352 = vsel %vm343, %v349, %v351
      %v353 = vrot.slane %v329, 1
      %v354 = vsel %vm343, %v351, %v353
      %v355 = vrot.slane %v330, 1
      %v356 = vsel %vm343, %v353, %v355
      %v357 = vrot.slane %v331, 1
      %v358 = vsel %vm343, %v355, %v357
      %v359 = vrot.slane %v332, 1
      %v360 = vsel %vm343, %v357, %v359
      %v361 = vrot.slane %v333, 1
      %v362 = vsel %vm343, %v359, %v361
      %v363 = vrot.slane %v334, 1
      %v364 = vsel %vm343, %v361, %v363
      %v365 = vrot.slane %v335, 1
      %v366 = vsel %vm343, %v363, %v365
      %v367 = vrot.slane %v336, 1
      %v368 = vsel %vm343, %v365, %v367
      %v369 = vrot.slane %v337, 1
      %v370 = vsel %vm343, %v367, %v369
      %v371 = vrot.slane %v338, 1
      %v372 = vsel %vm343, %v369, %v371
      %v373 = vrot.slane %v339, 1
      %v374 = vsel %vm343, %v371, %v373
      %v375 = vrot.slane %v340, 1
      %v376 = vsel %vm343, %v373, %v375
      %v377 = vrot.slane %v341, 1
      %v378 = vsel %vm343, %v375, %v377
      %v379 = vrot.slane %v342, 1
      %v380 = vsel %vm343, %v377, %v379
      %v382 = vunpack.c.l.b16 %v249
      %v383 = vpack.c.b16 %v382, %v382
      %v384 = vrot.slane %v383, 2
      %vm385 = vcmask 31744
      %v387 = vsel %vm385, %v346, 0
      %v390 = vsel %vm385, %v348, 0
      %v393 = vsel %vm385, %v350, 0
      %v396 = vsel %vm385, %v352, 0
      %v399 = vsel %vm385, %v354, 0
      %v402 = vsel %vm385, %v356, 0
      %v405 = vsel %vm385, %v358, 0
      %v408 = vsel %vm385, %v360, 0
      %v411 = vsel %vm385, %v362, 0
      %v414 = vsel %vm385, %v364, 0
      %v417 = vsel %vm385, %v366, 0
      %v420 = vsel %vm385, %v368, 0
      %v423 = vsel %vm385, %v370, 0
      %v426 = vsel %vm385, %v372, 0
      %v429 = vsel %vm385, %v374, 0
      %v432 = vsel %vm385, %v376, 0
      %v435 = vsel %vm385, %v378, 0
      %v438 = vsel %vm385, %v380, 0
      %vm440 = vcmask 1041408
      %v442 = vsel %vm440, %v384, 0
      %444 = vmatprep.subr.bf16.mxu0 0
      %445 = vmatpush1.bf16.msra.mxu0 %v442
      %446 = vmatprep.subr.bf16.mxu0 0
      %447 = vmatpush1.bf16.msra.mxu0 0
      %448 = vmatprep.subr.bf16.mxu0 0
      %449 = vmatpush1.bf16.msra.mxu0 0
      %450 = vmatprep.subr.bf16.mxu0 0
      %451 = vmatpush1.bf16.msra.mxu0 0
      %452 = vmatprep.subr.bf16.mxu0 0
      %453 = vmatpush1.bf16.msra.mxu0 0
      %454 = vmatprep.subr.bf16.mxu0 0
      %455 = vmatpush1.bf16.msra.mxu0 0
      %456 = vmatprep.subr.bf16.mxu0 0
      %457 = vmatpush1.bf16.msra.mxu0 0
      %458 = vmatprep.subr.bf16.mxu0 0
      %459 = vmatpush1.bf16.msra.mxu0 0
      %460 = vmatprep.subr.bf16.mxu0 0
      %461 = vmatpush1.bf16.msra.mxu0 0
      %462 = vmatprep.subr.bf16.mxu0 0
      %463 = vmatpush1.bf16.msra.mxu0 0
      %464 = vmatprep.subr.bf16.mxu0 0
      %465 = vmatpush1.bf16.msra.mxu0 0
      %466 = vmatprep.subr.bf16.mxu0 0
      %467 = vmatpush1.bf16.msra.mxu0 0
      %468 = vmatprep.subr.bf16.mxu0 0
      %469 = vmatpush1.bf16.msra.mxu0 0
      %470 = vmatprep.subr.bf16.mxu0 0
      %471 = vmatpush1.bf16.msra.mxu0 0
      %472 = vmatprep.subr.bf16.mxu0 0
      %473 = vmatpush1.bf16.msra.mxu0 0
      %474 = vmatprep.subr.bf16.mxu0 0
      %475 = vmatpush1.bf16.msra.mxu0 0
      %476 = vmatprep.mubr.bf16.mxu0 0
      %477 = vmatmul.mubr.bf16.gmra.mrb[0].mxu0 %v387
      %v478 = vpop.f32.mrb[0].mxu0
      %v479 = vadd.f32 0.0, %v478
      %v480 = vpop.f32.mrb[0].mxu0
      %v481 = vpop.f32.mrb[0].mxu0
      %v482 = vadd.f32 0.0, %v481
      %v483 = vpop.f32.mrb[0].mxu0
      %484 = vmatprep.mubr.bf16.mxu0 0
      %485 = vmatmul.mubr.bf16.gmra.mrb[0].mxu0 %v390
      %v486 = vpop.f32.mrb[0].mxu0
      %v487 = vadd.f32 0.0, %v486
      %v488 = vpop.f32.mrb[0].mxu0
      %v489 = vpop.f32.mrb[0].mxu0
      %v490 = vadd.f32 0.0, %v489
      %v491 = vpop.f32.mrb[0].mxu0
      %492 = vmatprep.mubr.bf16.mxu0 0
      %493 = vmatmul.mubr.bf16.gmra.mrb[0].mxu0 %v393
      %v494 = vpop.f32.mrb[0].mxu0
      %v495 = vadd.f32 0.0, %v494
      %v496 = vpop.f32.mrb[0].mxu0
      %v497 = vpop.f32.mrb[0].mxu0
      %v498 = vadd.f32 0.0, %v497
      %v499 = vpop.f32.mrb[0].mxu0
      %500 = vmatprep.mubr.bf16.mxu0 0
      %501 = vmatmul.mubr.bf16.gmra.mrb[0].mxu0 %v396
      %v502 = vpop.f32.mrb[0].mxu0
      %v503 = vadd.f32 0.0, %v502
      %v504 = vpop.f32.mrb[0].mxu0
      %v505 = vpop.f32.mrb[0].mxu0
      %v506 = vadd.f32 0.0, %v505
      %v507 = vpop.f32.mrb[0].mxu0
      %508 = vmatprep.mubr.bf16.mxu0 0
      %509 = vmatmul.mubr.bf16.gmra.mrb[0].mxu0 %v399
      %v510 = vpop.f32.mrb[0].mxu0
      %v511 = vadd.f32 0.0, %v510
      %v512 = vpop.f32.mrb[0].mxu0
      %v513 = vpop.f32.mrb[0].mxu0
      %v514 = vadd.f32 0.0, %v513
      %v515 = vpop.f32.mrb[0].mxu0
      %516 = vmatprep.mubr.bf16.mxu0 0
      %517 = vmatmul.mubr.bf16.gmra.mrb[0].mxu0 %v402
      %v518 = vpop.f32.mrb[0].mxu0
      %v519 = vadd.f32 0.0, %v518
      %v520 = vpop.f32.mrb[0].mxu0
      %v521 = vpop.f32.mrb[0].mxu0
      %v522 = vadd.f32 0.0, %v521
      %v523 = vpop.f32.mrb[0].mxu0
      %524 = vmatprep.mubr.bf16.mxu0 0
      %525 = vmatmul.mubr.bf16.gmra.mrb[0].mxu0 %v405
      %v526 = vpop.f32.mrb[0].mxu0
      %v527 = vadd.f32 0.0, %v526
      %v528 = vpop.f32.mrb[0].mxu0
      %v529 = vpop.f32.mrb[0].mxu0
      %v530 = vadd.f32 0.0, %v529
      %v531 = vpop.f32.mrb[0].mxu0
      %532 = vmatprep.mubr.bf16.mxu0 0
      %533 = vmatmul.mubr.bf16.gmra.mrb[0].mxu0 %v408
      %v534 = vpop.f32.mrb[0].mxu0
      %v535 = vadd.f32 0.0, %v534
      %v536 = vpop.f32.mrb[0].mxu0
      %v537 = vpop.f32.mrb[0].mxu0
      %v538 = vadd.f32 0.0, %v537
      %v539 = vpop.f32.mrb[0].mxu0
      %540 = vmatprep.mubr.bf16.mxu0 0
      %541 = vmatmul.mubr.bf16.gmra.mrb[0].mxu0 %v411
      %v542 = vpop.f32.mrb[0].mxu0
      %v543 = vadd.f32 0.0, %v542
      %v544 = vpop.f32.mrb[0].mxu0
      %v545 = vpop.f32.mrb[0].mxu0
      %v546 = vadd.f32 0.0, %v545
      %v547 = vpop.f32.mrb[0].mxu0
      %548 = vmatprep.mubr.bf16.mxu0 0
      %549 = vmatmul.mubr.bf16.gmra.mrb[0].mxu0 %v414
      %v550 = vpop.f32.mrb[0].mxu0
      %v551 = vadd.f32 0.0, %v550
      %v552 = vpop.f32.mrb[0].mxu0
      %v553 = vpop.f32.mrb[0].mxu0
      %v554 = vadd.f32 0.0, %v553
      %v555 = vpop.f32.mrb[0].mxu0
      %556 = vmatprep.mubr.bf16.mxu0 0
      %557 = vmatmul.mubr.bf16.gmra.mrb[0].mxu0 %v417
      %v558 = vpop.f32.mrb[0].mxu0
      %v559 = vadd.f32 0.0, %v558
      %v560 = vpop.f32.mrb[0].mxu0
      %v561 = vpop.f32.mrb[0].mxu0
      %v562 = vadd.f32 0.0, %v561
      %v563 = vpop.f32.mrb[0].mxu0
      %564 = vmatprep.mubr.bf16.mxu0 0
      %565 = vmatmul.mubr.bf16.gmra.mrb[0].mxu0 %v420
      %v566 = vpop.f32.mrb[0].mxu0
      %v567 = vadd.f32 0.0, %v566
      %v568 = vpop.f32.mrb[0].mxu0
      %v569 = vpop.f32.mrb[0].mxu0
      %v570 = vadd.f32 0.0, %v569
      %v571 = vpop.f32.mrb[0].mxu0
      %572 = vmatprep.mubr.bf16.mxu0 0
      %573 = vmatmul.mubr.bf16.gmra.mrb[0].mxu0 %v423
      %v574 = vpop.f32.mrb[0].mxu0
      %v575 = vadd.f32 0.0, %v574
      %v576 = vpop.f32.mrb[0].mxu0
      %v577 = vpop.f32.mrb[0].mxu0
      %v578 = vadd.f32 0.0, %v577
      %v579 = vpop.f32.mrb[0].mxu0
      %580 = vmatprep.mubr.bf16.mxu0 0
      %581 = vmatmul.mubr.bf16.gmra.mrb[0].mxu0 %v426
      %v582 = vpop.f32.mrb[0].mxu0
      %v583 = vadd.f32 0.0, %v582
      %v584 = vpop.f32.mrb[0].mxu0
      %v585 = vpop.f32.mrb[0].mxu0
      %v586 = vadd.f32 0.0, %v585
      %v587 = vpop.f32.mrb[0].mxu0
      %588 = vmatprep.mubr.bf16.mxu0 0
      %589 = vmatmul.mubr.bf16.gmra.mrb[0].mxu0 %v429
      %v590 = vpop.f32.mrb[0].mxu0
      %v591 = vadd.f32 0.0, %v590
      %v592 = vpop.f32.mrb[0].mxu0
      %v593 = vpop.f32.mrb[0].mxu0
      %v594 = vadd.f32 0.0, %v593
      %v595 = vpop.f32.mrb[0].mxu0
      %596 = vmatprep.mubr.bf16.mxu0 0
      %597 = vmatmul.mubr.bf16.gmra.mrb[0].mxu0 %v432
      %v598 = vpop.f32.mrb[0].mxu0
      %v599 = vadd.f32 0.0, %v598
      %v600 = vpop.f32.mrb[0].mxu0
      %v601 = vpop.f32.mrb[0].mxu0
      %v602 = vadd.f32 0.0, %v601
      %v603 = vpop.f32.mrb[0].mxu0
      %604 = vmatprep.mubr.bf16.mxu0 0
      %605 = vmatmul.mubr.bf16.gmra.mrb[0].mxu0 %v435
      %v606 = vpop.f32.mrb[0].mxu0
      %v607 = vadd.f32 0.0, %v606
      %v608 = vpop.f32.mrb[0].mxu0
      %v609 = vpop.f32.mrb[0].mxu0
      %v610 = vadd.f32 0.0, %v609
      %v611 = vpop.f32.mrb[0].mxu0
      %612 = vmatprep.mubr.bf16.mxu0 0
      %613 = vmatmul.mubr.bf16.gmra.mrb[0].mxu0 %v438
      %v614 = vpop.f32.mrb[0].mxu0
      %v615 = vadd.f32 0.0, %v614
      %v616 = vpop.f32.mrb[0].mxu0
      %v617 = vpop.f32.mrb[0].mxu0
      %v618 = vadd.f32 0.0, %v617
      %v619 = vpop.f32.mrb[0].mxu0
      %620 = vdwg.mxu0
      %v622 = vunpack.c.l.b16 %v210
      %v623 = vpack.c.b16 %v288, %v622
      %vm624 = vsmask.f32 7424
      %v626 = vshrl.u32 %v623, 16
      %v628 = vshll.u32 %v623, 16
      %v630 = vrot.slane %v628, 1
      %v631 = vor.u32 %v626, %v630
      %v633 = vshll.u32 %v325, 16
      %v635 = vrot.slane %v633, 1
      %v636 = vsel %vm624, %v631, %v635
      %v637 = vshrl.u32 %v325, 16
      %v639 = vor.u32 %v637, %v635
      %v641 = vshll.u32 %v326, 16
      %v643 = vrot.slane %v641, 1
      %v644 = vsel %vm624, %v639, %v643
      %v645 = vshrl.u32 %v326, 16
      %v647 = vor.u32 %v645, %v643
      %v649 = vshll.u32 %v327, 16
      %v651 = vrot.slane %v649, 1
      %v652 = vsel %vm624, %v647, %v651
      %v653 = vshrl.u32 %v327, 16
      %v655 = vor.u32 %v653, %v651
      %v657 = vshll.u32 %v328, 16
      %v659 = vrot.slane %v657, 1
      %v660 = vsel %vm624, %v655, %v659
      %v661 = vshrl.u32 %v328, 16
      %v663 = vor.u32 %v661, %v659
      %v665 = vshll.u32 %v329, 16
      %v667 = vrot.slane %v665, 1
      %v668 = vsel %vm624, %v663, %v667
      %v669 = vshrl.u32 %v329, 16
      %v671 = vor.u32 %v669, %v667
      %v673 = vshll.u32 %v330, 16
      %v675 = vrot.slane %v673, 1
      %v676 = vsel %vm624, %v671, %v675
      %v677 = vshrl.u32 %v330, 16
      %v679 = vor.u32 %v677, %v675
      %v681 = vshll.u32 %v331, 16
      %v683 = vrot.slane %v681, 1
      %v684 = vsel %vm624, %v679, %v683
      %v685 = vshrl.u32 %v331, 16
      %v687 = vor.u32 %v685, %v683
      %v689 = vshll.u32 %v332, 16
      %v691 = vrot.slane %v689, 1
      %v692 = vsel %vm624, %v687, %v691
      %v693 = vshrl.u32 %v332, 16
      %v695 = vor.u32 %v693, %v691
      %v697 = vshll.u32 %v333, 16
      %v699 = vrot.slane %v697, 1
      %v700 = vsel %vm624, %v695, %v699
      %v701 = vshrl.u32 %v333, 16
      %v703 = vor.u32 %v701, %v699
      %v705 = vshll.u32 %v334, 16
      %v707 = vrot.slane %v705, 1
      %v708 = vsel %vm624, %v703, %v707
      %v709 = vshrl.u32 %v334, 16
      %v711 = vor.u32 %v709, %v707
      %v713 = vshll.u32 %v335, 16
      %v715 = vrot.slane %v713, 1
      %v716 = vsel %vm624, %v711, %v715
      %v717 = vshrl.u32 %v335, 16
      %v719 = vor.u32 %v717, %v715
      %v721 = vshll.u32 %v336, 16
      %v723 = vrot.slane %v721, 1
      %v724 = vsel %vm624, %v719, %v723
      %v725 = vshrl.u32 %v336, 16
      %v727 = vor.u32 %v725, %v723
      %v729 = vshll.u32 %v337, 16
      %v731 = vrot.slane %v729, 1
      %v732 = vsel %vm624, %v727, %v731
      %v733 = vshrl.u32 %v337, 16
      %v735 = vor.u32 %v733, %v731
      %v737 = vshll.u32 %v338, 16
      %v739 = vrot.slane %v737, 1
      %v740 = vsel %vm624, %v735, %v739
      %v741 = vshrl.u32 %v338, 16
      %v743 = vor.u32 %v741, %v739
      %v745 = vshll.u32 %v339, 16
      %v747 = vrot.slane %v745, 1
      %v748 = vsel %vm624, %v743, %v747
      %v749 = vshrl.u32 %v339, 16
      %v751 = vor.u32 %v749, %v747
      %v753 = vshll.u32 %v340, 16
      %v755 = vrot.slane %v753, 1
      %v756 = vsel %vm624, %v751, %v755
      %v757 = vshrl.u32 %v340, 16
      %v759 = vor.u32 %v757, %v755
      %v761 = vshll.u32 %v341, 16
      %v763 = vrot.slane %v761, 1
      %v764 = vsel %vm624, %v759, %v763
      %v765 = vshrl.u32 %v341, 16
      %v767 = vor.u32 %v765, %v763
      %v769 = vshll.u32 %v342, 16
      %v771 = vrot.slane %v769, 1
      %v772 = vsel %vm624, %v767, %v771
      %v774 = vsel %vm385, %v636, 0
      %v777 = vsel %vm385, %v644, 0
      %v780 = vsel %vm385, %v652, 0
      %v783 = vsel %vm385, %v660, 0
      %v786 = vsel %vm385, %v668, 0
      %v789 = vsel %vm385, %v676, 0
      %v792 = vsel %vm385, %v684, 0
      %v795 = vsel %vm385, %v692, 0
      %v798 = vsel %vm385, %v700, 0
      %v801 = vsel %vm385, %v708, 0
      %v804 = vsel %vm385, %v716, 0
      %v807 = vsel %vm385, %v724, 0
      %v810 = vsel %vm385, %v732, 0
      %v813 = vsel %vm385, %v740, 0
      %v816 = vsel %vm385, %v748, 0
      %v819 = vsel %vm385, %v756, 0
      %v822 = vsel %vm385, %v764, 0
      %v825 = vsel %vm385, %v772, 0
      %v828 = vsel %vm440, %v247, 0
      %830 = vmatprep.subr.bf16.mxu0 0
      %831 = vmatpush1.bf16.msra.mxu0 %v828
      %832 = vmatprep.subr.bf16.mxu0 0
      %833 = vmatpush1.bf16.msra.mxu0 0
      %834 = vmatprep.subr.bf16.mxu0 0
      %835 = vmatpush1.bf16.msra.mxu0 0
      %836 = vmatprep.subr.bf16.mxu0 0
      %837 = vmatpush1.bf16.msra.mxu0 0
      %838 = vmatprep.subr.bf16.mxu0 0
      %839 = vmatpush1.bf16.msra.mxu0 0
      %840 = vmatprep.subr.bf16.mxu0 0
      %841 = vmatpush1.bf16.msra.mxu0 0
      %842 = vmatprep.subr.bf16.mxu0 0
      %843 = vmatpush1.bf16.msra.mxu0 0
      %844 = vmatprep.subr.bf16.mxu0 0
      %845 = vmatpush1.bf16.msra.mxu0 0
      %846 = vmatprep.subr.bf16.mxu0 0
      %847 = vmatpush1.bf16.msra.mxu0 0
      %848 = vmatprep.subr.bf16.mxu0 0
      %849 = vmatpush1.bf16.msra.mxu0 0
      %850 = vmatprep.subr.bf16.mxu0 0
      %851 = vmatpush1.bf16.msra.mxu0 0
      %852 = vmatprep.subr.bf16.mxu0 0
      %853 = vmatpush1.bf16.msra.mxu0 0
      %854 = vmatprep.subr.bf16.mxu0 0
      %855 = vmatpush1.bf16.msra.mxu0 0
      %856 = vmatprep.subr.bf16.mxu0 0
      %857 = vmatpush1.bf16.msra.mxu0 0
      %858 = vmatprep.subr.bf16.mxu0 0
      %859 = vmatpush1.bf16.msra.mxu0 0
      %860 = vmatprep.subr.bf16.mxu0 0
      %861 = vmatpush1.bf16.msra.mxu0 0
      %862 = vmatprep.mubr.bf16.mxu0 0
      %863 = vmatmul.mubr.bf16.gmra.mrb[0].mxu0 %v774
      %v864 = vpop.f32.mrb[0].mxu0
      %v865 = vadd.f32 %v479, %v864
      %v866 = vpop.f32.mrb[0].mxu0
      %v867 = vpop.f32.mrb[0].mxu0
      %v868 = vadd.f32 %v482, %v867
      %v869 = vpop.f32.mrb[0].mxu0
      %870 = vmatprep.mubr.bf16.mxu0 0
      %871 = vmatmul.mubr.bf16.gmra.mrb[0].mxu0 %v777
      %v872 = vpop.f32.mrb[0].mxu0
      %v873 = vadd.f32 %v487, %v872
      %v874 = vpop.f32.mrb[0].mxu0
      %v875 = vpop.f32.mrb[0].mxu0
      %v876 = vadd.f32 %v490, %v875
      %v877 = vpop.f32.mrb[0].mxu0
      %878 = vmatprep.mubr.bf16.mxu0 0
      %879 = vmatmul.mubr.bf16.gmra.mrb[0].mxu0 %v780
      %v880 = vpop.f32.mrb[0].mxu0
      %v881 = vadd.f32 %v495, %v880
      %v882 = vpop.f32.mrb[0].mxu0
      %v883 = vpop.f32.mrb[0].mxu0
      %v884 = vadd.f32 %v498, %v883
      %v885 = vpop.f32.mrb[0].mxu0
      %886 = vmatprep.mubr.bf16.mxu0 0
      %887 = vmatmul.mubr.bf16.gmra.mrb[0].mxu0 %v783
      %v888 = vpop.f32.mrb[0].mxu0
      %v889 = vadd.f32 %v503, %v888
      %v890 = vpop.f32.mrb[0].mxu0
      %v891 = vpop.f32.mrb[0].mxu0
      %v892 = vadd.f32 %v506, %v891
      %v893 = vpop.f32.mrb[0].mxu0
      %894 = vmatprep.mubr.bf16.mxu0 0
      %895 = vmatmul.mubr.bf16.gmra.mrb[0].mxu0 %v786
      %v896 = vpop.f32.mrb[0].mxu0
      %v897 = vadd.f32 %v511, %v896
      %v898 = vpop.f32.mrb[0].mxu0
      %v899 = vpop.f32.mrb[0].mxu0
      %v900 = vadd.f32 %v514, %v899
      %v901 = vpop.f32.mrb[0].mxu0
      %902 = vmatprep.mubr.bf16.mxu0 0
      %903 = vmatmul.mubr.bf16.gmra.mrb[0].mxu0 %v789
      %v904 = vpop.f32.mrb[0].mxu0
      %v905 = vadd.f32 %v519, %v904
      %v906 = vpop.f32.mrb[0].mxu0
      %v907 = vpop.f32.mrb[0].mxu0
      %v908 = vadd.f32 %v522, %v907
      %v909 = vpop.f32.mrb[0].mxu0
      %910 = vmatprep.mubr.bf16.mxu0 0
      %911 = vmatmul.mubr.bf16.gmra.mrb[0].mxu0 %v792
      %v912 = vpop.f32.mrb[0].mxu0
      %v913 = vadd.f32 %v527, %v912
      %v914 = vpop.f32.mrb[0].mxu0
      %v915 = vpop.f32.mrb[0].mxu0
      %v916 = vadd.f32 %v530, %v915
      %v917 = vpop.f32.mrb[0].mxu0
      %918 = vmatprep.mubr.bf16.mxu0 0
      %919 = vmatmul.mubr.bf16.gmra.mrb[0].mxu0 %v795
      %v920 = vpop.f32.mrb[0].mxu0
      %v921 = vadd.f32 %v535, %v920
      %v922 = vpop.f32.mrb[0].mxu0
      %v923 = vpop.f32.mrb[0].mxu0
      %v924 = vadd.f32 %v538, %v923
      %v925 = vpop.f32.mrb[0].mxu0
      %926 = vmatprep.mubr.bf16.mxu0 0
      %927 = vmatmul.mubr.bf16.gmra.mrb[0].mxu0 %v798
      %v928 = vpop.f32.mrb[0].mxu0
      %v929 = vadd.f32 %v543, %v928
      %v930 = vpop.f32.mrb[0].mxu0
      %v931 = vpop.f32.mrb[0].mxu0
      %v932 = vadd.f32 %v546, %v931
      %v933 = vpop.f32.mrb[0].mxu0
      %934 = vmatprep.mubr.bf16.mxu0 0
      %935 = vmatmul.mubr.bf16.gmra.mrb[0].mxu0 %v801
      %v936 = vpop.f32.mrb[0].mxu0
      %v937 = vadd.f32 %v551, %v936
      %v938 = vpop.f32.mrb[0].mxu0
      %v939 = vpop.f32.mrb[0].mxu0
      %v940 = vadd.f32 %v554, %v939
      %v941 = vpop.f32.mrb[0].mxu0
      %942 = vmatprep.mubr.bf16.mxu0 0
      %943 = vmatmul.mubr.bf16.gmra.mrb[0].mxu0 %v804
      %v944 = vpop.f32.mrb[0].mxu0
      %v945 = vadd.f32 %v559, %v944
      %v946 = vpop.f32.mrb[0].mxu0
      %v947 = vpop.f32.mrb[0].mxu0
      %v948 = vadd.f32 %v562, %v947
      %v949 = vpop.f32.mrb[0].mxu0
      %950 = vmatprep.mubr.bf16.mxu0 0
      %951 = vmatmul.mubr.bf16.gmra.mrb[0].mxu0 %v807
      %v952 = vpop.f32.mrb[0].mxu0
      %v953 = vadd.f32 %v567, %v952
      %v954 = vpop.f32.mrb[0].mxu0
      %v955 = vpop.f32.mrb[0].mxu0
      %v956 = vadd.f32 %v570, %v955
      %v957 = vpop.f32.mrb[0].mxu0
      %958 = vmatprep.mubr.bf16.mxu0 0
      %959 = vmatmul.mubr.bf16.gmra.mrb[0].mxu0 %v810
      %v960 = vpop.f32.mrb[0].mxu0
      %v961 = vadd.f32 %v575, %v960
      %v962 = vpop.f32.mrb[0].mxu0
      %v963 = vpop.f32.mrb[0].mxu0
      %v964 = vadd.f32 %v578, %v963
      %v965 = vpop.f32.mrb[0].mxu0
      %966 = vmatprep.mubr.bf16.mxu0 0
      %967 = vmatmul.mubr.bf16.gmra.mrb[0].mxu0 %v813
      %v968 = vpop.f32.mrb[0].mxu0
      %v969 = vadd.f32 %v583, %v968
      %v970 = vpop.f32.mrb[0].mxu0
      %v971 = vpop.f32.mrb[0].mxu0
      %v972 = vadd.f32 %v586, %v971
      %v973 = vpop.f32.mrb[0].mxu0
      %974 = vmatprep.mubr.bf16.mxu0 0
      %975 = vmatmul.mubr.bf16.gmra.mrb[0].mxu0 %v816
      %v976 = vpop.f32.mrb[0].mxu0
      %v977 = vadd.f32 %v591, %v976
      %v978 = vpop.f32.mrb[0].mxu0
      %v979 = vpop.f32.mrb[0].mxu0
      %v980 = vadd.f32 %v594, %v979
      %v981 = vpop.f32.mrb[0].mxu0
      %982 = vmatprep.mubr.bf16.mxu0 0
      %983 = vmatmul.mubr.bf16.gmra.mrb[0].mxu0 %v819
      %v984 = vpop.f32.mrb[0].mxu0
      %v985 = vadd.f32 %v599, %v984
      %v986 = vpop.f32.mrb[0].mxu0
      %v987 = vpop.f32.mrb[0].mxu0
      %v988 = vadd.f32 %v602, %v987
      %v989 = vpop.f32.mrb[0].mxu0
      %990 = vmatprep.mubr.bf16.mxu0 0
      %991 = vmatmul.mubr.bf16.gmra.mrb[0].mxu0 %v822
      %v992 = vpop.f32.mrb[0].mxu0
      %v993 = vadd.f32 %v607, %v992
      %v994 = vpop.f32.mrb[0].mxu0
      %v995 = vpop.f32.mrb[0].mxu0
      %v996 = vadd.f32 %v610, %v995
      %v997 = vpop.f32.mrb[0].mxu0
      %998 = vmatprep.mubr.bf16.mxu0 0
      %999 = vmatmul.mubr.bf16.gmra.mrb[0].mxu0 %v825
      %v1000 = vpop.f32.mrb[0].mxu0
      %v1001 = vadd.f32 %v615, %v1000
      %v1002 = vpop.f32.mrb[0].mxu0
      %v1003 = vpop.f32.mrb[0].mxu0
      %v1004 = vadd.f32 %v618, %v1003
      %v1005 = vpop.f32.mrb[0].mxu0
      %1006 = vdwg.mxu0
      %v1007 = vld [vmem:[%s199 + $0x98] sm:$0x3]
      %v1008 = vld [vmem:[%s1 + $0x4] sm:$0x3]
      %v1010 = vunpack.c.l.b16 %v1007
      %v1011 = vpack.c.b16 %v1010, %v1010
      %vm1012 = vsmask.f32 6400
      %v1014 = vshrl.u32 %v324, 16
      %v1016 = vrot.slane %v1014, 1
      %v1017 = vshll.u32 %v324, 16
      %v1019 = vrot.slane %v1017, 2
      %v1020 = vor.u32 %v1016, %v1019
      %v1021 = vrot.slane %v637, 1
      %v1022 = vrot.slane %v633, 2
      %v1023 = vor.u32 %v1021, %v1022
      %v1024 = vsel %vm1012, %v1020, %v1023
      %v1025 = vrot.slane %v645, 1
      %v1026 = vrot.slane %v641, 2
      %v1027 = vor.u32 %v1025, %v1026
      %v1028 = vsel %vm1012, %v1023, %v1027
      %v1029 = vrot.slane %v653, 1
      %v1030 = vrot.slane %v649, 2
      %v1031 = vor.u32 %v1029, %v1030
      %v1032 = vsel %vm1012, %v1027, %v1031
      %v1033 = vrot.slane %v661, 1
      %v1034 = vrot.slane %v657, 2
      %v1035 = vor.u32 %v1033, %v1034
      %v1036 = vsel %vm1012, %v1031, %v1035
      %v1037 = vrot.slane %v669, 1
      %v1038 = vrot.slane %v665, 2
      %v1039 = vor.u32 %v1037, %v1038
      %v1040 = vsel %vm1012, %v1035, %v1039
      %v1041 = vrot.slane %v677, 1
      %v1042 = vrot.slane %v673, 2
      %v1043 = vor.u32 %v1041, %v1042
      %v1044 = vsel %vm1012, %v1039, %v1043
      %v1045 = vrot.slane %v685, 1
      %v1046 = vrot.slane %v681, 2
      %v1047 = vor.u32 %v1045, %v1046
      %v1048 = vsel %vm1012, %v1043, %v1047
      %v1049 = vrot.slane %v693, 1
      %v1050 = vrot.slane %v689, 2
      %v1051 = vor.u32 %v1049, %v1050
      %v1052 = vsel %vm1012, %v1047, %v1051
      %v1053 = vrot.slane %v701, 1
      %v1054 = vrot.slane %v697, 2
      %v1055 = vor.u32 %v1053, %v1054
      %v1056 = vsel %vm1012, %v1051, %v1055
      %v1057 = vrot.slane %v709, 1
      %v1058 = vrot.slane %v705, 2
      %v1059 = vor.u32 %v1057, %v1058
      %v1060 = vsel %vm1012, %v1055, %v1059
      %v1061 = vrot.slane %v717, 1
      %v1062 = vrot.slane %v713, 2
      %v1063 = vor.u32 %v1061, %v1062
      %v1064 = vsel %vm1012, %v1059, %v1063
      %v1065 = vrot.slane %v725, 1
      %v1066 = vrot.slane %v721, 2
      %v1067 = vor.u32 %v1065, %v1066
      %v1068 = vsel %vm1012, %v1063, %v1067
      %v1069 = vrot.slane %v733, 1
      %v1070 = vrot.slane %v729, 2
      %v1071 = vor.u32 %v1069, %v1070
      %v1072 = vsel %vm1012, %v1067, %v1071
      %v1073 = vrot.slane %v741, 1
      %v1074 = vrot.slane %v737, 2
      %v1075 = vor.u32 %v1073, %v1074
      %v1076 = vsel %vm1012, %v1071, %v1075
      %v1077 = vrot.slane %v749, 1
      %v1078 = vrot.slane %v745, 2
      %v1079 = vor.u32 %v1077, %v1078
      %v1080 = vsel %vm1012, %v1075, %v1079
      %v1081 = vrot.slane %v757, 1
      %v1082 = vrot.slane %v753, 2
      %v1083 = vor.u32 %v1081, %v1082
      %v1084 = vsel %vm1012, %v1079, %v1083
      %v1085 = vrot.slane %v765, 1
      %v1086 = vrot.slane %v761, 2
      %v1087 = vor.u32 %v1085, %v1086
      %v1088 = vsel %vm1012, %v1083, %v1087
      %v1090 = vshrl.u32 %v1011, 16
      %v1092 = vrot.slane %v1090, 1
      %v1093 = vshll.u32 %v1011, 16
      %v1095 = vrot.slane %v1093, 2
      %v1096 = vor.u32 %v1092, %v1095
      %v1097 = vsel %vm1012, %v1087, %v1096
      %v1099 = vsel %vm385, %v1024, 0
      %v1102 = vsel %vm385, %v1028, 0
      %v1105 = vsel %vm385, %v1032, 0
      %v1108 = vsel %vm385, %v1036, 0
      %v1111 = vsel %vm385, %v1040, 0
      %v1114 = vsel %vm385, %v1044, 0
      %v1117 = vsel %vm385, %v1048, 0
      %v1120 = vsel %vm385, %v1052, 0
      %v1123 = vsel %vm385, %v1056, 0
      %v1126 = vsel %vm385, %v1060, 0
      %v1129 = vsel %vm385, %v1064, 0
      %v1132 = vsel %vm385, %v1068, 0
      %v1135 = vsel %vm385, %v1072, 0
      %v1138 = vsel %vm385, %v1076, 0
      %v1141 = vsel %vm385, %v1080, 0
      %v1144 = vsel %vm385, %v1084, 0
      %v1147 = vsel %vm385, %v1088, 0
      %v1150 = vsel %vm385, %v1097, 0
      %v1153 = vsel %vm440, %v1008, 0
      %1155 = vmatprep.subr.bf16.mxu0 0
      %1156 = vmatpush1.bf16.msra.mxu0 %v1153
      %1157 = vmatprep.subr.bf16.mxu0 0
      %1158 = vmatpush1.bf16.msra.mxu0 0
      %1159 = vmatprep.subr.bf16.mxu0 0
      %1160 = vmatpush1.bf16.msra.mxu0 0
      %1161 = vmatprep.subr.bf16.mxu0 0
      %1162 = vmatpush1.bf16.msra.mxu0 0
      %1163 = vmatprep.subr.bf16.mxu0 0
      %1164 = vmatpush1.bf16.msra.mxu0 0
      %1165 = vmatprep.subr.bf16.mxu0 0
      %1166 = vmatpush1.bf16.msra.mxu0 0
      %1167 = vmatprep.subr.bf16.mxu0 0
      %1168 = vmatpush1.bf16.msra.mxu0 0
      %1169 = vmatprep.subr.bf16.mxu0 0
      %1170 = vmatpush1.bf16.msra.mxu0 0
      %1171 = vmatprep.subr.bf16.mxu0 0
      %1172 = vmatpush1.bf16.msra.mxu0 0
      %1173 = vmatprep.subr.bf16.mxu0 0
      %1174 = vmatpush1.bf16.msra.mxu0 0
      %1175 = vmatprep.subr.bf16.mxu0 0
      %1176 = vmatpush1.bf16.msra.mxu0 0
      %1177 = vmatprep.subr.bf16.mxu0 0
      %1178 = vmatpush1.bf16.msra.mxu0 0
      %1179 = vmatprep.subr.bf16.mxu0 0
      %1180 = vmatpush1.bf16.msra.mxu0 0
      %1181 = vmatprep.subr.bf16.mxu0 0
      %1182 = vmatpush1.bf16.msra.mxu0 0
      %1183 = vmatprep.subr.bf16.mxu0 0
      %1184 = vmatpush1.bf16.msra.mxu0 0
      %1185 = vmatprep.subr.bf16.mxu0 0
      %1186 = vmatpush1.bf16.msra.mxu0 0
      %1187 = vmatprep.mubr.bf16.mxu0 0
      %1188 = vmatmul.mubr.bf16.gmra.mrb[0].mxu0 %v1099
      %v1189 = vpop.f32.mrb[0].mxu0
      %v1190 = vadd.f32 0.0, %v1189
      %v1191 = vpop.f32.mrb[0].mxu0
      %v1192 = vpop.f32.mrb[0].mxu0
      %v1193 = vadd.f32 0.0, %v1192
      %v1194 = vpop.f32.mrb[0].mxu0
      %1195 = vmatprep.mubr.bf16.mxu0 0
      %1196 = vmatmul.mubr.bf16.gmra.mrb[0].mxu0 %v1102
      %v1197 = vpop.f32.mrb[0].mxu0
      %v1198 = vadd.f32 0.0, %v1197
      %v1199 = vpop.f32.mrb[0].mxu0
      %v1200 = vpop.f32.mrb[0].mxu0
      %v1201 = vadd.f32 0.0, %v1200
      %v1202 = vpop.f32.mrb[0].mxu0
      %1203 = vmatprep.mubr.bf16.mxu0 0
      %1204 = vmatmul.mubr.bf16.gmra.mrb[0].mxu0 %v1105
      %v1205 = vpop.f32.mrb[0].mxu0
      %v1206 = vadd.f32 0.0, %v1205
      %v1207 = vpop.f32.mrb[0].mxu0
      %v1208 = vpop.f32.mrb[0].mxu0
      %v1209 = vadd.f32 0.0, %v1208
      %v1210 = vpop.f32.mrb[0].mxu0
      %1211 = vmatprep.mubr.bf16.mxu0 0
      %1212 = vmatmul.mubr.bf16.gmra.mrb[0].mxu0 %v1108
      %v1213 = vpop.f32.mrb[0].mxu0
      %v1214 = vadd.f32 0.0, %v1213
      %v1215 = vpop.f32.mrb[0].mxu0
      %v1216 = vpop.f32.mrb[0].mxu0
      %v1217 = vadd.f32 0.0, %v1216
      %v1218 = vpop.f32.mrb[0].mxu0
      %1219 = vmatprep.mubr.bf16.mxu0 0
      %1220 = vmatmul.mubr.bf16.gmra.mrb[0].mxu0 %v1111
      %v1221 = vpop.f32.mrb[0].mxu0
      %v1222 = vadd.f32 0.0, %v1221
      %v1223 = vpop.f32.mrb[0].mxu0
      %v1224 = vpop.f32.mrb[0].mxu0
      %v1225 = vadd.f32 0.0, %v1224
      %v1226 = vpop.f32.mrb[0].mxu0
      %1227 = vmatprep.mubr.bf16.mxu0 0
      %1228 = vmatmul.mubr.bf16.gmra.mrb[0].mxu0 %v1114
      %v1229 = vpop.f32.mrb[0].mxu0
      %v1230 = vadd.f32 0.0, %v1229
      %v1231 = vpop.f32.mrb[0].mxu0
      %v1232 = vpop.f32.mrb[0].mxu0
      %v1233 = vadd.f32 0.0, %v1232
      %v1234 = vpop.f32.mrb[0].mxu0
      %1235 = vmatprep.mubr.bf16.mxu0 0
      %1236 = vmatmul.mubr.bf16.gmra.mrb[0].mxu0 %v1117
      %v1237 = vpop.f32.mrb[0].mxu0
      %v1238 = vadd.f32 0.0, %v1237
      %v1239 = vpop.f32.mrb[0].mxu0
      %v1240 = vpop.f32.mrb[0].mxu0
      %v1241 = vadd.f32 0.0, %v1240
      %v1242 = vpop.f32.mrb[0].mxu0
      %1243 = vmatprep.mubr.bf16.mxu0 0
      %1244 = vmatmul.mubr.bf16.gmra.mrb[0].mxu0 %v1120
      %v1245 = vpop.f32.mrb[0].mxu0
      %v1246 = vadd.f32 0.0, %v1245
      %v1247 = vpop.f32.mrb[0].mxu0
      %v1248 = vpop.f32.mrb[0].mxu0
      %v1249 = vadd.f32 0.0, %v1248
      %v1250 = vpop.f32.mrb[0].mxu0
      %1251 = vmatprep.mubr.bf16.mxu0 0
      %1252 = vmatmul.mubr.bf16.gmra.mrb[0].mxu0 %v1123
      %v1253 = vpop.f32.mrb[0].mxu0
      %v1254 = vadd.f32 0.0, %v1253
      %v1255 = vpop.f32.mrb[0].mxu0
      %v1256 = vpop.f32.mrb[0].mxu0
      %v1257 = vadd.f32 0.0, %v1256
      %v1258 = vpop.f32.mrb[0].mxu0
      %1259 = vmatprep.mubr.bf16.mxu0 0
      %1260 = vmatmul.mubr.bf16.gmra.mrb[0].mxu0 %v1126
      %v1261 = vpop.f32.mrb[0].mxu0
      %v1262 = vadd.f32 0.0, %v1261
      %v1263 = vpop.f32.mrb[0].mxu0
      %v1264 = vpop.f32.mrb[0].mxu0
      %v1265 = vadd.f32 0.0, %v1264
      %v1266 = vpop.f32.mrb[0].mxu0
      %1267 = vmatprep.mubr.bf16.mxu0 0
      %1268 = vmatmul.mubr.bf16.gmra.mrb[0].mxu0 %v1129
      %v1269 = vpop.f32.mrb[0].mxu0
      %v1270 = vadd.f32 0.0, %v1269
      %v1271 = vpop.f32.mrb[0].mxu0
      %v1272 = vpop.f32.mrb[0].mxu0
      %v1273 = vadd.f32 0.0, %v1272
      %v1274 = vpop.f32.mrb[0].mxu0
      %1275 = vmatprep.mubr.bf16.mxu0 0
      %1276 = vmatmul.mubr.bf16.gmra.mrb[0].mxu0 %v1132
      %v1277 = vpop.f32.mrb[0].mxu0
      %v1278 = vadd.f32 0.0, %v1277
      %v1279 = vpop.f32.mrb[0].mxu0
      %v1280 = vpop.f32.mrb[0].mxu0
      %v1281 = vadd.f32 0.0, %v1280
      %v1282 = vpop.f32.mrb[0].mxu0
      %1283 = vmatprep.mubr.bf16.mxu0 0
      %1284 = vmatmul.mubr.bf16.gmra.mrb[0].mxu0 %v1135
      %v1285 = vpop.f32.mrb[0].mxu0
      %v1286 = vadd.f32 0.0, %v1285
      %v1287 = vpop.f32.mrb[0].mxu0
      %v1288 = vpop.f32.mrb[0].mxu0
      %v1289 = vadd.f32 0.0, %v1288
      %v1290 = vpop.f32.mrb[0].mxu0
      %1291 = vmatprep.mubr.bf16.mxu0 0
      %1292 = vmatmul.mubr.bf16.gmra.mrb[0].mxu0 %v1138
      %v1293 = vpop.f32.mrb[0].mxu0
      %v1294 = vadd.f32 0.0, %v1293
      %v1295 = vpop.f32.mrb[0].mxu0
      %v1296 = vpop.f32.mrb[0].mxu0
      %v1297 = vadd.f32 0.0, %v1296
      %v1298 = vpop.f32.mrb[0].mxu0
      %1299 = vmatprep.mubr.bf16.mxu0 0
      %1300 = vmatmul.mubr.bf16.gmra.mrb[0].mxu0 %v1141
      %v1301 = vpop.f32.mrb[0].mxu0
      %v1302 = vadd.f32 0.0, %v1301
      %v1303 = vpop.f32.mrb[0].mxu0
      %v1304 = vpop.f32.mrb[0].mxu0
      %v1305 = vadd.f32 0.0, %v1304
      %v1306 = vpop.f32.mrb[0].mxu0
      %1307 = vmatprep.mubr.bf16.mxu0 0
      %1308 = vmatmul.mubr.bf16.gmra.mrb[0].mxu0 %v1144
      %v1309 = vpop.f32.mrb[0].mxu0
      %v1310 = vadd.f32 0.0, %v1309
      %v1311 = vpop.f32.mrb[0].mxu0
      %v1312 = vpop.f32.mrb[0].mxu0
      %v1313 = vadd.f32 0.0, %v1312
      %v1314 = vpop.f32.mrb[0].mxu0
      %1315 = vmatprep.mubr.bf16.mxu0 0
      %1316 = vmatmul.mubr.bf16.gmra.mrb[0].mxu0 %v1147
      %v1317 = vpop.f32.mrb[0].mxu0
      %v1318 = vadd.f32 0.0, %v1317
      %v1319 = vpop.f32.mrb[0].mxu0
      %v1320 = vpop.f32.mrb[0].mxu0
      %v1321 = vadd.f32 0.0, %v1320
      %v1322 = vpop.f32.mrb[0].mxu0
      %1323 = vmatprep.mubr.bf16.mxu0 0
      %1324 = vmatmul.mubr.bf16.gmra.mrb[0].mxu0 %v1150
      %v1325 = vpop.f32.mrb[0].mxu0
      %v1326 = vadd.f32 0.0, %v1325
      %v1327 = vpop.f32.mrb[0].mxu0
      %v1328 = vpop.f32.mrb[0].mxu0
      %v1329 = vadd.f32 0.0, %v1328
      %v1330 = vpop.f32.mrb[0].mxu0
      %1331 = vdwg.mxu0
      %v1332 = vadd.f32 %v865, %v1190
      %v1333 = vadd.f32 %v868, %v1193
      %v1334 = vadd.f32 %v873, %v1198
      %v1335 = vadd.f32 %v876, %v1201
      %v1336 = vadd.f32 %v881, %v1206
      %v1337 = vadd.f32 %v884, %v1209
      %v1338 = vadd.f32 %v889, %v1214
      %v1339 = vadd.f32 %v892, %v1217
      %v1340 = vadd.f32 %v897, %v1222
      %v1341 = vadd.f32 %v900, %v1225
      %v1342 = vadd.f32 %v905, %v1230
      %v1343 = vadd.f32 %v908, %v1233
      %v1344 = vadd.f32 %v913, %v1238
      %v1345 = vadd.f32 %v916, %v1241
      %v1346 = vadd.f32 %v921, %v1246
      %v1347 = vadd.f32 %v924, %v1249
      %v1348 = vadd.f32 %v929, %v1254
      %v1349 = vadd.f32 %v932, %v1257
      %v1350 = vadd.f32 %v937, %v1262
      %v1351 = vadd.f32 %v940, %v1265
      %v1352 = vadd.f32 %v945, %v1270
      %v1353 = vadd.f32 %v948, %v1273
      %v1354 = vadd.f32 %v953, %v1278
      %v1355 = vadd.f32 %v956, %v1281
      %v1356 = vadd.f32 %v961, %v1286
      %v1357 = vadd.f32 %v964, %v1289
      %v1358 = vadd.f32 %v969, %v1294
      %v1359 = vadd.f32 %v972, %v1297
      %v1360 = vadd.f32 %v977, %v1302
      %v1361 = vadd.f32 %v980, %v1305
      %v1362 = vadd.f32 %v985, %v1310
      %v1363 = vadd.f32 %v988, %v1313
      %v1364 = vadd.f32 %v993, %v1318
      %v1365 = vadd.f32 %v996, %v1321
      %v1366 = vadd.f32 %v1001, %v1326
      %v1367 = vadd.f32 %v1004, %v1329
      %v1368 = vld [vmem:[%s199 + $0x10] sm:$0xe]
      %v1369 = vld [vmem:[%s199 + $0x14] sm:$0xf]
      %v1370 = vld [vmem:[%s199 + $0x18] sm:$0xf]
      %v1371 = vld [vmem:[%s199 + $0x1c] sm:$0xf]
      %v1372 = vld [vmem:[%s199 + $0x20] sm:$0xf]
      %v1373 = vld [vmem:[%s199 + $0x24] sm:$0xf]
      %v1374 = vld [vmem:[%s199 + $0x28] sm:$0xf]
      %v1375 = vld [vmem:[%s199 + $0x2c] sm:$0xf]
      %v1376 = vld [vmem:[%s199 + $0x30] sm:$0xf]
      %v1377 = vld [vmem:[%s199 + $0x34] sm:$0xf]
      %v1378 = vld [vmem:[%s199 + $0x38] sm:$0xf]
      %v1379 = vld [vmem:[%s199 + $0x3c] sm:$0xf]
      %v1380 = vld [vmem:[%s199 + $0x40] sm:$0xf]
      %v1381 = vld [vmem:[%s199 + $0x44] sm:$0xf]
      %v1382 = vld [vmem:[%s199 + $0x48] sm:$0xf]
      %v1383 = vld [vmem:[%s199 + $0x4c] sm:$0xf]
      %v1384 = vld [vmem:[%s199 + $0x50] sm:$0xf]
      %v1385 = vld [vmem:[%s199 + $0x54] sm:$0xf]
      %v1386 = vld [vmem:[%s199 + $0x58] sm:$0xf]
      %v1387 = vld [vmem:[%s199 + $0x5c] sm:$0xf]
      %v1388 = vld [vmem:[%s199 + $0x60] sm:$0xf]
      %v1389 = vld [vmem:[%s199 + $0x64] sm:$0xf]
      %v1390 = vld [vmem:[%s199 + $0x68] sm:$0xf]
      %v1391 = vld [vmem:[%s199 + $0x6c] sm:$0xf]
      %v1392 = vld [vmem:[%s199 + $0x70] sm:$0xf]
      %v1393 = vld [vmem:[%s199 + $0x74] sm:$0xf]
      %v1394 = vld [vmem:[%s199 + $0x78] sm:$0xf]
      %v1395 = vld [vmem:[%s199 + $0x7c] sm:$0xf]
      %v1396 = vld [vmem:[%s199 + $0x80] sm:$0xf]
      %v1397 = vld [vmem:[%s199 + $0x84] sm:$0xf]
      %v1398 = vld [vmem:[%s199 + $0x88] sm:$0xf]
      %v1399 = vld [vmem:[%s199 + $0x8c] sm:$0xf]
      %v1400 = vld [vmem:[%s199 + $0x90] sm:$0xf]
      %v1401 = vld [vmem:[%s199 + $0x94] sm:$0xf]
      %v1402 = vld [vmem:[%s199 + $0x98] sm:$0xf]
      %v1403 = vld [vmem:[%s199 + $0x9c] sm:$0xf]
      %v1404 = vld [vmem:[%s199 + $0xa0] sm:$0x3]
      %v1405 = vld [vmem:[%s1 + $0x4] sm:$0xc]
      %v1443 = vunpack.c.l.b16 %v1368
      %v1444 = vunpack.c.l.b16 %v1369
      %v1445 = vunpack.c.l.b16 %v1370
      %v1446 = vunpack.c.l.b16 %v1371
      %v1447 = vunpack.c.l.b16 %v1372
      %v1448 = vunpack.c.l.b16 %v1373
      %v1449 = vunpack.c.l.b16 %v1374
      %v1450 = vunpack.c.l.b16 %v1375
      %v1451 = vunpack.c.l.b16 %v1376
      %v1452 = vunpack.c.l.b16 %v1377
      %v1453 = vunpack.c.l.b16 %v1378
      %v1454 = vunpack.c.l.b16 %v1379
      %v1455 = vunpack.c.l.b16 %v1380
      %v1456 = vunpack.c.l.b16 %v1381
      %v1457 = vunpack.c.l.b16 %v1382
      %v1458 = vunpack.c.l.b16 %v1383
      %v1459 = vunpack.c.l.b16 %v1384
      %v1460 = vunpack.c.l.b16 %v1385
      %v1461 = vunpack.c.l.b16 %v1386
      %v1462 = vunpack.c.l.b16 %v1387
      %v1463 = vunpack.c.l.b16 %v1388
      %v1464 = vunpack.c.l.b16 %v1389
      %v1465 = vunpack.c.l.b16 %v1390
      %v1466 = vunpack.c.l.b16 %v1391
      %v1467 = vunpack.c.l.b16 %v1392
      %v1468 = vunpack.c.l.b16 %v1393
      %v1469 = vunpack.c.l.b16 %v1394
      %v1470 = vunpack.c.l.b16 %v1395
      %v1471 = vunpack.c.l.b16 %v1396
      %v1472 = vunpack.c.l.b16 %v1397
      %v1473 = vunpack.c.l.b16 %v1398
      %v1474 = vunpack.c.l.b16 %v1399
      %v1475 = vunpack.c.l.b16 %v1400
      %v1476 = vunpack.c.l.b16 %v1401
      %v1477 = vunpack.c.l.b16 %v1402
      %v1478 = vunpack.c.l.b16 %v1403
      %v1479 = vunpack.c.l.b16 %v1404
      %v1480 = vpack.c.b16 %v1444, %v1443
      %v1481 = vpack.c.b16 %v1446, %v1445
      %v1482 = vpack.c.b16 %v1448, %v1447
      %v1483 = vpack.c.b16 %v1450, %v1449
      %v1484 = vpack.c.b16 %v1452, %v1451
      %v1485 = vpack.c.b16 %v1454, %v1453
      %v1486 = vpack.c.b16 %v1456, %v1455
      %v1487 = vpack.c.b16 %v1458, %v1457
      %v1488 = vpack.c.b16 %v1460, %v1459
      %v1489 = vpack.c.b16 %v1462, %v1461
      %v1490 = vpack.c.b16 %v1464, %v1463
      %v1491 = vpack.c.b16 %v1466, %v1465
      %v1492 = vpack.c.b16 %v1468, %v1467
      %v1493 = vpack.c.b16 %v1470, %v1469
      %v1494 = vpack.c.b16 %v1472, %v1471
      %v1495 = vpack.c.b16 %v1474, %v1473
      %v1496 = vpack.c.b16 %v1476, %v1475
      %v1497 = vpack.c.b16 %v1478, %v1477
      %v1498 = vpack.c.b16 %v1479, %v1479
      %v1500 = vshrl.u32 %v1480, 16
      %v1502 = vrot.slane %v1500, 1
      %v1503 = vshll.u32 %v1480, 16
      %v1505 = vrot.slane %v1503, 2
      %v1506 = vor.u32 %v1502, %v1505
      %v1508 = vshrl.u32 %v1481, 16
      %v1510 = vrot.slane %v1508, 1
      %v1511 = vshll.u32 %v1481, 16
      %v1513 = vrot.slane %v1511, 2
      %v1514 = vor.u32 %v1510, %v1513
      %v1515 = vsel %vm1012, %v1506, %v1514
      %v1517 = vshrl.u32 %v1482, 16
      %v1519 = vrot.slane %v1517, 1
      %v1520 = vshll.u32 %v1482, 16
      %v1522 = vrot.slane %v1520, 2
      %v1523 = vor.u32 %v1519, %v1522
      %v1524 = vsel %vm1012, %v1514, %v1523
      %v1526 = vshrl.u32 %v1483, 16
      %v1528 = vrot.slane %v1526, 1
      %v1529 = vshll.u32 %v1483, 16
      %v1531 = vrot.slane %v1529, 2
      %v1532 = vor.u32 %v1528, %v1531
      %v1533 = vsel %vm1012, %v1523, %v1532
      %v1535 = vshrl.u32 %v1484, 16
      %v1537 = vrot.slane %v1535, 1
      %v1538 = vshll.u32 %v1484, 16
      %v1540 = vrot.slane %v1538, 2
      %v1541 = vor.u32 %v1537, %v1540
      %v1542 = vsel %vm1012, %v1532, %v1541
      %v1544 = vshrl.u32 %v1485, 16
      %v1546 = vrot.slane %v1544, 1
      %v1547 = vshll.u32 %v1485, 16
      %v1549 = vrot.slane %v1547, 2
      %v1550 = vor.u32 %v1546, %v1549
      %v1551 = vsel %vm1012, %v1541, %v1550
      %v1553 = vshrl.u32 %v1486, 16
      %v1555 = vrot.slane %v1553, 1
      %v1556 = vshll.u32 %v1486, 16
      %v1558 = vrot.slane %v1556, 2
      %v1559 = vor.u32 %v1555, %v1558
      %v1560 = vsel %vm1012, %v1550, %v1559
      %v1562 = vshrl.u32 %v1487, 16
      %v1564 = vrot.slane %v1562, 1
      %v1565 = vshll.u32 %v1487, 16
      %v1567 = vrot.slane %v1565, 2
      %v1568 = vor.u32 %v1564, %v1567
      %v1569 = vsel %vm1012, %v1559, %v1568
      %v1571 = vshrl.u32 %v1488, 16
      %v1573 = vrot.slane %v1571, 1
      %v1574 = vshll.u32 %v1488, 16
      %v1576 = vrot.slane %v1574, 2
      %v1577 = vor.u32 %v1573, %v1576
      %v1578 = vsel %vm1012, %v1568, %v1577
      %v1580 = vshrl.u32 %v1489, 16
      %v1582 = vrot.slane %v1580, 1
      %v1583 = vshll.u32 %v1489, 16
      %v1585 = vrot.slane %v1583, 2
      %v1586 = vor.u32 %v1582, %v1585
      %v1587 = vsel %vm1012, %v1577, %v1586
      %v1589 = vshrl.u32 %v1490, 16
      %v1591 = vrot.slane %v1589, 1
      %v1592 = vshll.u32 %v1490, 16
      %v1594 = vrot.slane %v1592, 2
      %v1595 = vor.u32 %v1591, %v1594
      %v1596 = vsel %vm1012, %v1586, %v1595
      %v1598 = vshrl.u32 %v1491, 16
      %v1600 = vrot.slane %v1598, 1
      %v1601 = vshll.u32 %v1491, 16
      %v1603 = vrot.slane %v1601, 2
      %v1604 = vor.u32 %v1600, %v1603
      %v1605 = vsel %vm1012, %v1595, %v1604
      %v1607 = vshrl.u32 %v1492, 16
      %v1609 = vrot.slane %v1607, 1
      %v1610 = vshll.u32 %v1492, 16
      %v1612 = vrot.slane %v1610, 2
      %v1613 = vor.u32 %v1609, %v1612
      %v1614 = vsel %vm1012, %v1604, %v1613
      %v1616 = vshrl.u32 %v1493, 16
      %v1618 = vrot.slane %v1616, 1
      %v1619 = vshll.u32 %v1493, 16
      %v1621 = vrot.slane %v1619, 2
      %v1622 = vor.u32 %v1618, %v1621
      %v1623 = vsel %vm1012, %v1613, %v1622
      %v1625 = vshrl.u32 %v1494, 16
      %v1627 = vrot.slane %v1625, 1
      %v1628 = vshll.u32 %v1494, 16
      %v1630 = vrot.slane %v1628, 2
      %v1631 = vor.u32 %v1627, %v1630
      %v1632 = vsel %vm1012, %v1622, %v1631
      %v1634 = vshrl.u32 %v1495, 16
      %v1636 = vrot.slane %v1634, 1
      %v1637 = vshll.u32 %v1495, 16
      %v1639 = vrot.slane %v1637, 2
      %v1640 = vor.u32 %v1636, %v1639
      %v1641 = vsel %vm1012, %v1631, %v1640
      %v1643 = vshrl.u32 %v1496, 16
      %v1645 = vrot.slane %v1643, 1
      %v1646 = vshll.u32 %v1496, 16
      %v1648 = vrot.slane %v1646, 2
      %v1649 = vor.u32 %v1645, %v1648
      %v1650 = vsel %vm1012, %v1640, %v1649
      %v1652 = vshrl.u32 %v1497, 16
      %v1654 = vrot.slane %v1652, 1
      %v1655 = vshll.u32 %v1497, 16
      %v1657 = vrot.slane %v1655, 2
      %v1658 = vor.u32 %v1654, %v1657
      %v1659 = vsel %vm1012, %v1649, %v1658
      %v1661 = vshrl.u32 %v1498, 16
      %v1663 = vrot.slane %v1661, 1
      %v1664 = vshll.u32 %v1498, 16
      %v1666 = vrot.slane %v1664, 2
      %v1667 = vor.u32 %v1663, %v1666
      %v1668 = vsel %vm1012, %v1658, %v1667
      %v1670 = vunpack.c.l.b16 %v1405
      %v1671 = vpack.c.b16 %v1670, %v1670
      %v1672 = vrot.slane %v1671, 2
      %v1674 = vsel %vm385, %v1515, 0
      %v1677 = vsel %vm385, %v1524, 0
      %v1680 = vsel %vm385, %v1533, 0
      %v1683 = vsel %vm385, %v1542, 0
      %v1686 = vsel %vm385, %v1551, 0
      %v1689 = vsel %vm385, %v1560, 0
      %v1692 = vsel %vm385, %v1569, 0
      %v1695 = vsel %vm385, %v1578, 0
      %v1698 = vsel %vm385, %v1587, 0
      %v1701 = vsel %vm385, %v1596, 0
      %v1704 = vsel %vm385, %v1605, 0
      %v1707 = vsel %vm385, %v1614, 0
      %v1710 = vsel %vm385, %v1623, 0
      %v1713 = vsel %vm385, %v1632, 0
      %v1716 = vsel %vm385, %v1641, 0
      %v1719 = vsel %vm385, %v1650, 0
      %v1722 = vsel %vm385, %v1659, 0
      %v1725 = vsel %vm385, %v1668, 0
      %v1728 = vsel %vm440, %v1672, 0
      %1730 = vmatprep.subr.bf16.mxu0 0
      %1731 = vmatpush1.bf16.msra.mxu0 %v1728
      %1732 = vmatprep.subr.bf16.mxu0 0
      %1733 = vmatpush1.bf16.msra.mxu0 0
      %1734 = vmatprep.subr.bf16.mxu0 0
      %1735 = vmatpush1.bf16.msra.mxu0 0
      %1736 = vmatprep.subr.bf16.mxu0 0
      %1737 = vmatpush1.bf16.msra.mxu0 0
      %1738 = vmatprep.subr.bf16.mxu0 0
      %1739 = vmatpush1.bf16.msra.mxu0 0
      %1740 = vmatprep.subr.bf16.mxu0 0
      %1741 = vmatpush1.bf16.msra.mxu0 0
      %1742 = vmatprep.subr.bf16.mxu0 0
      %1743 = vmatpush1.bf16.msra.mxu0 0
      %1744 = vmatprep.subr.bf16.mxu0 0
      %1745 = vmatpush1.bf16.msra.mxu0 0
      %1746 = vmatprep.subr.bf16.mxu0 0
      %1747 = vmatpush1.bf16.msra.mxu0 0
      %1748 = vmatprep.subr.bf16.mxu0 0
      %1749 = vmatpush1.bf16.msra.mxu0 0
      %1750 = vmatprep.subr.bf16.mxu0 0
      %1751 = vmatpush1.bf16.msra.mxu0 0
      %1752 = vmatprep.subr.bf16.mxu0 0
      %1753 = vmatpush1.bf16.msra.mxu0 0
      %1754 = vmatprep.subr.bf16.mxu0 0
      %1755 = vmatpush1.bf16.msra.mxu0 0
      %1756 = vmatprep.subr.bf16.mxu0 0
      %1757 = vmatpush1.bf16.msra.mxu0 0
      %1758 = vmatprep.subr.bf16.mxu0 0
      %1759 = vmatpush1.bf16.msra.mxu0 0
      %1760 = vmatprep.subr.bf16.mxu0 0
      %1761 = vmatpush1.bf16.msra.mxu0 0
      %1762 = vmatprep.mubr.bf16.mxu0 0
      %1763 = vmatmul.mubr.bf16.gmra.mrb[0].mxu0 %v1674
      %v1764 = vpop.f32.mrb[0].mxu0
      %v1765 = vadd.f32 0.0, %v1764
      %v1766 = vpop.f32.mrb[0].mxu0
      %v1767 = vpop.f32.mrb[0].mxu0
      %v1768 = vadd.f32 0.0, %v1767
      %v1769 = vpop.f32.mrb[0].mxu0
      %1770 = vmatprep.mubr.bf16.mxu0 0
      %1771 = vmatmul.mubr.bf16.gmra.mrb[0].mxu0 %v1677
      %v1772 = vpop.f32.mrb[0].mxu0
      %v1773 = vadd.f32 0.0, %v1772
      %v1774 = vpop.f32.mrb[0].mxu0
      %v1775 = vpop.f32.mrb[0].mxu0
      %v1776 = vadd.f32 0.0, %v1775
      %v1777 = vpop.f32.mrb[0].mxu0
      %1778 = vmatprep.mubr.bf16.mxu0 0
      %1779 = vmatmul.mubr.bf16.gmra.mrb[0].mxu0 %v1680
      %v1780 = vpop.f32.mrb[0].mxu0
      %v1781 = vadd.f32 0.0, %v1780
      %v1782 = vpop.f32.mrb[0].mxu0
      %v1783 = vpop.f32.mrb[0].mxu0
      %v1784 = vadd.f32 0.0, %v1783
      %v1785 = vpop.f32.mrb[0].mxu0
      %1786 = vmatprep.mubr.bf16.mxu0 0
      %1787 = vmatmul.mubr.bf16.gmra.mrb[0].mxu0 %v1683
      %v1788 = vpop.f32.mrb[0].mxu0
      %v1789 = vadd.f32 0.0, %v1788
      %v1790 = vpop.f32.mrb[0].mxu0
      %v1791 = vpop.f32.mrb[0].mxu0
      %v1792 = vadd.f32 0.0, %v1791
      %v1793 = vpop.f32.mrb[0].mxu0
      %1794 = vmatprep.mubr.bf16.mxu0 0
      %1795 = vmatmul.mubr.bf16.gmra.mrb[0].mxu0 %v1686
      %v1796 = vpop.f32.mrb[0].mxu0
      %v1797 = vadd.f32 0.0, %v1796
      %v1798 = vpop.f32.mrb[0].mxu0
      %v1799 = vpop.f32.mrb[0].mxu0
      %v1800 = vadd.f32 0.0, %v1799
      %v1801 = vpop.f32.mrb[0].mxu0
      %1802 = vmatprep.mubr.bf16.mxu0 0
      %1803 = vmatmul.mubr.bf16.gmra.mrb[0].mxu0 %v1689
      %v1804 = vpop.f32.mrb[0].mxu0
      %v1805 = vadd.f32 0.0, %v1804
      %v1806 = vpop.f32.mrb[0].mxu0
      %v1807 = vpop.f32.mrb[0].mxu0
      %v1808 = vadd.f32 0.0, %v1807
      %v1809 = vpop.f32.mrb[0].mxu0
      %1810 = vmatprep.mubr.bf16.mxu0 0
      %1811 = vmatmul.mubr.bf16.gmra.mrb[0].mxu0 %v1692
      %v1812 = vpop.f32.mrb[0].mxu0
      %v1813 = vadd.f32 0.0, %v1812
      %v1814 = vpop.f32.mrb[0].mxu0
      %v1815 = vpop.f32.mrb[0].mxu0
      %v1816 = vadd.f32 0.0, %v1815
      %v1817 = vpop.f32.mrb[0].mxu0
      %1818 = vmatprep.mubr.bf16.mxu0 0
      %1819 = vmatmul.mubr.bf16.gmra.mrb[0].mxu0 %v1695
      %v1820 = vpop.f32.mrb[0].mxu0
      %v1821 = vadd.f32 0.0, %v1820
      %v1822 = vpop.f32.mrb[0].mxu0
      %v1823 = vpop.f32.mrb[0].mxu0
      %v1824 = vadd.f32 0.0, %v1823
      %v1825 = vpop.f32.mrb[0].mxu0
      %1826 = vmatprep.mubr.bf16.mxu0 0
      %1827 = vmatmul.mubr.bf16.gmra.mrb[0].mxu0 %v1698
      %v1828 = vpop.f32.mrb[0].mxu0
      %v1829 = vadd.f32 0.0, %v1828
      %v1830 = vpop.f32.mrb[0].mxu0
      %v1831 = vpop.f32.mrb[0].mxu0
      %v1832 = vadd.f32 0.0, %v1831
      %v1833 = vpop.f32.mrb[0].mxu0
      %1834 = vmatprep.mubr.bf16.mxu0 0
      %1835 = vmatmul.mubr.bf16.gmra.mrb[0].mxu0 %v1701
      %v1836 = vpop.f32.mrb[0].mxu0
      %v1837 = vadd.f32 0.0, %v1836
      %v1838 = vpop.f32.mrb[0].mxu0
      %v1839 = vpop.f32.mrb[0].mxu0
      %v1840 = vadd.f32 0.0, %v1839
      %v1841 = vpop.f32.mrb[0].mxu0
      %1842 = vmatprep.mubr.bf16.mxu0 0
      %1843 = vmatmul.mubr.bf16.gmra.mrb[0].mxu0 %v1704
      %v1844 = vpop.f32.mrb[0].mxu0
      %v1845 = vadd.f32 0.0, %v1844
      %v1846 = vpop.f32.mrb[0].mxu0
      %v1847 = vpop.f32.mrb[0].mxu0
      %v1848 = vadd.f32 0.0, %v1847
      %v1849 = vpop.f32.mrb[0].mxu0
      %1850 = vmatprep.mubr.bf16.mxu0 0
      %1851 = vmatmul.mubr.bf16.gmra.mrb[0].mxu0 %v1707
      %v1852 = vpop.f32.mrb[0].mxu0
      %v1853 = vadd.f32 0.0, %v1852
      %v1854 = vpop.f32.mrb[0].mxu0
      %v1855 = vpop.f32.mrb[0].mxu0
      %v1856 = vadd.f32 0.0, %v1855
      %v1857 = vpop.f32.mrb[0].mxu0
      %1858 = vmatprep.mubr.bf16.mxu0 0
      %1859 = vmatmul.mubr.bf16.gmra.mrb[0].mxu0 %v1710
      %v1860 = vpop.f32.mrb[0].mxu0
      %v1861 = vadd.f32 0.0, %v1860
      %v1862 = vpop.f32.mrb[0].mxu0
      %v1863 = vpop.f32.mrb[0].mxu0
      %v1864 = vadd.f32 0.0, %v1863
      %v1865 = vpop.f32.mrb[0].mxu0
      %1866 = vmatprep.mubr.bf16.mxu0 0
      %1867 = vmatmul.mubr.bf16.gmra.mrb[0].mxu0 %v1713
      %v1868 = vpop.f32.mrb[0].mxu0
      %v1869 = vadd.f32 0.0, %v1868
      %v1870 = vpop.f32.mrb[0].mxu0
      %v1871 = vpop.f32.mrb[0].mxu0
      %v1872 = vadd.f32 0.0, %v1871
      %v1873 = vpop.f32.mrb[0].mxu0
      %1874 = vmatprep.mubr.bf16.mxu0 0
      %1875 = vmatmul.mubr.bf16.gmra.mrb[0].mxu0 %v1716
      %v1876 = vpop.f32.mrb[0].mxu0
      %v1877 = vadd.f32 0.0, %v1876
      %v1878 = vpop.f32.mrb[0].mxu0
      %v1879 = vpop.f32.mrb[0].mxu0
      %v1880 = vadd.f32 0.0, %v1879
      %v1881 = vpop.f32.mrb[0].mxu0
      %1882 = vmatprep.mubr.bf16.mxu0 0
      %1883 = vmatmul.mubr.bf16.gmra.mrb[0].mxu0 %v1719
      %v1884 = vpop.f32.mrb[0].mxu0
      %v1885 = vadd.f32 0.0, %v1884
      %v1886 = vpop.f32.mrb[0].mxu0
      %v1887 = vpop.f32.mrb[0].mxu0
      %v1888 = vadd.f32 0.0, %v1887
      %v1889 = vpop.f32.mrb[0].mxu0
      %1890 = vmatprep.mubr.bf16.mxu0 0
      %1891 = vmatmul.mubr.bf16.gmra.mrb[0].mxu0 %v1722
      %v1892 = vpop.f32.mrb[0].mxu0
      %v1893 = vadd.f32 0.0, %v1892
      %v1894 = vpop.f32.mrb[0].mxu0
      %v1895 = vpop.f32.mrb[0].mxu0
      %v1896 = vadd.f32 0.0, %v1895
      %v1897 = vpop.f32.mrb[0].mxu0
      %1898 = vmatprep.mubr.bf16.mxu0 0
      %1899 = vmatmul.mubr.bf16.gmra.mrb[0].mxu0 %v1725
      %v1900 = vpop.f32.mrb[0].mxu0
      %v1901 = vadd.f32 0.0, %v1900
      %v1902 = vpop.f32.mrb[0].mxu0
      %v1903 = vpop.f32.mrb[0].mxu0
      %v1904 = vadd.f32 0.0, %v1903
      %v1905 = vpop.f32.mrb[0].mxu0
      %1906 = vdwg.mxu0
      %v1907 = vadd.f32 %v1332, %v1765
      %v1908 = vadd.f32 %v1333, %v1768
      %v1909 = vadd.f32 %v1334, %v1773
      %v1910 = vadd.f32 %v1335, %v1776
      %v1911 = vadd.f32 %v1336, %v1781
      %v1912 = vadd.f32 %v1337, %v1784
      %v1913 = vadd.f32 %v1338, %v1789
      %v1914 = vadd.f32 %v1339, %v1792
      %v1915 = vadd.f32 %v1340, %v1797
      %v1916 = vadd.f32 %v1341, %v1800
      %v1917 = vadd.f32 %v1342, %v1805
      %v1918 = vadd.f32 %v1343, %v1808
      %v1919 = vadd.f32 %v1344, %v1813
      %v1920 = vadd.f32 %v1345, %v1816
      %v1921 = vadd.f32 %v1346, %v1821
      %v1922 = vadd.f32 %v1347, %v1824
      %v1923 = vadd.f32 %v1348, %v1829
      %v1924 = vadd.f32 %v1349, %v1832
      %v1925 = vadd.f32 %v1350, %v1837
      %v1926 = vadd.f32 %v1351, %v1840
      %v1927 = vadd.f32 %v1352, %v1845
      %v1928 = vadd.f32 %v1353, %v1848
      %v1929 = vadd.f32 %v1354, %v1853
      %v1930 = vadd.f32 %v1355, %v1856
      %v1931 = vadd.f32 %v1356, %v1861
      %v1932 = vadd.f32 %v1357, %v1864
      %v1933 = vadd.f32 %v1358, %v1869
      %v1934 = vadd.f32 %v1359, %v1872
      %v1935 = vadd.f32 %v1360, %v1877
      %v1936 = vadd.f32 %v1361, %v1880
      %v1937 = vadd.f32 %v1362, %v1885
      %v1938 = vadd.f32 %v1363, %v1888
      %v1939 = vadd.f32 %v1364, %v1893
      %v1940 = vadd.f32 %v1365, %v1896
      %v1941 = vadd.f32 %v1366, %v1901
      %v1942 = vadd.f32 %v1367, %v1904
      %v1943 = vld [vmem:[%s199 + $0x10] sm:$0xc]
      %v1944 = vld [vmem:[%s1 + $0x8] sm:$0x3]
      %v1946 = vunpack.c.l.b16 %v1943
      %v1947 = vpack.c.b16 %v1444, %v1946
      %vm1948 = vcmask 1045504
      %v1949 = vrot.slane %v1947, 2
      %v1950 = vrot.slane %v1481, 2
      %v1951 = vsel %vm1948, %v1949, %v1950
      %v1952 = vrot.slane %v1482, 2
      %v1953 = vsel %vm1948, %v1950, %v1952
      %v1954 = vrot.slane %v1483, 2
      %v1955 = vsel %vm1948, %v1952, %v1954
      %v1956 = vrot.slane %v1484, 2
      %v1957 = vsel %vm1948, %v1954, %v1956
      %v1958 = vrot.slane %v1485, 2
      %v1959 = vsel %vm1948, %v1956, %v1958
      %v1960 = vrot.slane %v1486, 2
      %v1961 = vsel %vm1948, %v1958, %v1960
      %v1962 = vrot.slane %v1487, 2
      %v1963 = vsel %vm1948, %v1960, %v1962
      %v1964 = vrot.slane %v1488, 2
      %v1965 = vsel %vm1948, %v1962, %v1964
      %v1966 = vrot.slane %v1489, 2
      %v1967 = vsel %vm1948, %v1964, %v1966
      %v1968 = vrot.slane %v1490, 2
      %v1969 = vsel %vm1948, %v1966, %v1968
      %v1970 = vrot.slane %v1491, 2
      %v1971 = vsel %vm1948, %v1968, %v1970
      %v1972 = vrot.slane %v1492, 2
      %v1973 = vsel %vm1948, %v1970, %v1972
      %v1974 = vrot.slane %v1493, 2
      %v1975 = vsel %vm1948, %v1972, %v1974
      %v1976 = vrot.slane %v1494, 2
      %v1977 = vsel %vm1948, %v1974, %v1976
      %v1978 = vrot.slane %v1495, 2
      %v1979 = vsel %vm1948, %v1976, %v1978
      %v1980 = vrot.slane %v1496, 2
      %v1981 = vsel %vm1948, %v1978, %v1980
      %v1982 = vrot.slane %v1497, 2
      %v1983 = vsel %vm1948, %v1980, %v1982
      %v1984 = vrot.slane %v1498, 2
      %v1985 = vsel %vm1948, %v1982, %v1984
      %v1987 = vsel %vm385, %v1951, 0
      %v1990 = vsel %vm385, %v1953, 0
      %v1993 = vsel %vm385, %v1955, 0
      %v1996 = vsel %vm385, %v1957, 0
      %v1999 = vsel %vm385, %v1959, 0
      %v2002 = vsel %vm385, %v1961, 0
      %v2005 = vsel %vm385, %v1963, 0
      %v2008 = vsel %vm385, %v1965, 0
      %v2011 = vsel %vm385, %v1967, 0
      %v2014 = vsel %vm385, %v1969, 0
      %v2017 = vsel %vm385, %v1971, 0
      %v2020 = vsel %vm385, %v1973, 0
      %v2023 = vsel %vm385, %v1975, 0
      %v2026 = vsel %vm385, %v1977, 0
      %v2029 = vsel %vm385, %v1979, 0
      %v2032 = vsel %vm385, %v1981, 0
      %v2035 = vsel %vm385, %v1983, 0
      %v2038 = vsel %vm385, %v1985, 0
      %v2041 = vsel %vm440, %v1944, 0
      %2043 = vmatprep.subr.bf16.mxu0 0
      %2044 = vmatpush1.bf16.msra.mxu0 %v2041
      %2045 = vmatprep.subr.bf16.mxu0 0
      %2046 = vmatpush1.bf16.msra.mxu0 0
      %2047 = vmatprep.subr.bf16.mxu0 0
      %2048 = vmatpush1.bf16.msra.mxu0 0
      %2049 = vmatprep.subr.bf16.mxu0 0
      %2050 = vmatpush1.bf16.msra.mxu0 0
      %2051 = vmatprep.subr.bf16.mxu0 0
      %2052 = vmatpush1.bf16.msra.mxu0 0
      %2053 = vmatprep.subr.bf16.mxu0 0
      %2054 = vmatpush1.bf16.msra.mxu0 0
      %2055 = vmatprep.subr.bf16.mxu0 0
      %2056 = vmatpush1.bf16.msra.mxu0 0
      %2057 = vmatprep.subr.bf16.mxu0 0
      %2058 = vmatpush1.bf16.msra.mxu0 0
      %2059 = vmatprep.subr.bf16.mxu0 0
      %2060 = vmatpush1.bf16.msra.mxu0 0
      %2061 = vmatprep.subr.bf16.mxu0 0
      %2062 = vmatpush1.bf16.msra.mxu0 0
      %2063 = vmatprep.subr.bf16.mxu0 0
      %2064 = vmatpush1.bf16.msra.mxu0 0
      %2065 = vmatprep.subr.bf16.mxu0 0
      %2066 = vmatpush1.bf16.msra.mxu0 0
      %2067 = vmatprep.subr.bf16.mxu0 0
      %2068 = vmatpush1.bf16.msra.mxu0 0
      %2069 = vmatprep.subr.bf16.mxu0 0
      %2070 = vmatpush1.bf16.msra.mxu0 0
      %2071 = vmatprep.subr.bf16.mxu0 0
      %2072 = vmatpush1.bf16.msra.mxu0 0
      %2073 = vmatprep.subr.bf16.mxu0 0
      %2074 = vmatpush1.bf16.msra.mxu0 0
      %2075 = vmatprep.mubr.bf16.mxu0 0
      %2076 = vmatmul.mubr.bf16.gmra.mrb[0].mxu0 %v1987
      %v2077 = vpop.f32.mrb[0].mxu0
      %v2078 = vadd.f32 0.0, %v2077
      %v2079 = vpop.f32.mrb[0].mxu0
      %v2080 = vpop.f32.mrb[0].mxu0
      %v2081 = vadd.f32 0.0, %v2080
      %v2082 = vpop.f32.mrb[0].mxu0
      %2083 = vmatprep.mubr.bf16.mxu0 0
      %2084 = vmatmul.mubr.bf16.gmra.mrb[0].mxu0 %v1990
      %v2085 = vpop.f32.mrb[0].mxu0
      %v2086 = vadd.f32 0.0, %v2085
      %v2087 = vpop.f32.mrb[0].mxu0
      %v2088 = vpop.f32.mrb[0].mxu0
      %v2089 = vadd.f32 0.0, %v2088
      %v2090 = vpop.f32.mrb[0].mxu0
      %2091 = vmatprep.mubr.bf16.mxu0 0
      %2092 = vmatmul.mubr.bf16.gmra.mrb[0].mxu0 %v1993
      %v2093 = vpop.f32.mrb[0].mxu0
      %v2094 = vadd.f32 0.0, %v2093
      %v2095 = vpop.f32.mrb[0].mxu0
      %v2096 = vpop.f32.mrb[0].mxu0
      %v2097 = vadd.f32 0.0, %v2096
      %v2098 = vpop.f32.mrb[0].mxu0
      %2099 = vmatprep.mubr.bf16.mxu0 0
      %2100 = vmatmul.mubr.bf16.gmra.mrb[0].mxu0 %v1996
      %v2101 = vpop.f32.mrb[0].mxu0
      %v2102 = vadd.f32 0.0, %v2101
      %v2103 = vpop.f32.mrb[0].mxu0
      %v2104 = vpop.f32.mrb[0].mxu0
      %v2105 = vadd.f32 0.0, %v2104
      %v2106 = vpop.f32.mrb[0].mxu0
      %2107 = vmatprep.mubr.bf16.mxu0 0
      %2108 = vmatmul.mubr.bf16.gmra.mrb[0].mxu0 %v1999
      %v2109 = vpop.f32.mrb[0].mxu0
      %v2110 = vadd.f32 0.0, %v2109
      %v2111 = vpop.f32.mrb[0].mxu0
      %v2112 = vpop.f32.mrb[0].mxu0
      %v2113 = vadd.f32 0.0, %v2112
      %v2114 = vpop.f32.mrb[0].mxu0
      %2115 = vmatprep.mubr.bf16.mxu0 0
      %2116 = vmatmul.mubr.bf16.gmra.mrb[0].mxu0 %v2002
      %v2117 = vpop.f32.mrb[0].mxu0
      %v2118 = vadd.f32 0.0, %v2117
      %v2119 = vpop.f32.mrb[0].mxu0
      %v2120 = vpop.f32.mrb[0].mxu0
      %v2121 = vadd.f32 0.0, %v2120
      %v2122 = vpop.f32.mrb[0].mxu0
      %2123 = vmatprep.mubr.bf16.mxu0 0
      %2124 = vmatmul.mubr.bf16.gmra.mrb[0].mxu0 %v2005
      %v2125 = vpop.f32.mrb[0].mxu0
      %v2126 = vadd.f32 0.0, %v2125
      %v2127 = vpop.f32.mrb[0].mxu0
      %v2128 = vpop.f32.mrb[0].mxu0
      %v2129 = vadd.f32 0.0, %v2128
      %v2130 = vpop.f32.mrb[0].mxu0
      %2131 = vmatprep.mubr.bf16.mxu0 0
      %2132 = vmatmul.mubr.bf16.gmra.mrb[0].mxu0 %v2008
      %v2133 = vpop.f32.mrb[0].mxu0
      %v2134 = vadd.f32 0.0, %v2133
      %v2135 = vpop.f32.mrb[0].mxu0
      %v2136 = vpop.f32.mrb[0].mxu0
      %v2137 = vadd.f32 0.0, %v2136
      %v2138 = vpop.f32.mrb[0].mxu0
      %2139 = vmatprep.mubr.bf16.mxu0 0
      %2140 = vmatmul.mubr.bf16.gmra.mrb[0].mxu0 %v2011
      %v2141 = vpop.f32.mrb[0].mxu0
      %v2142 = vadd.f32 0.0, %v2141
      %v2143 = vpop.f32.mrb[0].mxu0
      %v2144 = vpop.f32.mrb[0].mxu0
      %v2145 = vadd.f32 0.0, %v2144
      %v2146 = vpop.f32.mrb[0].mxu0
      %2147 = vmatprep.mubr.bf16.mxu0 0
      %2148 = vmatmul.mubr.bf16.gmra.mrb[0].mxu0 %v2014
      %v2149 = vpop.f32.mrb[0].mxu0
      %v2150 = vadd.f32 0.0, %v2149
      %v2151 = vpop.f32.mrb[0].mxu0
      %v2152 = vpop.f32.mrb[0].mxu0
      %v2153 = vadd.f32 0.0, %v2152
      %v2154 = vpop.f32.mrb[0].mxu0
      %2155 = vmatprep.mubr.bf16.mxu0 0
      %2156 = vmatmul.mubr.bf16.gmra.mrb[0].mxu0 %v2017
      %v2157 = vpop.f32.mrb[0].mxu0
      %v2158 = vadd.f32 0.0, %v2157
      %v2159 = vpop.f32.mrb[0].mxu0
      %v2160 = vpop.f32.mrb[0].mxu0
      %v2161 = vadd.f32 0.0, %v2160
      %v2162 = vpop.f32.mrb[0].mxu0
      %2163 = vmatprep.mubr.bf16.mxu0 0
      %2164 = vmatmul.mubr.bf16.gmra.mrb[0].mxu0 %v2020
      %v2165 = vpop.f32.mrb[0].mxu0
      %v2166 = vadd.f32 0.0, %v2165
      %v2167 = vpop.f32.mrb[0].mxu0
      %v2168 = vpop.f32.mrb[0].mxu0
      %v2169 = vadd.f32 0.0, %v2168
      %v2170 = vpop.f32.mrb[0].mxu0
      %2171 = vmatprep.mubr.bf16.mxu0 0
      %2172 = vmatmul.mubr.bf16.gmra.mrb[0].mxu0 %v2023
      %v2173 = vpop.f32.mrb[0].mxu0
      %v2174 = vadd.f32 0.0, %v2173
      %v2175 = vpop.f32.mrb[0].mxu0
      %v2176 = vpop.f32.mrb[0].mxu0
      %v2177 = vadd.f32 0.0, %v2176
      %v2178 = vpop.f32.mrb[0].mxu0
      %2179 = vmatprep.mubr.bf16.mxu0 0
      %2180 = vmatmul.mubr.bf16.gmra.mrb[0].mxu0 %v2026
      %v2181 = vpop.f32.mrb[0].mxu0
      %v2182 = vadd.f32 0.0, %v2181
      %v2183 = vpop.f32.mrb[0].mxu0
      %v2184 = vpop.f32.mrb[0].mxu0
      %v2185 = vadd.f32 0.0, %v2184
      %v2186 = vpop.f32.mrb[0].mxu0
      %2187 = vmatprep.mubr.bf16.mxu0 0
      %2188 = vmatmul.mubr.bf16.gmra.mrb[0].mxu0 %v2029
      %v2189 = vpop.f32.mrb[0].mxu0
      %v2190 = vadd.f32 0.0, %v2189
      %v2191 = vpop.f32.mrb[0].mxu0
      %v2192 = vpop.f32.mrb[0].mxu0
      %v2193 = vadd.f32 0.0, %v2192
      %v2194 = vpop.f32.mrb[0].mxu0
      %2195 = vmatprep.mubr.bf16.mxu0 0
      %2196 = vmatmul.mubr.bf16.gmra.mrb[0].mxu0 %v2032
      %v2197 = vpop.f32.mrb[0].mxu0
      %v2198 = vadd.f32 0.0, %v2197
      %v2199 = vpop.f32.mrb[0].mxu0
      %v2200 = vpop.f32.mrb[0].mxu0
      %v2201 = vadd.f32 0.0, %v2200
      %v2202 = vpop.f32.mrb[0].mxu0
      %2203 = vmatprep.mubr.bf16.mxu0 0
      %2204 = vmatmul.mubr.bf16.gmra.mrb[0].mxu0 %v2035
      %v2205 = vpop.f32.mrb[0].mxu0
      %v2206 = vadd.f32 0.0, %v2205
      %v2207 = vpop.f32.mrb[0].mxu0
      %v2208 = vpop.f32.mrb[0].mxu0
      %v2209 = vadd.f32 0.0, %v2208
      %v2210 = vpop.f32.mrb[0].mxu0
      %2211 = vmatprep.mubr.bf16.mxu0 0
      %2212 = vmatmul.mubr.bf16.gmra.mrb[0].mxu0 %v2038
      %v2213 = vpop.f32.mrb[0].mxu0
      %v2214 = vadd.f32 0.0, %v2213
      %v2215 = vpop.f32.mrb[0].mxu0
      %v2216 = vpop.f32.mrb[0].mxu0
      %v2217 = vadd.f32 0.0, %v2216
      %v2218 = vpop.f32.mrb[0].mxu0
      %2219 = vdwg.mxu0
      %v2220 = vadd.f32 %v1907, %v2078
      %v2221 = vadd.f32 %v1908, %v2081
      %v2222 = vadd.f32 %v1909, %v2086
      %v2223 = vadd.f32 %v1910, %v2089
      %v2224 = vadd.f32 %v1911, %v2094
      %v2225 = vadd.f32 %v1912, %v2097
      %v2226 = vadd.f32 %v1913, %v2102
      %v2227 = vadd.f32 %v1914, %v2105
      %v2228 = vadd.f32 %v1915, %v2110
      %v2229 = vadd.f32 %v1916, %v2113
      %v2230 = vadd.f32 %v1917, %v2118
      %v2231 = vadd.f32 %v1918, %v2121
      %v2232 = vadd.f32 %v1919, %v2126
      %v2233 = vadd.f32 %v1920, %v2129
      %v2234 = vadd.f32 %v1921, %v2134
      %v2235 = vadd.f32 %v1922, %v2137
      %v2236 = vadd.f32 %v1923, %v2142
      %v2237 = vadd.f32 %v1924, %v2145
      %v2238 = vadd.f32 %v1925, %v2150
      %v2239 = vadd.f32 %v1926, %v2153
      %v2240 = vadd.f32 %v1927, %v2158
      %v2241 = vadd.f32 %v1928, %v2161
      %v2242 = vadd.f32 %v1929, %v2166
      %v2243 = vadd.f32 %v1930, %v2169
      %v2244 = vadd.f32 %v1931, %v2174
      %v2245 = vadd.f32 %v1932, %v2177
      %v2246 = vadd.f32 %v1933, %v2182
      %v2247 = vadd.f32 %v1934, %v2185
      %v2248 = vadd.f32 %v1935, %v2190
      %v2249 = vadd.f32 %v1936, %v2193
      %v2250 = vadd.f32 %v1937, %v2198
      %v2251 = vadd.f32 %v1938, %v2201
      %v2252 = vadd.f32 %v1939, %v2206
      %v2253 = vadd.f32 %v1940, %v2209
      %v2254 = vadd.f32 %v1941, %v2214
      %v2255 = vadd.f32 %v1942, %v2217
      %v2256 = vld [vmem:[%s199 + $0xa0] sm:$0x7]
      %v2257 = vld [vmem:[%s1 + $0x8] sm:$0xc]
      %v2259 = vunpack.c.l.b16 %v2256
      %v2260 = vpack.c.b16 %v2259, %v2259
      %vm2261 = vsmask.f32 5376
      %v2263 = vshrl.u32 %v1947, 16
      %v2265 = vrot.slane %v2263, 2
      %v2266 = vshll.u32 %v1947, 16
      %v2268 = vrot.slane %v2266, 3
      %v2269 = vor.u32 %v2265, %v2268
      %v2270 = vrot.slane %v1508, 2
      %v2271 = vrot.slane %v1511, 3
      %v2272 = vor.u32 %v2270, %v2271
      %v2273 = vsel %vm2261, %v2269, %v2272
      %v2274 = vrot.slane %v1517, 2
      %v2275 = vrot.slane %v1520, 3
      %v2276 = vor.u32 %v2274, %v2275
      %v2277 = vsel %vm2261, %v2272, %v2276
      %v2278 = vrot.slane %v1526, 2
      %v2279 = vrot.slane %v1529, 3
      %v2280 = vor.u32 %v2278, %v2279
      %v2281 = vsel %vm2261, %v2276, %v2280
      %v2282 = vrot.slane %v1535, 2
      %v2283 = vrot.slane %v1538, 3
      %v2284 = vor.u32 %v2282, %v2283
      %v2285 = vsel %vm2261, %v2280, %v2284
      %v2286 = vrot.slane %v1544, 2
      %v2287 = vrot.slane %v1547, 3
      %v2288 = vor.u32 %v2286, %v2287
      %v2289 = vsel %vm2261, %v2284, %v2288
      %v2290 = vrot.slane %v1553, 2
      %v2291 = vrot.slane %v1556, 3
      %v2292 = vor.u32 %v2290, %v2291
      %v2293 = vsel %vm2261, %v2288, %v2292
      %v2294 = vrot.slane %v1562, 2
      %v2295 = vrot.slane %v1565, 3
      %v2296 = vor.u32 %v2294, %v2295
      %v2297 = vsel %vm2261, %v2292, %v2296
      %v2298 = vrot.slane %v1571, 2
      %v2299 = vrot.slane %v1574, 3
      %v2300 = vor.u32 %v2298, %v2299
      %v2301 = vsel %vm2261, %v2296, %v2300
      %v2302 = vrot.slane %v1580, 2
      %v2303 = vrot.slane %v1583, 3
      %v2304 = vor.u32 %v2302, %v2303
      %v2305 = vsel %vm2261, %v2300, %v2304
      %v2306 = vrot.slane %v1589, 2
      %v2307 = vrot.slane %v1592, 3
      %v2308 = vor.u32 %v2306, %v2307
      %v2309 = vsel %vm2261, %v2304, %v2308
      %v2310 = vrot.slane %v1598, 2
      %v2311 = vrot.slane %v1601, 3
      %v2312 = vor.u32 %v2310, %v2311
      %v2313 = vsel %vm2261, %v2308, %v2312
      %v2314 = vrot.slane %v1607, 2
      %v2315 = vrot.slane %v1610, 3
      %v2316 = vor.u32 %v2314, %v2315
      %v2317 = vsel %vm2261, %v2312, %v2316
      %v2318 = vrot.slane %v1616, 2
      %v2319 = vrot.slane %v1619, 3
      %v2320 = vor.u32 %v2318, %v2319
      %v2321 = vsel %vm2261, %v2316, %v2320
      %v2322 = vrot.slane %v1625, 2
      %v2323 = vrot.slane %v1628, 3
      %v2324 = vor.u32 %v2322, %v2323
      %v2325 = vsel %vm2261, %v2320, %v2324
      %v2326 = vrot.slane %v1634, 2
      %v2327 = vrot.slane %v1637, 3
      %v2328 = vor.u32 %v2326, %v2327
      %v2329 = vsel %vm2261, %v2324, %v2328
      %v2330 = vrot.slane %v1643, 2
      %v2331 = vrot.slane %v1646, 3
      %v2332 = vor.u32 %v2330, %v2331
      %v2333 = vsel %vm2261, %v2328, %v2332
      %v2334 = vrot.slane %v1652, 2
      %v2335 = vrot.slane %v1655, 3
      %v2336 = vor.u32 %v2334, %v2335
      %v2337 = vsel %vm2261, %v2332, %v2336
      %v2339 = vshrl.u32 %v2260, 16
      %v2341 = vrot.slane %v2339, 2
      %v2342 = vshll.u32 %v2260, 16
      %v2344 = vrot.slane %v2342, 3
      %v2345 = vor.u32 %v2341, %v2344
      %v2346 = vsel %vm2261, %v2336, %v2345
      %v2348 = vunpack.c.l.b16 %v2257
      %v2349 = vpack.c.b16 %v2348, %v2348
      %v2350 = vrot.slane %v2349, 2
      %v2352 = vsel %vm385, %v2273, 0
      %v2355 = vsel %vm385, %v2277, 0
      %v2358 = vsel %vm385, %v2281, 0
      %v2361 = vsel %vm385, %v2285, 0
      %v2364 = vsel %vm385, %v2289, 0
      %v2367 = vsel %vm385, %v2293, 0
      %v2370 = vsel %vm385, %v2297, 0
      %v2373 = vsel %vm385, %v2301, 0
      %v2376 = vsel %vm385, %v2305, 0
      %v2379 = vsel %vm385, %v2309, 0
      %v2382 = vsel %vm385, %v2313, 0
      %v2385 = vsel %vm385, %v2317, 0
      %v2388 = vsel %vm385, %v2321, 0
      %v2391 = vsel %vm385, %v2325, 0
      %v2394 = vsel %vm385, %v2329, 0
      %v2397 = vsel %vm385, %v2333, 0
      %v2400 = vsel %vm385, %v2337, 0
      %v2403 = vsel %vm385, %v2346, 0
      %v2406 = vsel %vm440, %v2350, 0
      %2408 = vmatprep.subr.bf16.mxu0 0
      %2409 = vmatpush1.bf16.msra.mxu0 %v2406
      %2410 = vmatprep.subr.bf16.mxu0 0
      %2411 = vmatpush1.bf16.msra.mxu0 0
      %2412 = vmatprep.subr.bf16.mxu0 0
      %2413 = vmatpush1.bf16.msra.mxu0 0
      %2414 = vmatprep.subr.bf16.mxu0 0
      %2415 = vmatpush1.bf16.msra.mxu0 0
      %2416 = vmatprep.subr.bf16.mxu0 0
      %2417 = vmatpush1.bf16.msra.mxu0 0
      %2418 = vmatprep.subr.bf16.mxu0 0
      %2419 = vmatpush1.bf16.msra.mxu0 0
      %2420 = vmatprep.subr.bf16.mxu0 0
      %2421 = vmatpush1.bf16.msra.mxu0 0
      %2422 = vmatprep.subr.bf16.mxu0 0
      %2423 = vmatpush1.bf16.msra.mxu0 0
      %2424 = vmatprep.subr.bf16.mxu0 0
      %2425 = vmatpush1.bf16.msra.mxu0 0
      %2426 = vmatprep.subr.bf16.mxu0 0
      %2427 = vmatpush1.bf16.msra.mxu0 0
      %2428 = vmatprep.subr.bf16.mxu0 0
      %2429 = vmatpush1.bf16.msra.mxu0 0
      %2430 = vmatprep.subr.bf16.mxu0 0
      %2431 = vmatpush1.bf16.msra.mxu0 0
      %2432 = vmatprep.subr.bf16.mxu0 0
      %2433 = vmatpush1.bf16.msra.mxu0 0
      %2434 = vmatprep.subr.bf16.mxu0 0
      %2435 = vmatpush1.bf16.msra.mxu0 0
      %2436 = vmatprep.subr.bf16.mxu0 0
      %2437 = vmatpush1.bf16.msra.mxu0 0
      %2438 = vmatprep.subr.bf16.mxu0 0
      %2439 = vmatpush1.bf16.msra.mxu0 0
      %2440 = vmatprep.mubr.bf16.mxu0 0
      %2441 = vmatmul.mubr.bf16.gmra.mrb[0].mxu0 %v2352
      %v2442 = vpop.f32.mrb[0].mxu0
      %v2443 = vadd.f32 0.0, %v2442
      %v2444 = vpop.f32.mrb[0].mxu0
      %v2445 = vpop.f32.mrb[0].mxu0
      %v2446 = vadd.f32 0.0, %v2445
      %v2447 = vpop.f32.mrb[0].mxu0
      %2448 = vmatprep.mubr.bf16.mxu0 0
      %2449 = vmatmul.mubr.bf16.gmra.mrb[0].mxu0 %v2355
      %v2450 = vpop.f32.mrb[0].mxu0
      %v2451 = vadd.f32 0.0, %v2450
      %v2452 = vpop.f32.mrb[0].mxu0
      %v2453 = vpop.f32.mrb[0].mxu0
      %v2454 = vadd.f32 0.0, %v2453
      %v2455 = vpop.f32.mrb[0].mxu0
      %2456 = vmatprep.mubr.bf16.mxu0 0
      %2457 = vmatmul.mubr.bf16.gmra.mrb[0].mxu0 %v2358
      %v2458 = vpop.f32.mrb[0].mxu0
      %v2459 = vadd.f32 0.0, %v2458
      %v2460 = vpop.f32.mrb[0].mxu0
      %v2461 = vpop.f32.mrb[0].mxu0
      %v2462 = vadd.f32 0.0, %v2461
      %v2463 = vpop.f32.mrb[0].mxu0
      %2464 = vmatprep.mubr.bf16.mxu0 0
      %2465 = vmatmul.mubr.bf16.gmra.mrb[0].mxu0 %v2361
      %v2466 = vpop.f32.mrb[0].mxu0
      %v2467 = vadd.f32 0.0, %v2466
      %v2468 = vpop.f32.mrb[0].mxu0
      %v2469 = vpop.f32.mrb[0].mxu0
      %v2470 = vadd.f32 0.0, %v2469
      %v2471 = vpop.f32.mrb[0].mxu0
      %2472 = vmatprep.mubr.bf16.mxu0 0
      %2473 = vmatmul.mubr.bf16.gmra.mrb[0].mxu0 %v2364
      %v2474 = vpop.f32.mrb[0].mxu0
      %v2475 = vadd.f32 0.0, %v2474
      %v2476 = vpop.f32.mrb[0].mxu0
      %v2477 = vpop.f32.mrb[0].mxu0
      %v2478 = vadd.f32 0.0, %v2477
      %v2479 = vpop.f32.mrb[0].mxu0
      %2480 = vmatprep.mubr.bf16.mxu0 0
      %2481 = vmatmul.mubr.bf16.gmra.mrb[0].mxu0 %v2367
      %v2482 = vpop.f32.mrb[0].mxu0
      %v2483 = vadd.f32 0.0, %v2482
      %v2484 = vpop.f32.mrb[0].mxu0
      %v2485 = vpop.f32.mrb[0].mxu0
      %v2486 = vadd.f32 0.0, %v2485
      %v2487 = vpop.f32.mrb[0].mxu0
      %2488 = vmatprep.mubr.bf16.mxu0 0
      %2489 = vmatmul.mubr.bf16.gmra.mrb[0].mxu0 %v2370
      %v2490 = vpop.f32.mrb[0].mxu0
      %v2491 = vadd.f32 0.0, %v2490
      %v2492 = vpop.f32.mrb[0].mxu0
      %v2493 = vpop.f32.mrb[0].mxu0
      %v2494 = vadd.f32 0.0, %v2493
      %v2495 = vpop.f32.mrb[0].mxu0
      %2496 = vmatprep.mubr.bf16.mxu0 0
      %2497 = vmatmul.mubr.bf16.gmra.mrb[0].mxu0 %v2373
      %v2498 = vpop.f32.mrb[0].mxu0
      %v2499 = vadd.f32 0.0, %v2498
      %v2500 = vpop.f32.mrb[0].mxu0
      %v2501 = vpop.f32.mrb[0].mxu0
      %v2502 = vadd.f32 0.0, %v2501
      %v2503 = vpop.f32.mrb[0].mxu0
      %2504 = vmatprep.mubr.bf16.mxu0 0
      %2505 = vmatmul.mubr.bf16.gmra.mrb[0].mxu0 %v2376
      %v2506 = vpop.f32.mrb[0].mxu0
      %v2507 = vadd.f32 0.0, %v2506
      %v2508 = vpop.f32.mrb[0].mxu0
      %v2509 = vpop.f32.mrb[0].mxu0
      %v2510 = vadd.f32 0.0, %v2509
      %v2511 = vpop.f32.mrb[0].mxu0
      %2512 = vmatprep.mubr.bf16.mxu0 0
      %2513 = vmatmul.mubr.bf16.gmra.mrb[0].mxu0 %v2379
      %v2514 = vpop.f32.mrb[0].mxu0
      %v2515 = vadd.f32 0.0, %v2514
      %v2516 = vpop.f32.mrb[0].mxu0
      %v2517 = vpop.f32.mrb[0].mxu0
      %v2518 = vadd.f32 0.0, %v2517
      %v2519 = vpop.f32.mrb[0].mxu0
      %2520 = vmatprep.mubr.bf16.mxu0 0
      %2521 = vmatmul.mubr.bf16.gmra.mrb[0].mxu0 %v2382
      %v2522 = vpop.f32.mrb[0].mxu0
      %v2523 = vadd.f32 0.0, %v2522
      %v2524 = vpop.f32.mrb[0].mxu0
      %v2525 = vpop.f32.mrb[0].mxu0
      %v2526 = vadd.f32 0.0, %v2525
      %v2527 = vpop.f32.mrb[0].mxu0
      %2528 = vmatprep.mubr.bf16.mxu0 0
      %2529 = vmatmul.mubr.bf16.gmra.mrb[0].mxu0 %v2385
      %v2530 = vpop.f32.mrb[0].mxu0
      %v2531 = vadd.f32 0.0, %v2530
      %v2532 = vpop.f32.mrb[0].mxu0
      %v2533 = vpop.f32.mrb[0].mxu0
      %v2534 = vadd.f32 0.0, %v2533
      %v2535 = vpop.f32.mrb[0].mxu0
      %2536 = vmatprep.mubr.bf16.mxu0 0
      %2537 = vmatmul.mubr.bf16.gmra.mrb[0].mxu0 %v2388
      %v2538 = vpop.f32.mrb[0].mxu0
      %v2539 = vadd.f32 0.0, %v2538
      %v2540 = vpop.f32.mrb[0].mxu0
      %v2541 = vpop.f32.mrb[0].mxu0
      %v2542 = vadd.f32 0.0, %v2541
      %v2543 = vpop.f32.mrb[0].mxu0
      %2544 = vmatprep.mubr.bf16.mxu0 0
      %2545 = vmatmul.mubr.bf16.gmra.mrb[0].mxu0 %v2391
      %v2546 = vpop.f32.mrb[0].mxu0
      %v2547 = vadd.f32 0.0, %v2546
      %v2548 = vpop.f32.mrb[0].mxu0
      %v2549 = vpop.f32.mrb[0].mxu0
      %v2550 = vadd.f32 0.0, %v2549
      %v2551 = vpop.f32.mrb[0].mxu0
      %2552 = vmatprep.mubr.bf16.mxu0 0
      %2553 = vmatmul.mubr.bf16.gmra.mrb[0].mxu0 %v2394
      %v2554 = vpop.f32.mrb[0].mxu0
      %v2555 = vadd.f32 0.0, %v2554
      %v2556 = vpop.f32.mrb[0].mxu0
      %v2557 = vpop.f32.mrb[0].mxu0
      %v2558 = vadd.f32 0.0, %v2557
      %v2559 = vpop.f32.mrb[0].mxu0
      %2560 = vmatprep.mubr.bf16.mxu0 0
      %2561 = vmatmul.mubr.bf16.gmra.mrb[0].mxu0 %v2397
      %v2562 = vpop.f32.mrb[0].mxu0
      %v2563 = vadd.f32 0.0, %v2562
      %v2564 = vpop.f32.mrb[0].mxu0
      %v2565 = vpop.f32.mrb[0].mxu0
      %v2566 = vadd.f32 0.0, %v2565
      %v2567 = vpop.f32.mrb[0].mxu0
      %2568 = vmatprep.mubr.bf16.mxu0 0
      %2569 = vmatmul.mubr.bf16.gmra.mrb[0].mxu0 %v2400
      %v2570 = vpop.f32.mrb[0].mxu0
      %v2571 = vadd.f32 0.0, %v2570
      %v2572 = vpop.f32.mrb[0].mxu0
      %v2573 = vpop.f32.mrb[0].mxu0
      %v2574 = vadd.f32 0.0, %v2573
      %v2575 = vpop.f32.mrb[0].mxu0
      %2576 = vmatprep.mubr.bf16.mxu0 0
      %2577 = vmatmul.mubr.bf16.gmra.mrb[0].mxu0 %v2403
      %v2578 = vpop.f32.mrb[0].mxu0
      %v2579 = vadd.f32 0.0, %v2578
      %v2580 = vpop.f32.mrb[0].mxu0
      %v2581 = vpop.f32.mrb[0].mxu0
      %v2582 = vadd.f32 0.0, %v2581
      %v2583 = vpop.f32.mrb[0].mxu0
      %2584 = vdwg.mxu0
      %v2585 = vadd.f32 %v2220, %v2443
      %v2586 = vadd.f32 %v2221, %v2446
      %v2587 = vadd.f32 %v2222, %v2451
      %v2588 = vadd.f32 %v2223, %v2454
      %v2589 = vadd.f32 %v2224, %v2459
      %v2590 = vadd.f32 %v2225, %v2462
      %v2591 = vadd.f32 %v2226, %v2467
      %v2592 = vadd.f32 %v2227, %v2470
      %v2593 = vadd.f32 %v2228, %v2475
      %v2594 = vadd.f32 %v2229, %v2478
      %v2595 = vadd.f32 %v2230, %v2483
      %v2596 = vadd.f32 %v2231, %v2486
      %v2597 = vadd.f32 %v2232, %v2491
      %v2598 = vadd.f32 %v2233, %v2494
      %v2599 = vadd.f32 %v2234, %v2499
      %v2600 = vadd.f32 %v2235, %v2502
      %v2601 = vadd.f32 %v2236, %v2507
      %v2602 = vadd.f32 %v2237, %v2510
      %v2603 = vadd.f32 %v2238, %v2515
      %v2604 = vadd.f32 %v2239, %v2518
      %v2605 = vadd.f32 %v2240, %v2523
      %v2606 = vadd.f32 %v2241, %v2526
      %v2607 = vadd.f32 %v2242, %v2531
      %v2608 = vadd.f32 %v2243, %v2534
      %v2609 = vadd.f32 %v2244, %v2539
      %v2610 = vadd.f32 %v2245, %v2542
      %v2611 = vadd.f32 %v2246, %v2547
      %v2612 = vadd.f32 %v2247, %v2550
      %v2613 = vadd.f32 %v2248, %v2555
      %v2614 = vadd.f32 %v2249, %v2558
      %v2615 = vadd.f32 %v2250, %v2563
      %v2616 = vadd.f32 %v2251, %v2566
      %v2617 = vadd.f32 %v2252, %v2571
      %v2618 = vadd.f32 %v2253, %v2574
      %v2619 = vadd.f32 %v2254, %v2579
      %v2620 = vadd.f32 %v2255, %v2582
      %v2621 = vld [vmem:[%s199 + $0x18] sm:$0xc]
      %v2622 = vld [vmem:[%s199 + $0x1c] sm:$0xf]
      %v2623 = vld [vmem:[%s199 + $0x20] sm:$0xf]
      %v2624 = vld [vmem:[%s199 + $0x24] sm:$0xf]
      %v2625 = vld [vmem:[%s199 + $0x28] sm:$0xf]
      %v2626 = vld [vmem:[%s199 + $0x2c] sm:$0xf]
      %v2627 = vld [vmem:[%s199 + $0x30] sm:$0xf]
      %v2628 = vld [vmem:[%s199 + $0x34] sm:$0xf]
      %v2629 = vld [vmem:[%s199 + $0x38] sm:$0xf]
      %v2630 = vld [vmem:[%s199 + $0x3c] sm:$0xf]
      %v2631 = vld [vmem:[%s199 + $0x40] sm:$0xf]
      %v2632 = vld [vmem:[%s199 + $0x44] sm:$0xf]
      %v2633 = vld [vmem:[%s199 + $0x48] sm:$0xf]
      %v2634 = vld [vmem:[%s199 + $0x4c] sm:$0xf]
      %v2635 = vld [vmem:[%s199 + $0x50] sm:$0xf]
      %v2636 = vld [vmem:[%s199 + $0x54] sm:$0xf]
      %v2637 = vld [vmem:[%s199 + $0x58] sm:$0xf]
      %v2638 = vld [vmem:[%s199 + $0x5c] sm:$0xf]
      %v2639 = vld [vmem:[%s199 + $0x60] sm:$0xf]
      %v2640 = vld [vmem:[%s199 + $0x64] sm:$0xf]
      %v2641 = vld [vmem:[%s199 + $0x68] sm:$0xf]
      %v2642 = vld [vmem:[%s199 + $0x6c] sm:$0xf]
      %v2643 = vld [vmem:[%s199 + $0x70] sm:$0xf]
      %v2644 = vld [vmem:[%s199 + $0x74] sm:$0xf]
      %v2645 = vld [vmem:[%s199 + $0x78] sm:$0xf]
      %v2646 = vld [vmem:[%s199 + $0x7c] sm:$0xf]
      %v2647 = vld [vmem:[%s199 + $0x80] sm:$0xf]
      %v2648 = vld [vmem:[%s199 + $0x84] sm:$0xf]
      %v2649 = vld [vmem:[%s199 + $0x88] sm:$0xf]
      %v2650 = vld [vmem:[%s199 + $0x8c] sm:$0xf]
      %v2651 = vld [vmem:[%s199 + $0x90] sm:$0xf]
      %v2652 = vld [vmem:[%s199 + $0x94] sm:$0xf]
      %v2653 = vld [vmem:[%s199 + $0x98] sm:$0xf]
      %v2654 = vld [vmem:[%s199 + $0x9c] sm:$0xf]
      %v2655 = vld [vmem:[%s199 + $0xa0] sm:$0xf]
      %v2656 = vld [vmem:[%s199 + $0xa4] sm:$0xf]
      %v2657 = vld [vmem:[%s199 + $0xa8] sm:$0x7]
      %v2658 = vld [vmem:[%s1 + $0xc] sm:$0x3]
      %v2696 = vunpack.c.l.b16 %v2621
      %v2697 = vunpack.c.l.b16 %v2622
      %v2698 = vunpack.c.l.b16 %v2623
      %v2699 = vunpack.c.l.b16 %v2624
      %v2700 = vunpack.c.l.b16 %v2625
      %v2701 = vunpack.c.l.b16 %v2626
      %v2702 = vunpack.c.l.b16 %v2627
      %v2703 = vunpack.c.l.b16 %v2628
      %v2704 = vunpack.c.l.b16 %v2629
      %v2705 = vunpack.c.l.b16 %v2630
      %v2706 = vunpack.c.l.b16 %v2631
      %v2707 = vunpack.c.l.b16 %v2632
      %v2708 = vunpack.c.l.b16 %v2633
      %v2709 = vunpack.c.l.b16 %v2634
      %v2710 = vunpack.c.l.b16 %v2635
      %v2711 = vunpack.c.l.b16 %v2636
      %v2712 = vunpack.c.l.b16 %v2637
      %v2713 = vunpack.c.l.b16 %v2638
      %v2714 = vunpack.c.l.b16 %v2639
      %v2715 = vunpack.c.l.b16 %v2640
      %v2716 = vunpack.c.l.b16 %v2641
      %v2717 = vunpack.c.l.b16 %v2642
      %v2718 = vunpack.c.l.b16 %v2643
      %v2719 = vunpack.c.l.b16 %v2644
      %v2720 = vunpack.c.l.b16 %v2645
      %v2721 = vunpack.c.l.b16 %v2646
      %v2722 = vunpack.c.l.b16 %v2647
      %v2723 = vunpack.c.l.b16 %v2648
      %v2724 = vunpack.c.l.b16 %v2649
      %v2725 = vunpack.c.l.b16 %v2650
      %v2726 = vunpack.c.l.b16 %v2651
      %v2727 = vunpack.c.l.b16 %v2652
      %v2728 = vunpack.c.l.b16 %v2653
      %v2729 = vunpack.c.l.b16 %v2654
      %v2730 = vunpack.c.l.b16 %v2655
      %v2731 = vunpack.c.l.b16 %v2656
      %v2732 = vunpack.c.l.b16 %v2657
      %v2733 = vpack.c.b16 %v2697, %v2696
      %v2734 = vpack.c.b16 %v2699, %v2698
      %v2735 = vpack.c.b16 %v2701, %v2700
      %v2736 = vpack.c.b16 %v2703, %v2702
      %v2737 = vpack.c.b16 %v2705, %v2704
      %v2738 = vpack.c.b16 %v2707, %v2706
      %v2739 = vpack.c.b16 %v2709, %v2708
      %v2740 = vpack.c.b16 %v2711, %v2710
      %v2741 = vpack.c.b16 %v2713, %v2712
      %v2742 = vpack.c.b16 %v2715, %v2714
      %v2743 = vpack.c.b16 %v2717, %v2716
      %v2744 = vpack.c.b16 %v2719, %v2718
      %v2745 = vpack.c.b16 %v2721, %v2720
      %v2746 = vpack.c.b16 %v2723, %v2722
      %v2747 = vpack.c.b16 %v2725, %v2724
      %v2748 = vpack.c.b16 %v2727, %v2726
      %v2749 = vpack.c.b16 %v2729, %v2728
      %v2750 = vpack.c.b16 %v2731, %v2730
      %v2751 = vpack.c.b16 %v2732, %v2732
      %v2753 = vshrl.u32 %v2733, 16
      %v2755 = vrot.slane %v2753, 2
      %v2756 = vshll.u32 %v2733, 16
      %v2758 = vrot.slane %v2756, 3
      %v2759 = vor.u32 %v2755, %v2758
      %v2761 = vshrl.u32 %v2734, 16
      %v2763 = vrot.slane %v2761, 2
      %v2764 = vshll.u32 %v2734, 16
      %v2766 = vrot.slane %v2764, 3
      %v2767 = vor.u32 %v2763, %v2766
      %v2768 = vsel %vm2261, %v2759, %v2767
      %v2770 = vshrl.u32 %v2735, 16
      %v2772 = vrot.slane %v2770, 2
      %v2773 = vshll.u32 %v2735, 16
      %v2775 = vrot.slane %v2773, 3
      %v2776 = vor.u32 %v2772, %v2775
      %v2777 = vsel %vm2261, %v2767, %v2776
      %v2779 = vshrl.u32 %v2736, 16
      %v2781 = vrot.slane %v2779, 2
      %v2782 = vshll.u32 %v2736, 16
      %v2784 = vrot.slane %v2782, 3
      %v2785 = vor.u32 %v2781, %v2784
      %v2786 = vsel %vm2261, %v2776, %v2785
      %v2788 = vshrl.u32 %v2737, 16
      %v2790 = vrot.slane %v2788, 2
      %v2791 = vshll.u32 %v2737, 16
      %v2793 = vrot.slane %v2791, 3
      %v2794 = vor.u32 %v2790, %v2793
      %v2795 = vsel %vm2261, %v2785, %v2794
      %v2797 = vshrl.u32 %v2738, 16
      %v2799 = vrot.slane %v2797, 2
      %v2800 = vshll.u32 %v2738, 16
      %v2802 = vrot.slane %v2800, 3
      %v2803 = vor.u32 %v2799, %v2802
      %v2804 = vsel %vm2261, %v2794, %v2803
      %v2806 = vshrl.u32 %v2739, 16
      %v2808 = vrot.slane %v2806, 2
      %v2809 = vshll.u32 %v2739, 16
      %v2811 = vrot.slane %v2809, 3
      %v2812 = vor.u32 %v2808, %v2811
      %v2813 = vsel %vm2261, %v2803, %v2812
      %v2815 = vshrl.u32 %v2740, 16
      %v2817 = vrot.slane %v2815, 2
      %v2818 = vshll.u32 %v2740, 16
      %v2820 = vrot.slane %v2818, 3
      %v2821 = vor.u32 %v2817, %v2820
      %v2822 = vsel %vm2261, %v2812, %v2821
      %v2824 = vshrl.u32 %v2741, 16
      %v2826 = vrot.slane %v2824, 2
      %v2827 = vshll.u32 %v2741, 16
      %v2829 = vrot.slane %v2827, 3
      %v2830 = vor.u32 %v2826, %v2829
      %v2831 = vsel %vm2261, %v2821, %v2830
      %v2833 = vshrl.u32 %v2742, 16
      %v2835 = vrot.slane %v2833, 2
      %v2836 = vshll.u32 %v2742, 16
      %v2838 = vrot.slane %v2836, 3
      %v2839 = vor.u32 %v2835, %v2838
      %v2840 = vsel %vm2261, %v2830, %v2839
      %v2842 = vshrl.u32 %v2743, 16
      %v2844 = vrot.slane %v2842, 2
      %v2845 = vshll.u32 %v2743, 16
      %v2847 = vrot.slane %v2845, 3
      %v2848 = vor.u32 %v2844, %v2847
      %v2849 = vsel %vm2261, %v2839, %v2848
      %v2851 = vshrl.u32 %v2744, 16
      %v2853 = vrot.slane %v2851, 2
      %v2854 = vshll.u32 %v2744, 16
      %v2856 = vrot.slane %v2854, 3
      %v2857 = vor.u32 %v2853, %v2856
      %v2858 = vsel %vm2261, %v2848, %v2857
      %v2860 = vshrl.u32 %v2745, 16
      %v2862 = vrot.slane %v2860, 2
      %v2863 = vshll.u32 %v2745, 16
      %v2865 = vrot.slane %v2863, 3
      %v2866 = vor.u32 %v2862, %v2865
      %v2867 = vsel %vm2261, %v2857, %v2866
      %v2869 = vshrl.u32 %v2746, 16
      %v2871 = vrot.slane %v2869, 2
      %v2872 = vshll.u32 %v2746, 16
      %v2874 = vrot.slane %v2872, 3
      %v2875 = vor.u32 %v2871, %v2874
      %v2876 = vsel %vm2261, %v2866, %v2875
      %v2878 = vshrl.u32 %v2747, 16
      %v2880 = vrot.slane %v2878, 2
      %v2881 = vshll.u32 %v2747, 16
      %v2883 = vrot.slane %v2881, 3
      %v2884 = vor.u32 %v2880, %v2883
      %v2885 = vsel %vm2261, %v2875, %v2884
      %v2887 = vshrl.u32 %v2748, 16
      %v2889 = vrot.slane %v2887, 2
      %v2890 = vshll.u32 %v2748, 16
      %v2892 = vrot.slane %v2890, 3
      %v2893 = vor.u32 %v2889, %v2892
      %v2894 = vsel %vm2261, %v2884, %v2893
      %v2896 = vshrl.u32 %v2749, 16
      %v2898 = vrot.slane %v2896, 2
      %v2899 = vshll.u32 %v2749, 16
      %v2901 = vrot.slane %v2899, 3
      %v2902 = vor.u32 %v2898, %v2901
      %v2903 = vsel %vm2261, %v2893, %v2902
      %v2905 = vshrl.u32 %v2750, 16
      %v2907 = vrot.slane %v2905, 2
      %v2908 = vshll.u32 %v2750, 16
      %v2910 = vrot.slane %v2908, 3
      %v2911 = vor.u32 %v2907, %v2910
      %v2912 = vsel %vm2261, %v2902, %v2911
      %v2914 = vshrl.u32 %v2751, 16
      %v2916 = vrot.slane %v2914, 2
      %v2917 = vshll.u32 %v2751, 16
      %v2919 = vrot.slane %v2917, 3
      %v2920 = vor.u32 %v2916, %v2919
      %v2921 = vsel %vm2261, %v2911, %v2920
      %v2923 = vsel %vm385, %v2768, 0
      %v2926 = vsel %vm385, %v2777, 0
      %v2929 = vsel %vm385, %v2786, 0
      %v2932 = vsel %vm385, %v2795, 0
      %v2935 = vsel %vm385, %v2804, 0
      %v2938 = vsel %vm385, %v2813, 0
      %v2941 = vsel %vm385, %v2822, 0
      %v2944 = vsel %vm385, %v2831, 0
      %v2947 = vsel %vm385, %v2840, 0
      %v2950 = vsel %vm385, %v2849, 0
      %v2953 = vsel %vm385, %v2858, 0
      %v2956 = vsel %vm385, %v2867, 0
      %v2959 = vsel %vm385, %v2876, 0
      %v2962 = vsel %vm385, %v2885, 0
      %v2965 = vsel %vm385, %v2894, 0
      %v2968 = vsel %vm385, %v2903, 0
      %v2971 = vsel %vm385, %v2912, 0
      %v2974 = vsel %vm385, %v2921, 0
      %v2977 = vsel %vm440, %v2658, 0
      %2979 = vmatprep.subr.bf16.mxu0 0
      %2980 = vmatpush1.bf16.msra.mxu0 %v2977
      %2981 = vmatprep.subr.bf16.mxu0 0
      %2982 = vmatpush1.bf16.msra.mxu0 0
      %2983 = vmatprep.subr.bf16.mxu0 0
      %2984 = vmatpush1.bf16.msra.mxu0 0
      %2985 = vmatprep.subr.bf16.mxu0 0
      %2986 = vmatpush1.bf16.msra.mxu0 0
      %2987 = vmatprep.subr.bf16.mxu0 0
      %2988 = vmatpush1.bf16.msra.mxu0 0
      %2989 = vmatprep.subr.bf16.mxu0 0
      %2990 = vmatpush1.bf16.msra.mxu0 0
      %2991 = vmatprep.subr.bf16.mxu0 0
      %2992 = vmatpush1.bf16.msra.mxu0 0
      %2993 = vmatprep.subr.bf16.mxu0 0
      %2994 = vmatpush1.bf16.msra.mxu0 0
      %2995 = vmatprep.subr.bf16.mxu0 0
      %2996 = vmatpush1.bf16.msra.mxu0 0
      %2997 = vmatprep.subr.bf16.mxu0 0
      %2998 = vmatpush1.bf16.msra.mxu0 0
      %2999 = vmatprep.subr.bf16.mxu0 0
      %3000 = vmatpush1.bf16.msra.mxu0 0
      %3001 = vmatprep.subr.bf16.mxu0 0
      %3002 = vmatpush1.bf16.msra.mxu0 0
      %3003 = vmatprep.subr.bf16.mxu0 0
      %3004 = vmatpush1.bf16.msra.mxu0 0
      %3005 = vmatprep.subr.bf16.mxu0 0
      %3006 = vmatpush1.bf16.msra.mxu0 0
      %3007 = vmatprep.subr.bf16.mxu0 0
      %3008 = vmatpush1.bf16.msra.mxu0 0
      %3009 = vmatprep.subr.bf16.mxu0 0
      %3010 = vmatpush1.bf16.msra.mxu0 0
      %3011 = vmatprep.mubr.bf16.mxu0 0
      %3012 = vmatmul.mubr.bf16.gmra.mrb[0].mxu0 %v2923
      %v3013 = vpop.f32.mrb[0].mxu0
      %v3014 = vadd.f32 0.0, %v3013
      %v3015 = vpop.f32.mrb[0].mxu0
      %v3016 = vpop.f32.mrb[0].mxu0
      %v3017 = vadd.f32 0.0, %v3016
      %v3018 = vpop.f32.mrb[0].mxu0
      %3019 = vmatprep.mubr.bf16.mxu0 0
      %3020 = vmatmul.mubr.bf16.gmra.mrb[0].mxu0 %v2926
      %v3021 = vpop.f32.mrb[0].mxu0
      %v3022 = vadd.f32 0.0, %v3021
      %v3023 = vpop.f32.mrb[0].mxu0
      %v3024 = vpop.f32.mrb[0].mxu0
      %v3025 = vadd.f32 0.0, %v3024
      %v3026 = vpop.f32.mrb[0].mxu0
      %3027 = vmatprep.mubr.bf16.mxu0 0
      %3028 = vmatmul.mubr.bf16.gmra.mrb[0].mxu0 %v2929
      %v3029 = vpop.f32.mrb[0].mxu0
      %v3030 = vadd.f32 0.0, %v3029
      %v3031 = vpop.f32.mrb[0].mxu0
      %v3032 = vpop.f32.mrb[0].mxu0
      %v3033 = vadd.f32 0.0, %v3032
      %v3034 = vpop.f32.mrb[0].mxu0
      %3035 = vmatprep.mubr.bf16.mxu0 0
      %3036 = vmatmul.mubr.bf16.gmra.mrb[0].mxu0 %v2932
      %v3037 = vpop.f32.mrb[0].mxu0
      %v3038 = vadd.f32 0.0, %v3037
      %v3039 = vpop.f32.mrb[0].mxu0
      %v3040 = vpop.f32.mrb[0].mxu0
      %v3041 = vadd.f32 0.0, %v3040
      %v3042 = vpop.f32.mrb[0].mxu0
      %3043 = vmatprep.mubr.bf16.mxu0 0
      %3044 = vmatmul.mubr.bf16.gmra.mrb[0].mxu0 %v2935
      %v3045 = vpop.f32.mrb[0].mxu0
      %v3046 = vadd.f32 0.0, %v3045
      %v3047 = vpop.f32.mrb[0].mxu0
      %v3048 = vpop.f32.mrb[0].mxu0
      %v3049 = vadd.f32 0.0, %v3048
      %v3050 = vpop.f32.mrb[0].mxu0
      %3051 = vmatprep.mubr.bf16.mxu0 0
      %3052 = vmatmul.mubr.bf16.gmra.mrb[0].mxu0 %v2938
      %v3053 = vpop.f32.mrb[0].mxu0
      %v3054 = vadd.f32 0.0, %v3053
      %v3055 = vpop.f32.mrb[0].mxu0
      %v3056 = vpop.f32.mrb[0].mxu0
      %v3057 = vadd.f32 0.0, %v3056
      %v3058 = vpop.f32.mrb[0].mxu0
      %3059 = vmatprep.mubr.bf16.mxu0 0
      %3060 = vmatmul.mubr.bf16.gmra.mrb[0].mxu0 %v2941
      %v3061 = vpop.f32.mrb[0].mxu0
      %v3062 = vadd.f32 0.0, %v3061
      %v3063 = vpop.f32.mrb[0].mxu0
      %v3064 = vpop.f32.mrb[0].mxu0
      %v3065 = vadd.f32 0.0, %v3064
      %v3066 = vpop.f32.mrb[0].mxu0
      %3067 = vmatprep.mubr.bf16.mxu0 0
      %3068 = vmatmul.mubr.bf16.gmra.mrb[0].mxu0 %v2944
      %v3069 = vpop.f32.mrb[0].mxu0
      %v3070 = vadd.f32 0.0, %v3069
      %v3071 = vpop.f32.mrb[0].mxu0
      %v3072 = vpop.f32.mrb[0].mxu0
      %v3073 = vadd.f32 0.0, %v3072
      %v3074 = vpop.f32.mrb[0].mxu0
      %3075 = vmatprep.mubr.bf16.mxu0 0
      %3076 = vmatmul.mubr.bf16.gmra.mrb[0].mxu0 %v2947
      %v3077 = vpop.f32.mrb[0].mxu0
      %v3078 = vadd.f32 0.0, %v3077
      %v3079 = vpop.f32.mrb[0].mxu0
      %v3080 = vpop.f32.mrb[0].mxu0
      %v3081 = vadd.f32 0.0, %v3080
      %v3082 = vpop.f32.mrb[0].mxu0
      %3083 = vmatprep.mubr.bf16.mxu0 0
      %3084 = vmatmul.mubr.bf16.gmra.mrb[0].mxu0 %v2950
      %v3085 = vpop.f32.mrb[0].mxu0
      %v3086 = vadd.f32 0.0, %v3085
      %v3087 = vpop.f32.mrb[0].mxu0
      %v3088 = vpop.f32.mrb[0].mxu0
      %v3089 = vadd.f32 0.0, %v3088
      %v3090 = vpop.f32.mrb[0].mxu0
      %3091 = vmatprep.mubr.bf16.mxu0 0
      %3092 = vmatmul.mubr.bf16.gmra.mrb[0].mxu0 %v2953
      %v3093 = vpop.f32.mrb[0].mxu0
      %v3094 = vadd.f32 0.0, %v3093
      %v3095 = vpop.f32.mrb[0].mxu0
      %v3096 = vpop.f32.mrb[0].mxu0
      %v3097 = vadd.f32 0.0, %v3096
      %v3098 = vpop.f32.mrb[0].mxu0
      %3099 = vmatprep.mubr.bf16.mxu0 0
      %3100 = vmatmul.mubr.bf16.gmra.mrb[0].mxu0 %v2956
      %v3101 = vpop.f32.mrb[0].mxu0
      %v3102 = vadd.f32 0.0, %v3101
      %v3103 = vpop.f32.mrb[0].mxu0
      %v3104 = vpop.f32.mrb[0].mxu0
      %v3105 = vadd.f32 0.0, %v3104
      %v3106 = vpop.f32.mrb[0].mxu0
      %3107 = vmatprep.mubr.bf16.mxu0 0
      %3108 = vmatmul.mubr.bf16.gmra.mrb[0].mxu0 %v2959
      %v3109 = vpop.f32.mrb[0].mxu0
      %v3110 = vadd.f32 0.0, %v3109
      %v3111 = vpop.f32.mrb[0].mxu0
      %v3112 = vpop.f32.mrb[0].mxu0
      %v3113 = vadd.f32 0.0, %v3112
      %v3114 = vpop.f32.mrb[0].mxu0
      %3115 = vmatprep.mubr.bf16.mxu0 0
      %3116 = vmatmul.mubr.bf16.gmra.mrb[0].mxu0 %v2962
      %v3117 = vpop.f32.mrb[0].mxu0
      %v3118 = vadd.f32 0.0, %v3117
      %v3119 = vpop.f32.mrb[0].mxu0
      %v3120 = vpop.f32.mrb[0].mxu0
      %v3121 = vadd.f32 0.0, %v3120
      %v3122 = vpop.f32.mrb[0].mxu0
      %3123 = vmatprep.mubr.bf16.mxu0 0
      %3124 = vmatmul.mubr.bf16.gmra.mrb[0].mxu0 %v2965
      %v3125 = vpop.f32.mrb[0].mxu0
      %v3126 = vadd.f32 0.0, %v3125
      %v3127 = vpop.f32.mrb[0].mxu0
      %v3128 = vpop.f32.mrb[0].mxu0
      %v3129 = vadd.f32 0.0, %v3128
      %v3130 = vpop.f32.mrb[0].mxu0
      %3131 = vmatprep.mubr.bf16.mxu0 0
      %3132 = vmatmul.mubr.bf16.gmra.mrb[0].mxu0 %v2968
      %v3133 = vpop.f32.mrb[0].mxu0
      %v3134 = vadd.f32 0.0, %v3133
      %v3135 = vpop.f32.mrb[0].mxu0
      %v3136 = vpop.f32.mrb[0].mxu0
      %v3137 = vadd.f32 0.0, %v3136
      %v3138 = vpop.f32.mrb[0].mxu0
      %3139 = vmatprep.mubr.bf16.mxu0 0
      %3140 = vmatmul.mubr.bf16.gmra.mrb[0].mxu0 %v2971
      %v3141 = vpop.f32.mrb[0].mxu0
      %v3142 = vadd.f32 0.0, %v3141
      %v3143 = vpop.f32.mrb[0].mxu0
      %v3144 = vpop.f32.mrb[0].mxu0
      %v3145 = vadd.f32 0.0, %v3144
      %v3146 = vpop.f32.mrb[0].mxu0
      %3147 = vmatprep.mubr.bf16.mxu0 0
      %3148 = vmatmul.mubr.bf16.gmra.mrb[0].mxu0 %v2974
      %v3149 = vpop.f32.mrb[0].mxu0
      %v3150 = vadd.f32 0.0, %v3149
      %v3151 = vpop.f32.mrb[0].mxu0
      %v3152 = vpop.f32.mrb[0].mxu0
      %v3153 = vadd.f32 0.0, %v3152
      %v3154 = vpop.f32.mrb[0].mxu0
      %3155 = vdwg.mxu0
      %v3156 = vadd.f32 %v2585, %v3014
      %v3157 = vadd.f32 %v2586, %v3017
      %v3158 = vadd.f32 %v2587, %v3022
      %v3159 = vadd.f32 %v2588, %v3025
      %v3160 = vadd.f32 %v2589, %v3030
      %v3161 = vadd.f32 %v2590, %v3033
      %v3162 = vadd.f32 %v2591, %v3038
      %v3163 = vadd.f32 %v2592, %v3041
      %v3164 = vadd.f32 %v2593, %v3046
      %v3165 = vadd.f32 %v2594, %v3049
      %v3166 = vadd.f32 %v2595, %v3054
      %v3167 = vadd.f32 %v2596, %v3057
      %v3168 = vadd.f32 %v2597, %v3062
      %v3169 = vadd.f32 %v2598, %v3065
      %v3170 = vadd.f32 %v2599, %v3070
      %v3171 = vadd.f32 %v2600, %v3073
      %v3172 = vadd.f32 %v2601, %v3078
      %v3173 = vadd.f32 %v2602, %v3081
      %v3174 = vadd.f32 %v2603, %v3086
      %v3175 = vadd.f32 %v2604, %v3089
      %v3176 = vadd.f32 %v2605, %v3094
      %v3177 = vadd.f32 %v2606, %v3097
      %v3178 = vadd.f32 %v2607, %v3102
      %v3179 = vadd.f32 %v2608, %v3105
      %v3180 = vadd.f32 %v2609, %v3110
      %v3181 = vadd.f32 %v2610, %v3113
      %v3182 = vadd.f32 %v2611, %v3118
      %v3183 = vadd.f32 %v2612, %v3121
      %v3184 = vadd.f32 %v2613, %v3126
      %v3185 = vadd.f32 %v2614, %v3129
      %v3186 = vadd.f32 %v2615, %v3134
      %v3187 = vadd.f32 %v2616, %v3137
      %v3188 = vadd.f32 %v2617, %v3142
      %v3189 = vadd.f32 %v2618, %v3145
      %v3190 = vadd.f32 %v2619, %v3150
      %v3191 = vadd.f32 %v2620, %v3153
      %v3192 = vld [vmem:[%s199 + $0x18] sm:$0x8]
      %v3193 = vld [vmem:[%s1 + $0xc] sm:$0xc]
      %v3195 = vunpack.c.l.b16 %v3192
      %v3196 = vpack.c.b16 %v2697, %v3195
      %vm3197 = vcmask 1044480
      %v3198 = vrot.slane %v3196, 3
      %v3199 = vrot.slane %v2734, 3
      %v3200 = vsel %vm3197, %v3198, %v3199
      %v3201 = vrot.slane %v2735, 3
      %v3202 = vsel %vm3197, %v3199, %v3201
      %v3203 = vrot.slane %v2736, 3
      %v3204 = vsel %vm3197, %v3201, %v3203
      %v3205 = vrot.slane %v2737, 3
      %v3206 = vsel %vm3197, %v3203, %v3205
      %v3207 = vrot.slane %v2738, 3
      %v3208 = vsel %vm3197, %v3205, %v3207
      %v3209 = vrot.slane %v2739, 3
      %v3210 = vsel %vm3197, %v3207, %v3209
      %v3211 = vrot.slane %v2740, 3
      %v3212 = vsel %vm3197, %v3209, %v3211
      %v3213 = vrot.slane %v2741, 3
      %v3214 = vsel %vm3197, %v3211, %v3213
      %v3215 = vrot.slane %v2742, 3
      %v3216 = vsel %vm3197, %v3213, %v3215
      %v3217 = vrot.slane %v2743, 3
      %v3218 = vsel %vm3197, %v3215, %v3217
      %v3219 = vrot.slane %v2744, 3
      %v3220 = vsel %vm3197, %v3217, %v3219
      %v3221 = vrot.slane %v2745, 3
      %v3222 = vsel %vm3197, %v3219, %v3221
      %v3223 = vrot.slane %v2746, 3
      %v3224 = vsel %vm3197, %v3221, %v3223
      %v3225 = vrot.slane %v2747, 3
      %v3226 = vsel %vm3197, %v3223, %v3225
      %v3227 = vrot.slane %v2748, 3
      %v3228 = vsel %vm3197, %v3225, %v3227
      %v3229 = vrot.slane %v2749, 3
      %v3230 = vsel %vm3197, %v3227, %v3229
      %v3231 = vrot.slane %v2750, 3
      %v3232 = vsel %vm3197, %v3229, %v3231
      %v3233 = vrot.slane %v2751, 3
      %v3234 = vsel %vm3197, %v3231, %v3233
      %v3236 = vunpack.c.l.b16 %v3193
      %v3237 = vpack.c.b16 %v3236, %v3236
      %v3238 = vrot.slane %v3237, 2
      %v3240 = vsel %vm385, %v3200, 0
      %v3243 = vsel %vm385, %v3202, 0
      %v3246 = vsel %vm385, %v3204, 0
      %v3249 = vsel %vm385, %v3206, 0
      %v3252 = vsel %vm385, %v3208, 0
      %v3255 = vsel %vm385, %v3210, 0
      %v3258 = vsel %vm385, %v3212, 0
      %v3261 = vsel %vm385, %v3214, 0
      %v3264 = vsel %vm385, %v3216, 0
      %v3267 = vsel %vm385, %v3218, 0
      %v3270 = vsel %vm385, %v3220, 0
      %v3273 = vsel %vm385, %v3222, 0
      %v3276 = vsel %vm385, %v3224, 0
      %v3279 = vsel %vm385, %v3226, 0
      %v3282 = vsel %vm385, %v3228, 0
      %v3285 = vsel %vm385, %v3230, 0
      %v3288 = vsel %vm385, %v3232, 0
      %v3291 = vsel %vm385, %v3234, 0
      %v3294 = vsel %vm440, %v3238, 0
      %3296 = vmatprep.subr.bf16.mxu0 0
      %3297 = vmatpush1.bf16.msra.mxu0 %v3294
      %3298 = vmatprep.subr.bf16.mxu0 0
      %3299 = vmatpush1.bf16.msra.mxu0 0
      %3300 = vmatprep.subr.bf16.mxu0 0
      %3301 = vmatpush1.bf16.msra.mxu0 0
      %3302 = vmatprep.subr.bf16.mxu0 0
      %3303 = vmatpush1.bf16.msra.mxu0 0
      %3304 = vmatprep.subr.bf16.mxu0 0
      %3305 = vmatpush1.bf16.msra.mxu0 0
      %3306 = vmatprep.subr.bf16.mxu0 0
      %3307 = vmatpush1.bf16.msra.mxu0 0
      %3308 = vmatprep.subr.bf16.mxu0 0
      %3309 = vmatpush1.bf16.msra.mxu0 0
      %3310 = vmatprep.subr.bf16.mxu0 0
      %3311 = vmatpush1.bf16.msra.mxu0 0
      %3312 = vmatprep.subr.bf16.mxu0 0
      %3313 = vmatpush1.bf16.msra.mxu0 0
      %3314 = vmatprep.subr.bf16.mxu0 0
      %3315 = vmatpush1.bf16.msra.mxu0 0
      %3316 = vmatprep.subr.bf16.mxu0 0
      %3317 = vmatpush1.bf16.msra.mxu0 0
      %3318 = vmatprep.subr.bf16.mxu0 0
      %3319 = vmatpush1.bf16.msra.mxu0 0
      %3320 = vmatprep.subr.bf16.mxu0 0
      %3321 = vmatpush1.bf16.msra.mxu0 0
      %3322 = vmatprep.subr.bf16.mxu0 0
      %3323 = vmatpush1.bf16.msra.mxu0 0
      %3324 = vmatprep.subr.bf16.mxu0 0
      %3325 = vmatpush1.bf16.msra.mxu0 0
      %3326 = vmatprep.subr.bf16.mxu0 0
      %3327 = vmatpush1.bf16.msra.mxu0 0
      %3328 = vmatprep.mubr.bf16.mxu0 0
      %3329 = vmatmul.mubr.bf16.gmra.mrb[0].mxu0 %v3240
      %v3330 = vpop.f32.mrb[0].mxu0
      %v3331 = vadd.f32 0.0, %v3330
      %v3332 = vpop.f32.mrb[0].mxu0
      %v3333 = vpop.f32.mrb[0].mxu0
      %v3334 = vadd.f32 0.0, %v3333
      %v3335 = vpop.f32.mrb[0].mxu0
      %3336 = vmatprep.mubr.bf16.mxu0 0
      %3337 = vmatmul.mubr.bf16.gmra.mrb[0].mxu0 %v3243
      %v3338 = vpop.f32.mrb[0].mxu0
      %v3339 = vadd.f32 0.0, %v3338
      %v3340 = vpop.f32.mrb[0].mxu0
      %v3341 = vpop.f32.mrb[0].mxu0
      %v3342 = vadd.f32 0.0, %v3341
      %v3343 = vpop.f32.mrb[0].mxu0
      %3344 = vmatprep.mubr.bf16.mxu0 0
      %3345 = vmatmul.mubr.bf16.gmra.mrb[0].mxu0 %v3246
      %v3346 = vpop.f32.mrb[0].mxu0
      %v3347 = vadd.f32 0.0, %v3346
      %v3348 = vpop.f32.mrb[0].mxu0
      %v3349 = vpop.f32.mrb[0].mxu0
      %v3350 = vadd.f32 0.0, %v3349
      %v3351 = vpop.f32.mrb[0].mxu0
      %3352 = vmatprep.mubr.bf16.mxu0 0
      %3353 = vmatmul.mubr.bf16.gmra.mrb[0].mxu0 %v3249
      %v3354 = vpop.f32.mrb[0].mxu0
      %v3355 = vadd.f32 0.0, %v3354
      %v3356 = vpop.f32.mrb[0].mxu0
      %v3357 = vpop.f32.mrb[0].mxu0
      %v3358 = vadd.f32 0.0, %v3357
      %v3359 = vpop.f32.mrb[0].mxu0
      %3360 = vmatprep.mubr.bf16.mxu0 0
      %3361 = vmatmul.mubr.bf16.gmra.mrb[0].mxu0 %v3252
      %v3362 = vpop.f32.mrb[0].mxu0
      %v3363 = vadd.f32 0.0, %v3362
      %v3364 = vpop.f32.mrb[0].mxu0
      %v3365 = vpop.f32.mrb[0].mxu0
      %v3366 = vadd.f32 0.0, %v3365
      %v3367 = vpop.f32.mrb[0].mxu0
      %3368 = vmatprep.mubr.bf16.mxu0 0
      %3369 = vmatmul.mubr.bf16.gmra.mrb[0].mxu0 %v3255
      %v3370 = vpop.f32.mrb[0].mxu0
      %v3371 = vadd.f32 0.0, %v3370
      %v3372 = vpop.f32.mrb[0].mxu0
      %v3373 = vpop.f32.mrb[0].mxu0
      %v3374 = vadd.f32 0.0, %v3373
      %v3375 = vpop.f32.mrb[0].mxu0
      %3376 = vmatprep.mubr.bf16.mxu0 0
      %3377 = vmatmul.mubr.bf16.gmra.mrb[0].mxu0 %v3258
      %v3378 = vpop.f32.mrb[0].mxu0
      %v3379 = vadd.f32 0.0, %v3378
      %v3380 = vpop.f32.mrb[0].mxu0
      %v3381 = vpop.f32.mrb[0].mxu0
      %v3382 = vadd.f32 0.0, %v3381
      %v3383 = vpop.f32.mrb[0].mxu0
      %3384 = vmatprep.mubr.bf16.mxu0 0
      %3385 = vmatmul.mubr.bf16.gmra.mrb[0].mxu0 %v3261
      %v3386 = vpop.f32.mrb[0].mxu0
      %v3387 = vadd.f32 0.0, %v3386
      %v3388 = vpop.f32.mrb[0].mxu0
      %v3389 = vpop.f32.mrb[0].mxu0
      %v3390 = vadd.f32 0.0, %v3389
      %v3391 = vpop.f32.mrb[0].mxu0
      %3392 = vmatprep.mubr.bf16.mxu0 0
      %3393 = vmatmul.mubr.bf16.gmra.mrb[0].mxu0 %v3264
      %v3394 = vpop.f32.mrb[0].mxu0
      %v3395 = vadd.f32 0.0, %v3394
      %v3396 = vpop.f32.mrb[0].mxu0
      %v3397 = vpop.f32.mrb[0].mxu0
      %v3398 = vadd.f32 0.0, %v3397
      %v3399 = vpop.f32.mrb[0].mxu0
      %3400 = vmatprep.mubr.bf16.mxu0 0
      %3401 = vmatmul.mubr.bf16.gmra.mrb[0].mxu0 %v3267
      %v3402 = vpop.f32.mrb[0].mxu0
      %v3403 = vadd.f32 0.0, %v3402
      %v3404 = vpop.f32.mrb[0].mxu0
      %v3405 = vpop.f32.mrb[0].mxu0
      %v3406 = vadd.f32 0.0, %v3405
      %v3407 = vpop.f32.mrb[0].mxu0
      %3408 = vmatprep.mubr.bf16.mxu0 0
      %3409 = vmatmul.mubr.bf16.gmra.mrb[0].mxu0 %v3270
      %v3410 = vpop.f32.mrb[0].mxu0
      %v3411 = vadd.f32 0.0, %v3410
      %v3412 = vpop.f32.mrb[0].mxu0
      %v3413 = vpop.f32.mrb[0].mxu0
      %v3414 = vadd.f32 0.0, %v3413
      %v3415 = vpop.f32.mrb[0].mxu0
      %3416 = vmatprep.mubr.bf16.mxu0 0
      %3417 = vmatmul.mubr.bf16.gmra.mrb[0].mxu0 %v3273
      %v3418 = vpop.f32.mrb[0].mxu0
      %v3419 = vadd.f32 0.0, %v3418
      %v3420 = vpop.f32.mrb[0].mxu0
      %v3421 = vpop.f32.mrb[0].mxu0
      %v3422 = vadd.f32 0.0, %v3421
      %v3423 = vpop.f32.mrb[0].mxu0
      %3424 = vmatprep.mubr.bf16.mxu0 0
      %3425 = vmatmul.mubr.bf16.gmra.mrb[0].mxu0 %v3276
      %v3426 = vpop.f32.mrb[0].mxu0
      %v3427 = vadd.f32 0.0, %v3426
      %v3428 = vpop.f32.mrb[0].mxu0
      %v3429 = vpop.f32.mrb[0].mxu0
      %v3430 = vadd.f32 0.0, %v3429
      %v3431 = vpop.f32.mrb[0].mxu0
      %3432 = vmatprep.mubr.bf16.mxu0 0
      %3433 = vmatmul.mubr.bf16.gmra.mrb[0].mxu0 %v3279
      %v3434 = vpop.f32.mrb[0].mxu0
      %v3435 = vadd.f32 0.0, %v3434
      %v3436 = vpop.f32.mrb[0].mxu0
      %v3437 = vpop.f32.mrb[0].mxu0
      %v3438 = vadd.f32 0.0, %v3437
      %v3439 = vpop.f32.mrb[0].mxu0
      %3440 = vmatprep.mubr.bf16.mxu0 0
      %3441 = vmatmul.mubr.bf16.gmra.mrb[0].mxu0 %v3282
      %v3442 = vpop.f32.mrb[0].mxu0
      %v3443 = vadd.f32 0.0, %v3442
      %v3444 = vpop.f32.mrb[0].mxu0
      %v3445 = vpop.f32.mrb[0].mxu0
      %v3446 = vadd.f32 0.0, %v3445
      %v3447 = vpop.f32.mrb[0].mxu0
      %3448 = vmatprep.mubr.bf16.mxu0 0
      %3449 = vmatmul.mubr.bf16.gmra.mrb[0].mxu0 %v3285
      %v3450 = vpop.f32.mrb[0].mxu0
      %v3451 = vadd.f32 0.0, %v3450
      %v3452 = vpop.f32.mrb[0].mxu0
      %v3453 = vpop.f32.mrb[0].mxu0
      %v3454 = vadd.f32 0.0, %v3453
      %v3455 = vpop.f32.mrb[0].mxu0
      %3456 = vmatprep.mubr.bf16.mxu0 0
      %3457 = vmatmul.mubr.bf16.gmra.mrb[0].mxu0 %v3288
      %v3458 = vpop.f32.mrb[0].mxu0
      %v3459 = vadd.f32 0.0, %v3458
      %v3460 = vpop.f32.mrb[0].mxu0
      %v3461 = vpop.f32.mrb[0].mxu0
      %v3462 = vadd.f32 0.0, %v3461
      %v3463 = vpop.f32.mrb[0].mxu0
      %3464 = vmatprep.mubr.bf16.mxu0 0
      %3465 = vmatmul.mubr.bf16.gmra.mrb[0].mxu0 %v3291
      %v3466 = vpop.f32.mrb[0].mxu0
      %v3467 = vadd.f32 0.0, %v3466
      %v3468 = vpop.f32.mrb[0].mxu0
      %v3469 = vpop.f32.mrb[0].mxu0
      %v3470 = vadd.f32 0.0, %v3469
      %v3471 = vpop.f32.mrb[0].mxu0
      %3472 = vdwg.mxu0
      %v3473 = vadd.f32 %v3156, %v3331
      %v3474 = vadd.f32 %v3157, %v3334
      %v3475 = vadd.f32 %v3158, %v3339
      %v3476 = vadd.f32 %v3159, %v3342
      %v3477 = vadd.f32 %v3160, %v3347
      %v3478 = vadd.f32 %v3161, %v3350
      %v3479 = vadd.f32 %v3162, %v3355
      %v3480 = vadd.f32 %v3163, %v3358
      %v3481 = vadd.f32 %v3164, %v3363
      %v3482 = vadd.f32 %v3165, %v3366
      %v3483 = vadd.f32 %v3166, %v3371
      %v3484 = vadd.f32 %v3167, %v3374
      %v3485 = vadd.f32 %v3168, %v3379
      %v3486 = vadd.f32 %v3169, %v3382
      %v3487 = vadd.f32 %v3170, %v3387
      %v3488 = vadd.f32 %v3171, %v3390
      %v3489 = vadd.f32 %v3172, %v3395
      %v3490 = vadd.f32 %v3173, %v3398
      %v3491 = vadd.f32 %v3174, %v3403
      %v3492 = vadd.f32 %v3175, %v3406
      %v3493 = vadd.f32 %v3176, %v3411
      %v3494 = vadd.f32 %v3177, %v3414
      %v3495 = vadd.f32 %v3178, %v3419
      %v3496 = vadd.f32 %v3179, %v3422
      %v3497 = vadd.f32 %v3180, %v3427
      %v3498 = vadd.f32 %v3181, %v3430
      %v3499 = vadd.f32 %v3182, %v3435
      %v3500 = vadd.f32 %v3183, %v3438
      %v3501 = vadd.f32 %v3184, %v3443
      %v3502 = vadd.f32 %v3185, %v3446
      %v3503 = vadd.f32 %v3186, %v3451
      %v3504 = vadd.f32 %v3187, %v3454
      %v3505 = vadd.f32 %v3188, %v3459
      %v3506 = vadd.f32 %v3189, %v3462
      %v3507 = vadd.f32 %v3190, %v3467
      %v3508 = vadd.f32 %v3191, %v3470
      %v3509 = vld [vmem:[%s199 + $0xa8] sm:$0xf]
      %v3510 = vld [vmem:[%s1 + $0x10] sm:$0x3]
      %v3512 = vunpack.c.l.b16 %v3509
      %v3513 = vpack.c.b16 %v3512, %v3512
      %vm3514 = vsmask.f32 4352
      %v3516 = vshrl.u32 %v3196, 16
      %v3518 = vrot.slane %v3516, 3
      %v3519 = vshll.u32 %v3196, 16
      %v3521 = vrot.slane %v3519, 4
      %v3522 = vor.u32 %v3518, %v3521
      %v3523 = vrot.slane %v2761, 3
      %v3524 = vrot.slane %v2764, 4
      %v3525 = vor.u32 %v3523, %v3524
      %v3526 = vsel %vm3514, %v3522, %v3525
      %v3527 = vrot.slane %v2770, 3
      %v3528 = vrot.slane %v2773, 4
      %v3529 = vor.u32 %v3527, %v3528
      %v3530 = vsel %vm3514, %v3525, %v3529
      %v3531 = vrot.slane %v2779, 3
      %v3532 = vrot.slane %v2782, 4
      %v3533 = vor.u32 %v3531, %v3532
      %v3534 = vsel %vm3514, %v3529, %v3533
      %v3535 = vrot.slane %v2788, 3
      %v3536 = vrot.slane %v2791, 4
      %v3537 = vor.u32 %v3535, %v3536
      %v3538 = vsel %vm3514, %v3533, %v3537
      %v3539 = vrot.slane %v2797, 3
      %v3540 = vrot.slane %v2800, 4
      %v3541 = vor.u32 %v3539, %v3540
      %v3542 = vsel %vm3514, %v3537, %v3541
      %v3543 = vrot.slane %v2806, 3
      %v3544 = vrot.slane %v2809, 4
      %v3545 = vor.u32 %v3543, %v3544
      %v3546 = vsel %vm3514, %v3541, %v3545
      %v3547 = vrot.slane %v2815, 3
      %v3548 = vrot.slane %v2818, 4
      %v3549 = vor.u32 %v3547, %v3548
      %v3550 = vsel %vm3514, %v3545, %v3549
      %v3551 = vrot.slane %v2824, 3
      %v3552 = vrot.slane %v2827, 4
      %v3553 = vor.u32 %v3551, %v3552
      %v3554 = vsel %vm3514, %v3549, %v3553
      %v3555 = vrot.slane %v2833, 3
      %v3556 = vrot.slane %v2836, 4
      %v3557 = vor.u32 %v3555, %v3556
      %v3558 = vsel %vm3514, %v3553, %v3557
      %v3559 = vrot.slane %v2842, 3
      %v3560 = vrot.slane %v2845, 4
      %v3561 = vor.u32 %v3559, %v3560
      %v3562 = vsel %vm3514, %v3557, %v3561
      %v3563 = vrot.slane %v2851, 3
      %v3564 = vrot.slane %v2854, 4
      %v3565 = vor.u32 %v3563, %v3564
      %v3566 = vsel %vm3514, %v3561, %v3565
      %v3567 = vrot.slane %v2860, 3
      %v3568 = vrot.slane %v2863, 4
      %v3569 = vor.u32 %v3567, %v3568
      %v3570 = vsel %vm3514, %v3565, %v3569
      %v3571 = vrot.slane %v2869, 3
      %v3572 = vrot.slane %v2872, 4
      %v3573 = vor.u32 %v3571, %v3572
      %v3574 = vsel %vm3514, %v3569, %v3573
      %v3575 = vrot.slane %v2878, 3
      %v3576 = vrot.slane %v2881, 4
      %v3577 = vor.u32 %v3575, %v3576
      %v3578 = vsel %vm3514, %v3573, %v3577
      %v3579 = vrot.slane %v2887, 3
      %v3580 = vrot.slane %v2890, 4
      %v3581 = vor.u32 %v3579, %v3580
      %v3582 = vsel %vm3514, %v3577, %v3581
      %v3583 = vrot.slane %v2896, 3
      %v3584 = vrot.slane %v2899, 4
      %v3585 = vor.u32 %v3583, %v3584
      %v3586 = vsel %vm3514, %v3581, %v3585
      %v3587 = vrot.slane %v2905, 3
      %v3588 = vrot.slane %v2908, 4
      %v3589 = vor.u32 %v3587, %v3588
      %v3590 = vsel %vm3514, %v3585, %v3589
      %v3592 = vshrl.u32 %v3513, 16
      %v3594 = vrot.slane %v3592, 3
      %v3595 = vshll.u32 %v3513, 16
      %v3597 = vrot.slane %v3595, 4
      %v3598 = vor.u32 %v3594, %v3597
      %v3599 = vsel %vm3514, %v3589, %v3598
      %v3601 = vsel %vm385, %v3526, 0
      %v3604 = vsel %vm385, %v3530, 0
      %v3607 = vsel %vm385, %v3534, 0
      %v3610 = vsel %vm385, %v3538, 0
      %v3613 = vsel %vm385, %v3542, 0
      %v3616 = vsel %vm385, %v3546, 0
      %v3619 = vsel %vm385, %v3550, 0
      %v3622 = vsel %vm385, %v3554, 0
      %v3625 = vsel %vm385, %v3558, 0
      %v3628 = vsel %vm385, %v3562, 0
      %v3631 = vsel %vm385, %v3566, 0
      %v3634 = vsel %vm385, %v3570, 0
      %v3637 = vsel %vm385, %v3574, 0
      %v3640 = vsel %vm385, %v3578, 0
      %v3643 = vsel %vm385, %v3582, 0
      %v3646 = vsel %vm385, %v3586, 0
      %v3649 = vsel %vm385, %v3590, 0
      %v3652 = vsel %vm385, %v3599, 0
      %v3655 = vsel %vm440, %v3510, 0
      %3657 = vmatprep.subr.bf16.mxu0 0
      %3658 = vmatpush1.bf16.msra.mxu0 %v3655
      %3659 = vmatprep.subr.bf16.mxu0 0
      %3660 = vmatpush1.bf16.msra.mxu0 0
      %3661 = vmatprep.subr.bf16.mxu0 0
      %3662 = vmatpush1.bf16.msra.mxu0 0
      %3663 = vmatprep.subr.bf16.mxu0 0
      %3664 = vmatpush1.bf16.msra.mxu0 0
      %3665 = vmatprep.subr.bf16.mxu0 0
      %3666 = vmatpush1.bf16.msra.mxu0 0
      %3667 = vmatprep.subr.bf16.mxu0 0
      %3668 = vmatpush1.bf16.msra.mxu0 0
      %3669 = vmatprep.subr.bf16.mxu0 0
      %3670 = vmatpush1.bf16.msra.mxu0 0
      %3671 = vmatprep.subr.bf16.mxu0 0
      %3672 = vmatpush1.bf16.msra.mxu0 0
      %3673 = vmatprep.subr.bf16.mxu0 0
      %3674 = vmatpush1.bf16.msra.mxu0 0
      %3675 = vmatprep.subr.bf16.mxu0 0
      %3676 = vmatpush1.bf16.msra.mxu0 0
      %3677 = vmatprep.subr.bf16.mxu0 0
      %3678 = vmatpush1.bf16.msra.mxu0 0
      %3679 = vmatprep.subr.bf16.mxu0 0
      %3680 = vmatpush1.bf16.msra.mxu0 0
      %3681 = vmatprep.subr.bf16.mxu0 0
      %3682 = vmatpush1.bf16.msra.mxu0 0
      %3683 = vmatprep.subr.bf16.mxu0 0
      %3684 = vmatpush1.bf16.msra.mxu0 0
      %3685 = vmatprep.subr.bf16.mxu0 0
      %3686 = vmatpush1.bf16.msra.mxu0 0
      %3687 = vmatprep.subr.bf16.mxu0 0
      %3688 = vmatpush1.bf16.msra.mxu0 0
      %3689 = vmatprep.mubr.bf16.mxu0 0
      %3690 = vmatmul.mubr.bf16.gmra.mrb[0].mxu0 %v3601
      %v3691 = vpop.f32.mrb[0].mxu0
      %v3692 = vadd.f32 0.0, %v3691
      %v3693 = vpop.f32.mrb[0].mxu0
      %v3694 = vpop.f32.mrb[0].mxu0
      %v3695 = vadd.f32 0.0, %v3694
      %v3696 = vpop.f32.mrb[0].mxu0
      %3697 = vmatprep.mubr.bf16.mxu0 0
      %3698 = vmatmul.mubr.bf16.gmra.mrb[0].mxu0 %v3604
      %v3699 = vpop.f32.mrb[0].mxu0
      %v3700 = vadd.f32 0.0, %v3699
      %v3701 = vpop.f32.mrb[0].mxu0
      %v3702 = vpop.f32.mrb[0].mxu0
      %v3703 = vadd.f32 0.0, %v3702
      %v3704 = vpop.f32.mrb[0].mxu0
      %3705 = vmatprep.mubr.bf16.mxu0 0
      %3706 = vmatmul.mubr.bf16.gmra.mrb[0].mxu0 %v3607
      %v3707 = vpop.f32.mrb[0].mxu0
      %v3708 = vadd.f32 0.0, %v3707
      %v3709 = vpop.f32.mrb[0].mxu0
      %v3710 = vpop.f32.mrb[0].mxu0
      %v3711 = vadd.f32 0.0, %v3710
      %v3712 = vpop.f32.mrb[0].mxu0
      %3713 = vmatprep.mubr.bf16.mxu0 0
      %3714 = vmatmul.mubr.bf16.gmra.mrb[0].mxu0 %v3610
      %v3715 = vpop.f32.mrb[0].mxu0
      %v3716 = vadd.f32 0.0, %v3715
      %v3717 = vpop.f32.mrb[0].mxu0
      %v3718 = vpop.f32.mrb[0].mxu0
      %v3719 = vadd.f32 0.0, %v3718
      %v3720 = vpop.f32.mrb[0].mxu0
      %3721 = vmatprep.mubr.bf16.mxu0 0
      %3722 = vmatmul.mubr.bf16.gmra.mrb[0].mxu0 %v3613
      %v3723 = vpop.f32.mrb[0].mxu0
      %v3724 = vadd.f32 0.0, %v3723
      %v3725 = vpop.f32.mrb[0].mxu0
      %v3726 = vpop.f32.mrb[0].mxu0
      %v3727 = vadd.f32 0.0, %v3726
      %v3728 = vpop.f32.mrb[0].mxu0
      %3729 = vmatprep.mubr.bf16.mxu0 0
      %3730 = vmatmul.mubr.bf16.gmra.mrb[0].mxu0 %v3616
      %v3731 = vpop.f32.mrb[0].mxu0
      %v3732 = vadd.f32 0.0, %v3731
      %v3733 = vpop.f32.mrb[0].mxu0
      %v3734 = vpop.f32.mrb[0].mxu0
      %v3735 = vadd.f32 0.0, %v3734
      %v3736 = vpop.f32.mrb[0].mxu0
      %3737 = vmatprep.mubr.bf16.mxu0 0
      %3738 = vmatmul.mubr.bf16.gmra.mrb[0].mxu0 %v3619
      %v3739 = vpop.f32.mrb[0].mxu0
      %v3740 = vadd.f32 0.0, %v3739
      %v3741 = vpop.f32.mrb[0].mxu0
      %v3742 = vpop.f32.mrb[0].mxu0
      %v3743 = vadd.f32 0.0, %v3742
      %v3744 = vpop.f32.mrb[0].mxu0
      %3745 = vmatprep.mubr.bf16.mxu0 0
      %3746 = vmatmul.mubr.bf16.gmra.mrb[0].mxu0 %v3622
      %v3747 = vpop.f32.mrb[0].mxu0
      %v3748 = vadd.f32 0.0, %v3747
      %v3749 = vpop.f32.mrb[0].mxu0
      %v3750 = vpop.f32.mrb[0].mxu0
      %v3751 = vadd.f32 0.0, %v3750
      %v3752 = vpop.f32.mrb[0].mxu0
      %3753 = vmatprep.mubr.bf16.mxu0 0
      %3754 = vmatmul.mubr.bf16.gmra.mrb[0].mxu0 %v3625
      %v3755 = vpop.f32.mrb[0].mxu0
      %v3756 = vadd.f32 0.0, %v3755
      %v3757 = vpop.f32.mrb[0].mxu0
      %v3758 = vpop.f32.mrb[0].mxu0
      %v3759 = vadd.f32 0.0, %v3758
      %v3760 = vpop.f32.mrb[0].mxu0
      %3761 = vmatprep.mubr.bf16.mxu0 0
      %3762 = vmatmul.mubr.bf16.gmra.mrb[0].mxu0 %v3628
      %v3763 = vpop.f32.mrb[0].mxu0
      %v3764 = vadd.f32 0.0, %v3763
      %v3765 = vpop.f32.mrb[0].mxu0
      %v3766 = vpop.f32.mrb[0].mxu0
      %v3767 = vadd.f32 0.0, %v3766
      %v3768 = vpop.f32.mrb[0].mxu0
      %3769 = vmatprep.mubr.bf16.mxu0 0
      %3770 = vmatmul.mubr.bf16.gmra.mrb[0].mxu0 %v3631
      %v3771 = vpop.f32.mrb[0].mxu0
      %v3772 = vadd.f32 0.0, %v3771
      %v3773 = vpop.f32.mrb[0].mxu0
      %v3774 = vpop.f32.mrb[0].mxu0
      %v3775 = vadd.f32 0.0, %v3774
      %v3776 = vpop.f32.mrb[0].mxu0
      %3777 = vmatprep.mubr.bf16.mxu0 0
      %3778 = vmatmul.mubr.bf16.gmra.mrb[0].mxu0 %v3634
      %v3779 = vpop.f32.mrb[0].mxu0
      %v3780 = vadd.f32 0.0, %v3779
      %v3781 = vpop.f32.mrb[0].mxu0
      %v3782 = vpop.f32.mrb[0].mxu0
      %v3783 = vadd.f32 0.0, %v3782
      %v3784 = vpop.f32.mrb[0].mxu0
      %3785 = vmatprep.mubr.bf16.mxu0 0
      %3786 = vmatmul.mubr.bf16.gmra.mrb[0].mxu0 %v3637
      %v3787 = vpop.f32.mrb[0].mxu0
      %v3788 = vadd.f32 0.0, %v3787
      %v3789 = vpop.f32.mrb[0].mxu0
      %v3790 = vpop.f32.mrb[0].mxu0
      %v3791 = vadd.f32 0.0, %v3790
      %v3792 = vpop.f32.mrb[0].mxu0
      %3793 = vmatprep.mubr.bf16.mxu0 0
      %3794 = vmatmul.mubr.bf16.gmra.mrb[0].mxu0 %v3640
      %v3795 = vpop.f32.mrb[0].mxu0
      %v3796 = vadd.f32 0.0, %v3795
      %v3797 = vpop.f32.mrb[0].mxu0
      %v3798 = vpop.f32.mrb[0].mxu0
      %v3799 = vadd.f32 0.0, %v3798
      %v3800 = vpop.f32.mrb[0].mxu0
      %3801 = vmatprep.mubr.bf16.mxu0 0
      %3802 = vmatmul.mubr.bf16.gmra.mrb[0].mxu0 %v3643
      %v3803 = vpop.f32.mrb[0].mxu0
      %v3804 = vadd.f32 0.0, %v3803
      %v3805 = vpop.f32.mrb[0].mxu0
      %v3806 = vpop.f32.mrb[0].mxu0
      %v3807 = vadd.f32 0.0, %v3806
      %v3808 = vpop.f32.mrb[0].mxu0
      %3809 = vmatprep.mubr.bf16.mxu0 0
      %3810 = vmatmul.mubr.bf16.gmra.mrb[0].mxu0 %v3646
      %v3811 = vpop.f32.mrb[0].mxu0
      %v3812 = vadd.f32 0.0, %v3811
      %v3813 = vpop.f32.mrb[0].mxu0
      %v3814 = vpop.f32.mrb[0].mxu0
      %v3815 = vadd.f32 0.0, %v3814
      %v3816 = vpop.f32.mrb[0].mxu0
      %3817 = vmatprep.mubr.bf16.mxu0 0
      %3818 = vmatmul.mubr.bf16.gmra.mrb[0].mxu0 %v3649
      %v3819 = vpop.f32.mrb[0].mxu0
      %v3820 = vadd.f32 0.0, %v3819
      %v3821 = vpop.f32.mrb[0].mxu0
      %v3822 = vpop.f32.mrb[0].mxu0
      %v3823 = vadd.f32 0.0, %v3822
      %v3824 = vpop.f32.mrb[0].mxu0
      %3825 = vmatprep.mubr.bf16.mxu0 0
      %3826 = vmatmul.mubr.bf16.gmra.mrb[0].mxu0 %v3652
      %v3827 = vpop.f32.mrb[0].mxu0
      %v3828 = vadd.f32 0.0, %v3827
      %v3829 = vpop.f32.mrb[0].mxu0
      %v3830 = vpop.f32.mrb[0].mxu0
      %v3831 = vadd.f32 0.0, %v3830
      %v3832 = vpop.f32.mrb[0].mxu0
      %3833 = vdwg.mxu0
      %v3834 = vadd.f32 %v3473, %v3692
      %v3835 = vadd.f32 %v3474, %v3695
      %v3836 = vadd.f32 %v3475, %v3700
      %v3837 = vadd.f32 %v3476, %v3703
      %v3838 = vadd.f32 %v3477, %v3708
      %v3839 = vadd.f32 %v3478, %v3711
      %v3840 = vadd.f32 %v3479, %v3716
      %v3841 = vadd.f32 %v3480, %v3719
      %v3842 = vadd.f32 %v3481, %v3724
      %v3843 = vadd.f32 %v3482, %v3727
      %v3844 = vadd.f32 %v3483, %v3732
      %v3845 = vadd.f32 %v3484, %v3735
      %v3846 = vadd.f32 %v3485, %v3740
      %v3847 = vadd.f32 %v3486, %v3743
      %v3848 = vadd.f32 %v3487, %v3748
      %v3849 = vadd.f32 %v3488, %v3751
      %v3850 = vadd.f32 %v3489, %v3756
      %v3851 = vadd.f32 %v3490, %v3759
      %v3852 = vadd.f32 %v3491, %v3764
      %v3853 = vadd.f32 %v3492, %v3767
      %v3854 = vadd.f32 %v3493, %v3772
      %v3855 = vadd.f32 %v3494, %v3775
      %v3856 = vadd.f32 %v3495, %v3780
      %v3857 = vadd.f32 %v3496, %v3783
      %v3858 = vadd.f32 %v3497, %v3788
      %v3859 = vadd.f32 %v3498, %v3791
      %v3860 = vadd.f32 %v3499, %v3796
      %v3861 = vadd.f32 %v3500, %v3799
      %v3862 = vadd.f32 %v3501, %v3804
      %v3863 = vadd.f32 %v3502, %v3807
      %v3864 = vadd.f32 %v3503, %v3812
      %v3865 = vadd.f32 %v3504, %v3815
      %v3866 = vadd.f32 %v3505, %v3820
      %v3867 = vadd.f32 %v3506, %v3823
      %v3868 = vadd.f32 %v3507, %v3828
      %v3869 = vadd.f32 %v3508, %v3831
      %v3870 = vld [vmem:[%s2] sm:$0xff]
      %v3871 = vld [vmem:[%s2 + $0x8] sm:$0xff]
      %v3872 = vld [vmem:[%s2 + $0x10] sm:$0xff]
      %v3873 = vld [vmem:[%s2 + $0x18] sm:$0xff]
      %v3874 = vld [vmem:[%s2 + $0x20] sm:$0xff]
      %v3875 = vld [vmem:[%s2 + $0x28] sm:$0xff]
      %v3876 = vld [vmem:[%s2 + $0x30] sm:$0xff]
      %v3877 = vld [vmem:[%s2 + $0x38] sm:$0xff]
      %v3878 = vld [vmem:[%s2 + $0x40] sm:$0xff]
      %v3879 = vld [vmem:[%s2 + $0x48] sm:$0xff]
      %v3880 = vld [vmem:[%s2 + $0x50] sm:$0xff]
      %v3881 = vld [vmem:[%s2 + $0x58] sm:$0xff]
      %v3882 = vld [vmem:[%s2 + $0x60] sm:$0xff]
      %v3883 = vld [vmem:[%s2 + $0x68] sm:$0xff]
      %v3884 = vld [vmem:[%s2 + $0x70] sm:$0xff]
      %v3885 = vld [vmem:[%s2 + $0x78] sm:$0xff]
      %v3886 = vld [vmem:[%s2 + $0x80] sm:$0xff]
      %v3887 = vld [vmem:[%s2 + $0x88] sm:$0xff]
      %v3888 = vld [vmem:[%s2 + $0x90] sm:$0xff]
      %v3889 = vld [vmem:[%s2 + $0x98] sm:$0xff]
      %v3890 = vld [vmem:[%s2 + $0xa0] sm:$0xff]
      %v3891 = vld [vmem:[%s2 + $0xa8] sm:$0xff]
      %v3892 = vld [vmem:[%s2 + $0xb0] sm:$0xff]
      %v3893 = vld [vmem:[%s2 + $0xb8] sm:$0xff]
      %v3894 = vld [vmem:[%s2 + $0xc0] sm:$0xff]
      %v3895 = vld [vmem:[%s2 + $0xc8] sm:$0xff]
      %v3896 = vld [vmem:[%s2 + $0xd0] sm:$0xff]
      %v3897 = vld [vmem:[%s2 + $0xd8] sm:$0xff]
      %v3898 = vld [vmem:[%s2 + $0xe0] sm:$0xff]
      %v3899 = vld [vmem:[%s2 + $0xe8] sm:$0xff]
      %v3900 = vld [vmem:[%s2 + $0xf0] sm:$0xff]
      %v3901 = vld [vmem:[%s2 + $0xf8] sm:$0xff]
      %v3902 = vld [vmem:[%s2 + $0x100] sm:$0xff]
      %v3903 = vld [vmem:[%s2 + $0x108] sm:$0xff]
      %v3904 = vld [vmem:[%s2 + $0x110] sm:$0xff]
      %v3905 = vld [vmem:[%s2 + $0x118] sm:$0xff]
      %3907 = vset.pattern.permute.xlu0 0
      %3908 = vperm.xlu0 %3907, %v3870
      %v3909 = vpop.permute.xlu0 %3908
      %3912 = vset.pattern.permute.xlu0 0
      %3913 = vperm.xlu0 %3912, %v3871
      %v3914 = vpop.permute.xlu0 %3913
      %3917 = vset.pattern.permute.xlu0 0
      %3918 = vperm.xlu0 %3917, %v3872
      %v3919 = vpop.permute.xlu0 %3918
      %3922 = vset.pattern.permute.xlu0 0
      %3923 = vperm.xlu0 %3922, %v3873
      %v3924 = vpop.permute.xlu0 %3923
      %3927 = vset.pattern.permute.xlu0 0
      %3928 = vperm.xlu0 %3927, %v3874
      %v3929 = vpop.permute.xlu0 %3928
      %3932 = vset.pattern.permute.xlu0 0
      %3933 = vperm.xlu0 %3932, %v3875
      %v3934 = vpop.permute.xlu0 %3933
      %3937 = vset.pattern.permute.xlu0 0
      %3938 = vperm.xlu0 %3937, %v3876
      %v3939 = vpop.permute.xlu0 %3938
      %3942 = vset.pattern.permute.xlu0 0
      %3943 = vperm.xlu0 %3942, %v3877
      %v3944 = vpop.permute.xlu0 %3943
      %3947 = vset.pattern.permute.xlu0 0
      %3948 = vperm.xlu0 %3947, %v3878
      %v3949 = vpop.permute.xlu0 %3948
      %3952 = vset.pattern.permute.xlu0 0
      %3953 = vperm.xlu0 %3952, %v3879
      %v3954 = vpop.permute.xlu0 %3953
      %3957 = vset.pattern.permute.xlu0 0
      %3958 = vperm.xlu0 %3957, %v3880
      %v3959 = vpop.permute.xlu0 %3958
      %3962 = vset.pattern.permute.xlu0 0
      %3963 = vperm.xlu0 %3962, %v3881
      %v3964 = vpop.permute.xlu0 %3963
      %3967 = vset.pattern.permute.xlu0 0
      %3968 = vperm.xlu0 %3967, %v3882
      %v3969 = vpop.permute.xlu0 %3968
      %3972 = vset.pattern.permute.xlu0 0
      %3973 = vperm.xlu0 %3972, %v3883
      %v3974 = vpop.permute.xlu0 %3973
      %3977 = vset.pattern.permute.xlu0 0
      %3978 = vperm.xlu0 %3977, %v3884
      %v3979 = vpop.permute.xlu0 %3978
      %3982 = vset.pattern.permute.xlu0 0
      %3983 = vperm.xlu0 %3982, %v3885
      %v3984 = vpop.permute.xlu0 %3983
      %3987 = vset.pattern.permute.xlu0 0
      %3988 = vperm.xlu0 %3987, %v3886
      %v3989 = vpop.permute.xlu0 %3988
      %3992 = vset.pattern.permute.xlu0 0
      %3993 = vperm.xlu0 %3992, %v3887
      %v3994 = vpop.permute.xlu0 %3993
      %3997 = vset.pattern.permute.xlu0 0
      %3998 = vperm.xlu0 %3997, %v3888
      %v3999 = vpop.permute.xlu0 %3998
      %4002 = vset.pattern.permute.xlu0 0
      %4003 = vperm.xlu0 %4002, %v3889
      %v4004 = vpop.permute.xlu0 %4003
      %4007 = vset.pattern.permute.xlu0 0
      %4008 = vperm.xlu0 %4007, %v3890
      %v4009 = vpop.permute.xlu0 %4008
      %4012 = vset.pattern.permute.xlu0 0
      %4013 = vperm.xlu0 %4012, %v3891
      %v4014 = vpop.permute.xlu0 %4013
      %4017 = vset.pattern.permute.xlu0 0
      %4018 = vperm.xlu0 %4017, %v3892
      %v4019 = vpop.permute.xlu0 %4018
      %4022 = vset.pattern.permute.xlu0 0
      %4023 = vperm.xlu0 %4022, %v3893
      %v4024 = vpop.permute.xlu0 %4023
      %4027 = vset.pattern.permute.xlu0 0
      %4028 = vperm.xlu0 %4027, %v3894
      %v4029 = vpop.permute.xlu0 %4028
      %4032 = vset.pattern.permute.xlu0 0
      %4033 = vperm.xlu0 %4032, %v3895
      %v4034 = vpop.permute.xlu0 %4033
      %4037 = vset.pattern.permute.xlu0 0
      %4038 = vperm.xlu0 %4037, %v3896
      %v4039 = vpop.permute.xlu0 %4038
      %4042 = vset.pattern.permute.xlu0 0
      %4043 = vperm.xlu0 %4042, %v3897
      %v4044 = vpop.permute.xlu0 %4043
      %4047 = vset.pattern.permute.xlu0 0
      %4048 = vperm.xlu0 %4047, %v3898
      %v4049 = vpop.permute.xlu0 %4048
      %4052 = vset.pattern.permute.xlu0 0
      %4053 = vperm.xlu0 %4052, %v3899
      %v4054 = vpop.permute.xlu0 %4053
      %4057 = vset.pattern.permute.xlu0 0
      %4058 = vperm.xlu0 %4057, %v3900
      %v4059 = vpop.permute.xlu0 %4058
      %4062 = vset.pattern.permute.xlu0 0
      %4063 = vperm.xlu0 %4062, %v3901
      %v4064 = vpop.permute.xlu0 %4063
      %4067 = vset.pattern.permute.xlu0 0
      %4068 = vperm.xlu0 %4067, %v3902
      %v4069 = vpop.permute.xlu0 %4068
      %4072 = vset.pattern.permute.xlu0 0
      %4073 = vperm.xlu0 %4072, %v3903
      %v4074 = vpop.permute.xlu0 %4073
      %4077 = vset.pattern.permute.xlu0 0
      %4078 = vperm.xlu0 %4077, %v3904
      %v4079 = vpop.permute.xlu0 %4078
      %4082 = vset.pattern.permute.xlu0 0
      %4083 = vperm.xlu0 %4082, %v3905
      %v4084 = vpop.permute.xlu0 %4083
      %v4086 = vmul.f32 %v3834, %v3909
      %v4087 = vmul.f32 %v3835, %v3914
      %v4088 = vmul.f32 %v3836, %v3919
      %v4089 = vmul.f32 %v3837, %v3924
      %v4090 = vmul.f32 %v3838, %v3929
      %v4091 = vmul.f32 %v3839, %v3934
      %v4092 = vmul.f32 %v3840, %v3939
      %v4093 = vmul.f32 %v3841, %v3944
      %v4094 = vmul.f32 %v3842, %v3949
      %v4095 = vmul.f32 %v3843, %v3954
      %v4096 = vmul.f32 %v3844, %v3959
      %v4097 = vmul.f32 %v3845, %v3964
      %v4098 = vmul.f32 %v3846, %v3969
      %v4099 = vmul.f32 %v3847, %v3974
      %v4100 = vmul.f32 %v3848, %v3979
      %v4101 = vmul.f32 %v3849, %v3984
      %v4102 = vmul.f32 %v3850, %v3989
      %v4103 = vmul.f32 %v3851, %v3994
      %v4104 = vmul.f32 %v3852, %v3999
      %v4105 = vmul.f32 %v3853, %v4004
      %v4106 = vmul.f32 %v3854, %v4009
      %v4107 = vmul.f32 %v3855, %v4014
      %v4108 = vmul.f32 %v3856, %v4019
      %v4109 = vmul.f32 %v3857, %v4024
      %v4110 = vmul.f32 %v3858, %v4029
      %v4111 = vmul.f32 %v3859, %v4034
      %v4112 = vmul.f32 %v3860, %v4039
      %v4113 = vmul.f32 %v3861, %v4044
      %v4114 = vmul.f32 %v3862, %v4049
      %v4115 = vmul.f32 %v3863, %v4054
      %v4116 = vmul.f32 %v3864, %v4059
      %v4117 = vmul.f32 %v3865, %v4064
      %v4118 = vmul.f32 %v3866, %v4069
      %v4119 = vmul.f32 %v3867, %v4074
      %v4120 = vmul.f32 %v3868, %v4079
      %v4121 = vmul.f32 %v3869, %v4084
      %v4122 = vadd.f32 %v4086, %v4087
      %v4123 = vadd.f32 %v4122, %v4088
      %v4124 = vadd.f32 %v4123, %v4089
      %v4125 = vadd.f32 %v4124, %v4090
      %v4126 = vadd.f32 %v4125, %v4091
      %v4127 = vadd.f32 %v4126, %v4092
      %v4128 = vadd.f32 %v4127, %v4093
      %v4129 = vadd.f32 %v4128, %v4094
      %v4130 = vadd.f32 %v4129, %v4095
      %v4131 = vadd.f32 %v4130, %v4096
      %v4132 = vadd.f32 %v4131, %v4097
      %v4133 = vadd.f32 %v4132, %v4098
      %v4134 = vadd.f32 %v4133, %v4099
      %v4135 = vadd.f32 %v4134, %v4100
      %v4136 = vadd.f32 %v4135, %v4101
      %v4137 = vadd.f32 %v4136, %v4102
      %v4138 = vadd.f32 %v4137, %v4103
      %v4139 = vadd.f32 %v4138, %v4104
      %v4140 = vadd.f32 %v4139, %v4105
      %v4141 = vadd.f32 %v4140, %v4106
      %v4142 = vadd.f32 %v4141, %v4107
      %v4143 = vadd.f32 %v4142, %v4108
      %v4144 = vadd.f32 %v4143, %v4109
      %v4145 = vadd.f32 %v4144, %v4110
      %v4146 = vadd.f32 %v4145, %v4111
      %v4147 = vadd.f32 %v4146, %v4112
      %v4148 = vadd.f32 %v4147, %v4113
      %v4149 = vadd.f32 %v4148, %v4114
      %v4150 = vadd.f32 %v4149, %v4115
      %v4151 = vadd.f32 %v4150, %v4116
      %v4152 = vadd.f32 %v4151, %v4117
      %v4153 = vadd.f32 %v4152, %v4118
      %v4154 = vadd.f32 %v4153, %v4119
      %v4155 = vadd.f32 %v4154, %v4120
      %v4156 = vadd.f32 %v4155, %v4121
      %v4157 = vrot.slane %v4156, 4
      %v4158 = vadd.f32 %v4156, %v4157
      %v4159 = vrot.slane %v4158, 2
      %v4160 = vadd.f32 %v4158, %v4159
      %v4161 = vrot.slane %v4160, 1
      %v4162 = vadd.f32 %v4160, %v4161
      %4163 = vst [vmem:[%s204] sm:$0xff] %v4162
      %v4164 = vmul.f32 %v4086, %v4086
      %v4165 = vmul.f32 %v4087, %v4087
      %v4166 = vmul.f32 %v4088, %v4088
      %v4167 = vmul.f32 %v4089, %v4089
      %v4168 = vmul.f32 %v4090, %v4090
      %v4169 = vmul.f32 %v4091, %v4091
      %v4170 = vmul.f32 %v4092, %v4092
      %v4171 = vmul.f32 %v4093, %v4093
      %v4172 = vmul.f32 %v4094, %v4094
      %v4173 = vmul.f32 %v4095, %v4095
      %v4174 = vmul.f32 %v4096, %v4096
      %v4175 = vmul.f32 %v4097, %v4097
      %v4176 = vmul.f32 %v4098, %v4098
      %v4177 = vmul.f32 %v4099, %v4099
      %v4178 = vmul.f32 %v4100, %v4100
      %v4179 = vmul.f32 %v4101, %v4101
      %v4180 = vmul.f32 %v4102, %v4102
      %v4181 = vmul.f32 %v4103, %v4103
      %v4182 = vmul.f32 %v4104, %v4104
      %v4183 = vmul.f32 %v4105, %v4105
      %v4184 = vmul.f32 %v4106, %v4106
      %v4185 = vmul.f32 %v4107, %v4107
      %v4186 = vmul.f32 %v4108, %v4108
      %v4187 = vmul.f32 %v4109, %v4109
      %v4188 = vmul.f32 %v4110, %v4110
      %v4189 = vmul.f32 %v4111, %v4111
      %v4190 = vmul.f32 %v4112, %v4112
      %v4191 = vmul.f32 %v4113, %v4113
      %v4192 = vmul.f32 %v4114, %v4114
      %v4193 = vmul.f32 %v4115, %v4115
      %v4194 = vmul.f32 %v4116, %v4116
      %v4195 = vmul.f32 %v4117, %v4117
      %v4196 = vmul.f32 %v4118, %v4118
      %v4197 = vmul.f32 %v4119, %v4119
      %v4198 = vmul.f32 %v4120, %v4120
      %v4199 = vmul.f32 %v4121, %v4121
      %v4200 = vadd.f32 %v4164, %v4165
      %v4201 = vadd.f32 %v4200, %v4166
      %v4202 = vadd.f32 %v4201, %v4167
      %v4203 = vadd.f32 %v4202, %v4168
      %v4204 = vadd.f32 %v4203, %v4169
      %v4205 = vadd.f32 %v4204, %v4170
      %v4206 = vadd.f32 %v4205, %v4171
      %v4207 = vadd.f32 %v4206, %v4172
      %v4208 = vadd.f32 %v4207, %v4173
      %v4209 = vadd.f32 %v4208, %v4174
      %v4210 = vadd.f32 %v4209, %v4175
      %v4211 = vadd.f32 %v4210, %v4176
      %v4212 = vadd.f32 %v4211, %v4177
      %v4213 = vadd.f32 %v4212, %v4178
      %v4214 = vadd.f32 %v4213, %v4179
      %v4215 = vadd.f32 %v4214, %v4180
      %v4216 = vadd.f32 %v4215, %v4181
      %v4217 = vadd.f32 %v4216, %v4182
      %v4218 = vadd.f32 %v4217, %v4183
      %v4219 = vadd.f32 %v4218, %v4184
      %v4220 = vadd.f32 %v4219, %v4185
      %v4221 = vadd.f32 %v4220, %v4186
      %v4222 = vadd.f32 %v4221, %v4187
      %v4223 = vadd.f32 %v4222, %v4188
      %v4224 = vadd.f32 %v4223, %v4189
      %v4225 = vadd.f32 %v4224, %v4190
      %v4226 = vadd.f32 %v4225, %v4191
      %v4227 = vadd.f32 %v4226, %v4192
      %v4228 = vadd.f32 %v4227, %v4193
      %v4229 = vadd.f32 %v4228, %v4194
      %v4230 = vadd.f32 %v4229, %v4195
      %v4231 = vadd.f32 %v4230, %v4196
      %v4232 = vadd.f32 %v4231, %v4197
      %v4233 = vadd.f32 %v4232, %v4198
      %v4234 = vadd.f32 %v4233, %v4199
      %v4235 = vrot.slane %v4234, 4
      %v4236 = vadd.f32 %v4234, %v4235
      %v4237 = vrot.slane %v4236, 2
      %v4238 = vadd.f32 %v4236, %v4237
      %v4239 = vrot.slane %v4238, 1
      %v4240 = vadd.f32 %v4238, %v4239
      %4241 = vst [vmem:[%s208] sm:$0xff] %v4240
      %p4242 = scmp.lt.s32.totalorder %s16, 1
      %s4243 = scalar_select %p4242, %s16, 1
      %s4244 = smul.addr %s4243, 8
      %s4245 = scalar_lea.vmem %s3, %s4244
      %p4246 = scmp.lt.s32.totalorder %s16, 1
      %s4247 = scalar_select %p4246, %s16, 1
      %s4248 = smul.addr %s4247, 8
      %s4249 = scalar_lea.vmem %s4, %s4248
      // Predicated region
      $region33: #{midlayer_forward.2} parent=31 // pred_check
        %p4250 = pneg %p102
      $region34: #{midlayer_forward.2} parent=31 // pred_check_branch
        %4252 = sbr.rel (%p4250) target = $region36
      $region35: #{midlayer_forward.2} parent=31 // pred_region
        _
      $region36: #{midlayer_forward.2} parent=31 // pred_fallthru
        _
      // Predicated region
      $region37: #{midlayer_forward.2} parent=31 // pred_check
        %p4253 = pneg %p128
      $region38: #{midlayer_forward.2} parent=31 // pred_check_branch
        %4255 = sbr.rel (%p4253) target = $region40
      $region39: #{midlayer_forward.2} parent=31 // pred_region
        _
      $region40: #{midlayer_forward.2} parent=31 // pred_fallthru
        _
    $region32: #{midlayer_forward.2} parent=5 // pred_fallthru
      _
    %p4256 = scmp.le.s32.totalorder 2, %s11
    // Predicated region
    $region41: #{midlayer_forward.2} parent=5 // pred_check
      %p4257 = pneg %p4256
    $region42: #{midlayer_forward.2} parent=5 // pred_check_branch
      %4259 = sbr.rel (%p4257) target = $region44
    $region43: #{midlayer_forward.2} parent=5 // pred_region
      %s4260 = ssub.s32 %s11, 2
      // Predicated region
      $region45: #{midlayer_forward.2} parent=43 // pred_check
        %p4261 = pneg %p108
      $region46: #{midlayer_forward.2} parent=43 // pred_check_branch
        %4263 = sbr.rel (%p4261) target = $region48
      $region47: #{midlayer_forward.2} parent=43 // pred_region
        %p4264 = scmp.lt.s32.totalorder %s17, 1
        %s4265 = scalar_select %p4264, %s17, 1
        %s4266 = smul.addr %s4265, 8
        %s4267 = scalar_lea.vmem %s3, %s4266
      $region48: #{midlayer_forward.2} parent=43 // pred_fallthru
        _
      // Predicated region
      $region49: #{midlayer_forward.2} parent=43 // pred_check
        %p4268 = pneg %p134
      $region50: #{midlayer_forward.2} parent=43 // pred_check_branch
        %4270 = sbr.rel (%p4268) target = $region52
      $region51: #{midlayer_forward.2} parent=43 // pred_region
        %p4271 = scmp.lt.s32.totalorder %s17, 1
        %s4272 = scalar_select %p4271, %s17, 1
        %s4273 = smul.addr %s4272, 8
        %s4274 = scalar_lea.vmem %s4, %s4273
      $region52: #{midlayer_forward.2} parent=43 // pred_fallthru
        _
    $region44: #{midlayer_forward.2} parent=5 // pred_fallthru
      _
  $region6: #{midlayer_forward.2} parent=0 // loop_footer
    %s15 = sadd.s32 1, %s11
  $region7: #{midlayer_forward.2} parent=0 // loop_footer_branch
    %10 = sbr.rel target = $region3
  $region8: #{midlayer_forward.2} parent=0 // loop_exit
    _

// kernel: midlayer_forward.3
$region0: #{midlayer_forward.3}
  #allocation0 [shape = 'u32[]', space=smem, size = 0x4, offset = 0x4, fixed_abs, tag = 'smem constant byte address 0x4 - core index']
  #allocation1 [shape = 'u32[144,128]{1,0:T(1,128)}', space=vmem, size = 0x12000, scoped, tag = 'internal scratch']
  %s0 = inlined_call_operand.vmem [shape: bf16[736,4], index: 0, kind: input, shape index: {}]
  %s1 = inlined_call_operand.vmem [shape: bf16[36,128], index: 1, kind: input, shape index: {}]
  %s2 = inlined_call_operand.vmem [shape: f32[16,128], index: 2, kind: input, shape index: {}]
  %s3 = inlined_call_operand.vmem [shape: f32[16,128], index: 3, kind: input, shape index: {}]
  %s4 = inlined_call_operand.vmem [shape: f32[576,128], index: 4, kind: output, shape index: {}]
  %s5 = sld [smem:[#allocation0]]
  $region49: #{midlayer_forward.3} parent=0
    _
  %s7 = ssub.s32 1, %s5
  %s8 = scalar_select 0, %s7, %s5
  loop: start=0, step=1, limit=4
  $region2: #{midlayer_forward.3} parent=0 // loop_pre_header
    _
  $region3: #{midlayer_forward.3} parent=0 // loop_header
    %s10 = sphi 0, %s14
    %p11 = scmp.ge.s32.totalorder %s10, 4
    %s20 = sphi 0, %s22
    %s23 = sphi 0, %s20
    %s24 = sphi 0, %s23
    %s40 = sphi 0, %s24
    %s44 = sphi 0, %s44
    %s46 = sphi 0, %s44
    %s47 = sphi 0, %s46
    %s61 = sphi 0, %s47
    %s67 = sphi 0, %s69
    %s70 = sphi 0, %s67
    %s71 = sphi 0, %s70
    %s87 = sphi 0, %s71
    %s93 = sphi 0, %s95
    %s96 = sphi 0, %s93
    %s97 = sphi 0, %s96
    %s113 = sphi 0, %s97
    %s119 = sphi 0, %s121
    %s122 = sphi 0, %s119
    %s123 = sphi 0, %s122
    %s139 = sphi 0, %s123
  $region4: #{midlayer_forward.3} parent=0 // loop_header_branch
    %13 = sbr.rel (%p11) target = $region8
  $region5: #{midlayer_forward.3} parent=0 // loop_body
    %s15 = ssub.s32 %s10, 1
    %s16 = ssub.s32 %s10, 2
    %s17 = sadd.s32 %s10, 1
    %s18 = ssub.s32 %s10, %s17
    %p19 = scmp.eq.s32.totalorder %s18, 0
    %s21 = sadd.s32 %s20, 1
    %s22 = scalar_select %p19, %s20, %s21
    %p25 = pneg %p19
    %p26 = scmp.eq.s32.totalorder %s10, 1
    %p27 = por %p25, %p26
    %p28 = scmp.ne.s32.totalorder %s20, %s23
    %p29 = scmp.eq.s32.totalorder %s10, 0
    %p30 = por %p28, %p29
    %p31 = scmp.ne.s32.totalorder %s20, %s23
    %p32 = scmp.eq.s32.totalorder %s15, 1
    %p33 = por %p31, %p32
    %p34 = scmp.ne.s32.totalorder %s23, %s24
    %p35 = scmp.eq.s32.totalorder %s15, 0
    %p36 = por %p34, %p35
    %p37 = scmp.ne.s32.totalorder %s23, %s24
    %p38 = scmp.eq.s32.totalorder %s16, 1
    %p39 = por %p37, %p38
    %p41 = scmp.ne.s32.totalorder %s24, %s40
    %p42 = scmp.eq.s32.totalorder %s16, 0
    %p43 = por %p41, %p42
    %s45 = sadd.s32 %s44, 1
    %p48 = scmp.eq.s32.totalorder %s10, 1
    %p49 = scmp.ne.s32.totalorder %s44, %s46
    %p50 = scmp.eq.s32.totalorder %s10, 0
    %p51 = por %p49, %p50
    %p52 = scmp.ne.s32.totalorder %s44, %s46
    %p53 = scmp.eq.s32.totalorder %s15, 1
    %p54 = por %p52, %p53
    %p55 = scmp.ne.s32.totalorder %s46, %s47
    %p56 = scmp.eq.s32.totalorder %s15, 0
    %p57 = por %p55, %p56
    %p58 = scmp.ne.s32.totalorder %s46, %s47
    %p59 = scmp.eq.s32.totalorder %s16, 1
    %p60 = por %p58, %p59
    %p62 = scmp.ne.s32.totalorder %s47, %s61
    %p63 = scmp.eq.s32.totalorder %s16, 0
    %p64 = por %p62, %p63
    %s65 = ssub.s32 %s10, %s17
    %p66 = scmp.eq.s32.totalorder %s65, 0
    %s68 = sadd.s32 %s67, 1
    %s69 = scalar_select %p66, %s67, %s68
    %p72 = pneg %p66
    %p73 = scmp.eq.s32.totalorder %s10, 1
    %p74 = por %p72, %p73
    %p75 = scmp.ne.s32.totalorder %s67, %s70
    %p76 = scmp.eq.s32.totalorder %s10, 0
    %p77 = por %p75, %p76
    %p78 = scmp.ne.s32.totalorder %s67, %s70
    %p79 = scmp.eq.s32.totalorder %s15, 1
    %p80 = por %p78, %p79
    %p81 = scmp.ne.s32.totalorder %s70, %s71
    %p82 = scmp.eq.s32.totalorder %s15, 0
    %p83 = por %p81, %p82
    %p84 = scmp.ne.s32.totalorder %s70, %s71
    %p85 = scmp.eq.s32.totalorder %s16, 1
    %p86 = por %p84, %p85
    %p88 = scmp.ne.s32.totalorder %s71, %s87
    %p89 = scmp.eq.s32.totalorder %s16, 0
    %p90 = por %p88, %p89
    %s91 = ssub.s32 %s10, %s17
    %p92 = scmp.eq.s32.totalorder %s91, 0
    %s94 = sadd.s32 %s93, 1
    %s95 = scalar_select %p92, %s93, %s94
    %p98 = pneg %p92
    %p99 = scmp.eq.s32.totalorder %s10, 1
    %p100 = por %p98, %p99
    %p101 = scmp.ne.s32.totalorder %s93, %s96
    %p102 = scmp.eq.s32.totalorder %s10, 0
    %p103 = por %p101, %p102
    %p104 = scmp.ne.s32.totalorder %s93, %s96
    %p105 = scmp.eq.s32.totalorder %s15, 1
    %p106 = por %p104, %p105
    %p107 = scmp.ne.s32.totalorder %s96, %s97
    %p108 = scmp.eq.s32.totalorder %s15, 0
    %p109 = por %p107, %p108
    %p110 = scmp.ne.s32.totalorder %s96, %s97
    %p111 = scmp.eq.s32.totalorder %s16, 1
    %p112 = por %p110, %p111
    %p114 = scmp.ne.s32.totalorder %s97, %s113
    %p115 = scmp.eq.s32.totalorder %s16, 0
    %p116 = por %p114, %p115
    %s117 = ssub.s32 %s10, %s17
    %p118 = scmp.eq.s32.totalorder %s117, 0
    %s120 = sadd.s32 %s119, 1
    %s121 = scalar_select %p118, %s119, %s120
    %p124 = pneg %p118
    %p125 = scmp.eq.s32.totalorder %s10, 1
    %p126 = por %p124, %p125
    %p127 = scmp.ne.s32.totalorder %s119, %s122
    %p128 = scmp.eq.s32.totalorder %s10, 0
    %p129 = por %p127, %p128
    %p130 = scmp.ne.s32.totalorder %s119, %s122
    %p131 = scmp.eq.s32.totalorder %s15, 1
    %p132 = por %p130, %p131
    %p133 = scmp.ne.s32.totalorder %s122, %s123
    %p134 = scmp.eq.s32.totalorder %s15, 0
    %p135 = por %p133, %p134
    %p136 = scmp.ne.s32.totalorder %s122, %s123
    %p137 = scmp.eq.s32.totalorder %s16, 1
    %p138 = por %p136, %p137
    %p140 = scmp.ne.s32.totalorder %s123, %s139
    %p141 = scmp.eq.s32.totalorder %s16, 0
    %p142 = por %p140, %p141
    %p143 = scmp.le.s32.totalorder 1, %s10
    %p144 = scmp.lt.s32.totalorder %s10, 3
    %p145 = pnand %p143, %p144
    %p146 = pneg %p145
    // Predicated region
    $region9: #{midlayer_forward.3} parent=5 // pred_check
      _
    $region10: #{midlayer_forward.3} parent=5 // pred_check_branch
      %148 = sbr.rel (%p145) target = $region12
    $region11: #{midlayer_forward.3} parent=5 // pred_region
      %s149 = ssub.s32 %s10, 1
      // Predicated region
      $region13: #{midlayer_forward.3} parent=11 // pred_check
        %p150 = pneg %p57
      $region14: #{midlayer_forward.3} parent=11 // pred_check_branch
        %152 = sbr.rel (%p150) target = $region16
      $region15: #{midlayer_forward.3} parent=11 // pred_region
        _
      $region16: #{midlayer_forward.3} parent=11 // pred_fallthru
        _
    $region12: #{midlayer_forward.3} parent=5 // pred_fallthru
      _
    %p153 = scmp.lt.s32.totalorder %s10, 2
    // Predicated region
    $region17: #{midlayer_forward.3} parent=5 // pred_check
      %p154 = pneg %p153
    $region18: #{midlayer_forward.3} parent=5 // pred_check_branch
      %156 = sbr.rel (%p154) target = $region20
    $region19: #{midlayer_forward.3} parent=5 // pred_region
      // Predicated region
      $region21: #{midlayer_forward.3} parent=19 // pred_check
        %p157 = pneg %p30
      $region22: #{midlayer_forward.3} parent=19 // pred_check_branch
        %159 = sbr.rel (%p157) target = $region24
      $region23: #{midlayer_forward.3} parent=19 // pred_region
        %s160 = smul.u32 46, %s10
        %p161 = scmp.lt.s32.totalorder %s160, 91
        %s162 = scalar_select %p161, %s160, 91
        %s163 = smul.addr %s162, 4
        %s164 = scalar_lea.vmem %s0, %s163
        %s165 = smul.u32 46, %s10
      $region24: #{midlayer_forward.3} parent=19 // pred_fallthru
        _
      // Predicated region
      $region25: #{midlayer_forward.3} parent=19 // pred_check
        %p166 = pneg %p77
      $region26: #{midlayer_forward.3} parent=19 // pred_check_branch
        %168 = sbr.rel (%p166) target = $region28
      $region27: #{midlayer_forward.3} parent=19 // pred_region
        %p169 = scmp.lt.s32.totalorder %s10, 1
        %s170 = scalar_select %p169, %s10, 1
        %s171 = smul.addr %s170, 8
        %s172 = scalar_lea.vmem %s2, %s171
      $region28: #{midlayer_forward.3} parent=19 // pred_fallthru
        _
      // Predicated region
      $region29: #{midlayer_forward.3} parent=19 // pred_check
        %p173 = pneg %p103
      $region30: #{midlayer_forward.3} parent=19 // pred_check_branch
        %175 = sbr.rel (%p173) target = $region32
      $region31: #{midlayer_forward.3} parent=19 // pred_region
        %p176 = scmp.lt.s32.totalorder %s10, 1
        %s177 = scalar_select %p176, %s10, 1
        %s178 = smul.addr %s177, 8
        %s179 = scalar_lea.vmem %s3, %s178
      $region32: #{midlayer_forward.3} parent=19 // pred_fallthru
        _
    $region20: #{midlayer_forward.3} parent=5 // pred_fallthru
      _
    %p180 = scmp.le.s32.totalorder 1, %s10
    %p181 = scmp.lt.s32.totalorder %s10, 3
    %p182 = pnand %p180, %p181
    %p183 = pneg %p182
    // Predicated region
    $region33: #{midlayer_forward.3} parent=5 // pred_check
      _
    $region34: #{midlayer_forward.3} parent=5 // pred_check_branch
      %185 = sbr.rel (%p182) target = $region36
    $region35: #{midlayer_forward.3} parent=5 // pred_region
      %s186 = ssub.s32 %s10, 1
      %s187 = smul.u32 46, %s15
      %p188 = scmp.lt.s32.totalorder %s187, 91
      %s189 = scalar_select %p188, %s187, 91
      %s190 = smul.addr %s189, 4
      %s191 = scalar_lea.vmem %s0, %s190
      %p192 = pneg %p36
      %p193 = pneg %p33
      %p194 = pneg %p57
      %p195 = pneg %p54
      %p196 = scmp.lt.s32.totalorder %s15, 1
      %s197 = scalar_select %p196, %s15, 1
      %s198 = smul.addr %s197, 8
      %s199 = scalar_lea.vmem %s2, %s198
      %p200 = pneg %p83
      %p201 = pneg %p80
      %p202 = scmp.lt.s32.totalorder %s15, 1
      %s203 = scalar_select %p202, %s15, 1
      %s204 = smul.addr %s203, 8
      %s205 = scalar_lea.vmem %s3, %s204
      %p206 = pneg %p109
      %p207 = pneg %p106
      %p208 = pneg %p135
      %p209 = pneg %p132
      %s210 = smul.u32 36, %s15
      %p211 = scmp.lt.s32.totalorder %s210, 71
      %s212 = scalar_select %p211, %s210, 71
      %s213 = smul.addr %s212, 8
      %s214 = scalar_lea.vmem %s4, %s213
      %s215 = smul.u32 46, %s15
      %p216 = scmp.lt.s32.totalorder %s215, 91
      %s217 = scalar_select %p216, %s215, 91
      %s218 = smul.addr %s217, 4
      %s219 = scalar_lea.vmem %s0, %s218
      %s220 = smul.u32 46, %s15
      %p221 = scmp.lt.s32.totalorder %s15, 1
      %s222 = scalar_select %p221, %s15, 1
      %s223 = smul.addr %s222, 8
      %s224 = scalar_lea.vmem %s2, %s223
      %p225 = scmp.lt.s32.totalorder %s15, 1
      %s226 = scalar_select %p225, %s15, 1
      %s227 = smul.addr %s226, 8
      %s228 = scalar_lea.vmem %s3, %s227
      %s229 = smul.u32 36, %s15
      %p230 = scmp.lt.s32.totalorder %s229, 71
      %s231 = scalar_select %p230, %s229, 71
      %s232 = smul.addr %s231, 8
      %s233 = scalar_lea.vmem %s4, %s232
      %s234 = smul.u32 36, %s15
      %v236 = vld [vmem:[%s219 + $0x8] sm:$0xf]
      %v237 = vld [vmem:[%s219 + $0xc] sm:$0xf]
      %v238 = vld [vmem:[%s219 + $0x10] sm:$0xf]
      %v239 = vld [vmem:[%s219 + $0x14] sm:$0xf]
      %v240 = vld [vmem:[%s219 + $0x18] sm:$0xf]
      %v241 = vld [vmem:[%s219 + $0x1c] sm:$0xf]
      %v242 = vld [vmem:[%s219 + $0x20] sm:$0xf]
      %v243 = vld [vmem:[%s219 + $0x24] sm:$0xf]
      %v244 = vld [vmem:[%s219 + $0x28] sm:$0xf]
      %v245 = vld [vmem:[%s219 + $0x2c] sm:$0xf]
      %v246 = vld [vmem:[%s219 + $0x30] sm:$0xf]
      %v247 = vld [vmem:[%s219 + $0x34] sm:$0xf]
      %v248 = vld [vmem:[%s219 + $0x38] sm:$0xf]
      %v249 = vld [vmem:[%s219 + $0x3c] sm:$0xf]
      %v250 = vld [vmem:[%s219 + $0x40] sm:$0xf]
      %v251 = vld [vmem:[%s219 + $0x44] sm:$0xf]
      %v252 = vld [vmem:[%s219 + $0x48] sm:$0xf]
      %v253 = vld [vmem:[%s219 + $0x4c] sm:$0xf]
      %v254 = vld [vmem:[%s219 + $0x50] sm:$0xf]
      %v255 = vld [vmem:[%s219 + $0x54] sm:$0xf]
      %v256 = vld [vmem:[%s219 + $0x58] sm:$0xf]
      %v257 = vld [vmem:[%s219 + $0x5c] sm:$0xf]
      %v258 = vld [vmem:[%s219 + $0x60] sm:$0xf]
      %v259 = vld [vmem:[%s219 + $0x64] sm:$0xf]
      %v260 = vld [vmem:[%s219 + $0x68] sm:$0xf]
      %v261 = vld [vmem:[%s219 + $0x6c] sm:$0xf]
      %v262 = vld [vmem:[%s219 + $0x70] sm:$0xf]
      %v263 = vld [vmem:[%s219 + $0x74] sm:$0xf]
      %v264 = vld [vmem:[%s219 + $0x78] sm:$0xf]
      %v265 = vld [vmem:[%s219 + $0x7c] sm:$0xf]
      %v266 = vld [vmem:[%s219 + $0x80] sm:$0xf]
      %v267 = vld [vmem:[%s219 + $0x84] sm:$0xf]
      %v268 = vld [vmem:[%s219 + $0x88] sm:$0xf]
      %v269 = vld [vmem:[%s219 + $0x8c] sm:$0xf]
      %v270 = vld [vmem:[%s219 + $0x90] sm:$0xf]
      %v271 = vld [vmem:[%s219 + $0x94] sm:$0xf]
      %v272 = vld [vmem:[%s219 + $0x98] sm:$0x1]
      %v273 = vld [vmem:[%s1] sm:$0x3]
      %v274 = vld [vmem:[%s219 + $0x8] sm:$0xe]
      %v275 = vld [vmem:[%s1] sm:$0xc]
      %v313 = vunpack.c.l.b16 %v274
      %v314 = vunpack.c.l.b16 %v237
      %v315 = vunpack.c.l.b16 %v238
      %v316 = vunpack.c.l.b16 %v239
      %v317 = vunpack.c.l.b16 %v240
      %v318 = vunpack.c.l.b16 %v241
      %v319 = vunpack.c.l.b16 %v242
      %v320 = vunpack.c.l.b16 %v243
      %v321 = vunpack.c.l.b16 %v244
      %v322 = vunpack.c.l.b16 %v245
      %v323 = vunpack.c.l.b16 %v246
      %v324 = vunpack.c.l.b16 %v247
      %v325 = vunpack.c.l.b16 %v248
      %v326 = vunpack.c.l.b16 %v249
      %v327 = vunpack.c.l.b16 %v250
      %v328 = vunpack.c.l.b16 %v251
      %v329 = vunpack.c.l.b16 %v252
      %v330 = vunpack.c.l.b16 %v253
      %v331 = vunpack.c.l.b16 %v254
      %v332 = vunpack.c.l.b16 %v255
      %v333 = vunpack.c.l.b16 %v256
      %v334 = vunpack.c.l.b16 %v257
      %v335 = vunpack.c.l.b16 %v258
      %v336 = vunpack.c.l.b16 %v259
      %v337 = vunpack.c.l.b16 %v260
      %v338 = vunpack.c.l.b16 %v261
      %v339 = vunpack.c.l.b16 %v262
      %v340 = vunpack.c.l.b16 %v263
      %v341 = vunpack.c.l.b16 %v264
      %v342 = vunpack.c.l.b16 %v265
      %v343 = vunpack.c.l.b16 %v266
      %v344 = vunpack.c.l.b16 %v267
      %v345 = vunpack.c.l.b16 %v268
      %v346 = vunpack.c.l.b16 %v269
      %v347 = vunpack.c.l.b16 %v270
      %v348 = vunpack.c.l.b16 %v271
      %v349 = vunpack.c.l.b16 %v272
      %v350 = vpack.c.b16 %v314, %v313
      %v351 = vpack.c.b16 %v316, %v315
      %v352 = vpack.c.b16 %v318, %v317
      %v353 = vpack.c.b16 %v320, %v319
      %v354 = vpack.c.b16 %v322, %v321
      %v355 = vpack.c.b16 %v324, %v323
      %v356 = vpack.c.b16 %v326, %v325
      %v357 = vpack.c.b16 %v328, %v327
      %v358 = vpack.c.b16 %v330, %v329
      %v359 = vpack.c.b16 %v332, %v331
      %v360 = vpack.c.b16 %v334, %v333
      %v361 = vpack.c.b16 %v336, %v335
      %v362 = vpack.c.b16 %v338, %v337
      %v363 = vpack.c.b16 %v340, %v339
      %v364 = vpack.c.b16 %v342, %v341
      %v365 = vpack.c.b16 %v344, %v343
      %v366 = vpack.c.b16 %v346, %v345
      %v367 = vpack.c.b16 %v348, %v347
      %v368 = vpack.c.b16 %v349, %v349
      %vm369 = vcmask 1046528
      %v370 = vrot.slane %v350, 1
      %v371 = vrot.slane %v351, 1
      %v372 = vsel %vm369, %v370, %v371
      %v373 = vrot.slane %v352, 1
      %v374 = vsel %vm369, %v371, %v373
      %v375 = vrot.slane %v353, 1
      %v376 = vsel %vm369, %v373, %v375
      %v377 = vrot.slane %v354, 1
      %v378 = vsel %vm369, %v375, %v377
      %v379 = vrot.slane %v355, 1
      %v380 = vsel %vm369, %v377, %v379
      %v381 = vrot.slane %v356, 1
      %v382 = vsel %vm369, %v379, %v381
      %v383 = vrot.slane %v357, 1
      %v384 = vsel %vm369, %v381, %v383
      %v385 = vrot.slane %v358, 1
      %v386 = vsel %vm369, %v383, %v385
      %v387 = vrot.slane %v359, 1
      %v388 = vsel %vm369, %v385, %v387
      %v389 = vrot.slane %v360, 1
      %v390 = vsel %vm369, %v387, %v389
      %v391 = vrot.slane %v361, 1
      %v392 = vsel %vm369, %v389, %v391
      %v393 = vrot.slane %v362, 1
      %v394 = vsel %vm369, %v391, %v393
      %v395 = vrot.slane %v363, 1
      %v396 = vsel %vm369, %v393, %v395
      %v397 = vrot.slane %v364, 1
      %v398 = vsel %vm369, %v395, %v397
      %v399 = vrot.slane %v365, 1
      %v400 = vsel %vm369, %v397, %v399
      %v401 = vrot.slane %v366, 1
      %v402 = vsel %vm369, %v399, %v401
      %v403 = vrot.slane %v367, 1
      %v404 = vsel %vm369, %v401, %v403
      %v405 = vrot.slane %v368, 1
      %v406 = vsel %vm369, %v403, %v405
      %v408 = vunpack.c.l.b16 %v275
      %v409 = vpack.c.b16 %v408, %v408
      %v410 = vrot.slane %v409, 2
      %vm411 = vcmask 31744
      %v413 = vsel %vm411, %v372, 0
      %v416 = vsel %vm411, %v374, 0
      %v419 = vsel %vm411, %v376, 0
      %v422 = vsel %vm411, %v378, 0
      %v425 = vsel %vm411, %v380, 0
      %v428 = vsel %vm411, %v382, 0
      %v431 = vsel %vm411, %v384, 0
      %v434 = vsel %vm411, %v386, 0
      %v437 = vsel %vm411, %v388, 0
      %v440 = vsel %vm411, %v390, 0
      %v443 = vsel %vm411, %v392, 0
      %v446 = vsel %vm411, %v394, 0
      %v449 = vsel %vm411, %v396, 0
      %v452 = vsel %vm411, %v398, 0
      %v455 = vsel %vm411, %v400, 0
      %v458 = vsel %vm411, %v402, 0
      %v461 = vsel %vm411, %v404, 0
      %v464 = vsel %vm411, %v406, 0
      %vm466 = vcmask 1041408
      %v468 = vsel %vm466, %v410, 0
      %470 = vmatprep.subr.bf16.mxu0 0
      %471 = vmatpush1.bf16.msra.mxu0 %v468
      %472 = vmatprep.subr.bf16.mxu0 0
      %473 = vmatpush1.bf16.msra.mxu0 0
      %474 = vmatprep.subr.bf16.mxu0 0
      %475 = vmatpush1.bf16.msra.mxu0 0
      %476 = vmatprep.subr.bf16.mxu0 0
      %477 = vmatpush1.bf16.msra.mxu0 0
      %478 = vmatprep.subr.bf16.mxu0 0
      %479 = vmatpush1.bf16.msra.mxu0 0
      %480 = vmatprep.subr.bf16.mxu0 0
      %481 = vmatpush1.bf16.msra.mxu0 0
      %482 = vmatprep.subr.bf16.mxu0 0
      %483 = vmatpush1.bf16.msra.mxu0 0
      %484 = vmatprep.subr.bf16.mxu0 0
      %485 = vmatpush1.bf16.msra.mxu0 0
      %486 = vmatprep.subr.bf16.mxu0 0
      %487 = vmatpush1.bf16.msra.mxu0 0
      %488 = vmatprep.subr.bf16.mxu0 0
      %489 = vmatpush1.bf16.msra.mxu0 0
      %490 = vmatprep.subr.bf16.mxu0 0
      %491 = vmatpush1.bf16.msra.mxu0 0
      %492 = vmatprep.subr.bf16.mxu0 0
      %493 = vmatpush1.bf16.msra.mxu0 0
      %494 = vmatprep.subr.bf16.mxu0 0
      %495 = vmatpush1.bf16.msra.mxu0 0
      %496 = vmatprep.subr.bf16.mxu0 0
      %497 = vmatpush1.bf16.msra.mxu0 0
      %498 = vmatprep.subr.bf16.mxu0 0
      %499 = vmatpush1.bf16.msra.mxu0 0
      %500 = vmatprep.subr.bf16.mxu0 0
      %501 = vmatpush1.bf16.msra.mxu0 0
      %502 = vmatprep.mubr.bf16.mxu0 0
      %503 = vmatmul.mubr.bf16.gmra.mrb[0].mxu0 %v413
      %v504 = vpop.f32.mrb[0].mxu0
      %v505 = vadd.f32 0.0, %v504
      %v506 = vpop.f32.mrb[0].mxu0
      %v507 = vpop.f32.mrb[0].mxu0
      %v508 = vadd.f32 0.0, %v507
      %v509 = vpop.f32.mrb[0].mxu0
      %510 = vmatprep.mubr.bf16.mxu0 0
      %511 = vmatmul.mubr.bf16.gmra.mrb[0].mxu0 %v416
      %v512 = vpop.f32.mrb[0].mxu0
      %v513 = vadd.f32 0.0, %v512
      %v514 = vpop.f32.mrb[0].mxu0
      %v515 = vpop.f32.mrb[0].mxu0
      %v516 = vadd.f32 0.0, %v515
      %v517 = vpop.f32.mrb[0].mxu0
      %518 = vmatprep.mubr.bf16.mxu0 0
      %519 = vmatmul.mubr.bf16.gmra.mrb[0].mxu0 %v419
      %v520 = vpop.f32.mrb[0].mxu0
      %v521 = vadd.f32 0.0, %v520
      %v522 = vpop.f32.mrb[0].mxu0
      %v523 = vpop.f32.mrb[0].mxu0
      %v524 = vadd.f32 0.0, %v523
      %v525 = vpop.f32.mrb[0].mxu0
      %526 = vmatprep.mubr.bf16.mxu0 0
      %527 = vmatmul.mubr.bf16.gmra.mrb[0].mxu0 %v422
      %v528 = vpop.f32.mrb[0].mxu0
      %v529 = vadd.f32 0.0, %v528
      %v530 = vpop.f32.mrb[0].mxu0
      %v531 = vpop.f32.mrb[0].mxu0
      %v532 = vadd.f32 0.0, %v531
      %v533 = vpop.f32.mrb[0].mxu0
      %534 = vmatprep.mubr.bf16.mxu0 0
      %535 = vmatmul.mubr.bf16.gmra.mrb[0].mxu0 %v425
      %v536 = vpop.f32.mrb[0].mxu0
      %v537 = vadd.f32 0.0, %v536
      %v538 = vpop.f32.mrb[0].mxu0
      %v539 = vpop.f32.mrb[0].mxu0
      %v540 = vadd.f32 0.0, %v539
      %v541 = vpop.f32.mrb[0].mxu0
      %542 = vmatprep.mubr.bf16.mxu0 0
      %543 = vmatmul.mubr.bf16.gmra.mrb[0].mxu0 %v428
      %v544 = vpop.f32.mrb[0].mxu0
      %v545 = vadd.f32 0.0, %v544
      %v546 = vpop.f32.mrb[0].mxu0
      %v547 = vpop.f32.mrb[0].mxu0
      %v548 = vadd.f32 0.0, %v547
      %v549 = vpop.f32.mrb[0].mxu0
      %550 = vmatprep.mubr.bf16.mxu0 0
      %551 = vmatmul.mubr.bf16.gmra.mrb[0].mxu0 %v431
      %v552 = vpop.f32.mrb[0].mxu0
      %v553 = vadd.f32 0.0, %v552
      %v554 = vpop.f32.mrb[0].mxu0
      %v555 = vpop.f32.mrb[0].mxu0
      %v556 = vadd.f32 0.0, %v555
      %v557 = vpop.f32.mrb[0].mxu0
      %558 = vmatprep.mubr.bf16.mxu0 0
      %559 = vmatmul.mubr.bf16.gmra.mrb[0].mxu0 %v434
      %v560 = vpop.f32.mrb[0].mxu0
      %v561 = vadd.f32 0.0, %v560
      %v562 = vpop.f32.mrb[0].mxu0
      %v563 = vpop.f32.mrb[0].mxu0
      %v564 = vadd.f32 0.0, %v563
      %v565 = vpop.f32.mrb[0].mxu0
      %566 = vmatprep.mubr.bf16.mxu0 0
      %567 = vmatmul.mubr.bf16.gmra.mrb[0].mxu0 %v437
      %v568 = vpop.f32.mrb[0].mxu0
      %v569 = vadd.f32 0.0, %v568
      %v570 = vpop.f32.mrb[0].mxu0
      %v571 = vpop.f32.mrb[0].mxu0
      %v572 = vadd.f32 0.0, %v571
      %v573 = vpop.f32.mrb[0].mxu0
      %574 = vmatprep.mubr.bf16.mxu0 0
      %575 = vmatmul.mubr.bf16.gmra.mrb[0].mxu0 %v440
      %v576 = vpop.f32.mrb[0].mxu0
      %v577 = vadd.f32 0.0, %v576
      %v578 = vpop.f32.mrb[0].mxu0
      %v579 = vpop.f32.mrb[0].mxu0
      %v580 = vadd.f32 0.0, %v579
      %v581 = vpop.f32.mrb[0].mxu0
      %582 = vmatprep.mubr.bf16.mxu0 0
      %583 = vmatmul.mubr.bf16.gmra.mrb[0].mxu0 %v443
      %v584 = vpop.f32.mrb[0].mxu0
      %v585 = vadd.f32 0.0, %v584
      %v586 = vpop.f32.mrb[0].mxu0
      %v587 = vpop.f32.mrb[0].mxu0
      %v588 = vadd.f32 0.0, %v587
      %v589 = vpop.f32.mrb[0].mxu0
      %590 = vmatprep.mubr.bf16.mxu0 0
      %591 = vmatmul.mubr.bf16.gmra.mrb[0].mxu0 %v446
      %v592 = vpop.f32.mrb[0].mxu0
      %v593 = vadd.f32 0.0, %v592
      %v594 = vpop.f32.mrb[0].mxu0
      %v595 = vpop.f32.mrb[0].mxu0
      %v596 = vadd.f32 0.0, %v595
      %v597 = vpop.f32.mrb[0].mxu0
      %598 = vmatprep.mubr.bf16.mxu0 0
      %599 = vmatmul.mubr.bf16.gmra.mrb[0].mxu0 %v449
      %v600 = vpop.f32.mrb[0].mxu0
      %v601 = vadd.f32 0.0, %v600
      %v602 = vpop.f32.mrb[0].mxu0
      %v603 = vpop.f32.mrb[0].mxu0
      %v604 = vadd.f32 0.0, %v603
      %v605 = vpop.f32.mrb[0].mxu0
      %606 = vmatprep.mubr.bf16.mxu0 0
      %607 = vmatmul.mubr.bf16.gmra.mrb[0].mxu0 %v452
      %v608 = vpop.f32.mrb[0].mxu0
      %v609 = vadd.f32 0.0, %v608
      %v610 = vpop.f32.mrb[0].mxu0
      %v611 = vpop.f32.mrb[0].mxu0
      %v612 = vadd.f32 0.0, %v611
      %v613 = vpop.f32.mrb[0].mxu0
      %614 = vmatprep.mubr.bf16.mxu0 0
      %615 = vmatmul.mubr.bf16.gmra.mrb[0].mxu0 %v455
      %v616 = vpop.f32.mrb[0].mxu0
      %v617 = vadd.f32 0.0, %v616
      %v618 = vpop.f32.mrb[0].mxu0
      %v619 = vpop.f32.mrb[0].mxu0
      %v620 = vadd.f32 0.0, %v619
      %v621 = vpop.f32.mrb[0].mxu0
      %622 = vmatprep.mubr.bf16.mxu0 0
      %623 = vmatmul.mubr.bf16.gmra.mrb[0].mxu0 %v458
      %v624 = vpop.f32.mrb[0].mxu0
      %v625 = vadd.f32 0.0, %v624
      %v626 = vpop.f32.mrb[0].mxu0
      %v627 = vpop.f32.mrb[0].mxu0
      %v628 = vadd.f32 0.0, %v627
      %v629 = vpop.f32.mrb[0].mxu0
      %630 = vmatprep.mubr.bf16.mxu0 0
      %631 = vmatmul.mubr.bf16.gmra.mrb[0].mxu0 %v461
      %v632 = vpop.f32.mrb[0].mxu0
      %v633 = vadd.f32 0.0, %v632
      %v634 = vpop.f32.mrb[0].mxu0
      %v635 = vpop.f32.mrb[0].mxu0
      %v636 = vadd.f32 0.0, %v635
      %v637 = vpop.f32.mrb[0].mxu0
      %638 = vmatprep.mubr.bf16.mxu0 0
      %639 = vmatmul.mubr.bf16.gmra.mrb[0].mxu0 %v464
      %v640 = vpop.f32.mrb[0].mxu0
      %v641 = vadd.f32 0.0, %v640
      %v642 = vpop.f32.mrb[0].mxu0
      %v643 = vpop.f32.mrb[0].mxu0
      %v644 = vadd.f32 0.0, %v643
      %v645 = vpop.f32.mrb[0].mxu0
      %646 = vdwg.mxu0
      %v648 = vunpack.c.l.b16 %v236
      %v649 = vpack.c.b16 %v314, %v648
      %vm650 = vsmask.f32 7424
      %v652 = vshrl.u32 %v649, 16
      %v654 = vshll.u32 %v649, 16
      %v656 = vrot.slane %v654, 1
      %v657 = vor.u32 %v652, %v656
      %v659 = vshll.u32 %v351, 16
      %v661 = vrot.slane %v659, 1
      %v662 = vsel %vm650, %v657, %v661
      %v663 = vshrl.u32 %v351, 16
      %v665 = vor.u32 %v663, %v661
      %v667 = vshll.u32 %v352, 16
      %v669 = vrot.slane %v667, 1
      %v670 = vsel %vm650, %v665, %v669
      %v671 = vshrl.u32 %v352, 16
      %v673 = vor.u32 %v671, %v669
      %v675 = vshll.u32 %v353, 16
      %v677 = vrot.slane %v675, 1
      %v678 = vsel %vm650, %v673, %v677
      %v679 = vshrl.u32 %v353, 16
      %v681 = vor.u32 %v679, %v677
      %v683 = vshll.u32 %v354, 16
      %v685 = vrot.slane %v683, 1
      %v686 = vsel %vm650, %v681, %v685
      %v687 = vshrl.u32 %v354, 16
      %v689 = vor.u32 %v687, %v685
      %v691 = vshll.u32 %v355, 16
      %v693 = vrot.slane %v691, 1
      %v694 = vsel %vm650, %v689, %v693
      %v695 = vshrl.u32 %v355, 16
      %v697 = vor.u32 %v695, %v693
      %v699 = vshll.u32 %v356, 16
      %v701 = vrot.slane %v699, 1
      %v702 = vsel %vm650, %v697, %v701
      %v703 = vshrl.u32 %v356, 16
      %v705 = vor.u32 %v703, %v701
      %v707 = vshll.u32 %v357, 16
      %v709 = vrot.slane %v707, 1
      %v710 = vsel %vm650, %v705, %v709
      %v711 = vshrl.u32 %v357, 16
      %v713 = vor.u32 %v711, %v709
      %v715 = vshll.u32 %v358, 16
      %v717 = vrot.slane %v715, 1
      %v718 = vsel %vm650, %v713, %v717
      %v719 = vshrl.u32 %v358, 16
      %v721 = vor.u32 %v719, %v717
      %v723 = vshll.u32 %v359, 16
      %v725 = vrot.slane %v723, 1
      %v726 = vsel %vm650, %v721, %v725
      %v727 = vshrl.u32 %v359, 16
      %v729 = vor.u32 %v727, %v725
      %v731 = vshll.u32 %v360, 16
      %v733 = vrot.slane %v731, 1
      %v734 = vsel %vm650, %v729, %v733
      %v735 = vshrl.u32 %v360, 16
      %v737 = vor.u32 %v735, %v733
      %v739 = vshll.u32 %v361, 16
      %v741 = vrot.slane %v739, 1
      %v742 = vsel %vm650, %v737, %v741
      %v743 = vshrl.u32 %v361, 16
      %v745 = vor.u32 %v743, %v741
      %v747 = vshll.u32 %v362, 16
      %v749 = vrot.slane %v747, 1
      %v750 = vsel %vm650, %v745, %v749
      %v751 = vshrl.u32 %v362, 16
      %v753 = vor.u32 %v751, %v749
      %v755 = vshll.u32 %v363, 16
      %v757 = vrot.slane %v755, 1
      %v758 = vsel %vm650, %v753, %v757
      %v759 = vshrl.u32 %v363, 16
      %v761 = vor.u32 %v759, %v757
      %v763 = vshll.u32 %v364, 16
      %v765 = vrot.slane %v763, 1
      %v766 = vsel %vm650, %v761, %v765
      %v767 = vshrl.u32 %v364, 16
      %v769 = vor.u32 %v767, %v765
      %v771 = vshll.u32 %v365, 16
      %v773 = vrot.slane %v771, 1
      %v774 = vsel %vm650, %v769, %v773
      %v775 = vshrl.u32 %v365, 16
      %v777 = vor.u32 %v775, %v773
      %v779 = vshll.u32 %v366, 16
      %v781 = vrot.slane %v779, 1
      %v782 = vsel %vm650, %v777, %v781
      %v783 = vshrl.u32 %v366, 16
      %v785 = vor.u32 %v783, %v781
      %v787 = vshll.u32 %v367, 16
      %v789 = vrot.slane %v787, 1
      %v790 = vsel %vm650, %v785, %v789
      %v791 = vshrl.u32 %v367, 16
      %v793 = vor.u32 %v791, %v789
      %v795 = vshll.u32 %v368, 16
      %v797 = vrot.slane %v795, 1
      %v798 = vsel %vm650, %v793, %v797
      %v800 = vsel %vm411, %v662, 0
      %v803 = vsel %vm411, %v670, 0
      %v806 = vsel %vm411, %v678, 0
      %v809 = vsel %vm411, %v686, 0
      %v812 = vsel %vm411, %v694, 0
      %v815 = vsel %vm411, %v702, 0
      %v818 = vsel %vm411, %v710, 0
      %v821 = vsel %vm411, %v718, 0
      %v824 = vsel %vm411, %v726, 0
      %v827 = vsel %vm411, %v734, 0
      %v830 = vsel %vm411, %v742, 0
      %v833 = vsel %vm411, %v750, 0
      %v836 = vsel %vm411, %v758, 0
      %v839 = vsel %vm411, %v766, 0
      %v842 = vsel %vm411, %v774, 0
      %v845 = vsel %vm411, %v782, 0
      %v848 = vsel %vm411, %v790, 0
      %v851 = vsel %vm411, %v798, 0
      %v854 = vsel %vm466, %v273, 0
      %856 = vmatprep.subr.bf16.mxu0 0
      %857 = vmatpush1.bf16.msra.mxu0 %v854
      %858 = vmatprep.subr.bf16.mxu0 0
      %859 = vmatpush1.bf16.msra.mxu0 0
      %860 = vmatprep.subr.bf16.mxu0 0
      %861 = vmatpush1.bf16.msra.mxu0 0
      %862 = vmatprep.subr.bf16.mxu0 0
      %863 = vmatpush1.bf16.msra.mxu0 0
      %864 = vmatprep.subr.bf16.mxu0 0
      %865 = vmatpush1.bf16.msra.mxu0 0
      %866 = vmatprep.subr.bf16.mxu0 0
      %867 = vmatpush1.bf16.msra.mxu0 0
      %868 = vmatprep.subr.bf16.mxu0 0
      %869 = vmatpush1.bf16.msra.mxu0 0
      %870 = vmatprep.subr.bf16.mxu0 0
      %871 = vmatpush1.bf16.msra.mxu0 0
      %872 = vmatprep.subr.bf16.mxu0 0
      %873 = vmatpush1.bf16.msra.mxu0 0
      %874 = vmatprep.subr.bf16.mxu0 0
      %875 = vmatpush1.bf16.msra.mxu0 0
      %876 = vmatprep.subr.bf16.mxu0 0
      %877 = vmatpush1.bf16.msra.mxu0 0
      %878 = vmatprep.subr.bf16.mxu0 0
      %879 = vmatpush1.bf16.msra.mxu0 0
      %880 = vmatprep.subr.bf16.mxu0 0
      %881 = vmatpush1.bf16.msra.mxu0 0
      %882 = vmatprep.subr.bf16.mxu0 0
      %883 = vmatpush1.bf16.msra.mxu0 0
      %884 = vmatprep.subr.bf16.mxu0 0
      %885 = vmatpush1.bf16.msra.mxu0 0
      %886 = vmatprep.subr.bf16.mxu0 0
      %887 = vmatpush1.bf16.msra.mxu0 0
      %888 = vmatprep.mubr.bf16.mxu0 0
      %889 = vmatmul.mubr.bf16.gmra.mrb[0].mxu0 %v800
      %v890 = vpop.f32.mrb[0].mxu0
      %v891 = vadd.f32 %v505, %v890
      %v892 = vpop.f32.mrb[0].mxu0
      %v893 = vpop.f32.mrb[0].mxu0
      %v894 = vadd.f32 %v508, %v893
      %v895 = vpop.f32.mrb[0].mxu0
      %896 = vmatprep.mubr.bf16.mxu0 0
      %897 = vmatmul.mubr.bf16.gmra.mrb[0].mxu0 %v803
      %v898 = vpop.f32.mrb[0].mxu0
      %v899 = vadd.f32 %v513, %v898
      %v900 = vpop.f32.mrb[0].mxu0
      %v901 = vpop.f32.mrb[0].mxu0
      %v902 = vadd.f32 %v516, %v901
      %v903 = vpop.f32.mrb[0].mxu0
      %904 = vmatprep.mubr.bf16.mxu0 0
      %905 = vmatmul.mubr.bf16.gmra.mrb[0].mxu0 %v806
      %v906 = vpop.f32.mrb[0].mxu0
      %v907 = vadd.f32 %v521, %v906
      %v908 = vpop.f32.mrb[0].mxu0
      %v909 = vpop.f32.mrb[0].mxu0
      %v910 = vadd.f32 %v524, %v909
      %v911 = vpop.f32.mrb[0].mxu0
      %912 = vmatprep.mubr.bf16.mxu0 0
      %913 = vmatmul.mubr.bf16.gmra.mrb[0].mxu0 %v809
      %v914 = vpop.f32.mrb[0].mxu0
      %v915 = vadd.f32 %v529, %v914
      %v916 = vpop.f32.mrb[0].mxu0
      %v917 = vpop.f32.mrb[0].mxu0
      %v918 = vadd.f32 %v532, %v917
      %v919 = vpop.f32.mrb[0].mxu0
      %920 = vmatprep.mubr.bf16.mxu0 0
      %921 = vmatmul.mubr.bf16.gmra.mrb[0].mxu0 %v812
      %v922 = vpop.f32.mrb[0].mxu0
      %v923 = vadd.f32 %v537, %v922
      %v924 = vpop.f32.mrb[0].mxu0
      %v925 = vpop.f32.mrb[0].mxu0
      %v926 = vadd.f32 %v540, %v925
      %v927 = vpop.f32.mrb[0].mxu0
      %928 = vmatprep.mubr.bf16.mxu0 0
      %929 = vmatmul.mubr.bf16.gmra.mrb[0].mxu0 %v815
      %v930 = vpop.f32.mrb[0].mxu0
      %v931 = vadd.f32 %v545, %v930
      %v932 = vpop.f32.mrb[0].mxu0
      %v933 = vpop.f32.mrb[0].mxu0
      %v934 = vadd.f32 %v548, %v933
      %v935 = vpop.f32.mrb[0].mxu0
      %936 = vmatprep.mubr.bf16.mxu0 0
      %937 = vmatmul.mubr.bf16.gmra.mrb[0].mxu0 %v818
      %v938 = vpop.f32.mrb[0].mxu0
      %v939 = vadd.f32 %v553, %v938
      %v940 = vpop.f32.mrb[0].mxu0
      %v941 = vpop.f32.mrb[0].mxu0
      %v942 = vadd.f32 %v556, %v941
      %v943 = vpop.f32.mrb[0].mxu0
      %944 = vmatprep.mubr.bf16.mxu0 0
      %945 = vmatmul.mubr.bf16.gmra.mrb[0].mxu0 %v821
      %v946 = vpop.f32.mrb[0].mxu0
      %v947 = vadd.f32 %v561, %v946
      %v948 = vpop.f32.mrb[0].mxu0
      %v949 = vpop.f32.mrb[0].mxu0
      %v950 = vadd.f32 %v564, %v949
      %v951 = vpop.f32.mrb[0].mxu0
      %952 = vmatprep.mubr.bf16.mxu0 0
      %953 = vmatmul.mubr.bf16.gmra.mrb[0].mxu0 %v824
      %v954 = vpop.f32.mrb[0].mxu0
      %v955 = vadd.f32 %v569, %v954
      %v956 = vpop.f32.mrb[0].mxu0
      %v957 = vpop.f32.mrb[0].mxu0
      %v958 = vadd.f32 %v572, %v957
      %v959 = vpop.f32.mrb[0].mxu0
      %960 = vmatprep.mubr.bf16.mxu0 0
      %961 = vmatmul.mubr.bf16.gmra.mrb[0].mxu0 %v827
      %v962 = vpop.f32.mrb[0].mxu0
      %v963 = vadd.f32 %v577, %v962
      %v964 = vpop.f32.mrb[0].mxu0
      %v965 = vpop.f32.mrb[0].mxu0
      %v966 = vadd.f32 %v580, %v965
      %v967 = vpop.f32.mrb[0].mxu0
      %968 = vmatprep.mubr.bf16.mxu0 0
      %969 = vmatmul.mubr.bf16.gmra.mrb[0].mxu0 %v830
      %v970 = vpop.f32.mrb[0].mxu0
      %v971 = vadd.f32 %v585, %v970
      %v972 = vpop.f32.mrb[0].mxu0
      %v973 = vpop.f32.mrb[0].mxu0
      %v974 = vadd.f32 %v588, %v973
      %v975 = vpop.f32.mrb[0].mxu0
      %976 = vmatprep.mubr.bf16.mxu0 0
      %977 = vmatmul.mubr.bf16.gmra.mrb[0].mxu0 %v833
      %v978 = vpop.f32.mrb[0].mxu0
      %v979 = vadd.f32 %v593, %v978
      %v980 = vpop.f32.mrb[0].mxu0
      %v981 = vpop.f32.mrb[0].mxu0
      %v982 = vadd.f32 %v596, %v981
      %v983 = vpop.f32.mrb[0].mxu0
      %984 = vmatprep.mubr.bf16.mxu0 0
      %985 = vmatmul.mubr.bf16.gmra.mrb[0].mxu0 %v836
      %v986 = vpop.f32.mrb[0].mxu0
      %v987 = vadd.f32 %v601, %v986
      %v988 = vpop.f32.mrb[0].mxu0
      %v989 = vpop.f32.mrb[0].mxu0
      %v990 = vadd.f32 %v604, %v989
      %v991 = vpop.f32.mrb[0].mxu0
      %992 = vmatprep.mubr.bf16.mxu0 0
      %993 = vmatmul.mubr.bf16.gmra.mrb[0].mxu0 %v839
      %v994 = vpop.f32.mrb[0].mxu0
      %v995 = vadd.f32 %v609, %v994
      %v996 = vpop.f32.mrb[0].mxu0
      %v997 = vpop.f32.mrb[0].mxu0
      %v998 = vadd.f32 %v612, %v997
      %v999 = vpop.f32.mrb[0].mxu0
      %1000 = vmatprep.mubr.bf16.mxu0 0
      %1001 = vmatmul.mubr.bf16.gmra.mrb[0].mxu0 %v842
      %v1002 = vpop.f32.mrb[0].mxu0
      %v1003 = vadd.f32 %v617, %v1002
      %v1004 = vpop.f32.mrb[0].mxu0
      %v1005 = vpop.f32.mrb[0].mxu0
      %v1006 = vadd.f32 %v620, %v1005
      %v1007 = vpop.f32.mrb[0].mxu0
      %1008 = vmatprep.mubr.bf16.mxu0 0
      %1009 = vmatmul.mubr.bf16.gmra.mrb[0].mxu0 %v845
      %v1010 = vpop.f32.mrb[0].mxu0
      %v1011 = vadd.f32 %v625, %v1010
      %v1012 = vpop.f32.mrb[0].mxu0
      %v1013 = vpop.f32.mrb[0].mxu0
      %v1014 = vadd.f32 %v628, %v1013
      %v1015 = vpop.f32.mrb[0].mxu0
      %1016 = vmatprep.mubr.bf16.mxu0 0
      %1017 = vmatmul.mubr.bf16.gmra.mrb[0].mxu0 %v848
      %v1018 = vpop.f32.mrb[0].mxu0
      %v1019 = vadd.f32 %v633, %v1018
      %v1020 = vpop.f32.mrb[0].mxu0
      %v1021 = vpop.f32.mrb[0].mxu0
      %v1022 = vadd.f32 %v636, %v1021
      %v1023 = vpop.f32.mrb[0].mxu0
      %1024 = vmatprep.mubr.bf16.mxu0 0
      %1025 = vmatmul.mubr.bf16.gmra.mrb[0].mxu0 %v851
      %v1026 = vpop.f32.mrb[0].mxu0
      %v1027 = vadd.f32 %v641, %v1026
      %v1028 = vpop.f32.mrb[0].mxu0
      %v1029 = vpop.f32.mrb[0].mxu0
      %v1030 = vadd.f32 %v644, %v1029
      %v1031 = vpop.f32.mrb[0].mxu0
      %1032 = vdwg.mxu0
      %v1033 = vld [vmem:[%s219 + $0x98] sm:$0x3]
      %v1034 = vld [vmem:[%s1 + $0x4] sm:$0x3]
      %v1036 = vunpack.c.l.b16 %v1033
      %v1037 = vpack.c.b16 %v1036, %v1036
      %vm1038 = vsmask.f32 6400
      %v1040 = vshrl.u32 %v350, 16
      %v1042 = vrot.slane %v1040, 1
      %v1043 = vshll.u32 %v350, 16
      %v1045 = vrot.slane %v1043, 2
      %v1046 = vor.u32 %v1042, %v1045
      %v1047 = vrot.slane %v663, 1
      %v1048 = vrot.slane %v659, 2
      %v1049 = vor.u32 %v1047, %v1048
      %v1050 = vsel %vm1038, %v1046, %v1049
      %v1051 = vrot.slane %v671, 1
      %v1052 = vrot.slane %v667, 2
      %v1053 = vor.u32 %v1051, %v1052
      %v1054 = vsel %vm1038, %v1049, %v1053
      %v1055 = vrot.slane %v679, 1
      %v1056 = vrot.slane %v675, 2
      %v1057 = vor.u32 %v1055, %v1056
      %v1058 = vsel %vm1038, %v1053, %v1057
      %v1059 = vrot.slane %v687, 1
      %v1060 = vrot.slane %v683, 2
      %v1061 = vor.u32 %v1059, %v1060
      %v1062 = vsel %vm1038, %v1057, %v1061
      %v1063 = vrot.slane %v695, 1
      %v1064 = vrot.slane %v691, 2
      %v1065 = vor.u32 %v1063, %v1064
      %v1066 = vsel %vm1038, %v1061, %v1065
      %v1067 = vrot.slane %v703, 1
      %v1068 = vrot.slane %v699, 2
      %v1069 = vor.u32 %v1067, %v1068
      %v1070 = vsel %vm1038, %v1065, %v1069
      %v1071 = vrot.slane %v711, 1
      %v1072 = vrot.slane %v707, 2
      %v1073 = vor.u32 %v1071, %v1072
      %v1074 = vsel %vm1038, %v1069, %v1073
      %v1075 = vrot.slane %v719, 1
      %v1076 = vrot.slane %v715, 2
      %v1077 = vor.u32 %v1075, %v1076
      %v1078 = vsel %vm1038, %v1073, %v1077
      %v1079 = vrot.slane %v727, 1
      %v1080 = vrot.slane %v723, 2
      %v1081 = vor.u32 %v1079, %v1080
      %v1082 = vsel %vm1038, %v1077, %v1081
      %v1083 = vrot.slane %v735, 1
      %v1084 = vrot.slane %v731, 2
      %v1085 = vor.u32 %v1083, %v1084
      %v1086 = vsel %vm1038, %v1081, %v1085
      %v1087 = vrot.slane %v743, 1
      %v1088 = vrot.slane %v739, 2
      %v1089 = vor.u32 %v1087, %v1088
      %v1090 = vsel %vm1038, %v1085, %v1089
      %v1091 = vrot.slane %v751, 1
      %v1092 = vrot.slane %v747, 2
      %v1093 = vor.u32 %v1091, %v1092
      %v1094 = vsel %vm1038, %v1089, %v1093
      %v1095 = vrot.slane %v759, 1
      %v1096 = vrot.slane %v755, 2
      %v1097 = vor.u32 %v1095, %v1096
      %v1098 = vsel %vm1038, %v1093, %v1097
      %v1099 = vrot.slane %v767, 1
      %v1100 = vrot.slane %v763, 2
      %v1101 = vor.u32 %v1099, %v1100
      %v1102 = vsel %vm1038, %v1097, %v1101
      %v1103 = vrot.slane %v775, 1
      %v1104 = vrot.slane %v771, 2
      %v1105 = vor.u32 %v1103, %v1104
      %v1106 = vsel %vm1038, %v1101, %v1105
      %v1107 = vrot.slane %v783, 1
      %v1108 = vrot.slane %v779, 2
      %v1109 = vor.u32 %v1107, %v1108
      %v1110 = vsel %vm1038, %v1105, %v1109
      %v1111 = vrot.slane %v791, 1
      %v1112 = vrot.slane %v787, 2
      %v1113 = vor.u32 %v1111, %v1112
      %v1114 = vsel %vm1038, %v1109, %v1113
      %v1116 = vshrl.u32 %v1037, 16
      %v1118 = vrot.slane %v1116, 1
      %v1119 = vshll.u32 %v1037, 16
      %v1121 = vrot.slane %v1119, 2
      %v1122 = vor.u32 %v1118, %v1121
      %v1123 = vsel %vm1038, %v1113, %v1122
      %v1125 = vsel %vm411, %v1050, 0
      %v1128 = vsel %vm411, %v1054, 0
      %v1131 = vsel %vm411, %v1058, 0
      %v1134 = vsel %vm411, %v1062, 0
      %v1137 = vsel %vm411, %v1066, 0
      %v1140 = vsel %vm411, %v1070, 0
      %v1143 = vsel %vm411, %v1074, 0
      %v1146 = vsel %vm411, %v1078, 0
      %v1149 = vsel %vm411, %v1082, 0
      %v1152 = vsel %vm411, %v1086, 0
      %v1155 = vsel %vm411, %v1090, 0
      %v1158 = vsel %vm411, %v1094, 0
      %v1161 = vsel %vm411, %v1098, 0
      %v1164 = vsel %vm411, %v1102, 0
      %v1167 = vsel %vm411, %v1106, 0
      %v1170 = vsel %vm411, %v1110, 0
      %v1173 = vsel %vm411, %v1114, 0
      %v1176 = vsel %vm411, %v1123, 0
      %v1179 = vsel %vm466, %v1034, 0
      %1181 = vmatprep.subr.bf16.mxu0 0
      %1182 = vmatpush1.bf16.msra.mxu0 %v1179
      %1183 = vmatprep.subr.bf16.mxu0 0
      %1184 = vmatpush1.bf16.msra.mxu0 0
      %1185 = vmatprep.subr.bf16.mxu0 0
      %1186 = vmatpush1.bf16.msra.mxu0 0
      %1187 = vmatprep.subr.bf16.mxu0 0
      %1188 = vmatpush1.bf16.msra.mxu0 0
      %1189 = vmatprep.subr.bf16.mxu0 0
      %1190 = vmatpush1.bf16.msra.mxu0 0
      %1191 = vmatprep.subr.bf16.mxu0 0
      %1192 = vmatpush1.bf16.msra.mxu0 0
      %1193 = vmatprep.subr.bf16.mxu0 0
      %1194 = vmatpush1.bf16.msra.mxu0 0
      %1195 = vmatprep.subr.bf16.mxu0 0
      %1196 = vmatpush1.bf16.msra.mxu0 0
      %1197 = vmatprep.subr.bf16.mxu0 0
      %1198 = vmatpush1.bf16.msra.mxu0 0
      %1199 = vmatprep.subr.bf16.mxu0 0
      %1200 = vmatpush1.bf16.msra.mxu0 0
      %1201 = vmatprep.subr.bf16.mxu0 0
      %1202 = vmatpush1.bf16.msra.mxu0 0
      %1203 = vmatprep.subr.bf16.mxu0 0
      %1204 = vmatpush1.bf16.msra.mxu0 0
      %1205 = vmatprep.subr.bf16.mxu0 0
      %1206 = vmatpush1.bf16.msra.mxu0 0
      %1207 = vmatprep.subr.bf16.mxu0 0
      %1208 = vmatpush1.bf16.msra.mxu0 0
      %1209 = vmatprep.subr.bf16.mxu0 0
      %1210 = vmatpush1.bf16.msra.mxu0 0
      %1211 = vmatprep.subr.bf16.mxu0 0
      %1212 = vmatpush1.bf16.msra.mxu0 0
      %1213 = vmatprep.mubr.bf16.mxu0 0
      %1214 = vmatmul.mubr.bf16.gmra.mrb[0].mxu0 %v1125
      %v1215 = vpop.f32.mrb[0].mxu0
      %v1216 = vadd.f32 0.0, %v1215
      %v1217 = vpop.f32.mrb[0].mxu0
      %v1218 = vpop.f32.mrb[0].mxu0
      %v1219 = vadd.f32 0.0, %v1218
      %v1220 = vpop.f32.mrb[0].mxu0
      %1221 = vmatprep.mubr.bf16.mxu0 0
      %1222 = vmatmul.mubr.bf16.gmra.mrb[0].mxu0 %v1128
      %v1223 = vpop.f32.mrb[0].mxu0
      %v1224 = vadd.f32 0.0, %v1223
      %v1225 = vpop.f32.mrb[0].mxu0
      %v1226 = vpop.f32.mrb[0].mxu0
      %v1227 = vadd.f32 0.0, %v1226
      %v1228 = vpop.f32.mrb[0].mxu0
      %1229 = vmatprep.mubr.bf16.mxu0 0
      %1230 = vmatmul.mubr.bf16.gmra.mrb[0].mxu0 %v1131
      %v1231 = vpop.f32.mrb[0].mxu0
      %v1232 = vadd.f32 0.0, %v1231
      %v1233 = vpop.f32.mrb[0].mxu0
      %v1234 = vpop.f32.mrb[0].mxu0
      %v1235 = vadd.f32 0.0, %v1234
      %v1236 = vpop.f32.mrb[0].mxu0
      %1237 = vmatprep.mubr.bf16.mxu0 0
      %1238 = vmatmul.mubr.bf16.gmra.mrb[0].mxu0 %v1134
      %v1239 = vpop.f32.mrb[0].mxu0
      %v1240 = vadd.f32 0.0, %v1239
      %v1241 = vpop.f32.mrb[0].mxu0
      %v1242 = vpop.f32.mrb[0].mxu0
      %v1243 = vadd.f32 0.0, %v1242
      %v1244 = vpop.f32.mrb[0].mxu0
      %1245 = vmatprep.mubr.bf16.mxu0 0
      %1246 = vmatmul.mubr.bf16.gmra.mrb[0].mxu0 %v1137
      %v1247 = vpop.f32.mrb[0].mxu0
      %v1248 = vadd.f32 0.0, %v1247
      %v1249 = vpop.f32.mrb[0].mxu0
      %v1250 = vpop.f32.mrb[0].mxu0
      %v1251 = vadd.f32 0.0, %v1250
      %v1252 = vpop.f32.mrb[0].mxu0
      %1253 = vmatprep.mubr.bf16.mxu0 0
      %1254 = vmatmul.mubr.bf16.gmra.mrb[0].mxu0 %v1140
      %v1255 = vpop.f32.mrb[0].mxu0
      %v1256 = vadd.f32 0.0, %v1255
      %v1257 = vpop.f32.mrb[0].mxu0
      %v1258 = vpop.f32.mrb[0].mxu0
      %v1259 = vadd.f32 0.0, %v1258
      %v1260 = vpop.f32.mrb[0].mxu0
      %1261 = vmatprep.mubr.bf16.mxu0 0
      %1262 = vmatmul.mubr.bf16.gmra.mrb[0].mxu0 %v1143
      %v1263 = vpop.f32.mrb[0].mxu0
      %v1264 = vadd.f32 0.0, %v1263
      %v1265 = vpop.f32.mrb[0].mxu0
      %v1266 = vpop.f32.mrb[0].mxu0
      %v1267 = vadd.f32 0.0, %v1266
      %v1268 = vpop.f32.mrb[0].mxu0
      %1269 = vmatprep.mubr.bf16.mxu0 0
      %1270 = vmatmul.mubr.bf16.gmra.mrb[0].mxu0 %v1146
      %v1271 = vpop.f32.mrb[0].mxu0
      %v1272 = vadd.f32 0.0, %v1271
      %v1273 = vpop.f32.mrb[0].mxu0
      %v1274 = vpop.f32.mrb[0].mxu0
      %v1275 = vadd.f32 0.0, %v1274
      %v1276 = vpop.f32.mrb[0].mxu0
      %1277 = vmatprep.mubr.bf16.mxu0 0
      %1278 = vmatmul.mubr.bf16.gmra.mrb[0].mxu0 %v1149
      %v1279 = vpop.f32.mrb[0].mxu0
      %v1280 = vadd.f32 0.0, %v1279
      %v1281 = vpop.f32.mrb[0].mxu0
      %v1282 = vpop.f32.mrb[0].mxu0
      %v1283 = vadd.f32 0.0, %v1282
      %v1284 = vpop.f32.mrb[0].mxu0
      %1285 = vmatprep.mubr.bf16.mxu0 0
      %1286 = vmatmul.mubr.bf16.gmra.mrb[0].mxu0 %v1152
      %v1287 = vpop.f32.mrb[0].mxu0
      %v1288 = vadd.f32 0.0, %v1287
      %v1289 = vpop.f32.mrb[0].mxu0
      %v1290 = vpop.f32.mrb[0].mxu0
      %v1291 = vadd.f32 0.0, %v1290
      %v1292 = vpop.f32.mrb[0].mxu0
      %1293 = vmatprep.mubr.bf16.mxu0 0
      %1294 = vmatmul.mubr.bf16.gmra.mrb[0].mxu0 %v1155
      %v1295 = vpop.f32.mrb[0].mxu0
      %v1296 = vadd.f32 0.0, %v1295
      %v1297 = vpop.f32.mrb[0].mxu0
      %v1298 = vpop.f32.mrb[0].mxu0
      %v1299 = vadd.f32 0.0, %v1298
      %v1300 = vpop.f32.mrb[0].mxu0
      %1301 = vmatprep.mubr.bf16.mxu0 0
      %1302 = vmatmul.mubr.bf16.gmra.mrb[0].mxu0 %v1158
      %v1303 = vpop.f32.mrb[0].mxu0
      %v1304 = vadd.f32 0.0, %v1303
      %v1305 = vpop.f32.mrb[0].mxu0
      %v1306 = vpop.f32.mrb[0].mxu0
      %v1307 = vadd.f32 0.0, %v1306
      %v1308 = vpop.f32.mrb[0].mxu0
      %1309 = vmatprep.mubr.bf16.mxu0 0
      %1310 = vmatmul.mubr.bf16.gmra.mrb[0].mxu0 %v1161
      %v1311 = vpop.f32.mrb[0].mxu0
      %v1312 = vadd.f32 0.0, %v1311
      %v1313 = vpop.f32.mrb[0].mxu0
      %v1314 = vpop.f32.mrb[0].mxu0
      %v1315 = vadd.f32 0.0, %v1314
      %v1316 = vpop.f32.mrb[0].mxu0
      %1317 = vmatprep.mubr.bf16.mxu0 0
      %1318 = vmatmul.mubr.bf16.gmra.mrb[0].mxu0 %v1164
      %v1319 = vpop.f32.mrb[0].mxu0
      %v1320 = vadd.f32 0.0, %v1319
      %v1321 = vpop.f32.mrb[0].mxu0
      %v1322 = vpop.f32.mrb[0].mxu0
      %v1323 = vadd.f32 0.0, %v1322
      %v1324 = vpop.f32.mrb[0].mxu0
      %1325 = vmatprep.mubr.bf16.mxu0 0
      %1326 = vmatmul.mubr.bf16.gmra.mrb[0].mxu0 %v1167
      %v1327 = vpop.f32.mrb[0].mxu0
      %v1328 = vadd.f32 0.0, %v1327
      %v1329 = vpop.f32.mrb[0].mxu0
      %v1330 = vpop.f32.mrb[0].mxu0
      %v1331 = vadd.f32 0.0, %v1330
      %v1332 = vpop.f32.mrb[0].mxu0
      %1333 = vmatprep.mubr.bf16.mxu0 0
      %1334 = vmatmul.mubr.bf16.gmra.mrb[0].mxu0 %v1170
      %v1335 = vpop.f32.mrb[0].mxu0
      %v1336 = vadd.f32 0.0, %v1335
      %v1337 = vpop.f32.mrb[0].mxu0
      %v1338 = vpop.f32.mrb[0].mxu0
      %v1339 = vadd.f32 0.0, %v1338
      %v1340 = vpop.f32.mrb[0].mxu0
      %1341 = vmatprep.mubr.bf16.mxu0 0
      %1342 = vmatmul.mubr.bf16.gmra.mrb[0].mxu0 %v1173
      %v1343 = vpop.f32.mrb[0].mxu0
      %v1344 = vadd.f32 0.0, %v1343
      %v1345 = vpop.f32.mrb[0].mxu0
      %v1346 = vpop.f32.mrb[0].mxu0
      %v1347 = vadd.f32 0.0, %v1346
      %v1348 = vpop.f32.mrb[0].mxu0
      %1349 = vmatprep.mubr.bf16.mxu0 0
      %1350 = vmatmul.mubr.bf16.gmra.mrb[0].mxu0 %v1176
      %v1351 = vpop.f32.mrb[0].mxu0
      %v1352 = vadd.f32 0.0, %v1351
      %v1353 = vpop.f32.mrb[0].mxu0
      %v1354 = vpop.f32.mrb[0].mxu0
      %v1355 = vadd.f32 0.0, %v1354
      %v1356 = vpop.f32.mrb[0].mxu0
      %1357 = vdwg.mxu0
      %v1358 = vadd.f32 %v891, %v1216
      %v1359 = vadd.f32 %v894, %v1219
      %v1360 = vadd.f32 %v899, %v1224
      %v1361 = vadd.f32 %v902, %v1227
      %v1362 = vadd.f32 %v907, %v1232
      %v1363 = vadd.f32 %v910, %v1235
      %v1364 = vadd.f32 %v915, %v1240
      %v1365 = vadd.f32 %v918, %v1243
      %v1366 = vadd.f32 %v923, %v1248
      %v1367 = vadd.f32 %v926, %v1251
      %v1368 = vadd.f32 %v931, %v1256
      %v1369 = vadd.f32 %v934, %v1259
      %v1370 = vadd.f32 %v939, %v1264
      %v1371 = vadd.f32 %v942, %v1267
      %v1372 = vadd.f32 %v947, %v1272
      %v1373 = vadd.f32 %v950, %v1275
      %v1374 = vadd.f32 %v955, %v1280
      %v1375 = vadd.f32 %v958, %v1283
      %v1376 = vadd.f32 %v963, %v1288
      %v1377 = vadd.f32 %v966, %v1291
      %v1378 = vadd.f32 %v971, %v1296
      %v1379 = vadd.f32 %v974, %v1299
      %v1380 = vadd.f32 %v979, %v1304
      %v1381 = vadd.f32 %v982, %v1307
      %v1382 = vadd.f32 %v987, %v1312
      %v1383 = vadd.f32 %v990, %v1315
      %v1384 = vadd.f32 %v995, %v1320
      %v1385 = vadd.f32 %v998, %v1323
      %v1386 = vadd.f32 %v1003, %v1328
      %v1387 = vadd.f32 %v1006, %v1331
      %v1388 = vadd.f32 %v1011, %v1336
      %v1389 = vadd.f32 %v1014, %v1339
      %v1390 = vadd.f32 %v1019, %v1344
      %v1391 = vadd.f32 %v1022, %v1347
      %v1392 = vadd.f32 %v1027, %v1352
      %v1393 = vadd.f32 %v1030, %v1355
      %v1394 = vld [vmem:[%s219 + $0x10] sm:$0xe]
      %v1395 = vld [vmem:[%s219 + $0x14] sm:$0xf]
      %v1396 = vld [vmem:[%s219 + $0x18] sm:$0xf]
      %v1397 = vld [vmem:[%s219 + $0x1c] sm:$0xf]
      %v1398 = vld [vmem:[%s219 + $0x20] sm:$0xf]
      %v1399 = vld [vmem:[%s219 + $0x24] sm:$0xf]
      %v1400 = vld [vmem:[%s219 + $0x28] sm:$0xf]
      %v1401 = vld [vmem:[%s219 + $0x2c] sm:$0xf]
      %v1402 = vld [vmem:[%s219 + $0x30] sm:$0xf]
      %v1403 = vld [vmem:[%s219 + $0x34] sm:$0xf]
      %v1404 = vld [vmem:[%s219 + $0x38] sm:$0xf]
      %v1405 = vld [vmem:[%s219 + $0x3c] sm:$0xf]
      %v1406 = vld [vmem:[%s219 + $0x40] sm:$0xf]
      %v1407 = vld [vmem:[%s219 + $0x44] sm:$0xf]
      %v1408 = vld [vmem:[%s219 + $0x48] sm:$0xf]
      %v1409 = vld [vmem:[%s219 + $0x4c] sm:$0xf]
      %v1410 = vld [vmem:[%s219 + $0x50] sm:$0xf]
      %v1411 = vld [vmem:[%s219 + $0x54] sm:$0xf]
      %v1412 = vld [vmem:[%s219 + $0x58] sm:$0xf]
      %v1413 = vld [vmem:[%s219 + $0x5c] sm:$0xf]
      %v1414 = vld [vmem:[%s219 + $0x60] sm:$0xf]
      %v1415 = vld [vmem:[%s219 + $0x64] sm:$0xf]
      %v1416 = vld [vmem:[%s219 + $0x68] sm:$0xf]
      %v1417 = vld [vmem:[%s219 + $0x6c] sm:$0xf]
      %v1418 = vld [vmem:[%s219 + $0x70] sm:$0xf]
      %v1419 = vld [vmem:[%s219 + $0x74] sm:$0xf]
      %v1420 = vld [vmem:[%s219 + $0x78] sm:$0xf]
      %v1421 = vld [vmem:[%s219 + $0x7c] sm:$0xf]
      %v1422 = vld [vmem:[%s219 + $0x80] sm:$0xf]
      %v1423 = vld [vmem:[%s219 + $0x84] sm:$0xf]
      %v1424 = vld [vmem:[%s219 + $0x88] sm:$0xf]
      %v1425 = vld [vmem:[%s219 + $0x8c] sm:$0xf]
      %v1426 = vld [vmem:[%s219 + $0x90] sm:$0xf]
      %v1427 = vld [vmem:[%s219 + $0x94] sm:$0xf]
      %v1428 = vld [vmem:[%s219 + $0x98] sm:$0xf]
      %v1429 = vld [vmem:[%s219 + $0x9c] sm:$0xf]
      %v1430 = vld [vmem:[%s219 + $0xa0] sm:$0x3]
      %v1431 = vld [vmem:[%s1 + $0x4] sm:$0xc]
      %v1469 = vunpack.c.l.b16 %v1394
      %v1470 = vunpack.c.l.b16 %v1395
      %v1471 = vunpack.c.l.b16 %v1396
      %v1472 = vunpack.c.l.b16 %v1397
      %v1473 = vunpack.c.l.b16 %v1398
      %v1474 = vunpack.c.l.b16 %v1399
      %v1475 = vunpack.c.l.b16 %v1400
      %v1476 = vunpack.c.l.b16 %v1401
      %v1477 = vunpack.c.l.b16 %v1402
      %v1478 = vunpack.c.l.b16 %v1403
      %v1479 = vunpack.c.l.b16 %v1404
      %v1480 = vunpack.c.l.b16 %v1405
      %v1481 = vunpack.c.l.b16 %v1406
      %v1482 = vunpack.c.l.b16 %v1407
      %v1483 = vunpack.c.l.b16 %v1408
      %v1484 = vunpack.c.l.b16 %v1409
      %v1485 = vunpack.c.l.b16 %v1410
      %v1486 = vunpack.c.l.b16 %v1411
      %v1487 = vunpack.c.l.b16 %v1412
      %v1488 = vunpack.c.l.b16 %v1413
      %v1489 = vunpack.c.l.b16 %v1414
      %v1490 = vunpack.c.l.b16 %v1415
      %v1491 = vunpack.c.l.b16 %v1416
      %v1492 = vunpack.c.l.b16 %v1417
      %v1493 = vunpack.c.l.b16 %v1418
      %v1494 = vunpack.c.l.b16 %v1419
      %v1495 = vunpack.c.l.b16 %v1420
      %v1496 = vunpack.c.l.b16 %v1421
      %v1497 = vunpack.c.l.b16 %v1422
      %v1498 = vunpack.c.l.b16 %v1423
      %v1499 = vunpack.c.l.b16 %v1424
      %v1500 = vunpack.c.l.b16 %v1425
      %v1501 = vunpack.c.l.b16 %v1426
      %v1502 = vunpack.c.l.b16 %v1427
      %v1503 = vunpack.c.l.b16 %v1428
      %v1504 = vunpack.c.l.b16 %v1429
      %v1505 = vunpack.c.l.b16 %v1430
      %v1506 = vpack.c.b16 %v1470, %v1469
      %v1507 = vpack.c.b16 %v1472, %v1471
      %v1508 = vpack.c.b16 %v1474, %v1473
      %v1509 = vpack.c.b16 %v1476, %v1475
      %v1510 = vpack.c.b16 %v1478, %v1477
      %v1511 = vpack.c.b16 %v1480, %v1479
      %v1512 = vpack.c.b16 %v1482, %v1481
      %v1513 = vpack.c.b16 %v1484, %v1483
      %v1514 = vpack.c.b16 %v1486, %v1485
      %v1515 = vpack.c.b16 %v1488, %v1487
      %v1516 = vpack.c.b16 %v1490, %v1489
      %v1517 = vpack.c.b16 %v1492, %v1491
      %v1518 = vpack.c.b16 %v1494, %v1493
      %v1519 = vpack.c.b16 %v1496, %v1495
      %v1520 = vpack.c.b16 %v1498, %v1497
      %v1521 = vpack.c.b16 %v1500, %v1499
      %v1522 = vpack.c.b16 %v1502, %v1501
      %v1523 = vpack.c.b16 %v1504, %v1503
      %v1524 = vpack.c.b16 %v1505, %v1505
      %v1526 = vshrl.u32 %v1506, 16
      %v1528 = vrot.slane %v1526, 1
      %v1529 = vshll.u32 %v1506, 16
      %v1531 = vrot.slane %v1529, 2
      %v1532 = vor.u32 %v1528, %v1531
      %v1534 = vshrl.u32 %v1507, 16
      %v1536 = vrot.slane %v1534, 1
      %v1537 = vshll.u32 %v1507, 16
      %v1539 = vrot.slane %v1537, 2
      %v1540 = vor.u32 %v1536, %v1539
      %v1541 = vsel %vm1038, %v1532, %v1540
      %v1543 = vshrl.u32 %v1508, 16
      %v1545 = vrot.slane %v1543, 1
      %v1546 = vshll.u32 %v1508, 16
      %v1548 = vrot.slane %v1546, 2
      %v1549 = vor.u32 %v1545, %v1548
      %v1550 = vsel %vm1038, %v1540, %v1549
      %v1552 = vshrl.u32 %v1509, 16
      %v1554 = vrot.slane %v1552, 1
      %v1555 = vshll.u32 %v1509, 16
      %v1557 = vrot.slane %v1555, 2
      %v1558 = vor.u32 %v1554, %v1557
      %v1559 = vsel %vm1038, %v1549, %v1558
      %v1561 = vshrl.u32 %v1510, 16
      %v1563 = vrot.slane %v1561, 1
      %v1564 = vshll.u32 %v1510, 16
      %v1566 = vrot.slane %v1564, 2
      %v1567 = vor.u32 %v1563, %v1566
      %v1568 = vsel %vm1038, %v1558, %v1567
      %v1570 = vshrl.u32 %v1511, 16
      %v1572 = vrot.slane %v1570, 1
      %v1573 = vshll.u32 %v1511, 16
      %v1575 = vrot.slane %v1573, 2
      %v1576 = vor.u32 %v1572, %v1575
      %v1577 = vsel %vm1038, %v1567, %v1576
      %v1579 = vshrl.u32 %v1512, 16
      %v1581 = vrot.slane %v1579, 1
      %v1582 = vshll.u32 %v1512, 16
      %v1584 = vrot.slane %v1582, 2
      %v1585 = vor.u32 %v1581, %v1584
      %v1586 = vsel %vm1038, %v1576, %v1585
      %v1588 = vshrl.u32 %v1513, 16
      %v1590 = vrot.slane %v1588, 1
      %v1591 = vshll.u32 %v1513, 16
      %v1593 = vrot.slane %v1591, 2
      %v1594 = vor.u32 %v1590, %v1593
      %v1595 = vsel %vm1038, %v1585, %v1594
      %v1597 = vshrl.u32 %v1514, 16
      %v1599 = vrot.slane %v1597, 1
      %v1600 = vshll.u32 %v1514, 16
      %v1602 = vrot.slane %v1600, 2
      %v1603 = vor.u32 %v1599, %v1602
      %v1604 = vsel %vm1038, %v1594, %v1603
      %v1606 = vshrl.u32 %v1515, 16
      %v1608 = vrot.slane %v1606, 1
      %v1609 = vshll.u32 %v1515, 16
      %v1611 = vrot.slane %v1609, 2
      %v1612 = vor.u32 %v1608, %v1611
      %v1613 = vsel %vm1038, %v1603, %v1612
      %v1615 = vshrl.u32 %v1516, 16
      %v1617 = vrot.slane %v1615, 1
      %v1618 = vshll.u32 %v1516, 16
      %v1620 = vrot.slane %v1618, 2
      %v1621 = vor.u32 %v1617, %v1620
      %v1622 = vsel %vm1038, %v1612, %v1621
      %v1624 = vshrl.u32 %v1517, 16
      %v1626 = vrot.slane %v1624, 1
      %v1627 = vshll.u32 %v1517, 16
      %v1629 = vrot.slane %v1627, 2
      %v1630 = vor.u32 %v1626, %v1629
      %v1631 = vsel %vm1038, %v1621, %v1630
      %v1633 = vshrl.u32 %v1518, 16
      %v1635 = vrot.slane %v1633, 1
      %v1636 = vshll.u32 %v1518, 16
      %v1638 = vrot.slane %v1636, 2
      %v1639 = vor.u32 %v1635, %v1638
      %v1640 = vsel %vm1038, %v1630, %v1639
      %v1642 = vshrl.u32 %v1519, 16
      %v1644 = vrot.slane %v1642, 1
      %v1645 = vshll.u32 %v1519, 16
      %v1647 = vrot.slane %v1645, 2
      %v1648 = vor.u32 %v1644, %v1647
      %v1649 = vsel %vm1038, %v1639, %v1648
      %v1651 = vshrl.u32 %v1520, 16
      %v1653 = vrot.slane %v1651, 1
      %v1654 = vshll.u32 %v1520, 16
      %v1656 = vrot.slane %v1654, 2
      %v1657 = vor.u32 %v1653, %v1656
      %v1658 = vsel %vm1038, %v1648, %v1657
      %v1660 = vshrl.u32 %v1521, 16
      %v1662 = vrot.slane %v1660, 1
      %v1663 = vshll.u32 %v1521, 16
      %v1665 = vrot.slane %v1663, 2
      %v1666 = vor.u32 %v1662, %v1665
      %v1667 = vsel %vm1038, %v1657, %v1666
      %v1669 = vshrl.u32 %v1522, 16
      %v1671 = vrot.slane %v1669, 1
      %v1672 = vshll.u32 %v1522, 16
      %v1674 = vrot.slane %v1672, 2
      %v1675 = vor.u32 %v1671, %v1674
      %v1676 = vsel %vm1038, %v1666, %v1675
      %v1678 = vshrl.u32 %v1523, 16
      %v1680 = vrot.slane %v1678, 1
      %v1681 = vshll.u32 %v1523, 16
      %v1683 = vrot.slane %v1681, 2
      %v1684 = vor.u32 %v1680, %v1683
      %v1685 = vsel %vm1038, %v1675, %v1684
      %v1687 = vshrl.u32 %v1524, 16
      %v1689 = vrot.slane %v1687, 1
      %v1690 = vshll.u32 %v1524, 16
      %v1692 = vrot.slane %v1690, 2
      %v1693 = vor.u32 %v1689, %v1692
      %v1694 = vsel %vm1038, %v1684, %v1693
      %v1696 = vunpack.c.l.b16 %v1431
      %v1697 = vpack.c.b16 %v1696, %v1696
      %v1698 = vrot.slane %v1697, 2
      %v1700 = vsel %vm411, %v1541, 0
      %v1703 = vsel %vm411, %v1550, 0
      %v1706 = vsel %vm411, %v1559, 0
      %v1709 = vsel %vm411, %v1568, 0
      %v1712 = vsel %vm411, %v1577, 0
      %v1715 = vsel %vm411, %v1586, 0
      %v1718 = vsel %vm411, %v1595, 0
      %v1721 = vsel %vm411, %v1604, 0
      %v1724 = vsel %vm411, %v1613, 0
      %v1727 = vsel %vm411, %v1622, 0
      %v1730 = vsel %vm411, %v1631, 0
      %v1733 = vsel %vm411, %v1640, 0
      %v1736 = vsel %vm411, %v1649, 0
      %v1739 = vsel %vm411, %v1658, 0
      %v1742 = vsel %vm411, %v1667, 0
      %v1745 = vsel %vm411, %v1676, 0
      %v1748 = vsel %vm411, %v1685, 0
      %v1751 = vsel %vm411, %v1694, 0
      %v1754 = vsel %vm466, %v1698, 0
      %1756 = vmatprep.subr.bf16.mxu0 0
      %1757 = vmatpush1.bf16.msra.mxu0 %v1754
      %1758 = vmatprep.subr.bf16.mxu0 0
      %1759 = vmatpush1.bf16.msra.mxu0 0
      %1760 = vmatprep.subr.bf16.mxu0 0
      %1761 = vmatpush1.bf16.msra.mxu0 0
      %1762 = vmatprep.subr.bf16.mxu0 0
      %1763 = vmatpush1.bf16.msra.mxu0 0
      %1764 = vmatprep.subr.bf16.mxu0 0
      %1765 = vmatpush1.bf16.msra.mxu0 0
      %1766 = vmatprep.subr.bf16.mxu0 0
      %1767 = vmatpush1.bf16.msra.mxu0 0
      %1768 = vmatprep.subr.bf16.mxu0 0
      %1769 = vmatpush1.bf16.msra.mxu0 0
      %1770 = vmatprep.subr.bf16.mxu0 0
      %1771 = vmatpush1.bf16.msra.mxu0 0
      %1772 = vmatprep.subr.bf16.mxu0 0
      %1773 = vmatpush1.bf16.msra.mxu0 0
      %1774 = vmatprep.subr.bf16.mxu0 0
      %1775 = vmatpush1.bf16.msra.mxu0 0
      %1776 = vmatprep.subr.bf16.mxu0 0
      %1777 = vmatpush1.bf16.msra.mxu0 0
      %1778 = vmatprep.subr.bf16.mxu0 0
      %1779 = vmatpush1.bf16.msra.mxu0 0
      %1780 = vmatprep.subr.bf16.mxu0 0
      %1781 = vmatpush1.bf16.msra.mxu0 0
      %1782 = vmatprep.subr.bf16.mxu0 0
      %1783 = vmatpush1.bf16.msra.mxu0 0
      %1784 = vmatprep.subr.bf16.mxu0 0
      %1785 = vmatpush1.bf16.msra.mxu0 0
      %1786 = vmatprep.subr.bf16.mxu0 0
      %1787 = vmatpush1.bf16.msra.mxu0 0
      %1788 = vmatprep.mubr.bf16.mxu0 0
      %1789 = vmatmul.mubr.bf16.gmra.mrb[0].mxu0 %v1700
      %v1790 = vpop.f32.mrb[0].mxu0
      %v1791 = vadd.f32 0.0, %v1790
      %v1792 = vpop.f32.mrb[0].mxu0
      %v1793 = vpop.f32.mrb[0].mxu0
      %v1794 = vadd.f32 0.0, %v1793
      %v1795 = vpop.f32.mrb[0].mxu0
      %1796 = vmatprep.mubr.bf16.mxu0 0
      %1797 = vmatmul.mubr.bf16.gmra.mrb[0].mxu0 %v1703
      %v1798 = vpop.f32.mrb[0].mxu0
      %v1799 = vadd.f32 0.0, %v1798
      %v1800 = vpop.f32.mrb[0].mxu0
      %v1801 = vpop.f32.mrb[0].mxu0
      %v1802 = vadd.f32 0.0, %v1801
      %v1803 = vpop.f32.mrb[0].mxu0
      %1804 = vmatprep.mubr.bf16.mxu0 0
      %1805 = vmatmul.mubr.bf16.gmra.mrb[0].mxu0 %v1706
      %v1806 = vpop.f32.mrb[0].mxu0
      %v1807 = vadd.f32 0.0, %v1806
      %v1808 = vpop.f32.mrb[0].mxu0
      %v1809 = vpop.f32.mrb[0].mxu0
      %v1810 = vadd.f32 0.0, %v1809
      %v1811 = vpop.f32.mrb[0].mxu0
      %1812 = vmatprep.mubr.bf16.mxu0 0
      %1813 = vmatmul.mubr.bf16.gmra.mrb[0].mxu0 %v1709
      %v1814 = vpop.f32.mrb[0].mxu0
      %v1815 = vadd.f32 0.0, %v1814
      %v1816 = vpop.f32.mrb[0].mxu0
      %v1817 = vpop.f32.mrb[0].mxu0
      %v1818 = vadd.f32 0.0, %v1817
      %v1819 = vpop.f32.mrb[0].mxu0
      %1820 = vmatprep.mubr.bf16.mxu0 0
      %1821 = vmatmul.mubr.bf16.gmra.mrb[0].mxu0 %v1712
      %v1822 = vpop.f32.mrb[0].mxu0
      %v1823 = vadd.f32 0.0, %v1822
      %v1824 = vpop.f32.mrb[0].mxu0
      %v1825 = vpop.f32.mrb[0].mxu0
      %v1826 = vadd.f32 0.0, %v1825
      %v1827 = vpop.f32.mrb[0].mxu0
      %1828 = vmatprep.mubr.bf16.mxu0 0
      %1829 = vmatmul.mubr.bf16.gmra.mrb[0].mxu0 %v1715
      %v1830 = vpop.f32.mrb[0].mxu0
      %v1831 = vadd.f32 0.0, %v1830
      %v1832 = vpop.f32.mrb[0].mxu0
      %v1833 = vpop.f32.mrb[0].mxu0
      %v1834 = vadd.f32 0.0, %v1833
      %v1835 = vpop.f32.mrb[0].mxu0
      %1836 = vmatprep.mubr.bf16.mxu0 0
      %1837 = vmatmul.mubr.bf16.gmra.mrb[0].mxu0 %v1718
      %v1838 = vpop.f32.mrb[0].mxu0
      %v1839 = vadd.f32 0.0, %v1838
      %v1840 = vpop.f32.mrb[0].mxu0
      %v1841 = vpop.f32.mrb[0].mxu0
      %v1842 = vadd.f32 0.0, %v1841
      %v1843 = vpop.f32.mrb[0].mxu0
      %1844 = vmatprep.mubr.bf16.mxu0 0
      %1845 = vmatmul.mubr.bf16.gmra.mrb[0].mxu0 %v1721
      %v1846 = vpop.f32.mrb[0].mxu0
      %v1847 = vadd.f32 0.0, %v1846
      %v1848 = vpop.f32.mrb[0].mxu0
      %v1849 = vpop.f32.mrb[0].mxu0
      %v1850 = vadd.f32 0.0, %v1849
      %v1851 = vpop.f32.mrb[0].mxu0
      %1852 = vmatprep.mubr.bf16.mxu0 0
      %1853 = vmatmul.mubr.bf16.gmra.mrb[0].mxu0 %v1724
      %v1854 = vpop.f32.mrb[0].mxu0
      %v1855 = vadd.f32 0.0, %v1854
      %v1856 = vpop.f32.mrb[0].mxu0
      %v1857 = vpop.f32.mrb[0].mxu0
      %v1858 = vadd.f32 0.0, %v1857
      %v1859 = vpop.f32.mrb[0].mxu0
      %1860 = vmatprep.mubr.bf16.mxu0 0
      %1861 = vmatmul.mubr.bf16.gmra.mrb[0].mxu0 %v1727
      %v1862 = vpop.f32.mrb[0].mxu0
      %v1863 = vadd.f32 0.0, %v1862
      %v1864 = vpop.f32.mrb[0].mxu0
      %v1865 = vpop.f32.mrb[0].mxu0
      %v1866 = vadd.f32 0.0, %v1865
      %v1867 = vpop.f32.mrb[0].mxu0
      %1868 = vmatprep.mubr.bf16.mxu0 0
      %1869 = vmatmul.mubr.bf16.gmra.mrb[0].mxu0 %v1730
      %v1870 = vpop.f32.mrb[0].mxu0
      %v1871 = vadd.f32 0.0, %v1870
      %v1872 = vpop.f32.mrb[0].mxu0
      %v1873 = vpop.f32.mrb[0].mxu0
      %v1874 = vadd.f32 0.0, %v1873
      %v1875 = vpop.f32.mrb[0].mxu0
      %1876 = vmatprep.mubr.bf16.mxu0 0
      %1877 = vmatmul.mubr.bf16.gmra.mrb[0].mxu0 %v1733
      %v1878 = vpop.f32.mrb[0].mxu0
      %v1879 = vadd.f32 0.0, %v1878
      %v1880 = vpop.f32.mrb[0].mxu0
      %v1881 = vpop.f32.mrb[0].mxu0
      %v1882 = vadd.f32 0.0, %v1881
      %v1883 = vpop.f32.mrb[0].mxu0
      %1884 = vmatprep.mubr.bf16.mxu0 0
      %1885 = vmatmul.mubr.bf16.gmra.mrb[0].mxu0 %v1736
      %v1886 = vpop.f32.mrb[0].mxu0
      %v1887 = vadd.f32 0.0, %v1886
      %v1888 = vpop.f32.mrb[0].mxu0
      %v1889 = vpop.f32.mrb[0].mxu0
      %v1890 = vadd.f32 0.0, %v1889
      %v1891 = vpop.f32.mrb[0].mxu0
      %1892 = vmatprep.mubr.bf16.mxu0 0
      %1893 = vmatmul.mubr.bf16.gmra.mrb[0].mxu0 %v1739
      %v1894 = vpop.f32.mrb[0].mxu0
      %v1895 = vadd.f32 0.0, %v1894
      %v1896 = vpop.f32.mrb[0].mxu0
      %v1897 = vpop.f32.mrb[0].mxu0
      %v1898 = vadd.f32 0.0, %v1897
      %v1899 = vpop.f32.mrb[0].mxu0
      %1900 = vmatprep.mubr.bf16.mxu0 0
      %1901 = vmatmul.mubr.bf16.gmra.mrb[0].mxu0 %v1742
      %v1902 = vpop.f32.mrb[0].mxu0
      %v1903 = vadd.f32 0.0, %v1902
      %v1904 = vpop.f32.mrb[0].mxu0
      %v1905 = vpop.f32.mrb[0].mxu0
      %v1906 = vadd.f32 0.0, %v1905
      %v1907 = vpop.f32.mrb[0].mxu0
      %1908 = vmatprep.mubr.bf16.mxu0 0
      %1909 = vmatmul.mubr.bf16.gmra.mrb[0].mxu0 %v1745
      %v1910 = vpop.f32.mrb[0].mxu0
      %v1911 = vadd.f32 0.0, %v1910
      %v1912 = vpop.f32.mrb[0].mxu0
      %v1913 = vpop.f32.mrb[0].mxu0
      %v1914 = vadd.f32 0.0, %v1913
      %v1915 = vpop.f32.mrb[0].mxu0
      %1916 = vmatprep.mubr.bf16.mxu0 0
      %1917 = vmatmul.mubr.bf16.gmra.mrb[0].mxu0 %v1748
      %v1918 = vpop.f32.mrb[0].mxu0
      %v1919 = vadd.f32 0.0, %v1918
      %v1920 = vpop.f32.mrb[0].mxu0
      %v1921 = vpop.f32.mrb[0].mxu0
      %v1922 = vadd.f32 0.0, %v1921
      %v1923 = vpop.f32.mrb[0].mxu0
      %1924 = vmatprep.mubr.bf16.mxu0 0
      %1925 = vmatmul.mubr.bf16.gmra.mrb[0].mxu0 %v1751
      %v1926 = vpop.f32.mrb[0].mxu0
      %v1927 = vadd.f32 0.0, %v1926
      %v1928 = vpop.f32.mrb[0].mxu0
      %v1929 = vpop.f32.mrb[0].mxu0
      %v1930 = vadd.f32 0.0, %v1929
      %v1931 = vpop.f32.mrb[0].mxu0
      %1932 = vdwg.mxu0
      %v1933 = vadd.f32 %v1358, %v1791
      %v1934 = vadd.f32 %v1359, %v1794
      %v1935 = vadd.f32 %v1360, %v1799
      %v1936 = vadd.f32 %v1361, %v1802
      %v1937 = vadd.f32 %v1362, %v1807
      %v1938 = vadd.f32 %v1363, %v1810
      %v1939 = vadd.f32 %v1364, %v1815
      %v1940 = vadd.f32 %v1365, %v1818
      %v1941 = vadd.f32 %v1366, %v1823
      %v1942 = vadd.f32 %v1367, %v1826
      %v1943 = vadd.f32 %v1368, %v1831
      %v1944 = vadd.f32 %v1369, %v1834
      %v1945 = vadd.f32 %v1370, %v1839
      %v1946 = vadd.f32 %v1371, %v1842
      %v1947 = vadd.f32 %v1372, %v1847
      %v1948 = vadd.f32 %v1373, %v1850
      %v1949 = vadd.f32 %v1374, %v1855
      %v1950 = vadd.f32 %v1375, %v1858
      %v1951 = vadd.f32 %v1376, %v1863
      %v1952 = vadd.f32 %v1377, %v1866
      %v1953 = vadd.f32 %v1378, %v1871
      %v1954 = vadd.f32 %v1379, %v1874
      %v1955 = vadd.f32 %v1380, %v1879
      %v1956 = vadd.f32 %v1381, %v1882
      %v1957 = vadd.f32 %v1382, %v1887
      %v1958 = vadd.f32 %v1383, %v1890
      %v1959 = vadd.f32 %v1384, %v1895
      %v1960 = vadd.f32 %v1385, %v1898
      %v1961 = vadd.f32 %v1386, %v1903
      %v1962 = vadd.f32 %v1387, %v1906
      %v1963 = vadd.f32 %v1388, %v1911
      %v1964 = vadd.f32 %v1389, %v1914
      %v1965 = vadd.f32 %v1390, %v1919
      %v1966 = vadd.f32 %v1391, %v1922
      %v1967 = vadd.f32 %v1392, %v1927
      %v1968 = vadd.f32 %v1393, %v1930
      %v1969 = vld [vmem:[%s219 + $0x10] sm:$0xc]
      %v1970 = vld [vmem:[%s1 + $0x8] sm:$0x3]
      %v1972 = vunpack.c.l.b16 %v1969
      %v1973 = vpack.c.b16 %v1470, %v1972
      %vm1974 = vcmask 1045504
      %v1975 = vrot.slane %v1973, 2
      %v1976 = vrot.slane %v1507, 2
      %v1977 = vsel %vm1974, %v1975, %v1976
      %v1978 = vrot.slane %v1508, 2
      %v1979 = vsel %vm1974, %v1976, %v1978
      %v1980 = vrot.slane %v1509, 2
      %v1981 = vsel %vm1974, %v1978, %v1980
      %v1982 = vrot.slane %v1510, 2
      %v1983 = vsel %vm1974, %v1980, %v1982
      %v1984 = vrot.slane %v1511, 2
      %v1985 = vsel %vm1974, %v1982, %v1984
      %v1986 = vrot.slane %v1512, 2
      %v1987 = vsel %vm1974, %v1984, %v1986
      %v1988 = vrot.slane %v1513, 2
      %v1989 = vsel %vm1974, %v1986, %v1988
      %v1990 = vrot.slane %v1514, 2
      %v1991 = vsel %vm1974, %v1988, %v1990
      %v1992 = vrot.slane %v1515, 2
      %v1993 = vsel %vm1974, %v1990, %v1992
      %v1994 = vrot.slane %v1516, 2
      %v1995 = vsel %vm1974, %v1992, %v1994
      %v1996 = vrot.slane %v1517, 2
      %v1997 = vsel %vm1974, %v1994, %v1996
      %v1998 = vrot.slane %v1518, 2
      %v1999 = vsel %vm1974, %v1996, %v1998
      %v2000 = vrot.slane %v1519, 2
      %v2001 = vsel %vm1974, %v1998, %v2000
      %v2002 = vrot.slane %v1520, 2
      %v2003 = vsel %vm1974, %v2000, %v2002
      %v2004 = vrot.slane %v1521, 2
      %v2005 = vsel %vm1974, %v2002, %v2004
      %v2006 = vrot.slane %v1522, 2
      %v2007 = vsel %vm1974, %v2004, %v2006
      %v2008 = vrot.slane %v1523, 2
      %v2009 = vsel %vm1974, %v2006, %v2008
      %v2010 = vrot.slane %v1524, 2
      %v2011 = vsel %vm1974, %v2008, %v2010
      %v2013 = vsel %vm411, %v1977, 0
      %v2016 = vsel %vm411, %v1979, 0
      %v2019 = vsel %vm411, %v1981, 0
      %v2022 = vsel %vm411, %v1983, 0
      %v2025 = vsel %vm411, %v1985, 0
      %v2028 = vsel %vm411, %v1987, 0
      %v2031 = vsel %vm411, %v1989, 0
      %v2034 = vsel %vm411, %v1991, 0
      %v2037 = vsel %vm411, %v1993, 0
      %v2040 = vsel %vm411, %v1995, 0
      %v2043 = vsel %vm411, %v1997, 0
      %v2046 = vsel %vm411, %v1999, 0
      %v2049 = vsel %vm411, %v2001, 0
      %v2052 = vsel %vm411, %v2003, 0
      %v2055 = vsel %vm411, %v2005, 0
      %v2058 = vsel %vm411, %v2007, 0
      %v2061 = vsel %vm411, %v2009, 0
      %v2064 = vsel %vm411, %v2011, 0
      %v2067 = vsel %vm466, %v1970, 0
      %2069 = vmatprep.subr.bf16.mxu0 0
      %2070 = vmatpush1.bf16.msra.mxu0 %v2067
      %2071 = vmatprep.subr.bf16.mxu0 0
      %2072 = vmatpush1.bf16.msra.mxu0 0
      %2073 = vmatprep.subr.bf16.mxu0 0
      %2074 = vmatpush1.bf16.msra.mxu0 0
      %2075 = vmatprep.subr.bf16.mxu0 0
      %2076 = vmatpush1.bf16.msra.mxu0 0
      %2077 = vmatprep.subr.bf16.mxu0 0
      %2078 = vmatpush1.bf16.msra.mxu0 0
      %2079 = vmatprep.subr.bf16.mxu0 0
      %2080 = vmatpush1.bf16.msra.mxu0 0
      %2081 = vmatprep.subr.bf16.mxu0 0
      %2082 = vmatpush1.bf16.msra.mxu0 0
      %2083 = vmatprep.subr.bf16.mxu0 0
      %2084 = vmatpush1.bf16.msra.mxu0 0
      %2085 = vmatprep.subr.bf16.mxu0 0
      %2086 = vmatpush1.bf16.msra.mxu0 0
      %2087 = vmatprep.subr.bf16.mxu0 0
      %2088 = vmatpush1.bf16.msra.mxu0 0
      %2089 = vmatprep.subr.bf16.mxu0 0
      %2090 = vmatpush1.bf16.msra.mxu0 0
      %2091 = vmatprep.subr.bf16.mxu0 0
      %2092 = vmatpush1.bf16.msra.mxu0 0
      %2093 = vmatprep.subr.bf16.mxu0 0
      %2094 = vmatpush1.bf16.msra.mxu0 0
      %2095 = vmatprep.subr.bf16.mxu0 0
      %2096 = vmatpush1.bf16.msra.mxu0 0
      %2097 = vmatprep.subr.bf16.mxu0 0
      %2098 = vmatpush1.bf16.msra.mxu0 0
      %2099 = vmatprep.subr.bf16.mxu0 0
      %2100 = vmatpush1.bf16.msra.mxu0 0
      %2101 = vmatprep.mubr.bf16.mxu0 0
      %2102 = vmatmul.mubr.bf16.gmra.mrb[0].mxu0 %v2013
      %v2103 = vpop.f32.mrb[0].mxu0
      %v2104 = vadd.f32 0.0, %v2103
      %v2105 = vpop.f32.mrb[0].mxu0
      %v2106 = vpop.f32.mrb[0].mxu0
      %v2107 = vadd.f32 0.0, %v2106
      %v2108 = vpop.f32.mrb[0].mxu0
      %2109 = vmatprep.mubr.bf16.mxu0 0
      %2110 = vmatmul.mubr.bf16.gmra.mrb[0].mxu0 %v2016
      %v2111 = vpop.f32.mrb[0].mxu0
      %v2112 = vadd.f32 0.0, %v2111
      %v2113 = vpop.f32.mrb[0].mxu0
      %v2114 = vpop.f32.mrb[0].mxu0
      %v2115 = vadd.f32 0.0, %v2114
      %v2116 = vpop.f32.mrb[0].mxu0
      %2117 = vmatprep.mubr.bf16.mxu0 0
      %2118 = vmatmul.mubr.bf16.gmra.mrb[0].mxu0 %v2019
      %v2119 = vpop.f32.mrb[0].mxu0
      %v2120 = vadd.f32 0.0, %v2119
      %v2121 = vpop.f32.mrb[0].mxu0
      %v2122 = vpop.f32.mrb[0].mxu0
      %v2123 = vadd.f32 0.0, %v2122
      %v2124 = vpop.f32.mrb[0].mxu0
      %2125 = vmatprep.mubr.bf16.mxu0 0
      %2126 = vmatmul.mubr.bf16.gmra.mrb[0].mxu0 %v2022
      %v2127 = vpop.f32.mrb[0].mxu0
      %v2128 = vadd.f32 0.0, %v2127
      %v2129 = vpop.f32.mrb[0].mxu0
      %v2130 = vpop.f32.mrb[0].mxu0
      %v2131 = vadd.f32 0.0, %v2130
      %v2132 = vpop.f32.mrb[0].mxu0
      %2133 = vmatprep.mubr.bf16.mxu0 0
      %2134 = vmatmul.mubr.bf16.gmra.mrb[0].mxu0 %v2025
      %v2135 = vpop.f32.mrb[0].mxu0
      %v2136 = vadd.f32 0.0, %v2135
      %v2137 = vpop.f32.mrb[0].mxu0
      %v2138 = vpop.f32.mrb[0].mxu0
      %v2139 = vadd.f32 0.0, %v2138
      %v2140 = vpop.f32.mrb[0].mxu0
      %2141 = vmatprep.mubr.bf16.mxu0 0
      %2142 = vmatmul.mubr.bf16.gmra.mrb[0].mxu0 %v2028
      %v2143 = vpop.f32.mrb[0].mxu0
      %v2144 = vadd.f32 0.0, %v2143
      %v2145 = vpop.f32.mrb[0].mxu0
      %v2146 = vpop.f32.mrb[0].mxu0
      %v2147 = vadd.f32 0.0, %v2146
      %v2148 = vpop.f32.mrb[0].mxu0
      %2149 = vmatprep.mubr.bf16.mxu0 0
      %2150 = vmatmul.mubr.bf16.gmra.mrb[0].mxu0 %v2031
      %v2151 = vpop.f32.mrb[0].mxu0
      %v2152 = vadd.f32 0.0, %v2151
      %v2153 = vpop.f32.mrb[0].mxu0
      %v2154 = vpop.f32.mrb[0].mxu0
      %v2155 = vadd.f32 0.0, %v2154
      %v2156 = vpop.f32.mrb[0].mxu0
      %2157 = vmatprep.mubr.bf16.mxu0 0
      %2158 = vmatmul.mubr.bf16.gmra.mrb[0].mxu0 %v2034
      %v2159 = vpop.f32.mrb[0].mxu0
      %v2160 = vadd.f32 0.0, %v2159
      %v2161 = vpop.f32.mrb[0].mxu0
      %v2162 = vpop.f32.mrb[0].mxu0
      %v2163 = vadd.f32 0.0, %v2162
      %v2164 = vpop.f32.mrb[0].mxu0
      %2165 = vmatprep.mubr.bf16.mxu0 0
      %2166 = vmatmul.mubr.bf16.gmra.mrb[0].mxu0 %v2037
      %v2167 = vpop.f32.mrb[0].mxu0
      %v2168 = vadd.f32 0.0, %v2167
      %v2169 = vpop.f32.mrb[0].mxu0
      %v2170 = vpop.f32.mrb[0].mxu0
      %v2171 = vadd.f32 0.0, %v2170
      %v2172 = vpop.f32.mrb[0].mxu0
      %2173 = vmatprep.mubr.bf16.mxu0 0
      %2174 = vmatmul.mubr.bf16.gmra.mrb[0].mxu0 %v2040
      %v2175 = vpop.f32.mrb[0].mxu0
      %v2176 = vadd.f32 0.0, %v2175
      %v2177 = vpop.f32.mrb[0].mxu0
      %v2178 = vpop.f32.mrb[0].mxu0
      %v2179 = vadd.f32 0.0, %v2178
      %v2180 = vpop.f32.mrb[0].mxu0
      %2181 = vmatprep.mubr.bf16.mxu0 0
      %2182 = vmatmul.mubr.bf16.gmra.mrb[0].mxu0 %v2043
      %v2183 = vpop.f32.mrb[0].mxu0
      %v2184 = vadd.f32 0.0, %v2183
      %v2185 = vpop.f32.mrb[0].mxu0
      %v2186 = vpop.f32.mrb[0].mxu0
      %v2187 = vadd.f32 0.0, %v2186
      %v2188 = vpop.f32.mrb[0].mxu0
      %2189 = vmatprep.mubr.bf16.mxu0 0
      %2190 = vmatmul.mubr.bf16.gmra.mrb[0].mxu0 %v2046
      %v2191 = vpop.f32.mrb[0].mxu0
      %v2192 = vadd.f32 0.0, %v2191
      %v2193 = vpop.f32.mrb[0].mxu0
      %v2194 = vpop.f32.mrb[0].mxu0
      %v2195 = vadd.f32 0.0, %v2194
      %v2196 = vpop.f32.mrb[0].mxu0
      %2197 = vmatprep.mubr.bf16.mxu0 0
      %2198 = vmatmul.mubr.bf16.gmra.mrb[0].mxu0 %v2049
      %v2199 = vpop.f32.mrb[0].mxu0
      %v2200 = vadd.f32 0.0, %v2199
      %v2201 = vpop.f32.mrb[0].mxu0
      %v2202 = vpop.f32.mrb[0].mxu0
      %v2203 = vadd.f32 0.0, %v2202
      %v2204 = vpop.f32.mrb[0].mxu0
      %2205 = vmatprep.mubr.bf16.mxu0 0
      %2206 = vmatmul.mubr.bf16.gmra.mrb[0].mxu0 %v2052
      %v2207 = vpop.f32.mrb[0].mxu0
      %v2208 = vadd.f32 0.0, %v2207
      %v2209 = vpop.f32.mrb[0].mxu0
      %v2210 = vpop.f32.mrb[0].mxu0
      %v2211 = vadd.f32 0.0, %v2210
      %v2212 = vpop.f32.mrb[0].mxu0
      %2213 = vmatprep.mubr.bf16.mxu0 0
      %2214 = vmatmul.mubr.bf16.gmra.mrb[0].mxu0 %v2055
      %v2215 = vpop.f32.mrb[0].mxu0
      %v2216 = vadd.f32 0.0, %v2215
      %v2217 = vpop.f32.mrb[0].mxu0
      %v2218 = vpop.f32.mrb[0].mxu0
      %v2219 = vadd.f32 0.0, %v2218
      %v2220 = vpop.f32.mrb[0].mxu0
      %2221 = vmatprep.mubr.bf16.mxu0 0
      %2222 = vmatmul.mubr.bf16.gmra.mrb[0].mxu0 %v2058
      %v2223 = vpop.f32.mrb[0].mxu0
      %v2224 = vadd.f32 0.0, %v2223
      %v2225 = vpop.f32.mrb[0].mxu0
      %v2226 = vpop.f32.mrb[0].mxu0
      %v2227 = vadd.f32 0.0, %v2226
      %v2228 = vpop.f32.mrb[0].mxu0
      %2229 = vmatprep.mubr.bf16.mxu0 0
      %2230 = vmatmul.mubr.bf16.gmra.mrb[0].mxu0 %v2061
      %v2231 = vpop.f32.mrb[0].mxu0
      %v2232 = vadd.f32 0.0, %v2231
      %v2233 = vpop.f32.mrb[0].mxu0
      %v2234 = vpop.f32.mrb[0].mxu0
      %v2235 = vadd.f32 0.0, %v2234
      %v2236 = vpop.f32.mrb[0].mxu0
      %2237 = vmatprep.mubr.bf16.mxu0 0
      %2238 = vmatmul.mubr.bf16.gmra.mrb[0].mxu0 %v2064
      %v2239 = vpop.f32.mrb[0].mxu0
      %v2240 = vadd.f32 0.0, %v2239
      %v2241 = vpop.f32.mrb[0].mxu0
      %v2242 = vpop.f32.mrb[0].mxu0
      %v2243 = vadd.f32 0.0, %v2242
      %v2244 = vpop.f32.mrb[0].mxu0
      %2245 = vdwg.mxu0
      %v2246 = vadd.f32 %v1933, %v2104
      %v2247 = vadd.f32 %v1934, %v2107
      %v2248 = vadd.f32 %v1935, %v2112
      %v2249 = vadd.f32 %v1936, %v2115
      %v2250 = vadd.f32 %v1937, %v2120
      %v2251 = vadd.f32 %v1938, %v2123
      %v2252 = vadd.f32 %v1939, %v2128
      %v2253 = vadd.f32 %v1940, %v2131
      %v2254 = vadd.f32 %v1941, %v2136
      %v2255 = vadd.f32 %v1942, %v2139
      %v2256 = vadd.f32 %v1943, %v2144
      %v2257 = vadd.f32 %v1944, %v2147
      %v2258 = vadd.f32 %v1945, %v2152
      %v2259 = vadd.f32 %v1946, %v2155
      %v2260 = vadd.f32 %v1947, %v2160
      %v2261 = vadd.f32 %v1948, %v2163
      %v2262 = vadd.f32 %v1949, %v2168
      %v2263 = vadd.f32 %v1950, %v2171
      %v2264 = vadd.f32 %v1951, %v2176
      %v2265 = vadd.f32 %v1952, %v2179
      %v2266 = vadd.f32 %v1953, %v2184
      %v2267 = vadd.f32 %v1954, %v2187
      %v2268 = vadd.f32 %v1955, %v2192
      %v2269 = vadd.f32 %v1956, %v2195
      %v2270 = vadd.f32 %v1957, %v2200
      %v2271 = vadd.f32 %v1958, %v2203
      %v2272 = vadd.f32 %v1959, %v2208
      %v2273 = vadd.f32 %v1960, %v2211
      %v2274 = vadd.f32 %v1961, %v2216
      %v2275 = vadd.f32 %v1962, %v2219
      %v2276 = vadd.f32 %v1963, %v2224
      %v2277 = vadd.f32 %v1964, %v2227
      %v2278 = vadd.f32 %v1965, %v2232
      %v2279 = vadd.f32 %v1966, %v2235
      %v2280 = vadd.f32 %v1967, %v2240
      %v2281 = vadd.f32 %v1968, %v2243
      %v2282 = vld [vmem:[%s219 + $0xa0] sm:$0x7]
      %v2283 = vld [vmem:[%s1 + $0x8] sm:$0xc]
      %v2285 = vunpack.c.l.b16 %v2282
      %v2286 = vpack.c.b16 %v2285, %v2285
      %vm2287 = vsmask.f32 5376
      %v2289 = vshrl.u32 %v1973, 16
      %v2291 = vrot.slane %v2289, 2
      %v2292 = vshll.u32 %v1973, 16
      %v2294 = vrot.slane %v2292, 3
      %v2295 = vor.u32 %v2291, %v2294
      %v2296 = vrot.slane %v1534, 2
      %v2297 = vrot.slane %v1537, 3
      %v2298 = vor.u32 %v2296, %v2297
      %v2299 = vsel %vm2287, %v2295, %v2298
      %v2300 = vrot.slane %v1543, 2
      %v2301 = vrot.slane %v1546, 3
      %v2302 = vor.u32 %v2300, %v2301
      %v2303 = vsel %vm2287, %v2298, %v2302
      %v2304 = vrot.slane %v1552, 2
      %v2305 = vrot.slane %v1555, 3
      %v2306 = vor.u32 %v2304, %v2305
      %v2307 = vsel %vm2287, %v2302, %v2306
      %v2308 = vrot.slane %v1561, 2
      %v2309 = vrot.slane %v1564, 3
      %v2310 = vor.u32 %v2308, %v2309
      %v2311 = vsel %vm2287, %v2306, %v2310
      %v2312 = vrot.slane %v1570, 2
      %v2313 = vrot.slane %v1573, 3
      %v2314 = vor.u32 %v2312, %v2313
      %v2315 = vsel %vm2287, %v2310, %v2314
      %v2316 = vrot.slane %v1579, 2
      %v2317 = vrot.slane %v1582, 3
      %v2318 = vor.u32 %v2316, %v2317
      %v2319 = vsel %vm2287, %v2314, %v2318
      %v2320 = vrot.slane %v1588, 2
      %v2321 = vrot.slane %v1591, 3
      %v2322 = vor.u32 %v2320, %v2321
      %v2323 = vsel %vm2287, %v2318, %v2322
      %v2324 = vrot.slane %v1597, 2
      %v2325 = vrot.slane %v1600, 3
      %v2326 = vor.u32 %v2324, %v2325
      %v2327 = vsel %vm2287, %v2322, %v2326
      %v2328 = vrot.slane %v1606, 2
      %v2329 = vrot.slane %v1609, 3
      %v2330 = vor.u32 %v2328, %v2329
      %v2331 = vsel %vm2287, %v2326, %v2330
      %v2332 = vrot.slane %v1615, 2
      %v2333 = vrot.slane %v1618, 3
      %v2334 = vor.u32 %v2332, %v2333
      %v2335 = vsel %vm2287, %v2330, %v2334
      %v2336 = vrot.slane %v1624, 2
      %v2337 = vrot.slane %v1627, 3
      %v2338 = vor.u32 %v2336, %v2337
      %v2339 = vsel %vm2287, %v2334, %v2338
      %v2340 = vrot.slane %v1633, 2
      %v2341 = vrot.slane %v1636, 3
      %v2342 = vor.u32 %v2340, %v2341
      %v2343 = vsel %vm2287, %v2338, %v2342
      %v2344 = vrot.slane %v1642, 2
      %v2345 = vrot.slane %v1645, 3
      %v2346 = vor.u32 %v2344, %v2345
      %v2347 = vsel %vm2287, %v2342, %v2346
      %v2348 = vrot.slane %v1651, 2
      %v2349 = vrot.slane %v1654, 3
      %v2350 = vor.u32 %v2348, %v2349
      %v2351 = vsel %vm2287, %v2346, %v2350
      %v2352 = vrot.slane %v1660, 2
      %v2353 = vrot.slane %v1663, 3
      %v2354 = vor.u32 %v2352, %v2353
      %v2355 = vsel %vm2287, %v2350, %v2354
      %v2356 = vrot.slane %v1669, 2
      %v2357 = vrot.slane %v1672, 3
      %v2358 = vor.u32 %v2356, %v2357
      %v2359 = vsel %vm2287, %v2354, %v2358
      %v2360 = vrot.slane %v1678, 2
      %v2361 = vrot.slane %v1681, 3
      %v2362 = vor.u32 %v2360, %v2361
      %v2363 = vsel %vm2287, %v2358, %v2362
      %v2365 = vshrl.u32 %v2286, 16
      %v2367 = vrot.slane %v2365, 2
      %v2368 = vshll.u32 %v2286, 16
      %v2370 = vrot.slane %v2368, 3
      %v2371 = vor.u32 %v2367, %v2370
      %v2372 = vsel %vm2287, %v2362, %v2371
      %v2374 = vunpack.c.l.b16 %v2283
      %v2375 = vpack.c.b16 %v2374, %v2374
      %v2376 = vrot.slane %v2375, 2
      %v2378 = vsel %vm411, %v2299, 0
      %v2381 = vsel %vm411, %v2303, 0
      %v2384 = vsel %vm411, %v2307, 0
      %v2387 = vsel %vm411, %v2311, 0
      %v2390 = vsel %vm411, %v2315, 0
      %v2393 = vsel %vm411, %v2319, 0
      %v2396 = vsel %vm411, %v2323, 0
      %v2399 = vsel %vm411, %v2327, 0
      %v2402 = vsel %vm411, %v2331, 0
      %v2405 = vsel %vm411, %v2335, 0
      %v2408 = vsel %vm411, %v2339, 0
      %v2411 = vsel %vm411, %v2343, 0
      %v2414 = vsel %vm411, %v2347, 0
      %v2417 = vsel %vm411, %v2351, 0
      %v2420 = vsel %vm411, %v2355, 0
      %v2423 = vsel %vm411, %v2359, 0
      %v2426 = vsel %vm411, %v2363, 0
      %v2429 = vsel %vm411, %v2372, 0
      %v2432 = vsel %vm466, %v2376, 0
      %2434 = vmatprep.subr.bf16.mxu0 0
      %2435 = vmatpush1.bf16.msra.mxu0 %v2432
      %2436 = vmatprep.subr.bf16.mxu0 0
      %2437 = vmatpush1.bf16.msra.mxu0 0
      %2438 = vmatprep.subr.bf16.mxu0 0
      %2439 = vmatpush1.bf16.msra.mxu0 0
      %2440 = vmatprep.subr.bf16.mxu0 0
      %2441 = vmatpush1.bf16.msra.mxu0 0
      %2442 = vmatprep.subr.bf16.mxu0 0
      %2443 = vmatpush1.bf16.msra.mxu0 0
      %2444 = vmatprep.subr.bf16.mxu0 0
      %2445 = vmatpush1.bf16.msra.mxu0 0
      %2446 = vmatprep.subr.bf16.mxu0 0
      %2447 = vmatpush1.bf16.msra.mxu0 0
      %2448 = vmatprep.subr.bf16.mxu0 0
      %2449 = vmatpush1.bf16.msra.mxu0 0
      %2450 = vmatprep.subr.bf16.mxu0 0
      %2451 = vmatpush1.bf16.msra.mxu0 0
      %2452 = vmatprep.subr.bf16.mxu0 0
      %2453 = vmatpush1.bf16.msra.mxu0 0
      %2454 = vmatprep.subr.bf16.mxu0 0
      %2455 = vmatpush1.bf16.msra.mxu0 0
      %2456 = vmatprep.subr.bf16.mxu0 0
      %2457 = vmatpush1.bf16.msra.mxu0 0
      %2458 = vmatprep.subr.bf16.mxu0 0
      %2459 = vmatpush1.bf16.msra.mxu0 0
      %2460 = vmatprep.subr.bf16.mxu0 0
      %2461 = vmatpush1.bf16.msra.mxu0 0
      %2462 = vmatprep.subr.bf16.mxu0 0
      %2463 = vmatpush1.bf16.msra.mxu0 0
      %2464 = vmatprep.subr.bf16.mxu0 0
      %2465 = vmatpush1.bf16.msra.mxu0 0
      %2466 = vmatprep.mubr.bf16.mxu0 0
      %2467 = vmatmul.mubr.bf16.gmra.mrb[0].mxu0 %v2378
      %v2468 = vpop.f32.mrb[0].mxu0
      %v2469 = vadd.f32 0.0, %v2468
      %v2470 = vpop.f32.mrb[0].mxu0
      %v2471 = vpop.f32.mrb[0].mxu0
      %v2472 = vadd.f32 0.0, %v2471
      %v2473 = vpop.f32.mrb[0].mxu0
      %2474 = vmatprep.mubr.bf16.mxu0 0
      %2475 = vmatmul.mubr.bf16.gmra.mrb[0].mxu0 %v2381
      %v2476 = vpop.f32.mrb[0].mxu0
      %v2477 = vadd.f32 0.0, %v2476
      %v2478 = vpop.f32.mrb[0].mxu0
      %v2479 = vpop.f32.mrb[0].mxu0
      %v2480 = vadd.f32 0.0, %v2479
      %v2481 = vpop.f32.mrb[0].mxu0
      %2482 = vmatprep.mubr.bf16.mxu0 0
      %2483 = vmatmul.mubr.bf16.gmra.mrb[0].mxu0 %v2384
      %v2484 = vpop.f32.mrb[0].mxu0
      %v2485 = vadd.f32 0.0, %v2484
      %v2486 = vpop.f32.mrb[0].mxu0
      %v2487 = vpop.f32.mrb[0].mxu0
      %v2488 = vadd.f32 0.0, %v2487
      %v2489 = vpop.f32.mrb[0].mxu0
      %2490 = vmatprep.mubr.bf16.mxu0 0
      %2491 = vmatmul.mubr.bf16.gmra.mrb[0].mxu0 %v2387
      %v2492 = vpop.f32.mrb[0].mxu0
      %v2493 = vadd.f32 0.0, %v2492
      %v2494 = vpop.f32.mrb[0].mxu0
      %v2495 = vpop.f32.mrb[0].mxu0
      %v2496 = vadd.f32 0.0, %v2495
      %v2497 = vpop.f32.mrb[0].mxu0
      %2498 = vmatprep.mubr.bf16.mxu0 0
      %2499 = vmatmul.mubr.bf16.gmra.mrb[0].mxu0 %v2390
      %v2500 = vpop.f32.mrb[0].mxu0
      %v2501 = vadd.f32 0.0, %v2500
      %v2502 = vpop.f32.mrb[0].mxu0
      %v2503 = vpop.f32.mrb[0].mxu0
      %v2504 = vadd.f32 0.0, %v2503
      %v2505 = vpop.f32.mrb[0].mxu0
      %2506 = vmatprep.mubr.bf16.mxu0 0
      %2507 = vmatmul.mubr.bf16.gmra.mrb[0].mxu0 %v2393
      %v2508 = vpop.f32.mrb[0].mxu0
      %v2509 = vadd.f32 0.0, %v2508
      %v2510 = vpop.f32.mrb[0].mxu0
      %v2511 = vpop.f32.mrb[0].mxu0
      %v2512 = vadd.f32 0.0, %v2511
      %v2513 = vpop.f32.mrb[0].mxu0
      %2514 = vmatprep.mubr.bf16.mxu0 0
      %2515 = vmatmul.mubr.bf16.gmra.mrb[0].mxu0 %v2396
      %v2516 = vpop.f32.mrb[0].mxu0
      %v2517 = vadd.f32 0.0, %v2516
      %v2518 = vpop.f32.mrb[0].mxu0
      %v2519 = vpop.f32.mrb[0].mxu0
      %v2520 = vadd.f32 0.0, %v2519
      %v2521 = vpop.f32.mrb[0].mxu0
      %2522 = vmatprep.mubr.bf16.mxu0 0
      %2523 = vmatmul.mubr.bf16.gmra.mrb[0].mxu0 %v2399
      %v2524 = vpop.f32.mrb[0].mxu0
      %v2525 = vadd.f32 0.0, %v2524
      %v2526 = vpop.f32.mrb[0].mxu0
      %v2527 = vpop.f32.mrb[0].mxu0
      %v2528 = vadd.f32 0.0, %v2527
      %v2529 = vpop.f32.mrb[0].mxu0
      %2530 = vmatprep.mubr.bf16.mxu0 0
      %2531 = vmatmul.mubr.bf16.gmra.mrb[0].mxu0 %v2402
      %v2532 = vpop.f32.mrb[0].mxu0
      %v2533 = vadd.f32 0.0, %v2532
      %v2534 = vpop.f32.mrb[0].mxu0
      %v2535 = vpop.f32.mrb[0].mxu0
      %v2536 = vadd.f32 0.0, %v2535
      %v2537 = vpop.f32.mrb[0].mxu0
      %2538 = vmatprep.mubr.bf16.mxu0 0
      %2539 = vmatmul.mubr.bf16.gmra.mrb[0].mxu0 %v2405
      %v2540 = vpop.f32.mrb[0].mxu0
      %v2541 = vadd.f32 0.0, %v2540
      %v2542 = vpop.f32.mrb[0].mxu0
      %v2543 = vpop.f32.mrb[0].mxu0
      %v2544 = vadd.f32 0.0, %v2543
      %v2545 = vpop.f32.mrb[0].mxu0
      %2546 = vmatprep.mubr.bf16.mxu0 0
      %2547 = vmatmul.mubr.bf16.gmra.mrb[0].mxu0 %v2408
      %v2548 = vpop.f32.mrb[0].mxu0
      %v2549 = vadd.f32 0.0, %v2548
      %v2550 = vpop.f32.mrb[0].mxu0
      %v2551 = vpop.f32.mrb[0].mxu0
      %v2552 = vadd.f32 0.0, %v2551
      %v2553 = vpop.f32.mrb[0].mxu0
      %2554 = vmatprep.mubr.bf16.mxu0 0
      %2555 = vmatmul.mubr.bf16.gmra.mrb[0].mxu0 %v2411
      %v2556 = vpop.f32.mrb[0].mxu0
      %v2557 = vadd.f32 0.0, %v2556
      %v2558 = vpop.f32.mrb[0].mxu0
      %v2559 = vpop.f32.mrb[0].mxu0
      %v2560 = vadd.f32 0.0, %v2559
      %v2561 = vpop.f32.mrb[0].mxu0
      %2562 = vmatprep.mubr.bf16.mxu0 0
      %2563 = vmatmul.mubr.bf16.gmra.mrb[0].mxu0 %v2414
      %v2564 = vpop.f32.mrb[0].mxu0
      %v2565 = vadd.f32 0.0, %v2564
      %v2566 = vpop.f32.mrb[0].mxu0
      %v2567 = vpop.f32.mrb[0].mxu0
      %v2568 = vadd.f32 0.0, %v2567
      %v2569 = vpop.f32.mrb[0].mxu0
      %2570 = vmatprep.mubr.bf16.mxu0 0
      %2571 = vmatmul.mubr.bf16.gmra.mrb[0].mxu0 %v2417
      %v2572 = vpop.f32.mrb[0].mxu0
      %v2573 = vadd.f32 0.0, %v2572
      %v2574 = vpop.f32.mrb[0].mxu0
      %v2575 = vpop.f32.mrb[0].mxu0
      %v2576 = vadd.f32 0.0, %v2575
      %v2577 = vpop.f32.mrb[0].mxu0
      %2578 = vmatprep.mubr.bf16.mxu0 0
      %2579 = vmatmul.mubr.bf16.gmra.mrb[0].mxu0 %v2420
      %v2580 = vpop.f32.mrb[0].mxu0
      %v2581 = vadd.f32 0.0, %v2580
      %v2582 = vpop.f32.mrb[0].mxu0
      %v2583 = vpop.f32.mrb[0].mxu0
      %v2584 = vadd.f32 0.0, %v2583
      %v2585 = vpop.f32.mrb[0].mxu0
      %2586 = vmatprep.mubr.bf16.mxu0 0
      %2587 = vmatmul.mubr.bf16.gmra.mrb[0].mxu0 %v2423
      %v2588 = vpop.f32.mrb[0].mxu0
      %v2589 = vadd.f32 0.0, %v2588
      %v2590 = vpop.f32.mrb[0].mxu0
      %v2591 = vpop.f32.mrb[0].mxu0
      %v2592 = vadd.f32 0.0, %v2591
      %v2593 = vpop.f32.mrb[0].mxu0
      %2594 = vmatprep.mubr.bf16.mxu0 0
      %2595 = vmatmul.mubr.bf16.gmra.mrb[0].mxu0 %v2426
      %v2596 = vpop.f32.mrb[0].mxu0
      %v2597 = vadd.f32 0.0, %v2596
      %v2598 = vpop.f32.mrb[0].mxu0
      %v2599 = vpop.f32.mrb[0].mxu0
      %v2600 = vadd.f32 0.0, %v2599
      %v2601 = vpop.f32.mrb[0].mxu0
      %2602 = vmatprep.mubr.bf16.mxu0 0
      %2603 = vmatmul.mubr.bf16.gmra.mrb[0].mxu0 %v2429
      %v2604 = vpop.f32.mrb[0].mxu0
      %v2605 = vadd.f32 0.0, %v2604
      %v2606 = vpop.f32.mrb[0].mxu0
      %v2607 = vpop.f32.mrb[0].mxu0
      %v2608 = vadd.f32 0.0, %v2607
      %v2609 = vpop.f32.mrb[0].mxu0
      %2610 = vdwg.mxu0
      %v2611 = vadd.f32 %v2246, %v2469
      %v2612 = vadd.f32 %v2247, %v2472
      %v2613 = vadd.f32 %v2248, %v2477
      %v2614 = vadd.f32 %v2249, %v2480
      %v2615 = vadd.f32 %v2250, %v2485
      %v2616 = vadd.f32 %v2251, %v2488
      %v2617 = vadd.f32 %v2252, %v2493
      %v2618 = vadd.f32 %v2253, %v2496
      %v2619 = vadd.f32 %v2254, %v2501
      %v2620 = vadd.f32 %v2255, %v2504
      %v2621 = vadd.f32 %v2256, %v2509
      %v2622 = vadd.f32 %v2257, %v2512
      %v2623 = vadd.f32 %v2258, %v2517
      %v2624 = vadd.f32 %v2259, %v2520
      %v2625 = vadd.f32 %v2260, %v2525
      %v2626 = vadd.f32 %v2261, %v2528
      %v2627 = vadd.f32 %v2262, %v2533
      %v2628 = vadd.f32 %v2263, %v2536
      %v2629 = vadd.f32 %v2264, %v2541
      %v2630 = vadd.f32 %v2265, %v2544
      %v2631 = vadd.f32 %v2266, %v2549
      %v2632 = vadd.f32 %v2267, %v2552
      %v2633 = vadd.f32 %v2268, %v2557
      %v2634 = vadd.f32 %v2269, %v2560
      %v2635 = vadd.f32 %v2270, %v2565
      %v2636 = vadd.f32 %v2271, %v2568
      %v2637 = vadd.f32 %v2272, %v2573
      %v2638 = vadd.f32 %v2273, %v2576
      %v2639 = vadd.f32 %v2274, %v2581
      %v2640 = vadd.f32 %v2275, %v2584
      %v2641 = vadd.f32 %v2276, %v2589
      %v2642 = vadd.f32 %v2277, %v2592
      %v2643 = vadd.f32 %v2278, %v2597
      %v2644 = vadd.f32 %v2279, %v2600
      %v2645 = vadd.f32 %v2280, %v2605
      %v2646 = vadd.f32 %v2281, %v2608
      %v2647 = vld [vmem:[%s219 + $0x18] sm:$0xc]
      %v2648 = vld [vmem:[%s219 + $0x1c] sm:$0xf]
      %v2649 = vld [vmem:[%s219 + $0x20] sm:$0xf]
      %v2650 = vld [vmem:[%s219 + $0x24] sm:$0xf]
      %v2651 = vld [vmem:[%s219 + $0x28] sm:$0xf]
      %v2652 = vld [vmem:[%s219 + $0x2c] sm:$0xf]
      %v2653 = vld [vmem:[%s219 + $0x30] sm:$0xf]
      %v2654 = vld [vmem:[%s219 + $0x34] sm:$0xf]
      %v2655 = vld [vmem:[%s219 + $0x38] sm:$0xf]
      %v2656 = vld [vmem:[%s219 + $0x3c] sm:$0xf]
      %v2657 = vld [vmem:[%s219 + $0x40] sm:$0xf]
      %v2658 = vld [vmem:[%s219 + $0x44] sm:$0xf]
      %v2659 = vld [vmem:[%s219 + $0x48] sm:$0xf]
      %v2660 = vld [vmem:[%s219 + $0x4c] sm:$0xf]
      %v2661 = vld [vmem:[%s219 + $0x50] sm:$0xf]
      %v2662 = vld [vmem:[%s219 + $0x54] sm:$0xf]
      %v2663 = vld [vmem:[%s219 + $0x58] sm:$0xf]
      %v2664 = vld [vmem:[%s219 + $0x5c] sm:$0xf]
      %v2665 = vld [vmem:[%s219 + $0x60] sm:$0xf]
      %v2666 = vld [vmem:[%s219 + $0x64] sm:$0xf]
      %v2667 = vld [vmem:[%s219 + $0x68] sm:$0xf]
      %v2668 = vld [vmem:[%s219 + $0x6c] sm:$0xf]
      %v2669 = vld [vmem:[%s219 + $0x70] sm:$0xf]
      %v2670 = vld [vmem:[%s219 + $0x74] sm:$0xf]
      %v2671 = vld [vmem:[%s219 + $0x78] sm:$0xf]
      %v2672 = vld [vmem:[%s219 + $0x7c] sm:$0xf]
      %v2673 = vld [vmem:[%s219 + $0x80] sm:$0xf]
      %v2674 = vld [vmem:[%s219 + $0x84] sm:$0xf]
      %v2675 = vld [vmem:[%s219 + $0x88] sm:$0xf]
      %v2676 = vld [vmem:[%s219 + $0x8c] sm:$0xf]
      %v2677 = vld [vmem:[%s219 + $0x90] sm:$0xf]
      %v2678 = vld [vmem:[%s219 + $0x94] sm:$0xf]
      %v2679 = vld [vmem:[%s219 + $0x98] sm:$0xf]
      %v2680 = vld [vmem:[%s219 + $0x9c] sm:$0xf]
      %v2681 = vld [vmem:[%s219 + $0xa0] sm:$0xf]
      %v2682 = vld [vmem:[%s219 + $0xa4] sm:$0xf]
      %v2683 = vld [vmem:[%s219 + $0xa8] sm:$0x7]
      %v2684 = vld [vmem:[%s1 + $0xc] sm:$0x3]
      %v2722 = vunpack.c.l.b16 %v2647
      %v2723 = vunpack.c.l.b16 %v2648
      %v2724 = vunpack.c.l.b16 %v2649
      %v2725 = vunpack.c.l.b16 %v2650
      %v2726 = vunpack.c.l.b16 %v2651
      %v2727 = vunpack.c.l.b16 %v2652
      %v2728 = vunpack.c.l.b16 %v2653
      %v2729 = vunpack.c.l.b16 %v2654
      %v2730 = vunpack.c.l.b16 %v2655
      %v2731 = vunpack.c.l.b16 %v2656
      %v2732 = vunpack.c.l.b16 %v2657
      %v2733 = vunpack.c.l.b16 %v2658
      %v2734 = vunpack.c.l.b16 %v2659
      %v2735 = vunpack.c.l.b16 %v2660
      %v2736 = vunpack.c.l.b16 %v2661
      %v2737 = vunpack.c.l.b16 %v2662
      %v2738 = vunpack.c.l.b16 %v2663
      %v2739 = vunpack.c.l.b16 %v2664
      %v2740 = vunpack.c.l.b16 %v2665
      %v2741 = vunpack.c.l.b16 %v2666
      %v2742 = vunpack.c.l.b16 %v2667
      %v2743 = vunpack.c.l.b16 %v2668
      %v2744 = vunpack.c.l.b16 %v2669
      %v2745 = vunpack.c.l.b16 %v2670
      %v2746 = vunpack.c.l.b16 %v2671
      %v2747 = vunpack.c.l.b16 %v2672
      %v2748 = vunpack.c.l.b16 %v2673
      %v2749 = vunpack.c.l.b16 %v2674
      %v2750 = vunpack.c.l.b16 %v2675
      %v2751 = vunpack.c.l.b16 %v2676
      %v2752 = vunpack.c.l.b16 %v2677
      %v2753 = vunpack.c.l.b16 %v2678
      %v2754 = vunpack.c.l.b16 %v2679
      %v2755 = vunpack.c.l.b16 %v2680
      %v2756 = vunpack.c.l.b16 %v2681
      %v2757 = vunpack.c.l.b16 %v2682
      %v2758 = vunpack.c.l.b16 %v2683
      %v2759 = vpack.c.b16 %v2723, %v2722
      %v2760 = vpack.c.b16 %v2725, %v2724
      %v2761 = vpack.c.b16 %v2727, %v2726
      %v2762 = vpack.c.b16 %v2729, %v2728
      %v2763 = vpack.c.b16 %v2731, %v2730
      %v2764 = vpack.c.b16 %v2733, %v2732
      %v2765 = vpack.c.b16 %v2735, %v2734
      %v2766 = vpack.c.b16 %v2737, %v2736
      %v2767 = vpack.c.b16 %v2739, %v2738
      %v2768 = vpack.c.b16 %v2741, %v2740
      %v2769 = vpack.c.b16 %v2743, %v2742
      %v2770 = vpack.c.b16 %v2745, %v2744
      %v2771 = vpack.c.b16 %v2747, %v2746
      %v2772 = vpack.c.b16 %v2749, %v2748
      %v2773 = vpack.c.b16 %v2751, %v2750
      %v2774 = vpack.c.b16 %v2753, %v2752
      %v2775 = vpack.c.b16 %v2755, %v2754
      %v2776 = vpack.c.b16 %v2757, %v2756
      %v2777 = vpack.c.b16 %v2758, %v2758
      %v2779 = vshrl.u32 %v2759, 16
      %v2781 = vrot.slane %v2779, 2
      %v2782 = vshll.u32 %v2759, 16
      %v2784 = vrot.slane %v2782, 3
      %v2785 = vor.u32 %v2781, %v2784
      %v2787 = vshrl.u32 %v2760, 16
      %v2789 = vrot.slane %v2787, 2
      %v2790 = vshll.u32 %v2760, 16
      %v2792 = vrot.slane %v2790, 3
      %v2793 = vor.u32 %v2789, %v2792
      %v2794 = vsel %vm2287, %v2785, %v2793
      %v2796 = vshrl.u32 %v2761, 16
      %v2798 = vrot.slane %v2796, 2
      %v2799 = vshll.u32 %v2761, 16
      %v2801 = vrot.slane %v2799, 3
      %v2802 = vor.u32 %v2798, %v2801
      %v2803 = vsel %vm2287, %v2793, %v2802
      %v2805 = vshrl.u32 %v2762, 16
      %v2807 = vrot.slane %v2805, 2
      %v2808 = vshll.u32 %v2762, 16
      %v2810 = vrot.slane %v2808, 3
      %v2811 = vor.u32 %v2807, %v2810
      %v2812 = vsel %vm2287, %v2802, %v2811
      %v2814 = vshrl.u32 %v2763, 16
      %v2816 = vrot.slane %v2814, 2
      %v2817 = vshll.u32 %v2763, 16
      %v2819 = vrot.slane %v2817, 3
      %v2820 = vor.u32 %v2816, %v2819
      %v2821 = vsel %vm2287, %v2811, %v2820
      %v2823 = vshrl.u32 %v2764, 16
      %v2825 = vrot.slane %v2823, 2
      %v2826 = vshll.u32 %v2764, 16
      %v2828 = vrot.slane %v2826, 3
      %v2829 = vor.u32 %v2825, %v2828
      %v2830 = vsel %vm2287, %v2820, %v2829
      %v2832 = vshrl.u32 %v2765, 16
      %v2834 = vrot.slane %v2832, 2
      %v2835 = vshll.u32 %v2765, 16
      %v2837 = vrot.slane %v2835, 3
      %v2838 = vor.u32 %v2834, %v2837
      %v2839 = vsel %vm2287, %v2829, %v2838
      %v2841 = vshrl.u32 %v2766, 16
      %v2843 = vrot.slane %v2841, 2
      %v2844 = vshll.u32 %v2766, 16
      %v2846 = vrot.slane %v2844, 3
      %v2847 = vor.u32 %v2843, %v2846
      %v2848 = vsel %vm2287, %v2838, %v2847
      %v2850 = vshrl.u32 %v2767, 16
      %v2852 = vrot.slane %v2850, 2
      %v2853 = vshll.u32 %v2767, 16
      %v2855 = vrot.slane %v2853, 3
      %v2856 = vor.u32 %v2852, %v2855
      %v2857 = vsel %vm2287, %v2847, %v2856
      %v2859 = vshrl.u32 %v2768, 16
      %v2861 = vrot.slane %v2859, 2
      %v2862 = vshll.u32 %v2768, 16
      %v2864 = vrot.slane %v2862, 3
      %v2865 = vor.u32 %v2861, %v2864
      %v2866 = vsel %vm2287, %v2856, %v2865
      %v2868 = vshrl.u32 %v2769, 16
      %v2870 = vrot.slane %v2868, 2
      %v2871 = vshll.u32 %v2769, 16
      %v2873 = vrot.slane %v2871, 3
      %v2874 = vor.u32 %v2870, %v2873
      %v2875 = vsel %vm2287, %v2865, %v2874
      %v2877 = vshrl.u32 %v2770, 16
      %v2879 = vrot.slane %v2877, 2
      %v2880 = vshll.u32 %v2770, 16
      %v2882 = vrot.slane %v2880, 3
      %v2883 = vor.u32 %v2879, %v2882
      %v2884 = vsel %vm2287, %v2874, %v2883
      %v2886 = vshrl.u32 %v2771, 16
      %v2888 = vrot.slane %v2886, 2
      %v2889 = vshll.u32 %v2771, 16
      %v2891 = vrot.slane %v2889, 3
      %v2892 = vor.u32 %v2888, %v2891
      %v2893 = vsel %vm2287, %v2883, %v2892
      %v2895 = vshrl.u32 %v2772, 16
      %v2897 = vrot.slane %v2895, 2
      %v2898 = vshll.u32 %v2772, 16
      %v2900 = vrot.slane %v2898, 3
      %v2901 = vor.u32 %v2897, %v2900
      %v2902 = vsel %vm2287, %v2892, %v2901
      %v2904 = vshrl.u32 %v2773, 16
      %v2906 = vrot.slane %v2904, 2
      %v2907 = vshll.u32 %v2773, 16
      %v2909 = vrot.slane %v2907, 3
      %v2910 = vor.u32 %v2906, %v2909
      %v2911 = vsel %vm2287, %v2901, %v2910
      %v2913 = vshrl.u32 %v2774, 16
      %v2915 = vrot.slane %v2913, 2
      %v2916 = vshll.u32 %v2774, 16
      %v2918 = vrot.slane %v2916, 3
      %v2919 = vor.u32 %v2915, %v2918
      %v2920 = vsel %vm2287, %v2910, %v2919
      %v2922 = vshrl.u32 %v2775, 16
      %v2924 = vrot.slane %v2922, 2
      %v2925 = vshll.u32 %v2775, 16
      %v2927 = vrot.slane %v2925, 3
      %v2928 = vor.u32 %v2924, %v2927
      %v2929 = vsel %vm2287, %v2919, %v2928
      %v2931 = vshrl.u32 %v2776, 16
      %v2933 = vrot.slane %v2931, 2
      %v2934 = vshll.u32 %v2776, 16
      %v2936 = vrot.slane %v2934, 3
      %v2937 = vor.u32 %v2933, %v2936
      %v2938 = vsel %vm2287, %v2928, %v2937
      %v2940 = vshrl.u32 %v2777, 16
      %v2942 = vrot.slane %v2940, 2
      %v2943 = vshll.u32 %v2777, 16
      %v2945 = vrot.slane %v2943, 3
      %v2946 = vor.u32 %v2942, %v2945
      %v2947 = vsel %vm2287, %v2937, %v2946
      %v2949 = vsel %vm411, %v2794, 0
      %v2952 = vsel %vm411, %v2803, 0
      %v2955 = vsel %vm411, %v2812, 0
      %v2958 = vsel %vm411, %v2821, 0
      %v2961 = vsel %vm411, %v2830, 0
      %v2964 = vsel %vm411, %v2839, 0
      %v2967 = vsel %vm411, %v2848, 0
      %v2970 = vsel %vm411, %v2857, 0
      %v2973 = vsel %vm411, %v2866, 0
      %v2976 = vsel %vm411, %v2875, 0
      %v2979 = vsel %vm411, %v2884, 0
      %v2982 = vsel %vm411, %v2893, 0
      %v2985 = vsel %vm411, %v2902, 0
      %v2988 = vsel %vm411, %v2911, 0
      %v2991 = vsel %vm411, %v2920, 0
      %v2994 = vsel %vm411, %v2929, 0
      %v2997 = vsel %vm411, %v2938, 0
      %v3000 = vsel %vm411, %v2947, 0
      %v3003 = vsel %vm466, %v2684, 0
      %3005 = vmatprep.subr.bf16.mxu0 0
      %3006 = vmatpush1.bf16.msra.mxu0 %v3003
      %3007 = vmatprep.subr.bf16.mxu0 0
      %3008 = vmatpush1.bf16.msra.mxu0 0
      %3009 = vmatprep.subr.bf16.mxu0 0
      %3010 = vmatpush1.bf16.msra.mxu0 0
      %3011 = vmatprep.subr.bf16.mxu0 0
      %3012 = vmatpush1.bf16.msra.mxu0 0
      %3013 = vmatprep.subr.bf16.mxu0 0
      %3014 = vmatpush1.bf16.msra.mxu0 0
      %3015 = vmatprep.subr.bf16.mxu0 0
      %3016 = vmatpush1.bf16.msra.mxu0 0
      %3017 = vmatprep.subr.bf16.mxu0 0
      %3018 = vmatpush1.bf16.msra.mxu0 0
      %3019 = vmatprep.subr.bf16.mxu0 0
      %3020 = vmatpush1.bf16.msra.mxu0 0
      %3021 = vmatprep.subr.bf16.mxu0 0
      %3022 = vmatpush1.bf16.msra.mxu0 0
      %3023 = vmatprep.subr.bf16.mxu0 0
      %3024 = vmatpush1.bf16.msra.mxu0 0
      %3025 = vmatprep.subr.bf16.mxu0 0
      %3026 = vmatpush1.bf16.msra.mxu0 0
      %3027 = vmatprep.subr.bf16.mxu0 0
      %3028 = vmatpush1.bf16.msra.mxu0 0
      %3029 = vmatprep.subr.bf16.mxu0 0
      %3030 = vmatpush1.bf16.msra.mxu0 0
      %3031 = vmatprep.subr.bf16.mxu0 0
      %3032 = vmatpush1.bf16.msra.mxu0 0
      %3033 = vmatprep.subr.bf16.mxu0 0
      %3034 = vmatpush1.bf16.msra.mxu0 0
      %3035 = vmatprep.subr.bf16.mxu0 0
      %3036 = vmatpush1.bf16.msra.mxu0 0
      %3037 = vmatprep.mubr.bf16.mxu0 0
      %3038 = vmatmul.mubr.bf16.gmra.mrb[0].mxu0 %v2949
      %v3039 = vpop.f32.mrb[0].mxu0
      %v3040 = vadd.f32 0.0, %v3039
      %v3041 = vpop.f32.mrb[0].mxu0
      %v3042 = vpop.f32.mrb[0].mxu0
      %v3043 = vadd.f32 0.0, %v3042
      %v3044 = vpop.f32.mrb[0].mxu0
      %3045 = vmatprep.mubr.bf16.mxu0 0
      %3046 = vmatmul.mubr.bf16.gmra.mrb[0].mxu0 %v2952
      %v3047 = vpop.f32.mrb[0].mxu0
      %v3048 = vadd.f32 0.0, %v3047
      %v3049 = vpop.f32.mrb[0].mxu0
      %v3050 = vpop.f32.mrb[0].mxu0
      %v3051 = vadd.f32 0.0, %v3050
      %v3052 = vpop.f32.mrb[0].mxu0
      %3053 = vmatprep.mubr.bf16.mxu0 0
      %3054 = vmatmul.mubr.bf16.gmra.mrb[0].mxu0 %v2955
      %v3055 = vpop.f32.mrb[0].mxu0
      %v3056 = vadd.f32 0.0, %v3055
      %v3057 = vpop.f32.mrb[0].mxu0
      %v3058 = vpop.f32.mrb[0].mxu0
      %v3059 = vadd.f32 0.0, %v3058
      %v3060 = vpop.f32.mrb[0].mxu0
      %3061 = vmatprep.mubr.bf16.mxu0 0
      %3062 = vmatmul.mubr.bf16.gmra.mrb[0].mxu0 %v2958
      %v3063 = vpop.f32.mrb[0].mxu0
      %v3064 = vadd.f32 0.0, %v3063
      %v3065 = vpop.f32.mrb[0].mxu0
      %v3066 = vpop.f32.mrb[0].mxu0
      %v3067 = vadd.f32 0.0, %v3066
      %v3068 = vpop.f32.mrb[0].mxu0
      %3069 = vmatprep.mubr.bf16.mxu0 0
      %3070 = vmatmul.mubr.bf16.gmra.mrb[0].mxu0 %v2961
      %v3071 = vpop.f32.mrb[0].mxu0
      %v3072 = vadd.f32 0.0, %v3071
      %v3073 = vpop.f32.mrb[0].mxu0
      %v3074 = vpop.f32.mrb[0].mxu0
      %v3075 = vadd.f32 0.0, %v3074
      %v3076 = vpop.f32.mrb[0].mxu0
      %3077 = vmatprep.mubr.bf16.mxu0 0
      %3078 = vmatmul.mubr.bf16.gmra.mrb[0].mxu0 %v2964
      %v3079 = vpop.f32.mrb[0].mxu0
      %v3080 = vadd.f32 0.0, %v3079
      %v3081 = vpop.f32.mrb[0].mxu0
      %v3082 = vpop.f32.mrb[0].mxu0
      %v3083 = vadd.f32 0.0, %v3082
      %v3084 = vpop.f32.mrb[0].mxu0
      %3085 = vmatprep.mubr.bf16.mxu0 0
      %3086 = vmatmul.mubr.bf16.gmra.mrb[0].mxu0 %v2967
      %v3087 = vpop.f32.mrb[0].mxu0
      %v3088 = vadd.f32 0.0, %v3087
      %v3089 = vpop.f32.mrb[0].mxu0
      %v3090 = vpop.f32.mrb[0].mxu0
      %v3091 = vadd.f32 0.0, %v3090
      %v3092 = vpop.f32.mrb[0].mxu0
      %3093 = vmatprep.mubr.bf16.mxu0 0
      %3094 = vmatmul.mubr.bf16.gmra.mrb[0].mxu0 %v2970
      %v3095 = vpop.f32.mrb[0].mxu0
      %v3096 = vadd.f32 0.0, %v3095
      %v3097 = vpop.f32.mrb[0].mxu0
      %v3098 = vpop.f32.mrb[0].mxu0
      %v3099 = vadd.f32 0.0, %v3098
      %v3100 = vpop.f32.mrb[0].mxu0
      %3101 = vmatprep.mubr.bf16.mxu0 0
      %3102 = vmatmul.mubr.bf16.gmra.mrb[0].mxu0 %v2973
      %v3103 = vpop.f32.mrb[0].mxu0
      %v3104 = vadd.f32 0.0, %v3103
      %v3105 = vpop.f32.mrb[0].mxu0
      %v3106 = vpop.f32.mrb[0].mxu0
      %v3107 = vadd.f32 0.0, %v3106
      %v3108 = vpop.f32.mrb[0].mxu0
      %3109 = vmatprep.mubr.bf16.mxu0 0
      %3110 = vmatmul.mubr.bf16.gmra.mrb[0].mxu0 %v2976
      %v3111 = vpop.f32.mrb[0].mxu0
      %v3112 = vadd.f32 0.0, %v3111
      %v3113 = vpop.f32.mrb[0].mxu0
      %v3114 = vpop.f32.mrb[0].mxu0
      %v3115 = vadd.f32 0.0, %v3114
      %v3116 = vpop.f32.mrb[0].mxu0
      %3117 = vmatprep.mubr.bf16.mxu0 0
      %3118 = vmatmul.mubr.bf16.gmra.mrb[0].mxu0 %v2979
      %v3119 = vpop.f32.mrb[0].mxu0
      %v3120 = vadd.f32 0.0, %v3119
      %v3121 = vpop.f32.mrb[0].mxu0
      %v3122 = vpop.f32.mrb[0].mxu0
      %v3123 = vadd.f32 0.0, %v3122
      %v3124 = vpop.f32.mrb[0].mxu0
      %3125 = vmatprep.mubr.bf16.mxu0 0
      %3126 = vmatmul.mubr.bf16.gmra.mrb[0].mxu0 %v2982
      %v3127 = vpop.f32.mrb[0].mxu0
      %v3128 = vadd.f32 0.0, %v3127
      %v3129 = vpop.f32.mrb[0].mxu0
      %v3130 = vpop.f32.mrb[0].mxu0
      %v3131 = vadd.f32 0.0, %v3130
      %v3132 = vpop.f32.mrb[0].mxu0
      %3133 = vmatprep.mubr.bf16.mxu0 0
      %3134 = vmatmul.mubr.bf16.gmra.mrb[0].mxu0 %v2985
      %v3135 = vpop.f32.mrb[0].mxu0
      %v3136 = vadd.f32 0.0, %v3135
      %v3137 = vpop.f32.mrb[0].mxu0
      %v3138 = vpop.f32.mrb[0].mxu0
      %v3139 = vadd.f32 0.0, %v3138
      %v3140 = vpop.f32.mrb[0].mxu0
      %3141 = vmatprep.mubr.bf16.mxu0 0
      %3142 = vmatmul.mubr.bf16.gmra.mrb[0].mxu0 %v2988
      %v3143 = vpop.f32.mrb[0].mxu0
      %v3144 = vadd.f32 0.0, %v3143
      %v3145 = vpop.f32.mrb[0].mxu0
      %v3146 = vpop.f32.mrb[0].mxu0
      %v3147 = vadd.f32 0.0, %v3146
      %v3148 = vpop.f32.mrb[0].mxu0
      %3149 = vmatprep.mubr.bf16.mxu0 0
      %3150 = vmatmul.mubr.bf16.gmra.mrb[0].mxu0 %v2991
      %v3151 = vpop.f32.mrb[0].mxu0
      %v3152 = vadd.f32 0.0, %v3151
      %v3153 = vpop.f32.mrb[0].mxu0
      %v3154 = vpop.f32.mrb[0].mxu0
      %v3155 = vadd.f32 0.0, %v3154
      %v3156 = vpop.f32.mrb[0].mxu0
      %3157 = vmatprep.mubr.bf16.mxu0 0
      %3158 = vmatmul.mubr.bf16.gmra.mrb[0].mxu0 %v2994
      %v3159 = vpop.f32.mrb[0].mxu0
      %v3160 = vadd.f32 0.0, %v3159
      %v3161 = vpop.f32.mrb[0].mxu0
      %v3162 = vpop.f32.mrb[0].mxu0
      %v3163 = vadd.f32 0.0, %v3162
      %v3164 = vpop.f32.mrb[0].mxu0
      %3165 = vmatprep.mubr.bf16.mxu0 0
      %3166 = vmatmul.mubr.bf16.gmra.mrb[0].mxu0 %v2997
      %v3167 = vpop.f32.mrb[0].mxu0
      %v3168 = vadd.f32 0.0, %v3167
      %v3169 = vpop.f32.mrb[0].mxu0
      %v3170 = vpop.f32.mrb[0].mxu0
      %v3171 = vadd.f32 0.0, %v3170
      %v3172 = vpop.f32.mrb[0].mxu0
      %3173 = vmatprep.mubr.bf16.mxu0 0
      %3174 = vmatmul.mubr.bf16.gmra.mrb[0].mxu0 %v3000
      %v3175 = vpop.f32.mrb[0].mxu0
      %v3176 = vadd.f32 0.0, %v3175
      %v3177 = vpop.f32.mrb[0].mxu0
      %v3178 = vpop.f32.mrb[0].mxu0
      %v3179 = vadd.f32 0.0, %v3178
      %v3180 = vpop.f32.mrb[0].mxu0
      %3181 = vdwg.mxu0
      %v3182 = vadd.f32 %v2611, %v3040
      %v3183 = vadd.f32 %v2612, %v3043
      %v3184 = vadd.f32 %v2613, %v3048
      %v3185 = vadd.f32 %v2614, %v3051
      %v3186 = vadd.f32 %v2615, %v3056
      %v3187 = vadd.f32 %v2616, %v3059
      %v3188 = vadd.f32 %v2617, %v3064
      %v3189 = vadd.f32 %v2618, %v3067
      %v3190 = vadd.f32 %v2619, %v3072
      %v3191 = vadd.f32 %v2620, %v3075
      %v3192 = vadd.f32 %v2621, %v3080
      %v3193 = vadd.f32 %v2622, %v3083
      %v3194 = vadd.f32 %v2623, %v3088
      %v3195 = vadd.f32 %v2624, %v3091
      %v3196 = vadd.f32 %v2625, %v3096
      %v3197 = vadd.f32 %v2626, %v3099
      %v3198 = vadd.f32 %v2627, %v3104
      %v3199 = vadd.f32 %v2628, %v3107
      %v3200 = vadd.f32 %v2629, %v3112
      %v3201 = vadd.f32 %v2630, %v3115
      %v3202 = vadd.f32 %v2631, %v3120
      %v3203 = vadd.f32 %v2632, %v3123
      %v3204 = vadd.f32 %v2633, %v3128
      %v3205 = vadd.f32 %v2634, %v3131
      %v3206 = vadd.f32 %v2635, %v3136
      %v3207 = vadd.f32 %v2636, %v3139
      %v3208 = vadd.f32 %v2637, %v3144
      %v3209 = vadd.f32 %v2638, %v3147
      %v3210 = vadd.f32 %v2639, %v3152
      %v3211 = vadd.f32 %v2640, %v3155
      %v3212 = vadd.f32 %v2641, %v3160
      %v3213 = vadd.f32 %v2642, %v3163
      %v3214 = vadd.f32 %v2643, %v3168
      %v3215 = vadd.f32 %v2644, %v3171
      %v3216 = vadd.f32 %v2645, %v3176
      %v3217 = vadd.f32 %v2646, %v3179
      %v3218 = vld [vmem:[%s219 + $0x18] sm:$0x8]
      %v3219 = vld [vmem:[%s1 + $0xc] sm:$0xc]
      %v3221 = vunpack.c.l.b16 %v3218
      %v3222 = vpack.c.b16 %v2723, %v3221
      %vm3223 = vcmask 1044480
      %v3224 = vrot.slane %v3222, 3
      %v3225 = vrot.slane %v2760, 3
      %v3226 = vsel %vm3223, %v3224, %v3225
      %v3227 = vrot.slane %v2761, 3
      %v3228 = vsel %vm3223, %v3225, %v3227
      %v3229 = vrot.slane %v2762, 3
      %v3230 = vsel %vm3223, %v3227, %v3229
      %v3231 = vrot.slane %v2763, 3
      %v3232 = vsel %vm3223, %v3229, %v3231
      %v3233 = vrot.slane %v2764, 3
      %v3234 = vsel %vm3223, %v3231, %v3233
      %v3235 = vrot.slane %v2765, 3
      %v3236 = vsel %vm3223, %v3233, %v3235
      %v3237 = vrot.slane %v2766, 3
      %v3238 = vsel %vm3223, %v3235, %v3237
      %v3239 = vrot.slane %v2767, 3
      %v3240 = vsel %vm3223, %v3237, %v3239
      %v3241 = vrot.slane %v2768, 3
      %v3242 = vsel %vm3223, %v3239, %v3241
      %v3243 = vrot.slane %v2769, 3
      %v3244 = vsel %vm3223, %v3241, %v3243
      %v3245 = vrot.slane %v2770, 3
      %v3246 = vsel %vm3223, %v3243, %v3245
      %v3247 = vrot.slane %v2771, 3
      %v3248 = vsel %vm3223, %v3245, %v3247
      %v3249 = vrot.slane %v2772, 3
      %v3250 = vsel %vm3223, %v3247, %v3249
      %v3251 = vrot.slane %v2773, 3
      %v3252 = vsel %vm3223, %v3249, %v3251
      %v3253 = vrot.slane %v2774, 3
      %v3254 = vsel %vm3223, %v3251, %v3253
      %v3255 = vrot.slane %v2775, 3
      %v3256 = vsel %vm3223, %v3253, %v3255
      %v3257 = vrot.slane %v2776, 3
      %v3258 = vsel %vm3223, %v3255, %v3257
      %v3259 = vrot.slane %v2777, 3
      %v3260 = vsel %vm3223, %v3257, %v3259
      %v3262 = vunpack.c.l.b16 %v3219
      %v3263 = vpack.c.b16 %v3262, %v3262
      %v3264 = vrot.slane %v3263, 2
      %v3266 = vsel %vm411, %v3226, 0
      %v3269 = vsel %vm411, %v3228, 0
      %v3272 = vsel %vm411, %v3230, 0
      %v3275 = vsel %vm411, %v3232, 0
      %v3278 = vsel %vm411, %v3234, 0
      %v3281 = vsel %vm411, %v3236, 0
      %v3284 = vsel %vm411, %v3238, 0
      %v3287 = vsel %vm411, %v3240, 0
      %v3290 = vsel %vm411, %v3242, 0
      %v3293 = vsel %vm411, %v3244, 0
      %v3296 = vsel %vm411, %v3246, 0
      %v3299 = vsel %vm411, %v3248, 0
      %v3302 = vsel %vm411, %v3250, 0
      %v3305 = vsel %vm411, %v3252, 0
      %v3308 = vsel %vm411, %v3254, 0
      %v3311 = vsel %vm411, %v3256, 0
      %v3314 = vsel %vm411, %v3258, 0
      %v3317 = vsel %vm411, %v3260, 0
      %v3320 = vsel %vm466, %v3264, 0
      %3322 = vmatprep.subr.bf16.mxu0 0
      %3323 = vmatpush1.bf16.msra.mxu0 %v3320
      %3324 = vmatprep.subr.bf16.mxu0 0
      %3325 = vmatpush1.bf16.msra.mxu0 0
      %3326 = vmatprep.subr.bf16.mxu0 0
      %3327 = vmatpush1.bf16.msra.mxu0 0
      %3328 = vmatprep.subr.bf16.mxu0 0
      %3329 = vmatpush1.bf16.msra.mxu0 0
      %3330 = vmatprep.subr.bf16.mxu0 0
      %3331 = vmatpush1.bf16.msra.mxu0 0
      %3332 = vmatprep.subr.bf16.mxu0 0
      %3333 = vmatpush1.bf16.msra.mxu0 0
      %3334 = vmatprep.subr.bf16.mxu0 0
      %3335 = vmatpush1.bf16.msra.mxu0 0
      %3336 = vmatprep.subr.bf16.mxu0 0
      %3337 = vmatpush1.bf16.msra.mxu0 0
      %3338 = vmatprep.subr.bf16.mxu0 0
      %3339 = vmatpush1.bf16.msra.mxu0 0
      %3340 = vmatprep.subr.bf16.mxu0 0
      %3341 = vmatpush1.bf16.msra.mxu0 0
      %3342 = vmatprep.subr.bf16.mxu0 0
      %3343 = vmatpush1.bf16.msra.mxu0 0
      %3344 = vmatprep.subr.bf16.mxu0 0
      %3345 = vmatpush1.bf16.msra.mxu0 0
      %3346 = vmatprep.subr.bf16.mxu0 0
      %3347 = vmatpush1.bf16.msra.mxu0 0
      %3348 = vmatprep.subr.bf16.mxu0 0
      %3349 = vmatpush1.bf16.msra.mxu0 0
      %3350 = vmatprep.subr.bf16.mxu0 0
      %3351 = vmatpush1.bf16.msra.mxu0 0
      %3352 = vmatprep.subr.bf16.mxu0 0
      %3353 = vmatpush1.bf16.msra.mxu0 0
      %3354 = vmatprep.mubr.bf16.mxu0 0
      %3355 = vmatmul.mubr.bf16.gmra.mrb[0].mxu0 %v3266
      %v3356 = vpop.f32.mrb[0].mxu0
      %v3357 = vadd.f32 0.0, %v3356
      %v3358 = vpop.f32.mrb[0].mxu0
      %v3359 = vpop.f32.mrb[0].mxu0
      %v3360 = vadd.f32 0.0, %v3359
      %v3361 = vpop.f32.mrb[0].mxu0
      %3362 = vmatprep.mubr.bf16.mxu0 0
      %3363 = vmatmul.mubr.bf16.gmra.mrb[0].mxu0 %v3269
      %v3364 = vpop.f32.mrb[0].mxu0
      %v3365 = vadd.f32 0.0, %v3364
      %v3366 = vpop.f32.mrb[0].mxu0
      %v3367 = vpop.f32.mrb[0].mxu0
      %v3368 = vadd.f32 0.0, %v3367
      %v3369 = vpop.f32.mrb[0].mxu0
      %3370 = vmatprep.mubr.bf16.mxu0 0
      %3371 = vmatmul.mubr.bf16.gmra.mrb[0].mxu0 %v3272
      %v3372 = vpop.f32.mrb[0].mxu0
      %v3373 = vadd.f32 0.0, %v3372
      %v3374 = vpop.f32.mrb[0].mxu0
      %v3375 = vpop.f32.mrb[0].mxu0
      %v3376 = vadd.f32 0.0, %v3375
      %v3377 = vpop.f32.mrb[0].mxu0
      %3378 = vmatprep.mubr.bf16.mxu0 0
      %3379 = vmatmul.mubr.bf16.gmra.mrb[0].mxu0 %v3275
      %v3380 = vpop.f32.mrb[0].mxu0
      %v3381 = vadd.f32 0.0, %v3380
      %v3382 = vpop.f32.mrb[0].mxu0
      %v3383 = vpop.f32.mrb[0].mxu0
      %v3384 = vadd.f32 0.0, %v3383
      %v3385 = vpop.f32.mrb[0].mxu0
      %3386 = vmatprep.mubr.bf16.mxu0 0
      %3387 = vmatmul.mubr.bf16.gmra.mrb[0].mxu0 %v3278
      %v3388 = vpop.f32.mrb[0].mxu0
      %v3389 = vadd.f32 0.0, %v3388
      %v3390 = vpop.f32.mrb[0].mxu0
      %v3391 = vpop.f32.mrb[0].mxu0
      %v3392 = vadd.f32 0.0, %v3391
      %v3393 = vpop.f32.mrb[0].mxu0
      %3394 = vmatprep.mubr.bf16.mxu0 0
      %3395 = vmatmul.mubr.bf16.gmra.mrb[0].mxu0 %v3281
      %v3396 = vpop.f32.mrb[0].mxu0
      %v3397 = vadd.f32 0.0, %v3396
      %v3398 = vpop.f32.mrb[0].mxu0
      %v3399 = vpop.f32.mrb[0].mxu0
      %v3400 = vadd.f32 0.0, %v3399
      %v3401 = vpop.f32.mrb[0].mxu0
      %3402 = vmatprep.mubr.bf16.mxu0 0
      %3403 = vmatmul.mubr.bf16.gmra.mrb[0].mxu0 %v3284
      %v3404 = vpop.f32.mrb[0].mxu0
      %v3405 = vadd.f32 0.0, %v3404
      %v3406 = vpop.f32.mrb[0].mxu0
      %v3407 = vpop.f32.mrb[0].mxu0
      %v3408 = vadd.f32 0.0, %v3407
      %v3409 = vpop.f32.mrb[0].mxu0
      %3410 = vmatprep.mubr.bf16.mxu0 0
      %3411 = vmatmul.mubr.bf16.gmra.mrb[0].mxu0 %v3287
      %v3412 = vpop.f32.mrb[0].mxu0
      %v3413 = vadd.f32 0.0, %v3412
      %v3414 = vpop.f32.mrb[0].mxu0
      %v3415 = vpop.f32.mrb[0].mxu0
      %v3416 = vadd.f32 0.0, %v3415
      %v3417 = vpop.f32.mrb[0].mxu0
      %3418 = vmatprep.mubr.bf16.mxu0 0
      %3419 = vmatmul.mubr.bf16.gmra.mrb[0].mxu0 %v3290
      %v3420 = vpop.f32.mrb[0].mxu0
      %v3421 = vadd.f32 0.0, %v3420
      %v3422 = vpop.f32.mrb[0].mxu0
      %v3423 = vpop.f32.mrb[0].mxu0
      %v3424 = vadd.f32 0.0, %v3423
      %v3425 = vpop.f32.mrb[0].mxu0
      %3426 = vmatprep.mubr.bf16.mxu0 0
      %3427 = vmatmul.mubr.bf16.gmra.mrb[0].mxu0 %v3293
      %v3428 = vpop.f32.mrb[0].mxu0
      %v3429 = vadd.f32 0.0, %v3428
      %v3430 = vpop.f32.mrb[0].mxu0
      %v3431 = vpop.f32.mrb[0].mxu0
      %v3432 = vadd.f32 0.0, %v3431
      %v3433 = vpop.f32.mrb[0].mxu0
      %3434 = vmatprep.mubr.bf16.mxu0 0
      %3435 = vmatmul.mubr.bf16.gmra.mrb[0].mxu0 %v3296
      %v3436 = vpop.f32.mrb[0].mxu0
      %v3437 = vadd.f32 0.0, %v3436
      %v3438 = vpop.f32.mrb[0].mxu0
      %v3439 = vpop.f32.mrb[0].mxu0
      %v3440 = vadd.f32 0.0, %v3439
      %v3441 = vpop.f32.mrb[0].mxu0
      %3442 = vmatprep.mubr.bf16.mxu0 0
      %3443 = vmatmul.mubr.bf16.gmra.mrb[0].mxu0 %v3299
      %v3444 = vpop.f32.mrb[0].mxu0
      %v3445 = vadd.f32 0.0, %v3444
      %v3446 = vpop.f32.mrb[0].mxu0
      %v3447 = vpop.f32.mrb[0].mxu0
      %v3448 = vadd.f32 0.0, %v3447
      %v3449 = vpop.f32.mrb[0].mxu0
      %3450 = vmatprep.mubr.bf16.mxu0 0
      %3451 = vmatmul.mubr.bf16.gmra.mrb[0].mxu0 %v3302
      %v3452 = vpop.f32.mrb[0].mxu0
      %v3453 = vadd.f32 0.0, %v3452
      %v3454 = vpop.f32.mrb[0].mxu0
      %v3455 = vpop.f32.mrb[0].mxu0
      %v3456 = vadd.f32 0.0, %v3455
      %v3457 = vpop.f32.mrb[0].mxu0
      %3458 = vmatprep.mubr.bf16.mxu0 0
      %3459 = vmatmul.mubr.bf16.gmra.mrb[0].mxu0 %v3305
      %v3460 = vpop.f32.mrb[0].mxu0
      %v3461 = vadd.f32 0.0, %v3460
      %v3462 = vpop.f32.mrb[0].mxu0
      %v3463 = vpop.f32.mrb[0].mxu0
      %v3464 = vadd.f32 0.0, %v3463
      %v3465 = vpop.f32.mrb[0].mxu0
      %3466 = vmatprep.mubr.bf16.mxu0 0
      %3467 = vmatmul.mubr.bf16.gmra.mrb[0].mxu0 %v3308
      %v3468 = vpop.f32.mrb[0].mxu0
      %v3469 = vadd.f32 0.0, %v3468
      %v3470 = vpop.f32.mrb[0].mxu0
      %v3471 = vpop.f32.mrb[0].mxu0
      %v3472 = vadd.f32 0.0, %v3471
      %v3473 = vpop.f32.mrb[0].mxu0
      %3474 = vmatprep.mubr.bf16.mxu0 0
      %3475 = vmatmul.mubr.bf16.gmra.mrb[0].mxu0 %v3311
      %v3476 = vpop.f32.mrb[0].mxu0
      %v3477 = vadd.f32 0.0, %v3476
      %v3478 = vpop.f32.mrb[0].mxu0
      %v3479 = vpop.f32.mrb[0].mxu0
      %v3480 = vadd.f32 0.0, %v3479
      %v3481 = vpop.f32.mrb[0].mxu0
      %3482 = vmatprep.mubr.bf16.mxu0 0
      %3483 = vmatmul.mubr.bf16.gmra.mrb[0].mxu0 %v3314
      %v3484 = vpop.f32.mrb[0].mxu0
      %v3485 = vadd.f32 0.0, %v3484
      %v3486 = vpop.f32.mrb[0].mxu0
      %v3487 = vpop.f32.mrb[0].mxu0
      %v3488 = vadd.f32 0.0, %v3487
      %v3489 = vpop.f32.mrb[0].mxu0
      %3490 = vmatprep.mubr.bf16.mxu0 0
      %3491 = vmatmul.mubr.bf16.gmra.mrb[0].mxu0 %v3317
      %v3492 = vpop.f32.mrb[0].mxu0
      %v3493 = vadd.f32 0.0, %v3492
      %v3494 = vpop.f32.mrb[0].mxu0
      %v3495 = vpop.f32.mrb[0].mxu0
      %v3496 = vadd.f32 0.0, %v3495
      %v3497 = vpop.f32.mrb[0].mxu0
      %3498 = vdwg.mxu0
      %v3499 = vadd.f32 %v3182, %v3357
      %v3500 = vadd.f32 %v3183, %v3360
      %v3501 = vadd.f32 %v3184, %v3365
      %v3502 = vadd.f32 %v3185, %v3368
      %v3503 = vadd.f32 %v3186, %v3373
      %v3504 = vadd.f32 %v3187, %v3376
      %v3505 = vadd.f32 %v3188, %v3381
      %v3506 = vadd.f32 %v3189, %v3384
      %v3507 = vadd.f32 %v3190, %v3389
      %v3508 = vadd.f32 %v3191, %v3392
      %v3509 = vadd.f32 %v3192, %v3397
      %v3510 = vadd.f32 %v3193, %v3400
      %v3511 = vadd.f32 %v3194, %v3405
      %v3512 = vadd.f32 %v3195, %v3408
      %v3513 = vadd.f32 %v3196, %v3413
      %v3514 = vadd.f32 %v3197, %v3416
      %v3515 = vadd.f32 %v3198, %v3421
      %v3516 = vadd.f32 %v3199, %v3424
      %v3517 = vadd.f32 %v3200, %v3429
      %v3518 = vadd.f32 %v3201, %v3432
      %v3519 = vadd.f32 %v3202, %v3437
      %v3520 = vadd.f32 %v3203, %v3440
      %v3521 = vadd.f32 %v3204, %v3445
      %v3522 = vadd.f32 %v3205, %v3448
      %v3523 = vadd.f32 %v3206, %v3453
      %v3524 = vadd.f32 %v3207, %v3456
      %v3525 = vadd.f32 %v3208, %v3461
      %v3526 = vadd.f32 %v3209, %v3464
      %v3527 = vadd.f32 %v3210, %v3469
      %v3528 = vadd.f32 %v3211, %v3472
      %v3529 = vadd.f32 %v3212, %v3477
      %v3530 = vadd.f32 %v3213, %v3480
      %v3531 = vadd.f32 %v3214, %v3485
      %v3532 = vadd.f32 %v3215, %v3488
      %v3533 = vadd.f32 %v3216, %v3493
      %v3534 = vadd.f32 %v3217, %v3496
      %v3535 = vld [vmem:[%s219 + $0xa8] sm:$0xf]
      %v3536 = vld [vmem:[%s1 + $0x10] sm:$0x3]
      %v3538 = vunpack.c.l.b16 %v3535
      %v3539 = vpack.c.b16 %v3538, %v3538
      %vm3540 = vsmask.f32 4352
      %v3542 = vshrl.u32 %v3222, 16
      %v3544 = vrot.slane %v3542, 3
      %v3545 = vshll.u32 %v3222, 16
      %v3547 = vrot.slane %v3545, 4
      %v3548 = vor.u32 %v3544, %v3547
      %v3549 = vrot.slane %v2787, 3
      %v3550 = vrot.slane %v2790, 4
      %v3551 = vor.u32 %v3549, %v3550
      %v3552 = vsel %vm3540, %v3548, %v3551
      %v3553 = vrot.slane %v2796, 3
      %v3554 = vrot.slane %v2799, 4
      %v3555 = vor.u32 %v3553, %v3554
      %v3556 = vsel %vm3540, %v3551, %v3555
      %v3557 = vrot.slane %v2805, 3
      %v3558 = vrot.slane %v2808, 4
      %v3559 = vor.u32 %v3557, %v3558
      %v3560 = vsel %vm3540, %v3555, %v3559
      %v3561 = vrot.slane %v2814, 3
      %v3562 = vrot.slane %v2817, 4
      %v3563 = vor.u32 %v3561, %v3562
      %v3564 = vsel %vm3540, %v3559, %v3563
      %v3565 = vrot.slane %v2823, 3
      %v3566 = vrot.slane %v2826, 4
      %v3567 = vor.u32 %v3565, %v3566
      %v3568 = vsel %vm3540, %v3563, %v3567
      %v3569 = vrot.slane %v2832, 3
      %v3570 = vrot.slane %v2835, 4
      %v3571 = vor.u32 %v3569, %v3570
      %v3572 = vsel %vm3540, %v3567, %v3571
      %v3573 = vrot.slane %v2841, 3
      %v3574 = vrot.slane %v2844, 4
      %v3575 = vor.u32 %v3573, %v3574
      %v3576 = vsel %vm3540, %v3571, %v3575
      %v3577 = vrot.slane %v2850, 3
      %v3578 = vrot.slane %v2853, 4
      %v3579 = vor.u32 %v3577, %v3578
      %v3580 = vsel %vm3540, %v3575, %v3579
      %v3581 = vrot.slane %v2859, 3
      %v3582 = vrot.slane %v2862, 4
      %v3583 = vor.u32 %v3581, %v3582
      %v3584 = vsel %vm3540, %v3579, %v3583
      %v3585 = vrot.slane %v2868, 3
      %v3586 = vrot.slane %v2871, 4
      %v3587 = vor.u32 %v3585, %v3586
      %v3588 = vsel %vm3540, %v3583, %v3587
      %v3589 = vrot.slane %v2877, 3
      %v3590 = vrot.slane %v2880, 4
      %v3591 = vor.u32 %v3589, %v3590
      %v3592 = vsel %vm3540, %v3587, %v3591
      %v3593 = vrot.slane %v2886, 3
      %v3594 = vrot.slane %v2889, 4
      %v3595 = vor.u32 %v3593, %v3594
      %v3596 = vsel %vm3540, %v3591, %v3595
      %v3597 = vrot.slane %v2895, 3
      %v3598 = vrot.slane %v2898, 4
      %v3599 = vor.u32 %v3597, %v3598
      %v3600 = vsel %vm3540, %v3595, %v3599
      %v3601 = vrot.slane %v2904, 3
      %v3602 = vrot.slane %v2907, 4
      %v3603 = vor.u32 %v3601, %v3602
      %v3604 = vsel %vm3540, %v3599, %v3603
      %v3605 = vrot.slane %v2913, 3
      %v3606 = vrot.slane %v2916, 4
      %v3607 = vor.u32 %v3605, %v3606
      %v3608 = vsel %vm3540, %v3603, %v3607
      %v3609 = vrot.slane %v2922, 3
      %v3610 = vrot.slane %v2925, 4
      %v3611 = vor.u32 %v3609, %v3610
      %v3612 = vsel %vm3540, %v3607, %v3611
      %v3613 = vrot.slane %v2931, 3
      %v3614 = vrot.slane %v2934, 4
      %v3615 = vor.u32 %v3613, %v3614
      %v3616 = vsel %vm3540, %v3611, %v3615
      %v3618 = vshrl.u32 %v3539, 16
      %v3620 = vrot.slane %v3618, 3
      %v3621 = vshll.u32 %v3539, 16
      %v3623 = vrot.slane %v3621, 4
      %v3624 = vor.u32 %v3620, %v3623
      %v3625 = vsel %vm3540, %v3615, %v3624
      %v3627 = vsel %vm411, %v3552, 0
      %v3630 = vsel %vm411, %v3556, 0
      %v3633 = vsel %vm411, %v3560, 0
      %v3636 = vsel %vm411, %v3564, 0
      %v3639 = vsel %vm411, %v3568, 0
      %v3642 = vsel %vm411, %v3572, 0
      %v3645 = vsel %vm411, %v3576, 0
      %v3648 = vsel %vm411, %v3580, 0
      %v3651 = vsel %vm411, %v3584, 0
      %v3654 = vsel %vm411, %v3588, 0
      %v3657 = vsel %vm411, %v3592, 0
      %v3660 = vsel %vm411, %v3596, 0
      %v3663 = vsel %vm411, %v3600, 0
      %v3666 = vsel %vm411, %v3604, 0
      %v3669 = vsel %vm411, %v3608, 0
      %v3672 = vsel %vm411, %v3612, 0
      %v3675 = vsel %vm411, %v3616, 0
      %v3678 = vsel %vm411, %v3625, 0
      %v3681 = vsel %vm466, %v3536, 0
      %3683 = vmatprep.subr.bf16.mxu0 0
      %3684 = vmatpush1.bf16.msra.mxu0 %v3681
      %3685 = vmatprep.subr.bf16.mxu0 0
      %3686 = vmatpush1.bf16.msra.mxu0 0
      %3687 = vmatprep.subr.bf16.mxu0 0
      %3688 = vmatpush1.bf16.msra.mxu0 0
      %3689 = vmatprep.subr.bf16.mxu0 0
      %3690 = vmatpush1.bf16.msra.mxu0 0
      %3691 = vmatprep.subr.bf16.mxu0 0
      %3692 = vmatpush1.bf16.msra.mxu0 0
      %3693 = vmatprep.subr.bf16.mxu0 0
      %3694 = vmatpush1.bf16.msra.mxu0 0
      %3695 = vmatprep.subr.bf16.mxu0 0
      %3696 = vmatpush1.bf16.msra.mxu0 0
      %3697 = vmatprep.subr.bf16.mxu0 0
      %3698 = vmatpush1.bf16.msra.mxu0 0
      %3699 = vmatprep.subr.bf16.mxu0 0
      %3700 = vmatpush1.bf16.msra.mxu0 0
      %3701 = vmatprep.subr.bf16.mxu0 0
      %3702 = vmatpush1.bf16.msra.mxu0 0
      %3703 = vmatprep.subr.bf16.mxu0 0
      %3704 = vmatpush1.bf16.msra.mxu0 0
      %3705 = vmatprep.subr.bf16.mxu0 0
      %3706 = vmatpush1.bf16.msra.mxu0 0
      %3707 = vmatprep.subr.bf16.mxu0 0
      %3708 = vmatpush1.bf16.msra.mxu0 0
      %3709 = vmatprep.subr.bf16.mxu0 0
      %3710 = vmatpush1.bf16.msra.mxu0 0
      %3711 = vmatprep.subr.bf16.mxu0 0
      %3712 = vmatpush1.bf16.msra.mxu0 0
      %3713 = vmatprep.subr.bf16.mxu0 0
      %3714 = vmatpush1.bf16.msra.mxu0 0
      %3715 = vmatprep.mubr.bf16.mxu0 0
      %3716 = vmatmul.mubr.bf16.gmra.mrb[0].mxu0 %v3627
      %v3717 = vpop.f32.mrb[0].mxu0
      %v3718 = vadd.f32 0.0, %v3717
      %v3719 = vpop.f32.mrb[0].mxu0
      %v3720 = vpop.f32.mrb[0].mxu0
      %v3721 = vadd.f32 0.0, %v3720
      %v3722 = vpop.f32.mrb[0].mxu0
      %3723 = vmatprep.mubr.bf16.mxu0 0
      %3724 = vmatmul.mubr.bf16.gmra.mrb[0].mxu0 %v3630
      %v3725 = vpop.f32.mrb[0].mxu0
      %v3726 = vadd.f32 0.0, %v3725
      %v3727 = vpop.f32.mrb[0].mxu0
      %v3728 = vpop.f32.mrb[0].mxu0
      %v3729 = vadd.f32 0.0, %v3728
      %v3730 = vpop.f32.mrb[0].mxu0
      %3731 = vmatprep.mubr.bf16.mxu0 0
      %3732 = vmatmul.mubr.bf16.gmra.mrb[0].mxu0 %v3633
      %v3733 = vpop.f32.mrb[0].mxu0
      %v3734 = vadd.f32 0.0, %v3733
      %v3735 = vpop.f32.mrb[0].mxu0
      %v3736 = vpop.f32.mrb[0].mxu0
      %v3737 = vadd.f32 0.0, %v3736
      %v3738 = vpop.f32.mrb[0].mxu0
      %3739 = vmatprep.mubr.bf16.mxu0 0
      %3740 = vmatmul.mubr.bf16.gmra.mrb[0].mxu0 %v3636
      %v3741 = vpop.f32.mrb[0].mxu0
      %v3742 = vadd.f32 0.0, %v3741
      %v3743 = vpop.f32.mrb[0].mxu0
      %v3744 = vpop.f32.mrb[0].mxu0
      %v3745 = vadd.f32 0.0, %v3744
      %v3746 = vpop.f32.mrb[0].mxu0
      %3747 = vmatprep.mubr.bf16.mxu0 0
      %3748 = vmatmul.mubr.bf16.gmra.mrb[0].mxu0 %v3639
      %v3749 = vpop.f32.mrb[0].mxu0
      %v3750 = vadd.f32 0.0, %v3749
      %v3751 = vpop.f32.mrb[0].mxu0
      %v3752 = vpop.f32.mrb[0].mxu0
      %v3753 = vadd.f32 0.0, %v3752
      %v3754 = vpop.f32.mrb[0].mxu0
      %3755 = vmatprep.mubr.bf16.mxu0 0
      %3756 = vmatmul.mubr.bf16.gmra.mrb[0].mxu0 %v3642
      %v3757 = vpop.f32.mrb[0].mxu0
      %v3758 = vadd.f32 0.0, %v3757
      %v3759 = vpop.f32.mrb[0].mxu0
      %v3760 = vpop.f32.mrb[0].mxu0
      %v3761 = vadd.f32 0.0, %v3760
      %v3762 = vpop.f32.mrb[0].mxu0
      %3763 = vmatprep.mubr.bf16.mxu0 0
      %3764 = vmatmul.mubr.bf16.gmra.mrb[0].mxu0 %v3645
      %v3765 = vpop.f32.mrb[0].mxu0
      %v3766 = vadd.f32 0.0, %v3765
      %v3767 = vpop.f32.mrb[0].mxu0
      %v3768 = vpop.f32.mrb[0].mxu0
      %v3769 = vadd.f32 0.0, %v3768
      %v3770 = vpop.f32.mrb[0].mxu0
      %3771 = vmatprep.mubr.bf16.mxu0 0
      %3772 = vmatmul.mubr.bf16.gmra.mrb[0].mxu0 %v3648
      %v3773 = vpop.f32.mrb[0].mxu0
      %v3774 = vadd.f32 0.0, %v3773
      %v3775 = vpop.f32.mrb[0].mxu0
      %v3776 = vpop.f32.mrb[0].mxu0
      %v3777 = vadd.f32 0.0, %v3776
      %v3778 = vpop.f32.mrb[0].mxu0
      %3779 = vmatprep.mubr.bf16.mxu0 0
      %3780 = vmatmul.mubr.bf16.gmra.mrb[0].mxu0 %v3651
      %v3781 = vpop.f32.mrb[0].mxu0
      %v3782 = vadd.f32 0.0, %v3781
      %v3783 = vpop.f32.mrb[0].mxu0
      %v3784 = vpop.f32.mrb[0].mxu0
      %v3785 = vadd.f32 0.0, %v3784
      %v3786 = vpop.f32.mrb[0].mxu0
      %3787 = vmatprep.mubr.bf16.mxu0 0
      %3788 = vmatmul.mubr.bf16.gmra.mrb[0].mxu0 %v3654
      %v3789 = vpop.f32.mrb[0].mxu0
      %v3790 = vadd.f32 0.0, %v3789
      %v3791 = vpop.f32.mrb[0].mxu0
      %v3792 = vpop.f32.mrb[0].mxu0
      %v3793 = vadd.f32 0.0, %v3792
      %v3794 = vpop.f32.mrb[0].mxu0
      %3795 = vmatprep.mubr.bf16.mxu0 0
      %3796 = vmatmul.mubr.bf16.gmra.mrb[0].mxu0 %v3657
      %v3797 = vpop.f32.mrb[0].mxu0
      %v3798 = vadd.f32 0.0, %v3797
      %v3799 = vpop.f32.mrb[0].mxu0
      %v3800 = vpop.f32.mrb[0].mxu0
      %v3801 = vadd.f32 0.0, %v3800
      %v3802 = vpop.f32.mrb[0].mxu0
      %3803 = vmatprep.mubr.bf16.mxu0 0
      %3804 = vmatmul.mubr.bf16.gmra.mrb[0].mxu0 %v3660
      %v3805 = vpop.f32.mrb[0].mxu0
      %v3806 = vadd.f32 0.0, %v3805
      %v3807 = vpop.f32.mrb[0].mxu0
      %v3808 = vpop.f32.mrb[0].mxu0
      %v3809 = vadd.f32 0.0, %v3808
      %v3810 = vpop.f32.mrb[0].mxu0
      %3811 = vmatprep.mubr.bf16.mxu0 0
      %3812 = vmatmul.mubr.bf16.gmra.mrb[0].mxu0 %v3663
      %v3813 = vpop.f32.mrb[0].mxu0
      %v3814 = vadd.f32 0.0, %v3813
      %v3815 = vpop.f32.mrb[0].mxu0
      %v3816 = vpop.f32.mrb[0].mxu0
      %v3817 = vadd.f32 0.0, %v3816
      %v3818 = vpop.f32.mrb[0].mxu0
      %3819 = vmatprep.mubr.bf16.mxu0 0
      %3820 = vmatmul.mubr.bf16.gmra.mrb[0].mxu0 %v3666
      %v3821 = vpop.f32.mrb[0].mxu0
      %v3822 = vadd.f32 0.0, %v3821
      %v3823 = vpop.f32.mrb[0].mxu0
      %v3824 = vpop.f32.mrb[0].mxu0
      %v3825 = vadd.f32 0.0, %v3824
      %v3826 = vpop.f32.mrb[0].mxu0
      %3827 = vmatprep.mubr.bf16.mxu0 0
      %3828 = vmatmul.mubr.bf16.gmra.mrb[0].mxu0 %v3669
      %v3829 = vpop.f32.mrb[0].mxu0
      %v3830 = vadd.f32 0.0, %v3829
      %v3831 = vpop.f32.mrb[0].mxu0
      %v3832 = vpop.f32.mrb[0].mxu0
      %v3833 = vadd.f32 0.0, %v3832
      %v3834 = vpop.f32.mrb[0].mxu0
      %3835 = vmatprep.mubr.bf16.mxu0 0
      %3836 = vmatmul.mubr.bf16.gmra.mrb[0].mxu0 %v3672
      %v3837 = vpop.f32.mrb[0].mxu0
      %v3838 = vadd.f32 0.0, %v3837
      %v3839 = vpop.f32.mrb[0].mxu0
      %v3840 = vpop.f32.mrb[0].mxu0
      %v3841 = vadd.f32 0.0, %v3840
      %v3842 = vpop.f32.mrb[0].mxu0
      %3843 = vmatprep.mubr.bf16.mxu0 0
      %3844 = vmatmul.mubr.bf16.gmra.mrb[0].mxu0 %v3675
      %v3845 = vpop.f32.mrb[0].mxu0
      %v3846 = vadd.f32 0.0, %v3845
      %v3847 = vpop.f32.mrb[0].mxu0
      %v3848 = vpop.f32.mrb[0].mxu0
      %v3849 = vadd.f32 0.0, %v3848
      %v3850 = vpop.f32.mrb[0].mxu0
      %3851 = vmatprep.mubr.bf16.mxu0 0
      %3852 = vmatmul.mubr.bf16.gmra.mrb[0].mxu0 %v3678
      %v3853 = vpop.f32.mrb[0].mxu0
      %v3854 = vadd.f32 0.0, %v3853
      %v3855 = vpop.f32.mrb[0].mxu0
      %v3856 = vpop.f32.mrb[0].mxu0
      %v3857 = vadd.f32 0.0, %v3856
      %v3858 = vpop.f32.mrb[0].mxu0
      %3859 = vdwg.mxu0
      %v3860 = vadd.f32 %v3499, %v3718
      %v3861 = vadd.f32 %v3500, %v3721
      %v3862 = vadd.f32 %v3501, %v3726
      %v3863 = vadd.f32 %v3502, %v3729
      %v3864 = vadd.f32 %v3503, %v3734
      %v3865 = vadd.f32 %v3504, %v3737
      %v3866 = vadd.f32 %v3505, %v3742
      %v3867 = vadd.f32 %v3506, %v3745
      %v3868 = vadd.f32 %v3507, %v3750
      %v3869 = vadd.f32 %v3508, %v3753
      %v3870 = vadd.f32 %v3509, %v3758
      %v3871 = vadd.f32 %v3510, %v3761
      %v3872 = vadd.f32 %v3511, %v3766
      %v3873 = vadd.f32 %v3512, %v3769
      %v3874 = vadd.f32 %v3513, %v3774
      %v3875 = vadd.f32 %v3514, %v3777
      %v3876 = vadd.f32 %v3515, %v3782
      %v3877 = vadd.f32 %v3516, %v3785
      %v3878 = vadd.f32 %v3517, %v3790
      %v3879 = vadd.f32 %v3518, %v3793
      %v3880 = vadd.f32 %v3519, %v3798
      %v3881 = vadd.f32 %v3520, %v3801
      %v3882 = vadd.f32 %v3521, %v3806
      %v3883 = vadd.f32 %v3522, %v3809
      %v3884 = vadd.f32 %v3523, %v3814
      %v3885 = vadd.f32 %v3524, %v3817
      %v3886 = vadd.f32 %v3525, %v3822
      %v3887 = vadd.f32 %v3526, %v3825
      %v3888 = vadd.f32 %v3527, %v3830
      %v3889 = vadd.f32 %v3528, %v3833
      %v3890 = vadd.f32 %v3529, %v3838
      %v3891 = vadd.f32 %v3530, %v3841
      %v3892 = vadd.f32 %v3531, %v3846
      %v3893 = vadd.f32 %v3532, %v3849
      %v3894 = vadd.f32 %v3533, %v3854
      %v3895 = vadd.f32 %v3534, %v3857
      %v3896 = vld [vmem:[%s224] sm:$0x1]
      %v3897 = vlaneseq
      %v3898 = vshrl.u32 %v3897, 7
      %v3899 = vsub.s32 0, %v3898
      %v3900 = vrot.slane %v3896, %v3899
      %v3901 = vmul.f32 %v3860, %v3900
      %v3902 = vmul.f32 %v3861, %v3900
      %v3903 = vmul.f32 %v3862, %v3900
      %v3904 = vmul.f32 %v3863, %v3900
      %v3905 = vmul.f32 %v3864, %v3900
      %v3906 = vmul.f32 %v3865, %v3900
      %v3907 = vmul.f32 %v3866, %v3900
      %v3908 = vmul.f32 %v3867, %v3900
      %v3909 = vmul.f32 %v3868, %v3900
      %v3910 = vmul.f32 %v3869, %v3900
      %v3911 = vmul.f32 %v3870, %v3900
      %v3912 = vmul.f32 %v3871, %v3900
      %v3913 = vmul.f32 %v3872, %v3900
      %v3914 = vmul.f32 %v3873, %v3900
      %v3915 = vmul.f32 %v3874, %v3900
      %v3916 = vmul.f32 %v3875, %v3900
      %v3917 = vmul.f32 %v3876, %v3900
      %v3918 = vmul.f32 %v3877, %v3900
      %v3919 = vmul.f32 %v3878, %v3900
      %v3920 = vmul.f32 %v3879, %v3900
      %v3921 = vmul.f32 %v3880, %v3900
      %v3922 = vmul.f32 %v3881, %v3900
      %v3923 = vmul.f32 %v3882, %v3900
      %v3924 = vmul.f32 %v3883, %v3900
      %v3925 = vmul.f32 %v3884, %v3900
      %v3926 = vmul.f32 %v3885, %v3900
      %v3927 = vmul.f32 %v3886, %v3900
      %v3928 = vmul.f32 %v3887, %v3900
      %v3929 = vmul.f32 %v3888, %v3900
      %v3930 = vmul.f32 %v3889, %v3900
      %v3931 = vmul.f32 %v3890, %v3900
      %v3932 = vmul.f32 %v3891, %v3900
      %v3933 = vmul.f32 %v3892, %v3900
      %v3934 = vmul.f32 %v3893, %v3900
      %v3935 = vmul.f32 %v3894, %v3900
      %v3936 = vmul.f32 %v3895, %v3900
      %v3937 = vld [vmem:[%s228] sm:$0x1]
      %v3938 = vlaneseq
      %v3939 = vshrl.u32 %v3938, 7
      %v3940 = vsub.s32 0, %v3939
      %v3941 = vrot.slane %v3937, %v3940
      %v3942 = vadd.f32 %v3901, %v3941
      %v3943 = vadd.f32 %v3902, %v3941
      %v3944 = vadd.f32 %v3903, %v3941
      %v3945 = vadd.f32 %v3904, %v3941
      %v3946 = vadd.f32 %v3905, %v3941
      %v3947 = vadd.f32 %v3906, %v3941
      %v3948 = vadd.f32 %v3907, %v3941
      %v3949 = vadd.f32 %v3908, %v3941
      %v3950 = vadd.f32 %v3909, %v3941
      %v3951 = vadd.f32 %v3910, %v3941
      %v3952 = vadd.f32 %v3911, %v3941
      %v3953 = vadd.f32 %v3912, %v3941
      %v3954 = vadd.f32 %v3913, %v3941
      %v3955 = vadd.f32 %v3914, %v3941
      %v3956 = vadd.f32 %v3915, %v3941
      %v3957 = vadd.f32 %v3916, %v3941
      %v3958 = vadd.f32 %v3917, %v3941
      %v3959 = vadd.f32 %v3918, %v3941
      %v3960 = vadd.f32 %v3919, %v3941
      %v3961 = vadd.f32 %v3920, %v3941
      %v3962 = vadd.f32 %v3921, %v3941
      %v3963 = vadd.f32 %v3922, %v3941
      %v3964 = vadd.f32 %v3923, %v3941
      %v3965 = vadd.f32 %v3924, %v3941
      %v3966 = vadd.f32 %v3925, %v3941
      %v3967 = vadd.f32 %v3926, %v3941
      %v3968 = vadd.f32 %v3927, %v3941
      %v3969 = vadd.f32 %v3928, %v3941
      %v3970 = vadd.f32 %v3929, %v3941
      %v3971 = vadd.f32 %v3930, %v3941
      %v3972 = vadd.f32 %v3931, %v3941
      %v3973 = vadd.f32 %v3932, %v3941
      %v3974 = vadd.f32 %v3933, %v3941
      %v3975 = vadd.f32 %v3934, %v3941
      %v3976 = vadd.f32 %v3935, %v3941
      %v3977 = vadd.f32 %v3936, %v3941
      %vm3978 = vcmp.gt.f32.partialorder %v3942, 0.0
      %vm3979 = vcmp.gt.f32.partialorder %v3943, 0.0
      %vm3980 = vcmp.gt.f32.partialorder %v3944, 0.0
      %vm3981 = vcmp.gt.f32.partialorder %v3945, 0.0
      %vm3982 = vcmp.gt.f32.partialorder %v3946, 0.0
      %vm3983 = vcmp.gt.f32.partialorder %v3947, 0.0
      %vm3984 = vcmp.gt.f32.partialorder %v3948, 0.0
      %vm3985 = vcmp.gt.f32.partialorder %v3949, 0.0
      %vm3986 = vcmp.gt.f32.partialorder %v3950, 0.0
      %vm3987 = vcmp.gt.f32.partialorder %v3951, 0.0
      %vm3988 = vcmp.gt.f32.partialorder %v3952, 0.0
      %vm3989 = vcmp.gt.f32.partialorder %v3953, 0.0
      %vm3990 = vcmp.gt.f32.partialorder %v3954, 0.0
      %vm3991 = vcmp.gt.f32.partialorder %v3955, 0.0
      %vm3992 = vcmp.gt.f32.partialorder %v3956, 0.0
      %vm3993 = vcmp.gt.f32.partialorder %v3957, 0.0
      %vm3994 = vcmp.gt.f32.partialorder %v3958, 0.0
      %vm3995 = vcmp.gt.f32.partialorder %v3959, 0.0
      %vm3996 = vcmp.gt.f32.partialorder %v3960, 0.0
      %vm3997 = vcmp.gt.f32.partialorder %v3961, 0.0
      %vm3998 = vcmp.gt.f32.partialorder %v3962, 0.0
      %vm3999 = vcmp.gt.f32.partialorder %v3963, 0.0
      %vm4000 = vcmp.gt.f32.partialorder %v3964, 0.0
      %vm4001 = vcmp.gt.f32.partialorder %v3965, 0.0
      %vm4002 = vcmp.gt.f32.partialorder %v3966, 0.0
      %vm4003 = vcmp.gt.f32.partialorder %v3967, 0.0
      %vm4004 = vcmp.gt.f32.partialorder %v3968, 0.0
      %vm4005 = vcmp.gt.f32.partialorder %v3969, 0.0
      %vm4006 = vcmp.gt.f32.partialorder %v3970, 0.0
      %vm4007 = vcmp.gt.f32.partialorder %v3971, 0.0
      %vm4008 = vcmp.gt.f32.partialorder %v3972, 0.0
      %vm4009 = vcmp.gt.f32.partialorder %v3973, 0.0
      %vm4010 = vcmp.gt.f32.partialorder %v3974, 0.0
      %vm4011 = vcmp.gt.f32.partialorder %v3975, 0.0
      %vm4012 = vcmp.gt.f32.partialorder %v3976, 0.0
      %vm4013 = vcmp.gt.f32.partialorder %v3977, 0.0
      %v4014 = vmul.f32 %v3942, 0.2
      %v4015 = vmul.f32 %v3943, 0.2
      %v4016 = vmul.f32 %v3944, 0.2
      %v4017 = vmul.f32 %v3945, 0.2
      %v4018 = vmul.f32 %v3946, 0.2
      %v4019 = vmul.f32 %v3947, 0.2
      %v4020 = vmul.f32 %v3948, 0.2
      %v4021 = vmul.f32 %v3949, 0.2
      %v4022 = vmul.f32 %v3950, 0.2
      %v4023 = vmul.f32 %v3951, 0.2
      %v4024 = vmul.f32 %v3952, 0.2
      %v4025 = vmul.f32 %v3953, 0.2
      %v4026 = vmul.f32 %v3954, 0.2
      %v4027 = vmul.f32 %v3955, 0.2
      %v4028 = vmul.f32 %v3956, 0.2
      %v4029 = vmul.f32 %v3957, 0.2
      %v4030 = vmul.f32 %v3958, 0.2
      %v4031 = vmul.f32 %v3959, 0.2
      %v4032 = vmul.f32 %v3960, 0.2
      %v4033 = vmul.f32 %v3961, 0.2
      %v4034 = vmul.f32 %v3962, 0.2
      %v4035 = vmul.f32 %v3963, 0.2
      %v4036 = vmul.f32 %v3964, 0.2
      %v4037 = vmul.f32 %v3965, 0.2
      %v4038 = vmul.f32 %v3966, 0.2
      %v4039 = vmul.f32 %v3967, 0.2
      %v4040 = vmul.f32 %v3968, 0.2
      %v4041 = vmul.f32 %v3969, 0.2
      %v4042 = vmul.f32 %v3970, 0.2
      %v4043 = vmul.f32 %v3971, 0.2
      %v4044 = vmul.f32 %v3972, 0.2
      %v4045 = vmul.f32 %v3973, 0.2
      %v4046 = vmul.f32 %v3974, 0.2
      %v4047 = vmul.f32 %v3975, 0.2
      %v4048 = vmul.f32 %v3976, 0.2
      %v4049 = vmul.f32 %v3977, 0.2
      %v4050 = vsel %vm3978, %v3942, %v4014
      %v4051 = vsel %vm3979, %v3943, %v4015
      %v4052 = vsel %vm3980, %v3944, %v4016
      %v4053 = vsel %vm3981, %v3945, %v4017
      %v4054 = vsel %vm3982, %v3946, %v4018
      %v4055 = vsel %vm3983, %v3947, %v4019
      %v4056 = vsel %vm3984, %v3948, %v4020
      %v4057 = vsel %vm3985, %v3949, %v4021
      %v4058 = vsel %vm3986, %v3950, %v4022
      %v4059 = vsel %vm3987, %v3951, %v4023
      %v4060 = vsel %vm3988, %v3952, %v4024
      %v4061 = vsel %vm3989, %v3953, %v4025
      %v4062 = vsel %vm3990, %v3954, %v4026
      %v4063 = vsel %vm3991, %v3955, %v4027
      %v4064 = vsel %vm3992, %v3956, %v4028
      %v4065 = vsel %vm3993, %v3957, %v4029
      %v4066 = vsel %vm3994, %v3958, %v4030
      %v4067 = vsel %vm3995, %v3959, %v4031
      %v4068 = vsel %vm3996, %v3960, %v4032
      %v4069 = vsel %vm3997, %v3961, %v4033
      %v4070 = vsel %vm3998, %v3962, %v4034
      %v4071 = vsel %vm3999, %v3963, %v4035
      %v4072 = vsel %vm4000, %v3964, %v4036
      %v4073 = vsel %vm4001, %v3965, %v4037
      %v4074 = vsel %vm4002, %v3966, %v4038
      %v4075 = vsel %vm4003, %v3967, %v4039
      %v4076 = vsel %vm4004, %v3968, %v4040
      %v4077 = vsel %vm4005, %v3969, %v4041
      %v4078 = vsel %vm4006, %v3970, %v4042
      %v4079 = vsel %vm4007, %v3971, %v4043
      %v4080 = vsel %vm4008, %v3972, %v4044
      %v4081 = vsel %vm4009, %v3973, %v4045
      %v4082 = vsel %vm4010, %v3974, %v4046
      %v4083 = vsel %vm4011, %v3975, %v4047
      %v4084 = vsel %vm4012, %v3976, %v4048
      %v4085 = vsel %vm4013, %v3977, %v4049
      %4086 = vst [vmem:[%s233] sm:$0xff] %v4050
      %4087 = vst [vmem:[%s233 + $0x8] sm:$0xff] %v4051
      %4088 = vst [vmem:[%s233 + $0x10] sm:$0xff] %v4052
      %4089 = vst [vmem:[%s233 + $0x18] sm:$0xff] %v4053
      %4090 = vst [vmem:[%s233 + $0x20] sm:$0xff] %v4054
      %4091 = vst [vmem:[%s233 + $0x28] sm:$0xff] %v4055
      %4092 = vst [vmem:[%s233 + $0x30] sm:$0xff] %v4056
      %4093 = vst [vmem:[%s233 + $0x38] sm:$0xff] %v4057
      %4094 = vst [vmem:[%s233 + $0x40] sm:$0xff] %v4058
      %4095 = vst [vmem:[%s233 + $0x48] sm:$0xff] %v4059
      %4096 = vst [vmem:[%s233 + $0x50] sm:$0xff] %v4060
      %4097 = vst [vmem:[%s233 + $0x58] sm:$0xff] %v4061
      %4098 = vst [vmem:[%s233 + $0x60] sm:$0xff] %v4062
      %4099 = vst [vmem:[%s233 + $0x68] sm:$0xff] %v4063
      %4100 = vst [vmem:[%s233 + $0x70] sm:$0xff] %v4064
      %4101 = vst [vmem:[%s233 + $0x78] sm:$0xff] %v4065
      %4102 = vst [vmem:[%s233 + $0x80] sm:$0xff] %v4066
      %4103 = vst [vmem:[%s233 + $0x88] sm:$0xff] %v4067
      %4104 = vst [vmem:[%s233 + $0x90] sm:$0xff] %v4068
      %4105 = vst [vmem:[%s233 + $0x98] sm:$0xff] %v4069
      %4106 = vst [vmem:[%s233 + $0xa0] sm:$0xff] %v4070
      %4107 = vst [vmem:[%s233 + $0xa8] sm:$0xff] %v4071
      %4108 = vst [vmem:[%s233 + $0xb0] sm:$0xff] %v4072
      %4109 = vst [vmem:[%s233 + $0xb8] sm:$0xff] %v4073
      %4110 = vst [vmem:[%s233 + $0xc0] sm:$0xff] %v4074
      %4111 = vst [vmem:[%s233 + $0xc8] sm:$0xff] %v4075
      %4112 = vst [vmem:[%s233 + $0xd0] sm:$0xff] %v4076
      %4113 = vst [vmem:[%s233 + $0xd8] sm:$0xff] %v4077
      %4114 = vst [vmem:[%s233 + $0xe0] sm:$0xff] %v4078
      %4115 = vst [vmem:[%s233 + $0xe8] sm:$0xff] %v4079
      %4116 = vst [vmem:[%s233 + $0xf0] sm:$0xff] %v4080
      %4117 = vst [vmem:[%s233 + $0xf8] sm:$0xff] %v4081
      %4118 = vst [vmem:[%s233 + $0x100] sm:$0xff] %v4082
      %4119 = vst [vmem:[%s233 + $0x108] sm:$0xff] %v4083
      %4120 = vst [vmem:[%s233 + $0x110] sm:$0xff] %v4084
      %4121 = vst [vmem:[%s233 + $0x118] sm:$0xff] %v4085
      %s4122 = smul.u32 36, %s15
      %p4123 = scmp.lt.s32.totalorder %s4122, 71
      %s4124 = scalar_select %p4123, %s4122, 71
      %s4125 = smul.addr %s4124, 8
      %s4126 = scalar_lea.vmem %s4, %s4125
      // Predicated region
      $region37: #{midlayer_forward.3} parent=35 // pred_check
        %p4127 = pneg %p132
      $region38: #{midlayer_forward.3} parent=35 // pred_check_branch
        %4129 = sbr.rel (%p4127) target = $region40
      $region39: #{midlayer_forward.3} parent=35 // pred_region
        %s4130 = smul.u32 36, %s15
      $region40: #{midlayer_forward.3} parent=35 // pred_fallthru
        _
    $region36: #{midlayer_forward.3} parent=5 // pred_fallthru
      _
    %p4131 = scmp.le.s32.totalorder 2, %s10
    // Predicated region
    $region41: #{midlayer_forward.3} parent=5 // pred_check
      %p4132 = pneg %p4131
    $region42: #{midlayer_forward.3} parent=5 // pred_check_branch
      %4134 = sbr.rel (%p4132) target = $region44
    $region43: #{midlayer_forward.3} parent=5 // pred_region
      %s4135 = ssub.s32 %s10, 2
      // Predicated region
      $region45: #{midlayer_forward.3} parent=43 // pred_check
        %p4136 = pneg %p138
      $region46: #{midlayer_forward.3} parent=43 // pred_check_branch
        %4138 = sbr.rel (%p4136) target = $region48
      $region47: #{midlayer_forward.3} parent=43 // pred_region
        %s4139 = smul.u32 36, %s16
        %p4140 = scmp.lt.s32.totalorder %s4139, 71
        %s4141 = scalar_select %p4140, %s4139, 71
        %s4142 = smul.addr %s4141, 8
        %s4143 = scalar_lea.vmem %s4, %s4142
      $region48: #{midlayer_forward.3} parent=43 // pred_fallthru
        _
    $region44: #{midlayer_forward.3} parent=5 // pred_fallthru
      _
  $region6: #{midlayer_forward.3} parent=0 // loop_footer
    %s14 = sadd.s32 1, %s10
  $region7: #{midlayer_forward.3} parent=0 // loop_footer_branch
    %9 = sbr.rel target = $region3
  $region8: #{midlayer_forward.3} parent=0 // loop_exit
    _

</llo_original>
